<compile_context>
chip_gen: v6e
topology: v6e:2x2x1
jax: 0.10.0
libtpu: 0.0.40
codegen_flags: <defaults>
</compile_context>

<pallas_src>
import functools
import math

import jax
import jax.numpy as jnp
import numpy as np
from jax.experimental import pallas as pl
from jax.experimental.pallas import tpu as pltpu


def _round_up(x, m):
    return (x + m - 1) // m * m


def _seesaw_kernel(flags_ref, cls_ref, side_ref, pmask_ref, logcum_ref, out_ref,
                   *, num_classes, p, q, eps, loss_weight):
    i = pl.program_id(0)
    N, C = cls_ref.shape

    x = cls_ref[...].astype(jnp.float32)                      # (N, C)
    side = side_ref[...]                                      # (N, 8) f32 per-row data
    pos = side[:, 0:1]                                        # valid positive label
    nov = side[:, 1:2]                                        # label == -1 ("novel")
    wpos = side[:, 2:3]                                       # label_weight * pos
    log_cum_lab = side[:, 3:4]                                # log(clamp(cum[label], 1))
    x_lab = side[:, 4:5]                                      # raw logit at label
    poi = side[:, 5:6]                                        # label is a poisonous class

    ones_c = jnp.ones((C, 1), jnp.float32)                    # MXU row-sum helper
    hp = jax.lax.Precision.HIGHEST

    # shared softmax statistics: single exp pass; lane-sum offloaded to the idle MXU
    x_max = jnp.max(x, axis=1, keepdims=True)                 # (N,1)
    log_denom = jnp.log(jnp.dot(jnp.exp(x - x_max), ones_c,
                                preferred_element_type=jnp.float32, precision=hp))

    # seesaw log-weights folded into the logits; log_w == 0 at the label lane, so no
    # (1 - onehot) masking pass is needed.
    log_w = None
    if p > 0:
        log_w = p * jnp.minimum(logcum_ref[...] - log_cum_lab, 0.0)        # mitigation
    if q > 0:
        log_eps = jnp.float32(math.log(eps))
        log_self = jnp.maximum(x_lab - x_max - log_denom, log_eps)         # log clamp(self,eps)
        comp = q * jnp.maximum((x - x_max - log_denom) - log_self, 0.0)    # compensation
        log_w = comp if log_w is None else log_w + comp
    x_mod = x if log_w is None else x + log_w

    xm_max = jnp.max(x_mod, axis=1, keepdims=True)
    lse = jnp.log(jnp.dot(jnp.exp(x_mod - xm_max), ones_c,
                          preferred_element_type=jnp.float32, precision=hp)) + xm_max
    ce = lse - x_lab                                          # x_mod[label] == x[label]

    # "novel" rows (label == -1): uniform-target CE, closed form  lse(x) - mean(x)
    x_mean = jnp.dot(x, ones_c, preferred_element_type=jnp.float32, precision=hp) * (1.0 / C)
    nov_per = (log_denom + x_max) - x_mean

    loss_row = ce * wpos + nov_per * nov                      # (N,1)
    cnt_row = pos + nov                                       # (N,1)
    loss_sum = jnp.sum(loss_row, axis=0, keepdims=True) * loss_weight      # (1,1)
    cnt_sum = jnp.sum(cnt_row, axis=0, keepdims=True)                      # (1,1)

    # lane-dense per-tile partial: lane 0 = loss sum, lane 1 = row count
    lane = jax.lax.broadcasted_iota(jnp.int32, (1, 8, 128), 2)
    out_ref[...] = jnp.where(lane == 0, loss_sum, jnp.where(lane == 1, cnt_sum, 0.0))

    # ---- poisonous-vs-edible top-5 margin (module enables only for C > 1000) ----
    if num_classes > 1000:
        @pl.when(flags_ref[i] != 0)        # skip the XLU-heavy block for tiles w/o poisonous rows
        def _poison():
            pmask = pmask_ref[...]                            # (1, C), 1.0 = poisonous class
            NEG = jnp.float32(-1e30)

            def top5_mean(vals):
                # mask-all-ties variant: identical to torch.topk unless exact float ties
                # occur among the real logits (measure-zero for continuous scores).
                cur = vals
                total = jnp.zeros((N, 1), jnp.float32)
                for _ in range(5):
                    m = jnp.max(cur, axis=1, keepdims=True)
                    total = total + m
                    cur = jnp.where(cur == m, NEG, cur)
                return total * 0.2

            poi_top = top5_mean(jnp.where(pmask > 0.0, x, NEG))
            edi_top = top5_mean(jnp.where(pmask > 0.0, NEG, x))
            d = edi_top - poi_top
            # -log_softmax([poison, edible])[:, 0] == softplus(edible - poison), stable form
            poi_per = jnp.maximum(d, 0.0) + jnp.log(1.0 + jnp.exp(-jnp.abs(d)))
            psum = jnp.sum(poi_per * poi, axis=0, keepdims=True) * loss_weight
            pcnt = jnp.sum(poi, axis=0, keepdims=True)
            out_ref[...] += jnp.where(lane == 0, psum, jnp.where(lane == 1, pcnt, 0.0))


@functools.partial(jax.jit, static_argnames=("p", "q", "eps", "loss_weight"))
def _seesaw_loss_impl(cls_score, labels, label_weights, cum_samples, pmask,
                      *, p, q, eps, loss_weight):
    N, C = cls_score.shape
    itemsize = cls_score.dtype.itemsize

    # ---- tile sizing from a VMEM working-set budget (generation-safe) ----
    # per-row bytes: double-buffered input tile + ~8 live f32 (tile, C) temporaries
    bytes_per_row = C * (2 * itemsize + 8 * 4)
    budget = 20 * 1024 * 1024              # fits v7x (64 MiB phys) and v5e/v6e comfortably
    max_tile = max(8, min(1024, (budget // bytes_per_row) // 8 * 8))
    tile_n = min(max_tile, _round_up(N, 8))
    n_pad = _round_up(N, tile_n)
    num_tiles = n_pad // tile_n
    pad = n_pad - N

    labels = labels.astype(jnp.int32)
    cls_p = jnp.pad(cls_score, ((0, pad), (0, 0)))            # keep caller dtype (bf16 OK)
    lab_p = jnp.pad(labels, (0, pad), constant_values=-2)     # -2: neither pos nor novel
    w_p = jnp.pad(label_weights.astype(jnp.float32), (0, pad))

    valid = jnp.logical_and(lab_p >= 0, lab_p < C)
    lab_clip = jnp.clip(lab_p, 0, C - 1)

    # complete full-batch histogram BEFORE any tile computes its seesaw weights
    hist = jnp.zeros((C,), jnp.float32).at[lab_clip].add(valid.astype(jnp.float32))
    cum = cum_samples[:C] + hist
    log_cum_flat = jnp.log(jnp.maximum(cum, 1.0))
    log_cum = log_cum_flat.reshape(1, C)

    # per-row side data, gathered once in the wrapper (removes all onehot work in-kernel)
    pos_f = valid.astype(jnp.float32)
    nov_f = (lab_p == -1).astype(jnp.float32)
    poi_f = jnp.where(valid, pmask[0, lab_clip], 0.0)
    log_cum_lab = log_cum_flat[lab_clip] * pos_f
    x_lab = jnp.take_along_axis(cls_p, lab_clip[:, None], axis=1)[:, 0].astype(jnp.float32)
    zeros = jnp.zeros_like(pos_f)
    side = jnp.stack([pos_f, nov_f, w_p * pos_f, log_cum_lab, x_lab, poi_f,
                      zeros, zeros], axis=1)                  # (n_pad, 8) f32

    # per-tile "contains a poisonous label" flag (scalar-prefetched; gates the top-5 block)
    flags = (jnp.sum(poi_f.reshape(num_tiles, tile_n), axis=1) > 0.0).astype(jnp.int32)

    kernel = functools.partial(
        _seesaw_kernel, num_classes=C, p=float(p), q=float(q),
        eps=float(eps), loss_weight=float(loss_weight))

    grid_spec = pltpu.PrefetchScalarGridSpec(
        num_scalar_prefetch=1,
        grid=(num_tiles,),
        in_specs=[
            pl.BlockSpec((tile_n, C), lambda i, fl: (i, 0)),      # cls_score tile
            pl.BlockSpec((tile_n, 8), lambda i, fl: (i, 0)),      # merged per-row side data
            pl.BlockSpec((1, C), lambda i, fl: (0, 0)),           # poison mask (resident)
            pl.BlockSpec((1, C), lambda i, fl: (0, 0)),           # log(clamp(cum,1)) (resident)
        ],
        out_specs=pl.BlockSpec((1, 8, 128), lambda i, fl: (i, 0, 0)),  # per-tile partials
    )

    vmem_limit = int(min(48 * 1024 * 1024,
                         max(16 * 1024 * 1024, tile_n * bytes_per_row * 3 // 2)))

    partials = pl.pallas_call(
        kernel,
        grid_spec=grid_spec,
        out_shape=jax.ShapeDtypeStruct((num_tiles, 8, 128), jnp.float32),
        compiler_params=pltpu.CompilerParams(
            dimension_semantics=("parallel",),    # independent per-tile partials -> both v7x TCs
            vmem_limit_bytes=vmem_limit),
    )(flags, cls_p, side, pmask, log_cum)

    loss_sum = jnp.sum(partials[:, 0, 0])
    cnt = jnp.sum(partials[:, 0, 1])
    # TODO(synk): torch returns NaN (0/0) when the batch has no valid rows; we return 0.0.
    loss = jnp.where(cnt > 0.0, loss_sum / jnp.maximum(cnt, 1.0), 0.0)

    # overflow bin (index C) collects label == -1 (torch negative indexing) -- buffer glue
    last = cum_samples[C] + jnp.sum(
        jnp.logical_or(labels == -1, labels == C).astype(jnp.float32))
    new_cum = jnp.concatenate([cum, last.reshape(1)])
    return loss, new_cum


def seesaw_loss(cls_score, labels, label_weights=None, cum_samples=None,
                poison_species=None, *, p=0.8, q=2.0, eps=1e-2, loss_weight=1.0):
    """Forward pass of SeesawLoss (reduction='mean', avg_factor=None, return_dict=False).

    Returns (loss_scalar, updated_cum_samples[num_classes + 1])."""
    cls_score = jnp.asarray(cls_score)            # keep caller dtype (bf16 stays bf16 on the DMA)
    N, C = cls_score.shape
    labels = jnp.asarray(labels, jnp.int32)
    if label_weights is None:
        label_weights = jnp.ones((N,), jnp.float32)
    else:
        label_weights = jnp.asarray(label_weights, jnp.float32).reshape(N)
    if cum_samples is None:
        cum_samples = jnp.zeros((C + 1,), jnp.float32)   # register_buffer init: zeros
    cum_samples = jnp.asarray(cum_samples, jnp.float32)

    pmask = jnp.zeros((1, C), jnp.float32)
    if poison_species is not None and C > 1000:
        pmask = pmask.at[0, jnp.asarray(poison_species, jnp.int32)].set(1.0)

    return _seesaw_loss_impl(cls_score, labels, label_weights, cum_samples, pmask,
                             p=float(p), q=float(q), eps=float(eps),
                             loss_weight=float(loss_weight))


# ---------------- pure-numpy reference (direct translation of the torch code) ----------------
def _reference(cls_score, labels, poison_species, p, q, eps, loss_weight):
    cls = np.asarray(cls_score, np.float64)
    lab = np.asarray(labels, np.int64)
    N, C = cls.shape
    pos = (lab < C) & (lab >= 0)
    nov = lab == -1
    poi = np.isin(lab, np.asarray(poison_species)) if C > 1000 else np.zeros(1, bool)

    cum = np.zeros(C + 1)
    for u in np.unique(lab):
        cum[u] += np.sum(lab == u)
    lw = np.ones(N)

    def log_softmax(z):
        z = z - z.max(axis=1, keepdims=True)
        return z - np.log(np.exp(z).sum(axis=1, keepdims=True))

    if pos.sum() > 0:
        cs, lb, w = cls[pos], lab[pos], lw[pos]
        cc = cum[:C]
        onehot = np.eye(C)[lb]
        seesaw = np.ones_like(cs)
        if p > 0:
            ratio = np.clip(cc, 1, None)[None, :] / np.clip(cc, 1, None)[:, None]
            idx = (ratio < 1.0).astype(np.float64)
            seesaw = seesaw * (ratio ** p * idx + (1 - idx))[lb]
        if q > 0:
            sm = np.exp(log_softmax(cs))
            self_s = sm[np.arange(len(cs)), lb]
            smat = sm / np.clip(self_s, eps, None)[:, None]
            idx = (smat > 1.0).astype(np.float64)
            seesaw = seesaw * (smat ** q * idx + (1 - idx))
        cs2 = cs + np.log(seesaw) * (1 - onehot)
        ce = -log_softmax(cs2)[np.arange(len(cs)), lb]
        loss_pos = loss_weight * np.mean(ce * w)
    else:
        loss_pos = 0.0
    if nov.sum() > 0:
        csn = cls[nov]
        loss_nov = loss_weight * (-(np.ones_like(csn) / C * log_softmax(csn)).sum(1)).mean()
    else:
        loss_nov = 0.0
    if poi.sum() > 0:
        pm = np.zeros(C); pm[np.asarray(poison_species)] = 1
        top_p = np.sort(cls[poi][:, pm == 1], axis=1)[:, -5:].mean(1)
        top_e = np.sort(cls[poi][:, pm != 1], axis=1)[:, -5:].mean(1)
        per = -log_softmax(np.stack([top_p, top_e], axis=1))[:, 0]
        loss_poi = loss_weight * per.mean()
    else:
        loss_poi = 0.0
    return (loss_pos * pos.sum() + loss_nov * nov.sum() + loss_poi * poi.sum()) / (
        pos.sum() + nov.sum() + poi.sum())


if __name__ == "__main__":
    N, C = 16, 1152          # C > 1000 so the poisonous-species branch is active
    p, q, eps, loss_weight = 0.8, 2.0, 1e-2, 1.0

    # deterministic synthetic poisonous-species set (replaces the CSV)
    poison_species = np.arange(C)[np.arange(C) % 7 == 3]

    key = jax.random.PRNGKey(0)
    k1, k2, k3 = jax.random.split(key, 3)
    cls_score = jax.random.normal(k1, (N, C), jnp.float32)

    # case 1: mix of positive, novel (-1) and poisonous labels
    labels = jax.random.randint(k2, (N,), 0, C)
    labels = labels.at[0].set(-1).at[1].set(-1)      # "novel" samples
    labels = labels.at[2].set(3).at[3].set(10)       # poisonous-class samples (3, 10 % 7 == 3)
    labels = labels.astype(jnp.int32)

    loss, new_cum = seesaw_loss(cls_score, labels, None, None, poison_species,
                                p=p, q=q, eps=eps, loss_weight=loss_weight)
    loss = jax.block_until_ready(loss)
    jax.block_until_ready(new_cum)
    ref = _reference(np.asarray(cls_score), np.asarray(labels), poison_species,
                     p, q, eps, loss_weight)
    assert np.isfinite(float(loss))
    assert np.allclose(float(loss), ref, rtol=2e-3, atol=1e-5), (float(loss), ref)

    # case 2: no poisonous labels -> per-tile flag gates (skips) the top-5 block
    base = jax.random.randint(k3, (N,), 0, C)
    labels2 = jnp.where(base % 7 == 3, (base + 1) % C, base)
    labels2 = labels2.at[0].set(-1).astype(jnp.int32)
    loss2, _ = seesaw_loss(cls_score, labels2, None, None, poison_species,
                           p=p, q=q, eps=eps, loss_weight=loss_weight)
    loss2 = jax.block_until_ready(loss2)
    ref2 = _reference(np.asarray(cls_score), np.asarray(labels2), poison_species,
                      p, q, eps, loss_weight)
    assert np.allclose(float(loss2), ref2, rtol=2e-3, atol=1e-5), (float(loss2), ref2)

    print("KERNEL_OK")
</pallas_src>

<mosaic_0001>
module attributes {stable_mosaic.version = 11 : i64} {
  func.func private @main(%arg0: i32) attributes {dimension_semantics = [#tpu.dimension_semantics<core_parallel>], iteration_bounds = array<i64: 2>, tpu.core_type = #tpu.core_type<sc_scalar_subcore>, window_params = []} {
    return
  }
}

module attributes {stable_mosaic.version = 11 : i64} {
  func.func private @main(%arg0: i32) attributes {dimension_semantics = [#tpu.dimension_semantics<core_parallel>], iteration_bounds = array<i64: 2>, tpu.core_type = #tpu.core_type<sc_scalar_subcore>, window_params = []} {
    return
  }
}

module attributes {stable_mosaic.version = 11 : i64} {
  func.func @_seesaw_kernel(%arg0: i32, %arg1: memref<1xi32, #tpu.memory_space<smem>>, %arg2: memref<16x1152xf32, #tpu.memory_space<vmem>>, %arg3: memref<16x8xf32, #tpu.memory_space<vmem>>, %arg4: memref<1x1152xf32, #tpu.memory_space<vmem>>, %arg5: memref<1x1152xf32, #tpu.memory_space<vmem>>, %arg6: memref<1x8x128xf32, #tpu.memory_space<vmem>>) attributes {dimension_semantics = [#tpu.dimension_semantics<parallel>], iteration_bounds = array<i64: 1>, scalar_prefetch = 1 : i64, scratch_operands = 0 : i64, tpu.core_type = #tpu.core_type<tc>, window_params = [{transform_indices = @transform_0, window_bounds = array<i64: 16, 1152>}, {transform_indices = @transform_1, window_bounds = array<i64: 16, 8>}, {pipeline_mode = #tpu.pipeline_mode<synchronous>, transform_indices = @transform_2, window_bounds = array<i64: 1, 1152>}, {pipeline_mode = #tpu.pipeline_mode<synchronous>, transform_indices = @transform_3, window_bounds = array<i64: 1, 1152>}, {transform_indices = @transform_4, window_bounds = array<i64: 1, 8, 128>}]} {
    %c0 = arith.constant 0 : index
    %c0_0 = arith.constant 0 : index
    %0 = vector.load %arg2[%c0, %c0_0] : memref<16x1152xf32, #tpu.memory_space<vmem>>, vector<16x1152xf32>
    %c0_1 = arith.constant 0 : index
    %c0_2 = arith.constant 0 : index
    %1 = vector.load %arg3[%c0_1, %c0_2] : memref<16x8xf32, #tpu.memory_space<vmem>>, vector<16x8xf32>
    %2 = vector.extract_strided_slice %1 {offsets = [0, 0], sizes = [16, 1], strides = [1, 1]} : vector<16x8xf32> to vector<16x1xf32>
    %3 = vector.extract_strided_slice %1 {offsets = [0, 1], sizes = [16, 1], strides = [1, 1]} : vector<16x8xf32> to vector<16x1xf32>
    %4 = vector.extract_strided_slice %1 {offsets = [0, 2], sizes = [16, 1], strides = [1, 1]} : vector<16x8xf32> to vector<16x1xf32>
    %5 = vector.extract_strided_slice %1 {offsets = [0, 3], sizes = [16, 1], strides = [1, 1]} : vector<16x8xf32> to vector<16x1xf32>
    %6 = vector.extract_strided_slice %1 {offsets = [0, 4], sizes = [16, 1], strides = [1, 1]} : vector<16x8xf32> to vector<16x1xf32>
    %7 = vector.extract_strided_slice %1 {offsets = [0, 5], sizes = [16, 1], strides = [1, 1]} : vector<16x8xf32> to vector<16x1xf32>
    %cst = arith.constant 1.000000e+00 : f32
    %8 = vector.broadcast %cst : f32 to vector<1152x1xf32>
    %cst_3 = arith.constant dense<0xFF800000> : vector<16xf32>
    %9 = vector.multi_reduction <maximumf>, %0, %cst_3 [1] : vector<16x1152xf32> to vector<16xf32>
    %10 = vector.shape_cast %9 : vector<16xf32> to vector<16x1xf32>
    %11 = vector.broadcast %10 : vector<16x1xf32> to vector<16x1152xf32>
    %12 = arith.subf %0, %11 : vector<16x1152xf32>
    %13 = math.exp %12 : vector<16x1152xf32>
    %cst_4 = arith.constant dense<0.000000e+00> : vector<16x1xf32>
    %14 = tpu.matmul %13, %8, %cst_4 {dimension_numbers = #tpu.dot_dimension_numbers<[1], [0], [0], [1], [0, 0, 1, 1], [], []>, precision = #tpu.contract_precision<fp32>} : vector<16x1152xf32>, vector<1152x1xf32>, vector<16x1xf32> -> vector<16x1xf32>
    %15 = math.log %14 : vector<16x1xf32>
    %c0_5 = arith.constant 0 : index
    %c0_6 = arith.constant 0 : index
    %16 = vector.load %arg5[%c0_5, %c0_6] : memref<1x1152xf32, #tpu.memory_space<vmem>>, vector<1x1152xf32>
    %17 = vector.broadcast %16 : vector<1x1152xf32> to vector<16x1152xf32>
    %18 = vector.broadcast %5 : vector<16x1xf32> to vector<16x1152xf32>
    %19 = arith.subf %17, %18 : vector<16x1152xf32>
    %cst_7 = arith.constant 0.000000e+00 : f32
    %20 = vector.broadcast %cst_7 : f32 to vector<16x1152xf32>
    %21 = arith.minimumf %19, %20 : vector<16x1152xf32>
    %cst_8 = arith.constant 8.000000e-01 : f32
    %22 = vector.broadcast %cst_8 : f32 to vector<16x1152xf32>
    %23 = arith.mulf %22, %21 : vector<16x1152xf32>
    %24 = arith.subf %6, %10 : vector<16x1xf32>
    %25 = arith.subf %24, %15 : vector<16x1xf32>
    %cst_9 = arith.constant -4.60517025 : f32
    %26 = vector.broadcast %cst_9 : f32 to vector<16x1xf32>
    %27 = arith.maximumf %25, %26 : vector<16x1xf32>
    %28 = vector.broadcast %10 : vector<16x1xf32> to vector<16x1152xf32>
    %29 = arith.subf %0, %28 : vector<16x1152xf32>
    %30 = vector.broadcast %15 : vector<16x1xf32> to vector<16x1152xf32>
    %31 = arith.subf %29, %30 : vector<16x1152xf32>
    %32 = vector.broadcast %27 : vector<16x1xf32> to vector<16x1152xf32>
    %33 = arith.subf %31, %32 : vector<16x1152xf32>
    %cst_10 = arith.constant 0.000000e+00 : f32
    %34 = vector.broadcast %cst_10 : f32 to vector<16x1152xf32>
    %35 = arith.maximumf %33, %34 : vector<16x1152xf32>
    %cst_11 = arith.constant 2.000000e+00 : f32
    %36 = vector.broadcast %cst_11 : f32 to vector<16x1152xf32>
    %37 = arith.mulf %36, %35 : vector<16x1152xf32>
    %38 = arith.addf %23, %37 : vector<16x1152xf32>
    %39 = arith.addf %0, %38 : vector<16x1152xf32>
    %cst_12 = arith.constant dense<0xFF800000> : vector<16xf32>
    %40 = vector.multi_reduction <maximumf>, %39, %cst_12 [1] : vector<16x1152xf32> to vector<16xf32>
    %41 = vector.shape_cast %40 : vector<16xf32> to vector<16x1xf32>
    %42 = vector.broadcast %41 : vector<16x1xf32> to vector<16x1152xf32>
    %43 = arith.subf %39, %42 : vector<16x1152xf32>
    %44 = math.exp %43 : vector<16x1152xf32>
    %cst_13 = arith.constant dense<0.000000e+00> : vector<16x1xf32>
    %45 = tpu.matmul %44, %8, %cst_13 {dimension_numbers = #tpu.dot_dimension_numbers<[1], [0], [0], [1], [0, 0, 1, 1], [], []>, precision = #tpu.contract_precision<fp32>} : vector<16x1152xf32>, vector<1152x1xf32>, vector<16x1xf32> -> vector<16x1xf32>
    %46 = math.log %45 : vector<16x1xf32>
    %47 = arith.addf %46, %41 : vector<16x1xf32>
    %48 = arith.subf %47, %6 : vector<16x1xf32>
    %cst_14 = arith.constant dense<0.000000e+00> : vector<16x1xf32>
    %49 = tpu.matmul %0, %8, %cst_14 {dimension_numbers = #tpu.dot_dimension_numbers<[1], [0], [0], [1], [0, 0, 1, 1], [], []>, precision = #tpu.contract_precision<fp32>} : vector<16x1152xf32>, vector<1152x1xf32>, vector<16x1xf32> -> vector<16x1xf32>
    %cst_15 = arith.constant 8.68055562E-4 : f32
    %50 = vector.broadcast %cst_15 : f32 to vector<16x1xf32>
    %51 = arith.mulf %49, %50 : vector<16x1xf32>
    %52 = arith.addf %15, %10 : vector<16x1xf32>
    %53 = arith.subf %52, %51 : vector<16x1xf32>
    %54 = arith.mulf %48, %4 : vector<16x1xf32>
    %55 = arith.mulf %53, %3 : vector<16x1xf32>
    %56 = arith.addf %54, %55 : vector<16x1xf32>
    %57 = arith.addf %2, %3 : vector<16x1xf32>
    %cst_16 = arith.constant dense<0.000000e+00> : vector<1xf32>
    %58 = vector.multi_reduction <add>, %56, %cst_16 [0] : vector<16x1xf32> to vector<1xf32>
    %59 = vector.shape_cast %58 : vector<1xf32> to vector<1x1xf32>
    %cst_17 = arith.constant 1.000000e+00 : f32
    %60 = vector.broadcast %cst_17 : f32 to vector<1x1xf32>
    %61 = arith.mulf %59, %60 : vector<1x1xf32>
    %cst_18 = arith.constant dense<0.000000e+00> : vector<1xf32>
    %62 = vector.multi_reduction <add>, %57, %cst_18 [0] : vector<16x1xf32> to vector<1xf32>
    %63 = vector.shape_cast %62 : vector<1xf32> to vector<1x1xf32>
    %64 = tpu.iota {dimensions = array<i32: 2>} : vector<1x8x128xi32>
    %c0_i32 = arith.constant 0 : i32
    %65 = vector.broadcast %c0_i32 : i32 to vector<1x8x128xi32>
    %66 = arith.cmpi eq, %64, %65 : vector<1x8x128xi32>
    %c1_i32 = arith.constant 1 : i32
    %67 = vector.broadcast %c1_i32 : i32 to vector<1x8x128xi32>
    %68 = arith.cmpi eq, %64, %67 : vector<1x8x128xi32>
    %cst_19 = arith.constant 0.000000e+00 : f32
    %69 = vector.shape_cast %63 : vector<1x1xf32> to vector<1x1x1xf32>
    %70 = vector.broadcast %69 : vector<1x1x1xf32> to vector<1x8x128xf32>
    %71 = vector.broadcast %cst_19 : f32 to vector<1x8x128xf32>
    %72 = arith.select %68, %70, %71 : vector<1x8x128xi1>, vector<1x8x128xf32>
    %73 = vector.shape_cast %61 : vector<1x1xf32> to vector<1x1x1xf32>
    %74 = vector.broadcast %73 : vector<1x1x1xf32> to vector<1x8x128xf32>
    %75 = arith.select %66, %74, %72 : vector<1x8x128xi1>, vector<1x8x128xf32>
    %c0_20 = arith.constant 0 : index
    %c0_21 = arith.constant 0 : index
    %c0_22 = arith.constant 0 : index
    %76 = vector.load %arg6[%c0_20, %c0_21, %c0_22] : memref<1x8x128xf32, #tpu.memory_space<vmem>>, vector<1x8x128xf32>
    tpu.vector_store %arg6[%c0_20, %c0_21, %c0_22], %75 {strides = array<i32>} : memref<1x8x128xf32, #tpu.memory_space<vmem>>, vector<1x8x128xf32>,
    %77 = arith.index_cast %arg0 : i32 to index
    %78 = memref.load %arg1[%77] : memref<1xi32, #tpu.memory_space<smem>>
    %c0_i32_23 = arith.constant 0 : i32
    %79 = arith.cmpi ne, %78, %c0_i32_23 : i32
    %80 = arith.extui %79 : i1 to i32
    %c0_i32_24 = arith.constant 0 : i32
    %81 = arith.cmpi ne, %80, %c0_i32_24 : i32
    scf.if %81 {
      %c0_25 = arith.constant 0 : index
      %c0_26 = arith.constant 0 : index
      %82 = vector.load %arg4[%c0_25, %c0_26] : memref<1x1152xf32, #tpu.memory_space<vmem>>, vector<1x1152xf32>
      %cst_27 = arith.constant 0.000000e+00 : f32
      %83 = vector.broadcast %cst_27 : f32 to vector<1x1152xf32>
      %84 = arith.cmpf ogt, %82, %83 : vector<1x1152xf32>
      %cst_28 = arith.constant -1.000000e+30 : f32
      %85 = vector.shape_cast %84 : vector<1x1152xi1> to vector<1x1152xi1>
      %86 = vector.broadcast %85 : vector<1x1152xi1> to vector<16x1152xi1>
      %87 = vector.broadcast %cst_28 : f32 to vector<16x1152xf32>
      %88 = arith.select %86, %0, %87 : vector<16x1152xi1>, vector<16x1152xf32>
      %cst_29 = arith.constant 0.000000e+00 : f32
      %89 = vector.broadcast %cst_29 : f32 to vector<16x1xf32>
      %cst_30 = arith.constant dense<0xFF800000> : vector<16xf32>
      %90 = vector.multi_reduction <maximumf>, %88, %cst_30 [1] : vector<16x1152xf32> to vector<16xf32>
      %91 = vector.shape_cast %90 : vector<16xf32> to vector<16x1xf32>
      %92 = arith.addf %89, %91 : vector<16x1xf32>
      %93 = vector.broadcast %91 : vector<16x1xf32> to vector<16x1152xf32>
      %94 = arith.cmpf oeq, %88, %93 : vector<16x1152xf32>
      %cst_31 = arith.constant -1.000000e+30 : f32
      %95 = vector.broadcast %cst_31 : f32 to vector<16x1152xf32>
      %96 = arith.select %94, %95, %88 : vector<16x1152xi1>, vector<16x1152xf32>
      %cst_32 = arith.constant dense<0xFF800000> : vector<16xf32>
      %97 = vector.multi_reduction <maximumf>, %96, %cst_32 [1] : vector<16x1152xf32> to vector<16xf32>
      %98 = vector.shape_cast %97 : vector<16xf32> to vector<16x1xf32>
      %99 = arith.addf %92, %98 : vector<16x1xf32>
      %100 = vector.broadcast %98 : vector<16x1xf32> to vector<16x1152xf32>
      %101 = arith.cmpf oeq, %96, %100 : vector<16x1152xf32>
      %cst_33 = arith.constant -1.000000e+30 : f32
      %102 = vector.broadcast %cst_33 : f32 to vector<16x1152xf32>
      %103 = arith.select %101, %102, %96 : vector<16x1152xi1>, vector<16x1152xf32>
      %cst_34 = arith.constant dense<0xFF800000> : vector<16xf32>
      %104 = vector.multi_reduction <maximumf>, %103, %cst_34 [1] : vector<16x1152xf32> to vector<16xf32>
      %105 = vector.shape_cast %104 : vector<16xf32> to vector<16x1xf32>
      %106 = arith.addf %99, %105 : vector<16x1xf32>
      %107 = vector.broadcast %105 : vector<16x1xf32> to vector<16x1152xf32>
      %108 = arith.cmpf oeq, %103, %107 : vector<16x1152xf32>
      %cst_35 = arith.constant -1.000000e+30 : f32
      %109 = vector.broadcast %cst_35 : f32 to vector<16x1152xf32>
      %110 = arith.select %108, %109, %103 : vector<16x1152xi1>, vector<16x1152xf32>
      %cst_36 = arith.constant dense<0xFF800000> : vector<16xf32>
      %111 = vector.multi_reduction <maximumf>, %110, %cst_36 [1] : vector<16x1152xf32> to vector<16xf32>
      %112 = vector.shape_cast %111 : vector<16xf32> to vector<16x1xf32>
      %113 = arith.addf %106, %112 : vector<16x1xf32>
      %114 = vector.broadcast %112 : vector<16x1xf32> to vector<16x1152xf32>
      %115 = arith.cmpf oeq, %110, %114 : vector<16x1152xf32>
      %cst_37 = arith.constant -1.000000e+30 : f32
      %116 = vector.broadcast %cst_37 : f32 to vector<16x1152xf32>
      %117 = arith.select %115, %116, %110 : vector<16x1152xi1>, vector<16x1152xf32>
      %cst_38 = arith.constant dense<0xFF800000> : vector<16xf32>
      %118 = vector.multi_reduction <maximumf>, %117, %cst_38 [1] : vector<16x1152xf32> to vector<16xf32>
      %119 = vector.shape_cast %118 : vector<16xf32> to vector<16x1xf32>
      %120 = arith.addf %113, %119 : vector<16x1xf32>
      %cst_39 = arith.constant 2.000000e-01 : f32
      %121 = vector.broadcast %cst_39 : f32 to vector<16x1xf32>
      %122 = arith.mulf %120, %121 : vector<16x1xf32>
      %cst_40 = arith.constant 0.000000e+00 : f32
      %123 = vector.broadcast %cst_40 : f32 to vector<1x1152xf32>
      %124 = arith.cmpf ogt, %82, %123 : vector<1x1152xf32>
      %cst_41 = arith.constant -1.000000e+30 : f32
      %125 = vector.shape_cast %124 : vector<1x1152xi1> to vector<1x1152xi1>
      %126 = vector.broadcast %125 : vector<1x1152xi1> to vector<16x1152xi1>
      %127 = vector.broadcast %cst_41 : f32 to vector<16x1152xf32>
      %128 = arith.select %126, %127, %0 : vector<16x1152xi1>, vector<16x1152xf32>
      %cst_42 = arith.constant 0.000000e+00 : f32
      %129 = vector.broadcast %cst_42 : f32 to vector<16x1xf32>
      %cst_43 = arith.constant dense<0xFF800000> : vector<16xf32>
      %130 = vector.multi_reduction <maximumf>, %128, %cst_43 [1] : vector<16x1152xf32> to vector<16xf32>
      %131 = vector.shape_cast %130 : vector<16xf32> to vector<16x1xf32>
      %132 = arith.addf %129, %131 : vector<16x1xf32>
      %133 = vector.broadcast %131 : vector<16x1xf32> to vector<16x1152xf32>
      %134 = arith.cmpf oeq, %128, %133 : vector<16x1152xf32>
      %cst_44 = arith.constant -1.000000e+30 : f32
      %135 = vector.broadcast %cst_44 : f32 to vector<16x1152xf32>
      %136 = arith.select %134, %135, %128 : vector<16x1152xi1>, vector<16x1152xf32>
      %cst_45 = arith.constant dense<0xFF800000> : vector<16xf32>
      %137 = vector.multi_reduction <maximumf>, %136, %cst_45 [1] : vector<16x1152xf32> to vector<16xf32>
      %138 = vector.shape_cast %137 : vector<16xf32> to vector<16x1xf32>
      %139 = arith.addf %132, %138 : vector<16x1xf32>
      %140 = vector.broadcast %138 : vector<16x1xf32> to vector<16x1152xf32>
      %141 = arith.cmpf oeq, %136, %140 : vector<16x1152xf32>
      %cst_46 = arith.constant -1.000000e+30 : f32
      %142 = vector.broadcast %cst_46 : f32 to vector<16x1152xf32>
      %143 = arith.select %141, %142, %136 : vector<16x1152xi1>, vector<16x1152xf32>
      %cst_47 = arith.constant dense<0xFF800000> : vector<16xf32>
      %144 = vector.multi_reduction <maximumf>, %143, %cst_47 [1] : vector<16x1152xf32> to vector<16xf32>
      %145 = vector.shape_cast %144 : vector<16xf32> to vector<16x1xf32>
      %146 = arith.addf %139, %145 : vector<16x1xf32>
      %147 = vector.broadcast %145 : vector<16x1xf32> to vector<16x1152xf32>
      %148 = arith.cmpf oeq, %143, %147 : vector<16x1152xf32>
      %cst_48 = arith.constant -1.000000e+30 : f32
      %149 = vector.broadcast %cst_48 : f32 to vector<16x1152xf32>
      %150 = arith.select %148, %149, %143 : vector<16x1152xi1>, vector<16x1152xf32>
      %cst_49 = arith.constant dense<0xFF800000> : vector<16xf32>
      %151 = vector.multi_reduction <maximumf>, %150, %cst_49 [1] : vector<16x1152xf32> to vector<16xf32>
      %152 = vector.shape_cast %151 : vector<16xf32> to vector<16x1xf32>
      %153 = arith.addf %146, %152 : vector<16x1xf32>
      %154 = vector.broadcast %152 : vector<16x1xf32> to vector<16x1152xf32>
      %155 = arith.cmpf oeq, %150, %154 : vector<16x1152xf32>
      %cst_50 = arith.constant -1.000000e+30 : f32
      %156 = vector.broadcast %cst_50 : f32 to vector<16x1152xf32>
      %157 = arith.select %155, %156, %150 : vector<16x1152xi1>, vector<16x1152xf32>
      %cst_51 = arith.constant dense<0xFF800000> : vector<16xf32>
      %158 = vector.multi_reduction <maximumf>, %157, %cst_51 [1] : vector<16x1152xf32> to vector<16xf32>
      %159 = vector.shape_cast %158 : vector<16xf32> to vector<16x1xf32>
      %160 = arith.addf %153, %159 : vector<16x1xf32>
      %cst_52 = arith.constant 2.000000e-01 : f32
      %161 = vector.broadcast %cst_52 : f32 to vector<16x1xf32>
      %162 = arith.mulf %160, %161 : vector<16x1xf32>
      %163 = arith.subf %162, %122 : vector<16x1xf32>
      %cst_53 = arith.constant 0.000000e+00 : f32
      %164 = vector.broadcast %cst_53 : f32 to vector<16x1xf32>
      %165 = arith.maximumf %163, %164 : vector<16x1xf32>
      %166 = math.absf %163 : vector<16x1xf32>
      %cst_54 = arith.constant 0.000000e+00 : f32
      %167 = vector.broadcast %cst_54 : f32 to vector<16x1xf32>
      %168 = arith.subf %167, %166 : vector<16x1xf32>
      %169 = math.exp %168 : vector<16x1xf32>
      %cst_55 = arith.constant 1.000000e+00 : f32
      %170 = vector.broadcast %cst_55 : f32 to vector<16x1xf32>
      %171 = arith.addf %170, %169 : vector<16x1xf32>
      %172 = math.log %171 : vector<16x1xf32>
      %173 = arith.addf %165, %172 : vector<16x1xf32>
      %174 = arith.mulf %173, %7 : vector<16x1xf32>
      %cst_56 = arith.constant dense<0.000000e+00> : vector<1xf32>
      %175 = vector.multi_reduction <add>, %174, %cst_56 [0] : vector<16x1xf32> to vector<1xf32>
      %176 = vector.shape_cast %175 : vector<1xf32> to vector<1x1xf32>
      %cst_57 = arith.constant 1.000000e+00 : f32
      %177 = vector.broadcast %cst_57 : f32 to vector<1x1xf32>
      %178 = arith.mulf %176, %177 : vector<1x1xf32>
      %cst_58 = arith.constant dense<0.000000e+00> : vector<1xf32>
      %179 = vector.multi_reduction <add>, %7, %cst_58 [0] : vector<16x1xf32> to vector<1xf32>
      %180 = vector.shape_cast %179 : vector<1xf32> to vector<1x1xf32>
      %c0_59 = arith.constant 0 : index
      %c0_60 = arith.constant 0 : index
      %c0_61 = arith.constant 0 : index
      %181 = vector.load %arg6[%c0_59, %c0_60, %c0_61] : memref<1x8x128xf32, #tpu.memory_space<vmem>>, vector<1x8x128xf32>
      %c0_i32_62 = arith.constant 0 : i32
      %182 = vector.broadcast %c0_i32_62 : i32 to vector<1x8x128xi32>
      %183 = arith.cmpi eq, %64, %182 : vector<1x8x128xi32>
      %c1_i32_63 = arith.constant 1 : i32
      %184 = vector.broadcast %c1_i32_63 : i32 to vector<1x8x128xi32>
      %185 = arith.cmpi eq, %64, %184 : vector<1x8x128xi32>
      %cst_64 = arith.constant 0.000000e+00 : f32
      %186 = vector.shape_cast %180 : vector<1x1xf32> to vector<1x1x1xf32>
      %187 = vector.broadcast %186 : vector<1x1x1xf32> to vector<1x8x128xf32>
      %188 = vector.broadcast %cst_64 : f32 to vector<1x8x128xf32>
      %189 = arith.select %185, %187, %188 : vector<1x8x128xi1>, vector<1x8x128xf32>
      %190 = vector.shape_cast %178 : vector<1x1xf32> to vector<1x1x1xf32>
      %191 = vector.broadcast %190 : vector<1x1x1xf32> to vector<1x8x128xf32>
      %192 = arith.select %183, %191, %189 : vector<1x8x128xi1>, vector<1x8x128xf32>
      %193 = arith.addf %181, %192 : vector<1x8x128xf32>
      %c0_65 = arith.constant 0 : index
      %c0_66 = arith.constant 0 : index
      %c0_67 = arith.constant 0 : index
      %194 = vector.load %arg6[%c0_65, %c0_66, %c0_67] : memref<1x8x128xf32, #tpu.memory_space<vmem>>, vector<1x8x128xf32>
      tpu.vector_store %arg6[%c0_65, %c0_66, %c0_67], %193 {strides = array<i32>} : memref<1x8x128xf32, #tpu.memory_space<vmem>>, vector<1x8x128xf32>,
    } else {
    }
    return
  }
  func.func @transform_0(%arg0: i32, %arg1: memref<1xi32, #tpu.memory_space<smem>>) -> (i32, i32) {
    %c0_i32 = arith.constant 0 : i32
    %c0_i32_0 = arith.constant 0 : i32
    return %arg0, %c0_i32 : i32, i32
  }
  func.func @transform_1(%arg0: i32, %arg1: memref<1xi32, #tpu.memory_space<smem>>) -> (i32, i32) {
    %c0_i32 = arith.constant 0 : i32
    %c0_i32_0 = arith.constant 0 : i32
    return %arg0, %c0_i32 : i32, i32
  }
  func.func @transform_2(%arg0: i32, %arg1: memref<1xi32, #tpu.memory_space<smem>>) -> (i32, i32) {
    %c0_i32 = arith.constant 0 : i32
    %c0_i32_0 = arith.constant 0 : i32
    %c0_i32_1 = arith.constant 0 : i32
    return %c0_i32, %c0_i32_0 : i32, i32
  }
  func.func @transform_3(%arg0: i32, %arg1: memref<1xi32, #tpu.memory_space<smem>>) -> (i32, i32) {
    %c0_i32 = arith.constant 0 : i32
    %c0_i32_0 = arith.constant 0 : i32
    %c0_i32_1 = arith.constant 0 : i32
    return %c0_i32, %c0_i32_0 : i32, i32
  }
  func.func @transform_4(%arg0: i32, %arg1: memref<1xi32, #tpu.memory_space<smem>>) -> (i32, i32, i32) {
    %c0_i32 = arith.constant 0 : i32
    %c0_i32_0 = arith.constant 0 : i32
    %c0_i32_1 = arith.constant 0 : i32
    return %arg0, %c0_i32, %c0_i32_0 : i32, i32, i32
  }
}

</mosaic_0001>

<llo_original>
// kernel: _seesaw_loss_impl.1
$region0: #{_seesaw_loss_impl.1}
  #allocation0 [shape = 'u32[]', space=smem, size = 0x4, offset = 0x4, fixed_abs, tag = 'smem constant byte address 0x4 - core index']
  #allocation1 [shape = 'u32[144,128]{1,0:T(1,128)}', space=vmem, size = 0x12000, scoped, tag = 'internal scratch']
  #allocation2 [shape = 's32[1]{0}', space=sflag, size = 0x4, scoped, tag = 'scoped memory for _seesaw_loss_impl.1']
  #allocation3 [shape = 's32[1]{0:T(128)S(6)}', space=smem, size = 0x200, scoped, tag = 'prefetched SMEM operand 0']
  %s0 = inlined_call_operand.<no memory space> [shape: s32[1], index: 0, kind: input, shape index: {}]
  %s1 = inlined_call_operand.vmem [shape: f32[16,1152], index: 1, kind: input, shape index: {}]
  %s2 = inlined_call_operand.vmem [shape: f32[16,8], index: 2, kind: input, shape index: {}]
  %s3 = inlined_call_operand.vmem [shape: f32[1,1152], index: 3, kind: input, shape index: {}]
  %s4 = inlined_call_operand.vmem [shape: f32[1,1152], index: 4, kind: input, shape index: {}]
  %s5 = inlined_call_operand.vmem [shape: f32[1,8,128], index: 5, kind: output, shape index: {}]
  %s6 = sld [smem:[#allocation0]]
  $region30: #{_seesaw_loss_impl.1} parent=0
    _
  %s8 = ssub.s32 1, %s6
  %s9 = scalar_select 0, %s8, %s6
  %10 = sst [smem:[#allocation3]] %s0
  // Predicated region
  $region2: #{_seesaw_loss_impl.1} parent=0 // pred_check
    _
  $region3: #{_seesaw_loss_impl.1} parent=0 // pred_check_branch
    %12 = sbr.rel (0) target = $region5
  $region4: #{_seesaw_loss_impl.1} parent=0 // pred_region
    _
  $region5: #{_seesaw_loss_impl.1} parent=0 // pred_fallthru
    _
  // Predicated region
  $region6: #{_seesaw_loss_impl.1} parent=0 // pred_check
    _
  $region7: #{_seesaw_loss_impl.1} parent=0 // pred_check_branch
    %14 = sbr.rel (0) target = $region9
  $region8: #{_seesaw_loss_impl.1} parent=0 // pred_region
    _
  $region9: #{_seesaw_loss_impl.1} parent=0 // pred_fallthru
    _
  // Predicated region
  $region10: #{_seesaw_loss_impl.1} parent=0 // pred_check
    _
  $region11: #{_seesaw_loss_impl.1} parent=0 // pred_check_branch
    %16 = sbr.rel (0) target = $region13
  $region12: #{_seesaw_loss_impl.1} parent=0 // pred_region
    _
  $region13: #{_seesaw_loss_impl.1} parent=0 // pred_fallthru
    _
  // Predicated region
  $region14: #{_seesaw_loss_impl.1} parent=0 // pred_check
    _
  $region15: #{_seesaw_loss_impl.1} parent=0 // pred_check_branch
    %18 = sbr.rel (0) target = $region17
  $region16: #{_seesaw_loss_impl.1} parent=0 // pred_region
    _
  $region17: #{_seesaw_loss_impl.1} parent=0 // pred_fallthru
    _
  %v19 = vld [vmem:[%s1] sm:$0xff]
  %v20 = vld [vmem:[%s1 + $0x8] sm:$0xff]
  %v21 = vld [vmem:[%s1 + $0x10] sm:$0xff]
  %v22 = vld [vmem:[%s1 + $0x18] sm:$0xff]
  %v23 = vld [vmem:[%s1 + $0x20] sm:$0xff]
  %v24 = vld [vmem:[%s1 + $0x28] sm:$0xff]
  %v25 = vld [vmem:[%s1 + $0x30] sm:$0xff]
  %v26 = vld [vmem:[%s1 + $0x38] sm:$0xff]
  %v27 = vld [vmem:[%s1 + $0x40] sm:$0xff]
  %v28 = vld [vmem:[%s1 + $0x48] sm:$0xff]
  %v29 = vld [vmem:[%s1 + $0x50] sm:$0xff]
  %v30 = vld [vmem:[%s1 + $0x58] sm:$0xff]
  %v31 = vld [vmem:[%s1 + $0x60] sm:$0xff]
  %v32 = vld [vmem:[%s1 + $0x68] sm:$0xff]
  %v33 = vld [vmem:[%s1 + $0x70] sm:$0xff]
  %v34 = vld [vmem:[%s1 + $0x78] sm:$0xff]
  %v35 = vld [vmem:[%s1 + $0x80] sm:$0xff]
  %v36 = vld [vmem:[%s1 + $0x88] sm:$0xff]
  %v37 = vld [vmem:[%s2] sm:$0xff]
  %v38 = vld [vmem:[%s2 + $0x8] sm:$0xff]
  %v39 = vmax.f32 %v19, %v21
  %v40 = vmax.f32 %v20, %v22
  %v41 = vmax.f32 %v39, %v23
  %v42 = vmax.f32 %v40, %v24
  %v43 = vmax.f32 %v41, %v25
  %v44 = vmax.f32 %v42, %v26
  %v45 = vmax.f32 %v43, %v27
  %v46 = vmax.f32 %v45, %v44
  %47 = vmax.xlane.f32.xlu0 %v46
  %v48 = vpop.xlane.xlu0 %47
  %v49 = vmax.f32 %v28, %v30
  %v50 = vmax.f32 %v29, %v31
  %v51 = vmax.f32 %v49, %v32
  %v52 = vmax.f32 %v50, %v33
  %v53 = vmax.f32 %v51, %v34
  %v54 = vmax.f32 %v52, %v35
  %v55 = vmax.f32 %v53, %v36
  %v56 = vmax.f32 %v55, %v54
  %57 = vmax.xlane.f32.xlu0 %v56
  %v58 = vpop.xlane.xlu0 %57
  %v59 = vsub.f32 %v19, %v48
  %v60 = vsub.f32 %v20, %v48
  %v61 = vsub.f32 %v21, %v48
  %v62 = vsub.f32 %v22, %v48
  %v63 = vsub.f32 %v23, %v48
  %v64 = vsub.f32 %v24, %v48
  %v65 = vsub.f32 %v25, %v48
  %v66 = vsub.f32 %v26, %v48
  %v67 = vsub.f32 %v27, %v48
  %v68 = vsub.f32 %v28, %v58
  %v69 = vsub.f32 %v29, %v58
  %v70 = vsub.f32 %v30, %v58
  %v71 = vsub.f32 %v31, %v58
  %v72 = vsub.f32 %v32, %v58
  %v73 = vsub.f32 %v33, %v58
  %v74 = vsub.f32 %v34, %v58
  %v75 = vsub.f32 %v35, %v58
  %v76 = vsub.f32 %v36, %v58
  %v77 = vmul.f32 %v59, 1.442695
  %v78 = vpow.pop %v77
  %v79 = vmul.f32 %v60, 1.442695
  %v80 = vpow.pop %v79
  %v81 = vmul.f32 %v61, 1.442695
  %v82 = vpow.pop %v81
  %v83 = vmul.f32 %v62, 1.442695
  %v84 = vpow.pop %v83
  %v85 = vmul.f32 %v63, 1.442695
  %v86 = vpow.pop %v85
  %v87 = vmul.f32 %v64, 1.442695
  %v88 = vpow.pop %v87
  %v89 = vmul.f32 %v65, 1.442695
  %v90 = vpow.pop %v89
  %v91 = vmul.f32 %v66, 1.442695
  %v92 = vpow.pop %v91
  %v93 = vmul.f32 %v67, 1.442695
  %v94 = vpow.pop %v93
  %v95 = vmul.f32 %v68, 1.442695
  %v96 = vpow.pop %v95
  %v97 = vmul.f32 %v69, 1.442695
  %v98 = vpow.pop %v97
  %v99 = vmul.f32 %v70, 1.442695
  %v100 = vpow.pop %v99
  %v101 = vmul.f32 %v71, 1.442695
  %v102 = vpow.pop %v101
  %v103 = vmul.f32 %v72, 1.442695
  %v104 = vpow.pop %v103
  %v105 = vmul.f32 %v73, 1.442695
  %v106 = vpow.pop %v105
  %v107 = vmul.f32 %v74, 1.442695
  %v108 = vpow.pop %v107
  %v109 = vmul.f32 %v75, 1.442695
  %v110 = vpow.pop %v109
  %v111 = vmul.f32 %v76, 1.442695
  %v112 = vpow.pop %v111
  %113 = vmatprep.subr.mxu0 0.0
  %114 = vmatpush1.msra.mxu0 1.0
  %115 = vmatprep.subr.mxu0 0.0
  %116 = vmatpush1.msra.mxu0 1.0
  %117 = vmatprep.subr.mxu0 0.0
  %118 = vmatpush1.msra.mxu0 1.0
  %119 = vmatprep.subr.mxu0 0.0
  %120 = vmatpush1.msra.mxu0 1.0
  %121 = vmatprep.subr.mxu0 0.0
  %122 = vmatpush1.msra.mxu0 1.0
  %123 = vmatprep.subr.mxu0 0.0
  %124 = vmatpush1.msra.mxu0 1.0
  %125 = vmatprep.subr.mxu0 0.0
  %126 = vmatpush1.msra.mxu0 1.0
  %127 = vmatprep.subr.mxu0 0.0
  %128 = vmatpush1.msra.mxu0 1.0
  %129 = vmatprep.subr.mxu0 0.0
  %130 = vmatpush1.msra.mxu0 1.0
  %131 = vmatprep.subr.mxu0 0.0
  %132 = vmatpush1.msra.mxu0 1.0
  %133 = vmatprep.subr.mxu0 0.0
  %134 = vmatpush1.msra.mxu0 1.0
  %135 = vmatprep.subr.mxu0 0.0
  %136 = vmatpush1.msra.mxu0 1.0
  %137 = vmatprep.subr.mxu0 0.0
  %138 = vmatpush1.msra.mxu0 1.0
  %139 = vmatprep.subr.mxu0 0.0
  %140 = vmatpush1.msra.mxu0 1.0
  %141 = vmatprep.subr.mxu0 0.0
  %142 = vmatpush1.msra.mxu0 1.0
  %143 = vmatprep.subr.mxu0 0.0
  %144 = vmatpush1.msra.mxu0 1.0
  %145 = vmatprep.subr.mxu0 0.0
  %146 = vmatpush2.msra.mxu0 1.0
  %147 = vmatprep.subr.mxu0 0.0
  %148 = vmatpush2.msra.mxu0 1.0
  %149 = vmatprep.subr.mxu0 0.0
  %150 = vmatpush2.msra.mxu0 1.0
  %151 = vmatprep.subr.mxu0 0.0
  %152 = vmatpush2.msra.mxu0 1.0
  %153 = vmatprep.subr.mxu0 0.0
  %154 = vmatpush2.msra.mxu0 1.0
  %155 = vmatprep.subr.mxu0 0.0
  %156 = vmatpush2.msra.mxu0 1.0
  %157 = vmatprep.subr.mxu0 0.0
  %158 = vmatpush2.msra.mxu0 1.0
  %159 = vmatprep.subr.mxu0 0.0
  %160 = vmatpush2.msra.mxu0 1.0
  %161 = vmatprep.subr.mxu0 0.0
  %162 = vmatpush2.msra.mxu0 1.0
  %163 = vmatprep.subr.mxu0 0.0
  %164 = vmatpush2.msra.mxu0 1.0
  %165 = vmatprep.subr.mxu0 0.0
  %166 = vmatpush2.msra.mxu0 1.0
  %167 = vmatprep.subr.mxu0 0.0
  %168 = vmatpush2.msra.mxu0 1.0
  %169 = vmatprep.subr.mxu0 0.0
  %170 = vmatpush2.msra.mxu0 1.0
  %171 = vmatprep.subr.mxu0 0.0
  %172 = vmatpush2.msra.mxu0 1.0
  %173 = vmatprep.subr.mxu0 0.0
  %174 = vmatpush2.msra.mxu0 1.0
  %175 = vmatprep.subr.mxu0 0.0
  %176 = vmatpush2.msra.mxu0 1.0
  %v177 = vand.u32 %v80, 4294901760
  %v178 = vsub.f32 %v80, %v177
  %v179 = vand.u32 %v178, 4294901760
  %v180 = vsub.f32 %v178, %v179
  %v181 = vand.u32 %v180, 4294901760
  %182 = vmatprep.mubr.f32.mxu0 %v181
  %v183 = vand.u32 %v78, 4294901760
  %v184 = vsub.f32 %v78, %v183
  %v185 = vand.u32 %v184, 4294901760
  %v186 = vsub.f32 %v184, %v185
  %v187 = vand.u32 %v186, 4294901760
  %188 = vmatmul.mubr.f32.gmra.mxu0 %v187
  %v189 = vpop.f32.mrf.mxu0
  %v190 = vadd.f32 0.0, %v189
  %v191 = vpop.f32.mrf.mxu0
  %v192 = vand.u32 %v98, 4294901760
  %v193 = vsub.f32 %v98, %v192
  %v194 = vand.u32 %v193, 4294901760
  %v195 = vsub.f32 %v193, %v194
  %v196 = vand.u32 %v195, 4294901760
  %197 = vmatprep.mubr.f32.mxu0 %v196
  %v198 = vand.u32 %v96, 4294901760
  %v199 = vsub.f32 %v96, %v198
  %v200 = vand.u32 %v199, 4294901760
  %v201 = vsub.f32 %v199, %v200
  %v202 = vand.u32 %v201, 4294901760
  %203 = vmatmul.mubr.f32.gmra.mxu0 %v202
  %v204 = vpop.f32.mrf.mxu0
  %v205 = vadd.f32 0.0, %v204
  %v206 = vpop.f32.mrf.mxu0
  %207 = vdwg.mxu0
  %208 = vmatprep.subr.mxu0 0.0
  %209 = vmatpush1.msra.mxu0 0.0
  %210 = vmatprep.subr.mxu0 0.0
  %211 = vmatpush1.msra.mxu0 0.0
  %212 = vmatprep.subr.mxu0 0.0
  %213 = vmatpush1.msra.mxu0 0.0
  %214 = vmatprep.subr.mxu0 0.0
  %215 = vmatpush1.msra.mxu0 0.0
  %216 = vmatprep.subr.mxu0 0.0
  %217 = vmatpush1.msra.mxu0 0.0
  %218 = vmatprep.subr.mxu0 0.0
  %219 = vmatpush1.msra.mxu0 0.0
  %220 = vmatprep.subr.mxu0 0.0
  %221 = vmatpush1.msra.mxu0 0.0
  %222 = vmatprep.subr.mxu0 0.0
  %223 = vmatpush1.msra.mxu0 0.0
  %224 = vmatprep.subr.mxu0 0.0
  %225 = vmatpush1.msra.mxu0 0.0
  %226 = vmatprep.subr.mxu0 0.0
  %227 = vmatpush1.msra.mxu0 0.0
  %228 = vmatprep.subr.mxu0 0.0
  %229 = vmatpush1.msra.mxu0 0.0
  %230 = vmatprep.subr.mxu0 0.0
  %231 = vmatpush1.msra.mxu0 0.0
  %232 = vmatprep.subr.mxu0 0.0
  %233 = vmatpush1.msra.mxu0 0.0
  %234 = vmatprep.subr.mxu0 0.0
  %235 = vmatpush1.msra.mxu0 0.0
  %236 = vmatprep.subr.mxu0 0.0
  %237 = vmatpush1.msra.mxu0 0.0
  %238 = vmatprep.subr.mxu0 0.0
  %239 = vmatpush1.msra.mxu0 0.0
  %240 = vmatprep.subr.mxu0 0.0
  %241 = vmatpush2.msra.mxu0 0.0
  %242 = vmatprep.subr.mxu0 0.0
  %243 = vmatpush2.msra.mxu0 0.0
  %244 = vmatprep.subr.mxu0 0.0
  %245 = vmatpush2.msra.mxu0 0.0
  %246 = vmatprep.subr.mxu0 0.0
  %247 = vmatpush2.msra.mxu0 0.0
  %248 = vmatprep.subr.mxu0 0.0
  %249 = vmatpush2.msra.mxu0 0.0
  %250 = vmatprep.subr.mxu0 0.0
  %251 = vmatpush2.msra.mxu0 0.0
  %252 = vmatprep.subr.mxu0 0.0
  %253 = vmatpush2.msra.mxu0 0.0
  %254 = vmatprep.subr.mxu0 0.0
  %255 = vmatpush2.msra.mxu0 0.0
  %256 = vmatprep.subr.mxu0 0.0
  %257 = vmatpush2.msra.mxu0 0.0
  %258 = vmatprep.subr.mxu0 0.0
  %259 = vmatpush2.msra.mxu0 0.0
  %260 = vmatprep.subr.mxu0 0.0
  %261 = vmatpush2.msra.mxu0 0.0
  %262 = vmatprep.subr.mxu0 0.0
  %263 = vmatpush2.msra.mxu0 0.0
  %264 = vmatprep.subr.mxu0 0.0
  %265 = vmatpush2.msra.mxu0 0.0
  %266 = vmatprep.subr.mxu0 0.0
  %267 = vmatpush2.msra.mxu0 0.0
  %268 = vmatprep.subr.mxu0 0.0
  %269 = vmatpush2.msra.mxu0 0.0
  %270 = vmatprep.subr.mxu0 0.0
  %271 = vmatpush2.msra.mxu0 0.0
  %v272 = vand.u32 %v80, 4294901760
  %273 = vmatprep.mubr.f32.mxu0 %v272
  %v274 = vand.u32 %v78, 4294901760
  %275 = vmatmul.mubr.f32.gmra.mxu0 %v274
  %v276 = vpop.f32.mrf.mxu0
  %v277 = vadd.f32 %v190, %v276
  %v278 = vpop.f32.mrf.mxu0
  %v279 = vand.u32 %v98, 4294901760
  %280 = vmatprep.mubr.f32.mxu0 %v279
  %v281 = vand.u32 %v96, 4294901760
  %282 = vmatmul.mubr.f32.gmra.mxu0 %v281
  %v283 = vpop.f32.mrf.mxu0
  %v284 = vadd.f32 %v205, %v283
  %v285 = vpop.f32.mrf.mxu0
  %286 = vdwg.mxu0
  %287 = vmatprep.subr.mxu0 0.0
  %288 = vmatpush1.msra.mxu0 0.0
  %289 = vmatprep.subr.mxu0 0.0
  %290 = vmatpush1.msra.mxu0 0.0
  %291 = vmatprep.subr.mxu0 0.0
  %292 = vmatpush1.msra.mxu0 0.0
  %293 = vmatprep.subr.mxu0 0.0
  %294 = vmatpush1.msra.mxu0 0.0
  %295 = vmatprep.subr.mxu0 0.0
  %296 = vmatpush1.msra.mxu0 0.0
  %297 = vmatprep.subr.mxu0 0.0
  %298 = vmatpush1.msra.mxu0 0.0
  %299 = vmatprep.subr.mxu0 0.0
  %300 = vmatpush1.msra.mxu0 0.0
  %301 = vmatprep.subr.mxu0 0.0
  %302 = vmatpush1.msra.mxu0 0.0
  %303 = vmatprep.subr.mxu0 0.0
  %304 = vmatpush1.msra.mxu0 0.0
  %305 = vmatprep.subr.mxu0 0.0
  %306 = vmatpush1.msra.mxu0 0.0
  %307 = vmatprep.subr.mxu0 0.0
  %308 = vmatpush1.msra.mxu0 0.0
  %309 = vmatprep.subr.mxu0 0.0
  %310 = vmatpush1.msra.mxu0 0.0
  %311 = vmatprep.subr.mxu0 0.0
  %312 = vmatpush1.msra.mxu0 0.0
  %313 = vmatprep.subr.mxu0 0.0
  %314 = vmatpush1.msra.mxu0 0.0
  %315 = vmatprep.subr.mxu0 0.0
  %316 = vmatpush1.msra.mxu0 0.0
  %317 = vmatprep.subr.mxu0 0.0
  %318 = vmatpush1.msra.mxu0 0.0
  %319 = vmatprep.subr.mxu0 0.0
  %320 = vmatpush2.msra.mxu0 0.0
  %321 = vmatprep.subr.mxu0 0.0
  %322 = vmatpush2.msra.mxu0 0.0
  %323 = vmatprep.subr.mxu0 0.0
  %324 = vmatpush2.msra.mxu0 0.0
  %325 = vmatprep.subr.mxu0 0.0
  %326 = vmatpush2.msra.mxu0 0.0
  %327 = vmatprep.subr.mxu0 0.0
  %328 = vmatpush2.msra.mxu0 0.0
  %329 = vmatprep.subr.mxu0 0.0
  %330 = vmatpush2.msra.mxu0 0.0
  %331 = vmatprep.subr.mxu0 0.0
  %332 = vmatpush2.msra.mxu0 0.0
  %333 = vmatprep.subr.mxu0 0.0
  %334 = vmatpush2.msra.mxu0 0.0
  %335 = vmatprep.subr.mxu0 0.0
  %336 = vmatpush2.msra.mxu0 0.0
  %337 = vmatprep.subr.mxu0 0.0
  %338 = vmatpush2.msra.mxu0 0.0
  %339 = vmatprep.subr.mxu0 0.0
  %340 = vmatpush2.msra.mxu0 0.0
  %341 = vmatprep.subr.mxu0 0.0
  %342 = vmatpush2.msra.mxu0 0.0
  %343 = vmatprep.subr.mxu0 0.0
  %344 = vmatpush2.msra.mxu0 0.0
  %345 = vmatprep.subr.mxu0 0.0
  %346 = vmatpush2.msra.mxu0 0.0
  %347 = vmatprep.subr.mxu0 0.0
  %348 = vmatpush2.msra.mxu0 0.0
  %349 = vmatprep.subr.mxu0 0.0
  %350 = vmatpush2.msra.mxu0 0.0
  %v351 = vand.u32 %v80, 4294901760
  %v352 = vsub.f32 %v80, %v351
  %353 = vmatprep.mubr.f32.mxu0 %v352
  %v354 = vand.u32 %v78, 4294901760
  %v355 = vsub.f32 %v78, %v354
  %356 = vmatmul.mubr.f32.gmra.mxu0 %v355
  %v357 = vpop.f32.mrf.mxu0
  %v358 = vadd.f32 %v277, %v357
  %v359 = vpop.f32.mrf.mxu0
  %v360 = vand.u32 %v98, 4294901760
  %v361 = vsub.f32 %v98, %v360
  %362 = vmatprep.mubr.f32.mxu0 %v361
  %v363 = vand.u32 %v96, 4294901760
  %v364 = vsub.f32 %v96, %v363
  %365 = vmatmul.mubr.f32.gmra.mxu0 %v364
  %v366 = vpop.f32.mrf.mxu0
  %v367 = vadd.f32 %v284, %v366
  %v368 = vpop.f32.mrf.mxu0
  %369 = vdwg.mxu0
  %370 = vmatprep.subr.mxu0 0.0
  %371 = vmatpush1.msra.mxu0 1.0
  %372 = vmatprep.subr.mxu0 0.0
  %373 = vmatpush1.msra.mxu0 1.0
  %374 = vmatprep.subr.mxu0 0.0
  %375 = vmatpush1.msra.mxu0 1.0
  %376 = vmatprep.subr.mxu0 0.0
  %377 = vmatpush1.msra.mxu0 1.0
  %378 = vmatprep.subr.mxu0 0.0
  %379 = vmatpush1.msra.mxu0 1.0
  %380 = vmatprep.subr.mxu0 0.0
  %381 = vmatpush1.msra.mxu0 1.0
  %382 = vmatprep.subr.mxu0 0.0
  %383 = vmatpush1.msra.mxu0 1.0
  %384 = vmatprep.subr.mxu0 0.0
  %385 = vmatpush1.msra.mxu0 1.0
  %386 = vmatprep.subr.mxu0 0.0
  %387 = vmatpush1.msra.mxu0 1.0
  %388 = vmatprep.subr.mxu0 0.0
  %389 = vmatpush1.msra.mxu0 1.0
  %390 = vmatprep.subr.mxu0 0.0
  %391 = vmatpush1.msra.mxu0 1.0
  %392 = vmatprep.subr.mxu0 0.0
  %393 = vmatpush1.msra.mxu0 1.0
  %394 = vmatprep.subr.mxu0 0.0
  %395 = vmatpush1.msra.mxu0 1.0
  %396 = vmatprep.subr.mxu0 0.0
  %397 = vmatpush1.msra.mxu0 1.0
  %398 = vmatprep.subr.mxu0 0.0
  %399 = vmatpush1.msra.mxu0 1.0
  %400 = vmatprep.subr.mxu0 0.0
  %401 = vmatpush1.msra.mxu0 1.0
  %402 = vmatprep.subr.mxu0 0.0
  %403 = vmatpush2.msra.mxu0 1.0
  %404 = vmatprep.subr.mxu0 0.0
  %405 = vmatpush2.msra.mxu0 1.0
  %406 = vmatprep.subr.mxu0 0.0
  %407 = vmatpush2.msra.mxu0 1.0
  %408 = vmatprep.subr.mxu0 0.0
  %409 = vmatpush2.msra.mxu0 1.0
  %410 = vmatprep.subr.mxu0 0.0
  %411 = vmatpush2.msra.mxu0 1.0
  %412 = vmatprep.subr.mxu0 0.0
  %413 = vmatpush2.msra.mxu0 1.0
  %414 = vmatprep.subr.mxu0 0.0
  %415 = vmatpush2.msra.mxu0 1.0
  %416 = vmatprep.subr.mxu0 0.0
  %417 = vmatpush2.msra.mxu0 1.0
  %418 = vmatprep.subr.mxu0 0.0
  %419 = vmatpush2.msra.mxu0 1.0
  %420 = vmatprep.subr.mxu0 0.0
  %421 = vmatpush2.msra.mxu0 1.0
  %422 = vmatprep.subr.mxu0 0.0
  %423 = vmatpush2.msra.mxu0 1.0
  %424 = vmatprep.subr.mxu0 0.0
  %425 = vmatpush2.msra.mxu0 1.0
  %426 = vmatprep.subr.mxu0 0.0
  %427 = vmatpush2.msra.mxu0 1.0
  %428 = vmatprep.subr.mxu0 0.0
  %429 = vmatpush2.msra.mxu0 1.0
  %430 = vmatprep.subr.mxu0 0.0
  %431 = vmatpush2.msra.mxu0 1.0
  %432 = vmatprep.subr.mxu0 0.0
  %433 = vmatpush2.msra.mxu0 1.0
  %v434 = vand.u32 %v80, 4294901760
  %v435 = vsub.f32 %v80, %v434
  %v436 = vand.u32 %v435, 4294901760
  %437 = vmatprep.mubr.f32.mxu0 %v436
  %v438 = vand.u32 %v78, 4294901760
  %v439 = vsub.f32 %v78, %v438
  %v440 = vand.u32 %v439, 4294901760
  %441 = vmatmul.mubr.f32.gmra.mxu0 %v440
  %v442 = vpop.f32.mrf.mxu0
  %v443 = vadd.f32 %v358, %v442
  %v444 = vpop.f32.mrf.mxu0
  %v445 = vand.u32 %v98, 4294901760
  %v446 = vsub.f32 %v98, %v445
  %v447 = vand.u32 %v446, 4294901760
  %448 = vmatprep.mubr.f32.mxu0 %v447
  %v449 = vand.u32 %v96, 4294901760
  %v450 = vsub.f32 %v96, %v449
  %v451 = vand.u32 %v450, 4294901760
  %452 = vmatmul.mubr.f32.gmra.mxu0 %v451
  %v453 = vpop.f32.mrf.mxu0
  %v454 = vadd.f32 %v367, %v453
  %v455 = vpop.f32.mrf.mxu0
  %456 = vdwg.mxu0
  %457 = vmatprep.subr.mxu0 0.0
  %458 = vmatpush1.msra.mxu0 0.0
  %459 = vmatprep.subr.mxu0 0.0
  %460 = vmatpush1.msra.mxu0 0.0
  %461 = vmatprep.subr.mxu0 0.0
  %462 = vmatpush1.msra.mxu0 0.0
  %463 = vmatprep.subr.mxu0 0.0
  %464 = vmatpush1.msra.mxu0 0.0
  %465 = vmatprep.subr.mxu0 0.0
  %466 = vmatpush1.msra.mxu0 0.0
  %467 = vmatprep.subr.mxu0 0.0
  %468 = vmatpush1.msra.mxu0 0.0
  %469 = vmatprep.subr.mxu0 0.0
  %470 = vmatpush1.msra.mxu0 0.0
  %471 = vmatprep.subr.mxu0 0.0
  %472 = vmatpush1.msra.mxu0 0.0
  %473 = vmatprep.subr.mxu0 0.0
  %474 = vmatpush1.msra.mxu0 0.0
  %475 = vmatprep.subr.mxu0 0.0
  %476 = vmatpush1.msra.mxu0 0.0
  %477 = vmatprep.subr.mxu0 0.0
  %478 = vmatpush1.msra.mxu0 0.0
  %479 = vmatprep.subr.mxu0 0.0
  %480 = vmatpush1.msra.mxu0 0.0
  %481 = vmatprep.subr.mxu0 0.0
  %482 = vmatpush1.msra.mxu0 0.0
  %483 = vmatprep.subr.mxu0 0.0
  %484 = vmatpush1.msra.mxu0 0.0
  %485 = vmatprep.subr.mxu0 0.0
  %486 = vmatpush1.msra.mxu0 0.0
  %487 = vmatprep.subr.mxu0 0.0
  %488 = vmatpush1.msra.mxu0 0.0
  %489 = vmatprep.subr.mxu0 0.0
  %490 = vmatpush2.msra.mxu0 0.0
  %491 = vmatprep.subr.mxu0 0.0
  %492 = vmatpush2.msra.mxu0 0.0
  %493 = vmatprep.subr.mxu0 0.0
  %494 = vmatpush2.msra.mxu0 0.0
  %495 = vmatprep.subr.mxu0 0.0
  %496 = vmatpush2.msra.mxu0 0.0
  %497 = vmatprep.subr.mxu0 0.0
  %498 = vmatpush2.msra.mxu0 0.0
  %499 = vmatprep.subr.mxu0 0.0
  %500 = vmatpush2.msra.mxu0 0.0
  %501 = vmatprep.subr.mxu0 0.0
  %502 = vmatpush2.msra.mxu0 0.0
  %503 = vmatprep.subr.mxu0 0.0
  %504 = vmatpush2.msra.mxu0 0.0
  %505 = vmatprep.subr.mxu0 0.0
  %506 = vmatpush2.msra.mxu0 0.0
  %507 = vmatprep.subr.mxu0 0.0
  %508 = vmatpush2.msra.mxu0 0.0
  %509 = vmatprep.subr.mxu0 0.0
  %510 = vmatpush2.msra.mxu0 0.0
  %511 = vmatprep.subr.mxu0 0.0
  %512 = vmatpush2.msra.mxu0 0.0
  %513 = vmatprep.subr.mxu0 0.0
  %514 = vmatpush2.msra.mxu0 0.0
  %515 = vmatprep.subr.mxu0 0.0
  %516 = vmatpush2.msra.mxu0 0.0
  %517 = vmatprep.subr.mxu0 0.0
  %518 = vmatpush2.msra.mxu0 0.0
  %519 = vmatprep.subr.mxu0 0.0
  %520 = vmatpush2.msra.mxu0 0.0
  %v521 = vand.u32 %v80, 4294901760
  %522 = vmatprep.mubr.f32.mxu0 %v521
  %v523 = vand.u32 %v78, 4294901760
  %524 = vmatmul.mubr.f32.gmra.mxu0 %v523
  %v525 = vpop.f32.mrf.mxu0
  %v526 = vadd.f32 %v443, %v525
  %v527 = vpop.f32.mrf.mxu0
  %v528 = vand.u32 %v98, 4294901760
  %529 = vmatprep.mubr.f32.mxu0 %v528
  %v530 = vand.u32 %v96, 4294901760
  %531 = vmatmul.mubr.f32.gmra.mxu0 %v530
  %v532 = vpop.f32.mrf.mxu0
  %v533 = vadd.f32 %v454, %v532
  %v534 = vpop.f32.mrf.mxu0
  %535 = vdwg.mxu0
  %536 = vmatprep.subr.mxu0 0.0
  %537 = vmatpush1.msra.mxu0 1.0
  %538 = vmatprep.subr.mxu0 0.0
  %539 = vmatpush1.msra.mxu0 1.0
  %540 = vmatprep.subr.mxu0 0.0
  %541 = vmatpush1.msra.mxu0 1.0
  %542 = vmatprep.subr.mxu0 0.0
  %543 = vmatpush1.msra.mxu0 1.0
  %544 = vmatprep.subr.mxu0 0.0
  %545 = vmatpush1.msra.mxu0 1.0
  %546 = vmatprep.subr.mxu0 0.0
  %547 = vmatpush1.msra.mxu0 1.0
  %548 = vmatprep.subr.mxu0 0.0
  %549 = vmatpush1.msra.mxu0 1.0
  %550 = vmatprep.subr.mxu0 0.0
  %551 = vmatpush1.msra.mxu0 1.0
  %552 = vmatprep.subr.mxu0 0.0
  %553 = vmatpush1.msra.mxu0 1.0
  %554 = vmatprep.subr.mxu0 0.0
  %555 = vmatpush1.msra.mxu0 1.0
  %556 = vmatprep.subr.mxu0 0.0
  %557 = vmatpush1.msra.mxu0 1.0
  %558 = vmatprep.subr.mxu0 0.0
  %559 = vmatpush1.msra.mxu0 1.0
  %560 = vmatprep.subr.mxu0 0.0
  %561 = vmatpush1.msra.mxu0 1.0
  %562 = vmatprep.subr.mxu0 0.0
  %563 = vmatpush1.msra.mxu0 1.0
  %564 = vmatprep.subr.mxu0 0.0
  %565 = vmatpush1.msra.mxu0 1.0
  %566 = vmatprep.subr.mxu0 0.0
  %567 = vmatpush1.msra.mxu0 1.0
  %568 = vmatprep.subr.mxu0 0.0
  %569 = vmatpush2.msra.mxu0 1.0
  %570 = vmatprep.subr.mxu0 0.0
  %571 = vmatpush2.msra.mxu0 1.0
  %572 = vmatprep.subr.mxu0 0.0
  %573 = vmatpush2.msra.mxu0 1.0
  %574 = vmatprep.subr.mxu0 0.0
  %575 = vmatpush2.msra.mxu0 1.0
  %576 = vmatprep.subr.mxu0 0.0
  %577 = vmatpush2.msra.mxu0 1.0
  %578 = vmatprep.subr.mxu0 0.0
  %579 = vmatpush2.msra.mxu0 1.0
  %580 = vmatprep.subr.mxu0 0.0
  %581 = vmatpush2.msra.mxu0 1.0
  %582 = vmatprep.subr.mxu0 0.0
  %583 = vmatpush2.msra.mxu0 1.0
  %584 = vmatprep.subr.mxu0 0.0
  %585 = vmatpush2.msra.mxu0 1.0
  %586 = vmatprep.subr.mxu0 0.0
  %587 = vmatpush2.msra.mxu0 1.0
  %588 = vmatprep.subr.mxu0 0.0
  %589 = vmatpush2.msra.mxu0 1.0
  %590 = vmatprep.subr.mxu0 0.0
  %591 = vmatpush2.msra.mxu0 1.0
  %592 = vmatprep.subr.mxu0 0.0
  %593 = vmatpush2.msra.mxu0 1.0
  %594 = vmatprep.subr.mxu0 0.0
  %595 = vmatpush2.msra.mxu0 1.0
  %596 = vmatprep.subr.mxu0 0.0
  %597 = vmatpush2.msra.mxu0 1.0
  %598 = vmatprep.subr.mxu0 0.0
  %599 = vmatpush2.msra.mxu0 1.0
  %v600 = vand.u32 %v80, 4294901760
  %601 = vmatprep.mubr.f32.mxu0 %v600
  %v602 = vand.u32 %v78, 4294901760
  %603 = vmatmul.mubr.f32.gmra.mxu0 %v602
  %v604 = vpop.f32.mrf.mxu0
  %v605 = vadd.f32 %v526, %v604
  %v606 = vpop.f32.mrf.mxu0
  %v607 = vand.u32 %v98, 4294901760
  %608 = vmatprep.mubr.f32.mxu0 %v607
  %v609 = vand.u32 %v96, 4294901760
  %610 = vmatmul.mubr.f32.gmra.mxu0 %v609
  %v611 = vpop.f32.mrf.mxu0
  %v612 = vadd.f32 %v533, %v611
  %v613 = vpop.f32.mrf.mxu0
  %614 = vdwg.mxu0
  %615 = vmatprep.subr.mxu0 0.0
  %616 = vmatpush1.msra.mxu0 1.0
  %617 = vmatprep.subr.mxu0 0.0
  %618 = vmatpush1.msra.mxu0 1.0
  %619 = vmatprep.subr.mxu0 0.0
  %620 = vmatpush1.msra.mxu0 1.0
  %621 = vmatprep.subr.mxu0 0.0
  %622 = vmatpush1.msra.mxu0 1.0
  %623 = vmatprep.subr.mxu0 0.0
  %624 = vmatpush1.msra.mxu0 1.0
  %625 = vmatprep.subr.mxu0 0.0
  %626 = vmatpush1.msra.mxu0 1.0
  %627 = vmatprep.subr.mxu0 0.0
  %628 = vmatpush1.msra.mxu0 1.0
  %629 = vmatprep.subr.mxu0 0.0
  %630 = vmatpush1.msra.mxu0 1.0
  %631 = vmatprep.subr.mxu0 0.0
  %632 = vmatpush1.msra.mxu0 1.0
  %633 = vmatprep.subr.mxu0 0.0
  %634 = vmatpush1.msra.mxu0 1.0
  %635 = vmatprep.subr.mxu0 0.0
  %636 = vmatpush1.msra.mxu0 1.0
  %637 = vmatprep.subr.mxu0 0.0
  %638 = vmatpush1.msra.mxu0 1.0
  %639 = vmatprep.subr.mxu0 0.0
  %640 = vmatpush1.msra.mxu0 1.0
  %641 = vmatprep.subr.mxu0 0.0
  %642 = vmatpush1.msra.mxu0 1.0
  %643 = vmatprep.subr.mxu0 0.0
  %644 = vmatpush1.msra.mxu0 1.0
  %645 = vmatprep.subr.mxu0 0.0
  %646 = vmatpush1.msra.mxu0 1.0
  %647 = vmatprep.subr.mxu0 0.0
  %648 = vmatpush2.msra.mxu0 1.0
  %649 = vmatprep.subr.mxu0 0.0
  %650 = vmatpush2.msra.mxu0 1.0
  %651 = vmatprep.subr.mxu0 0.0
  %652 = vmatpush2.msra.mxu0 1.0
  %653 = vmatprep.subr.mxu0 0.0
  %654 = vmatpush2.msra.mxu0 1.0
  %655 = vmatprep.subr.mxu0 0.0
  %656 = vmatpush2.msra.mxu0 1.0
  %657 = vmatprep.subr.mxu0 0.0
  %658 = vmatpush2.msra.mxu0 1.0
  %659 = vmatprep.subr.mxu0 0.0
  %660 = vmatpush2.msra.mxu0 1.0
  %661 = vmatprep.subr.mxu0 0.0
  %662 = vmatpush2.msra.mxu0 1.0
  %663 = vmatprep.subr.mxu0 0.0
  %664 = vmatpush2.msra.mxu0 1.0
  %665 = vmatprep.subr.mxu0 0.0
  %666 = vmatpush2.msra.mxu0 1.0
  %667 = vmatprep.subr.mxu0 0.0
  %668 = vmatpush2.msra.mxu0 1.0
  %669 = vmatprep.subr.mxu0 0.0
  %670 = vmatpush2.msra.mxu0 1.0
  %671 = vmatprep.subr.mxu0 0.0
  %672 = vmatpush2.msra.mxu0 1.0
  %673 = vmatprep.subr.mxu0 0.0
  %674 = vmatpush2.msra.mxu0 1.0
  %675 = vmatprep.subr.mxu0 0.0
  %676 = vmatpush2.msra.mxu0 1.0
  %677 = vmatprep.subr.mxu0 0.0
  %678 = vmatpush2.msra.mxu0 1.0
  %v679 = vand.u32 %v84, 4294901760
  %v680 = vsub.f32 %v84, %v679
  %v681 = vand.u32 %v680, 4294901760
  %v682 = vsub.f32 %v680, %v681
  %v683 = vand.u32 %v682, 4294901760
  %684 = vmatprep.mubr.f32.mxu0 %v683
  %v685 = vand.u32 %v82, 4294901760
  %v686 = vsub.f32 %v82, %v685
  %v687 = vand.u32 %v686, 4294901760
  %v688 = vsub.f32 %v686, %v687
  %v689 = vand.u32 %v688, 4294901760
  %690 = vmatmul.mubr.f32.gmra.mxu0 %v689
  %v691 = vpop.f32.mrf.mxu0
  %v692 = vadd.f32 %v605, %v691
  %v693 = vpop.f32.mrf.mxu0
  %v694 = vand.u32 %v102, 4294901760
  %v695 = vsub.f32 %v102, %v694
  %v696 = vand.u32 %v695, 4294901760
  %v697 = vsub.f32 %v695, %v696
  %v698 = vand.u32 %v697, 4294901760
  %699 = vmatprep.mubr.f32.mxu0 %v698
  %v700 = vand.u32 %v100, 4294901760
  %v701 = vsub.f32 %v100, %v700
  %v702 = vand.u32 %v701, 4294901760
  %v703 = vsub.f32 %v701, %v702
  %v704 = vand.u32 %v703, 4294901760
  %705 = vmatmul.mubr.f32.gmra.mxu0 %v704
  %v706 = vpop.f32.mrf.mxu0
  %v707 = vadd.f32 %v612, %v706
  %v708 = vpop.f32.mrf.mxu0
  %709 = vdwg.mxu0
  %710 = vmatprep.subr.mxu0 0.0
  %711 = vmatpush1.msra.mxu0 0.0
  %712 = vmatprep.subr.mxu0 0.0
  %713 = vmatpush1.msra.mxu0 0.0
  %714 = vmatprep.subr.mxu0 0.0
  %715 = vmatpush1.msra.mxu0 0.0
  %716 = vmatprep.subr.mxu0 0.0
  %717 = vmatpush1.msra.mxu0 0.0
  %718 = vmatprep.subr.mxu0 0.0
  %719 = vmatpush1.msra.mxu0 0.0
  %720 = vmatprep.subr.mxu0 0.0
  %721 = vmatpush1.msra.mxu0 0.0
  %722 = vmatprep.subr.mxu0 0.0
  %723 = vmatpush1.msra.mxu0 0.0
  %724 = vmatprep.subr.mxu0 0.0
  %725 = vmatpush1.msra.mxu0 0.0
  %726 = vmatprep.subr.mxu0 0.0
  %727 = vmatpush1.msra.mxu0 0.0
  %728 = vmatprep.subr.mxu0 0.0
  %729 = vmatpush1.msra.mxu0 0.0
  %730 = vmatprep.subr.mxu0 0.0
  %731 = vmatpush1.msra.mxu0 0.0
  %732 = vmatprep.subr.mxu0 0.0
  %733 = vmatpush1.msra.mxu0 0.0
  %734 = vmatprep.subr.mxu0 0.0
  %735 = vmatpush1.msra.mxu0 0.0
  %736 = vmatprep.subr.mxu0 0.0
  %737 = vmatpush1.msra.mxu0 0.0
  %738 = vmatprep.subr.mxu0 0.0
  %739 = vmatpush1.msra.mxu0 0.0
  %740 = vmatprep.subr.mxu0 0.0
  %741 = vmatpush1.msra.mxu0 0.0
  %742 = vmatprep.subr.mxu0 0.0
  %743 = vmatpush2.msra.mxu0 0.0
  %744 = vmatprep.subr.mxu0 0.0
  %745 = vmatpush2.msra.mxu0 0.0
  %746 = vmatprep.subr.mxu0 0.0
  %747 = vmatpush2.msra.mxu0 0.0
  %748 = vmatprep.subr.mxu0 0.0
  %749 = vmatpush2.msra.mxu0 0.0
  %750 = vmatprep.subr.mxu0 0.0
  %751 = vmatpush2.msra.mxu0 0.0
  %752 = vmatprep.subr.mxu0 0.0
  %753 = vmatpush2.msra.mxu0 0.0
  %754 = vmatprep.subr.mxu0 0.0
  %755 = vmatpush2.msra.mxu0 0.0
  %756 = vmatprep.subr.mxu0 0.0
  %757 = vmatpush2.msra.mxu0 0.0
  %758 = vmatprep.subr.mxu0 0.0
  %759 = vmatpush2.msra.mxu0 0.0
  %760 = vmatprep.subr.mxu0 0.0
  %761 = vmatpush2.msra.mxu0 0.0
  %762 = vmatprep.subr.mxu0 0.0
  %763 = vmatpush2.msra.mxu0 0.0
  %764 = vmatprep.subr.mxu0 0.0
  %765 = vmatpush2.msra.mxu0 0.0
  %766 = vmatprep.subr.mxu0 0.0
  %767 = vmatpush2.msra.mxu0 0.0
  %768 = vmatprep.subr.mxu0 0.0
  %769 = vmatpush2.msra.mxu0 0.0
  %770 = vmatprep.subr.mxu0 0.0
  %771 = vmatpush2.msra.mxu0 0.0
  %772 = vmatprep.subr.mxu0 0.0
  %773 = vmatpush2.msra.mxu0 0.0
  %v774 = vand.u32 %v84, 4294901760
  %775 = vmatprep.mubr.f32.mxu0 %v774
  %v776 = vand.u32 %v82, 4294901760
  %777 = vmatmul.mubr.f32.gmra.mxu0 %v776
  %v778 = vpop.f32.mrf.mxu0
  %v779 = vadd.f32 %v692, %v778
  %v780 = vpop.f32.mrf.mxu0
  %v781 = vand.u32 %v102, 4294901760
  %782 = vmatprep.mubr.f32.mxu0 %v781
  %v783 = vand.u32 %v100, 4294901760
  %784 = vmatmul.mubr.f32.gmra.mxu0 %v783
  %v785 = vpop.f32.mrf.mxu0
  %v786 = vadd.f32 %v707, %v785
  %v787 = vpop.f32.mrf.mxu0
  %788 = vdwg.mxu0
  %789 = vmatprep.subr.mxu0 0.0
  %790 = vmatpush1.msra.mxu0 0.0
  %791 = vmatprep.subr.mxu0 0.0
  %792 = vmatpush1.msra.mxu0 0.0
  %793 = vmatprep.subr.mxu0 0.0
  %794 = vmatpush1.msra.mxu0 0.0
  %795 = vmatprep.subr.mxu0 0.0
  %796 = vmatpush1.msra.mxu0 0.0
  %797 = vmatprep.subr.mxu0 0.0
  %798 = vmatpush1.msra.mxu0 0.0
  %799 = vmatprep.subr.mxu0 0.0
  %800 = vmatpush1.msra.mxu0 0.0
  %801 = vmatprep.subr.mxu0 0.0
  %802 = vmatpush1.msra.mxu0 0.0
  %803 = vmatprep.subr.mxu0 0.0
  %804 = vmatpush1.msra.mxu0 0.0
  %805 = vmatprep.subr.mxu0 0.0
  %806 = vmatpush1.msra.mxu0 0.0
  %807 = vmatprep.subr.mxu0 0.0
  %808 = vmatpush1.msra.mxu0 0.0
  %809 = vmatprep.subr.mxu0 0.0
  %810 = vmatpush1.msra.mxu0 0.0
  %811 = vmatprep.subr.mxu0 0.0
  %812 = vmatpush1.msra.mxu0 0.0
  %813 = vmatprep.subr.mxu0 0.0
  %814 = vmatpush1.msra.mxu0 0.0
  %815 = vmatprep.subr.mxu0 0.0
  %816 = vmatpush1.msra.mxu0 0.0
  %817 = vmatprep.subr.mxu0 0.0
  %818 = vmatpush1.msra.mxu0 0.0
  %819 = vmatprep.subr.mxu0 0.0
  %820 = vmatpush1.msra.mxu0 0.0
  %821 = vmatprep.subr.mxu0 0.0
  %822 = vmatpush2.msra.mxu0 0.0
  %823 = vmatprep.subr.mxu0 0.0
  %824 = vmatpush2.msra.mxu0 0.0
  %825 = vmatprep.subr.mxu0 0.0
  %826 = vmatpush2.msra.mxu0 0.0
  %827 = vmatprep.subr.mxu0 0.0
  %828 = vmatpush2.msra.mxu0 0.0
  %829 = vmatprep.subr.mxu0 0.0
  %830 = vmatpush2.msra.mxu0 0.0
  %831 = vmatprep.subr.mxu0 0.0
  %832 = vmatpush2.msra.mxu0 0.0
  %833 = vmatprep.subr.mxu0 0.0
  %834 = vmatpush2.msra.mxu0 0.0
  %835 = vmatprep.subr.mxu0 0.0
  %836 = vmatpush2.msra.mxu0 0.0
  %837 = vmatprep.subr.mxu0 0.0
  %838 = vmatpush2.msra.mxu0 0.0
  %839 = vmatprep.subr.mxu0 0.0
  %840 = vmatpush2.msra.mxu0 0.0
  %841 = vmatprep.subr.mxu0 0.0
  %842 = vmatpush2.msra.mxu0 0.0
  %843 = vmatprep.subr.mxu0 0.0
  %844 = vmatpush2.msra.mxu0 0.0
  %845 = vmatprep.subr.mxu0 0.0
  %846 = vmatpush2.msra.mxu0 0.0
  %847 = vmatprep.subr.mxu0 0.0
  %848 = vmatpush2.msra.mxu0 0.0
  %849 = vmatprep.subr.mxu0 0.0
  %850 = vmatpush2.msra.mxu0 0.0
  %851 = vmatprep.subr.mxu0 0.0
  %852 = vmatpush2.msra.mxu0 0.0
  %v853 = vand.u32 %v84, 4294901760
  %v854 = vsub.f32 %v84, %v853
  %855 = vmatprep.mubr.f32.mxu0 %v854
  %v856 = vand.u32 %v82, 4294901760
  %v857 = vsub.f32 %v82, %v856
  %858 = vmatmul.mubr.f32.gmra.mxu0 %v857
  %v859 = vpop.f32.mrf.mxu0
  %v860 = vadd.f32 %v779, %v859
  %v861 = vpop.f32.mrf.mxu0
  %v862 = vand.u32 %v102, 4294901760
  %v863 = vsub.f32 %v102, %v862
  %864 = vmatprep.mubr.f32.mxu0 %v863
  %v865 = vand.u32 %v100, 4294901760
  %v866 = vsub.f32 %v100, %v865
  %867 = vmatmul.mubr.f32.gmra.mxu0 %v866
  %v868 = vpop.f32.mrf.mxu0
  %v869 = vadd.f32 %v786, %v868
  %v870 = vpop.f32.mrf.mxu0
  %871 = vdwg.mxu0
  %872 = vmatprep.subr.mxu0 0.0
  %873 = vmatpush1.msra.mxu0 1.0
  %874 = vmatprep.subr.mxu0 0.0
  %875 = vmatpush1.msra.mxu0 1.0
  %876 = vmatprep.subr.mxu0 0.0
  %877 = vmatpush1.msra.mxu0 1.0
  %878 = vmatprep.subr.mxu0 0.0
  %879 = vmatpush1.msra.mxu0 1.0
  %880 = vmatprep.subr.mxu0 0.0
  %881 = vmatpush1.msra.mxu0 1.0
  %882 = vmatprep.subr.mxu0 0.0
  %883 = vmatpush1.msra.mxu0 1.0
  %884 = vmatprep.subr.mxu0 0.0
  %885 = vmatpush1.msra.mxu0 1.0
  %886 = vmatprep.subr.mxu0 0.0
  %887 = vmatpush1.msra.mxu0 1.0
  %888 = vmatprep.subr.mxu0 0.0
  %889 = vmatpush1.msra.mxu0 1.0
  %890 = vmatprep.subr.mxu0 0.0
  %891 = vmatpush1.msra.mxu0 1.0
  %892 = vmatprep.subr.mxu0 0.0
  %893 = vmatpush1.msra.mxu0 1.0
  %894 = vmatprep.subr.mxu0 0.0
  %895 = vmatpush1.msra.mxu0 1.0
  %896 = vmatprep.subr.mxu0 0.0
  %897 = vmatpush1.msra.mxu0 1.0
  %898 = vmatprep.subr.mxu0 0.0
  %899 = vmatpush1.msra.mxu0 1.0
  %900 = vmatprep.subr.mxu0 0.0
  %901 = vmatpush1.msra.mxu0 1.0
  %902 = vmatprep.subr.mxu0 0.0
  %903 = vmatpush1.msra.mxu0 1.0
  %904 = vmatprep.subr.mxu0 0.0
  %905 = vmatpush2.msra.mxu0 1.0
  %906 = vmatprep.subr.mxu0 0.0
  %907 = vmatpush2.msra.mxu0 1.0
  %908 = vmatprep.subr.mxu0 0.0
  %909 = vmatpush2.msra.mxu0 1.0
  %910 = vmatprep.subr.mxu0 0.0
  %911 = vmatpush2.msra.mxu0 1.0
  %912 = vmatprep.subr.mxu0 0.0
  %913 = vmatpush2.msra.mxu0 1.0
  %914 = vmatprep.subr.mxu0 0.0
  %915 = vmatpush2.msra.mxu0 1.0
  %916 = vmatprep.subr.mxu0 0.0
  %917 = vmatpush2.msra.mxu0 1.0
  %918 = vmatprep.subr.mxu0 0.0
  %919 = vmatpush2.msra.mxu0 1.0
  %920 = vmatprep.subr.mxu0 0.0
  %921 = vmatpush2.msra.mxu0 1.0
  %922 = vmatprep.subr.mxu0 0.0
  %923 = vmatpush2.msra.mxu0 1.0
  %924 = vmatprep.subr.mxu0 0.0
  %925 = vmatpush2.msra.mxu0 1.0
  %926 = vmatprep.subr.mxu0 0.0
  %927 = vmatpush2.msra.mxu0 1.0
  %928 = vmatprep.subr.mxu0 0.0
  %929 = vmatpush2.msra.mxu0 1.0
  %930 = vmatprep.subr.mxu0 0.0
  %931 = vmatpush2.msra.mxu0 1.0
  %932 = vmatprep.subr.mxu0 0.0
  %933 = vmatpush2.msra.mxu0 1.0
  %934 = vmatprep.subr.mxu0 0.0
  %935 = vmatpush2.msra.mxu0 1.0
  %v936 = vand.u32 %v84, 4294901760
  %v937 = vsub.f32 %v84, %v936
  %v938 = vand.u32 %v937, 4294901760
  %939 = vmatprep.mubr.f32.mxu0 %v938
  %v940 = vand.u32 %v82, 4294901760
  %v941 = vsub.f32 %v82, %v940
  %v942 = vand.u32 %v941, 4294901760
  %943 = vmatmul.mubr.f32.gmra.mxu0 %v942
  %v944 = vpop.f32.mrf.mxu0
  %v945 = vadd.f32 %v860, %v944
  %v946 = vpop.f32.mrf.mxu0
  %v947 = vand.u32 %v102, 4294901760
  %v948 = vsub.f32 %v102, %v947
  %v949 = vand.u32 %v948, 4294901760
  %950 = vmatprep.mubr.f32.mxu0 %v949
  %v951 = vand.u32 %v100, 4294901760
  %v952 = vsub.f32 %v100, %v951
  %v953 = vand.u32 %v952, 4294901760
  %954 = vmatmul.mubr.f32.gmra.mxu0 %v953
  %v955 = vpop.f32.mrf.mxu0
  %v956 = vadd.f32 %v869, %v955
  %v957 = vpop.f32.mrf.mxu0
  %958 = vdwg.mxu0
  %959 = vmatprep.subr.mxu0 0.0
  %960 = vmatpush1.msra.mxu0 0.0
  %961 = vmatprep.subr.mxu0 0.0
  %962 = vmatpush1.msra.mxu0 0.0
  %963 = vmatprep.subr.mxu0 0.0
  %964 = vmatpush1.msra.mxu0 0.0
  %965 = vmatprep.subr.mxu0 0.0
  %966 = vmatpush1.msra.mxu0 0.0
  %967 = vmatprep.subr.mxu0 0.0
  %968 = vmatpush1.msra.mxu0 0.0
  %969 = vmatprep.subr.mxu0 0.0
  %970 = vmatpush1.msra.mxu0 0.0
  %971 = vmatprep.subr.mxu0 0.0
  %972 = vmatpush1.msra.mxu0 0.0
  %973 = vmatprep.subr.mxu0 0.0
  %974 = vmatpush1.msra.mxu0 0.0
  %975 = vmatprep.subr.mxu0 0.0
  %976 = vmatpush1.msra.mxu0 0.0
  %977 = vmatprep.subr.mxu0 0.0
  %978 = vmatpush1.msra.mxu0 0.0
  %979 = vmatprep.subr.mxu0 0.0
  %980 = vmatpush1.msra.mxu0 0.0
  %981 = vmatprep.subr.mxu0 0.0
  %982 = vmatpush1.msra.mxu0 0.0
  %983 = vmatprep.subr.mxu0 0.0
  %984 = vmatpush1.msra.mxu0 0.0
  %985 = vmatprep.subr.mxu0 0.0
  %986 = vmatpush1.msra.mxu0 0.0
  %987 = vmatprep.subr.mxu0 0.0
  %988 = vmatpush1.msra.mxu0 0.0
  %989 = vmatprep.subr.mxu0 0.0
  %990 = vmatpush1.msra.mxu0 0.0
  %991 = vmatprep.subr.mxu0 0.0
  %992 = vmatpush2.msra.mxu0 0.0
  %993 = vmatprep.subr.mxu0 0.0
  %994 = vmatpush2.msra.mxu0 0.0
  %995 = vmatprep.subr.mxu0 0.0
  %996 = vmatpush2.msra.mxu0 0.0
  %997 = vmatprep.subr.mxu0 0.0
  %998 = vmatpush2.msra.mxu0 0.0
  %999 = vmatprep.subr.mxu0 0.0
  %1000 = vmatpush2.msra.mxu0 0.0
  %1001 = vmatprep.subr.mxu0 0.0
  %1002 = vmatpush2.msra.mxu0 0.0
  %1003 = vmatprep.subr.mxu0 0.0
  %1004 = vmatpush2.msra.mxu0 0.0
  %1005 = vmatprep.subr.mxu0 0.0
  %1006 = vmatpush2.msra.mxu0 0.0
  %1007 = vmatprep.subr.mxu0 0.0
  %1008 = vmatpush2.msra.mxu0 0.0
  %1009 = vmatprep.subr.mxu0 0.0
  %1010 = vmatpush2.msra.mxu0 0.0
  %1011 = vmatprep.subr.mxu0 0.0
  %1012 = vmatpush2.msra.mxu0 0.0
  %1013 = vmatprep.subr.mxu0 0.0
  %1014 = vmatpush2.msra.mxu0 0.0
  %1015 = vmatprep.subr.mxu0 0.0
  %1016 = vmatpush2.msra.mxu0 0.0
  %1017 = vmatprep.subr.mxu0 0.0
  %1018 = vmatpush2.msra.mxu0 0.0
  %1019 = vmatprep.subr.mxu0 0.0
  %1020 = vmatpush2.msra.mxu0 0.0
  %1021 = vmatprep.subr.mxu0 0.0
  %1022 = vmatpush2.msra.mxu0 0.0
  %v1023 = vand.u32 %v84, 4294901760
  %1024 = vmatprep.mubr.f32.mxu0 %v1023
  %v1025 = vand.u32 %v82, 4294901760
  %1026 = vmatmul.mubr.f32.gmra.mxu0 %v1025
  %v1027 = vpop.f32.mrf.mxu0
  %v1028 = vadd.f32 %v945, %v1027
  %v1029 = vpop.f32.mrf.mxu0
  %v1030 = vand.u32 %v102, 4294901760
  %1031 = vmatprep.mubr.f32.mxu0 %v1030
  %v1032 = vand.u32 %v100, 4294901760
  %1033 = vmatmul.mubr.f32.gmra.mxu0 %v1032
  %v1034 = vpop.f32.mrf.mxu0
  %v1035 = vadd.f32 %v956, %v1034
  %v1036 = vpop.f32.mrf.mxu0
  %1037 = vdwg.mxu0
  %1038 = vmatprep.subr.mxu0 0.0
  %1039 = vmatpush1.msra.mxu0 1.0
  %1040 = vmatprep.subr.mxu0 0.0
  %1041 = vmatpush1.msra.mxu0 1.0
  %1042 = vmatprep.subr.mxu0 0.0
  %1043 = vmatpush1.msra.mxu0 1.0
  %1044 = vmatprep.subr.mxu0 0.0
  %1045 = vmatpush1.msra.mxu0 1.0
  %1046 = vmatprep.subr.mxu0 0.0
  %1047 = vmatpush1.msra.mxu0 1.0
  %1048 = vmatprep.subr.mxu0 0.0
  %1049 = vmatpush1.msra.mxu0 1.0
  %1050 = vmatprep.subr.mxu0 0.0
  %1051 = vmatpush1.msra.mxu0 1.0
  %1052 = vmatprep.subr.mxu0 0.0
  %1053 = vmatpush1.msra.mxu0 1.0
  %1054 = vmatprep.subr.mxu0 0.0
  %1055 = vmatpush1.msra.mxu0 1.0
  %1056 = vmatprep.subr.mxu0 0.0
  %1057 = vmatpush1.msra.mxu0 1.0
  %1058 = vmatprep.subr.mxu0 0.0
  %1059 = vmatpush1.msra.mxu0 1.0
  %1060 = vmatprep.subr.mxu0 0.0
  %1061 = vmatpush1.msra.mxu0 1.0
  %1062 = vmatprep.subr.mxu0 0.0
  %1063 = vmatpush1.msra.mxu0 1.0
  %1064 = vmatprep.subr.mxu0 0.0
  %1065 = vmatpush1.msra.mxu0 1.0
  %1066 = vmatprep.subr.mxu0 0.0
  %1067 = vmatpush1.msra.mxu0 1.0
  %1068 = vmatprep.subr.mxu0 0.0
  %1069 = vmatpush1.msra.mxu0 1.0
  %1070 = vmatprep.subr.mxu0 0.0
  %1071 = vmatpush2.msra.mxu0 1.0
  %1072 = vmatprep.subr.mxu0 0.0
  %1073 = vmatpush2.msra.mxu0 1.0
  %1074 = vmatprep.subr.mxu0 0.0
  %1075 = vmatpush2.msra.mxu0 1.0
  %1076 = vmatprep.subr.mxu0 0.0
  %1077 = vmatpush2.msra.mxu0 1.0
  %1078 = vmatprep.subr.mxu0 0.0
  %1079 = vmatpush2.msra.mxu0 1.0
  %1080 = vmatprep.subr.mxu0 0.0
  %1081 = vmatpush2.msra.mxu0 1.0
  %1082 = vmatprep.subr.mxu0 0.0
  %1083 = vmatpush2.msra.mxu0 1.0
  %1084 = vmatprep.subr.mxu0 0.0
  %1085 = vmatpush2.msra.mxu0 1.0
  %1086 = vmatprep.subr.mxu0 0.0
  %1087 = vmatpush2.msra.mxu0 1.0
  %1088 = vmatprep.subr.mxu0 0.0
  %1089 = vmatpush2.msra.mxu0 1.0
  %1090 = vmatprep.subr.mxu0 0.0
  %1091 = vmatpush2.msra.mxu0 1.0
  %1092 = vmatprep.subr.mxu0 0.0
  %1093 = vmatpush2.msra.mxu0 1.0
  %1094 = vmatprep.subr.mxu0 0.0
  %1095 = vmatpush2.msra.mxu0 1.0
  %1096 = vmatprep.subr.mxu0 0.0
  %1097 = vmatpush2.msra.mxu0 1.0
  %1098 = vmatprep.subr.mxu0 0.0
  %1099 = vmatpush2.msra.mxu0 1.0
  %1100 = vmatprep.subr.mxu0 0.0
  %1101 = vmatpush2.msra.mxu0 1.0
  %v1102 = vand.u32 %v84, 4294901760
  %1103 = vmatprep.mubr.f32.mxu0 %v1102
  %v1104 = vand.u32 %v82, 4294901760
  %1105 = vmatmul.mubr.f32.gmra.mxu0 %v1104
  %v1106 = vpop.f32.mrf.mxu0
  %v1107 = vadd.f32 %v1028, %v1106
  %v1108 = vpop.f32.mrf.mxu0
  %v1109 = vand.u32 %v102, 4294901760
  %1110 = vmatprep.mubr.f32.mxu0 %v1109
  %v1111 = vand.u32 %v100, 4294901760
  %1112 = vmatmul.mubr.f32.gmra.mxu0 %v1111
  %v1113 = vpop.f32.mrf.mxu0
  %v1114 = vadd.f32 %v1035, %v1113
  %v1115 = vpop.f32.mrf.mxu0
  %1116 = vdwg.mxu0
  %1117 = vmatprep.subr.mxu0 0.0
  %1118 = vmatpush1.msra.mxu0 1.0
  %1119 = vmatprep.subr.mxu0 0.0
  %1120 = vmatpush1.msra.mxu0 1.0
  %1121 = vmatprep.subr.mxu0 0.0
  %1122 = vmatpush1.msra.mxu0 1.0
  %1123 = vmatprep.subr.mxu0 0.0
  %1124 = vmatpush1.msra.mxu0 1.0
  %1125 = vmatprep.subr.mxu0 0.0
  %1126 = vmatpush1.msra.mxu0 1.0
  %1127 = vmatprep.subr.mxu0 0.0
  %1128 = vmatpush1.msra.mxu0 1.0
  %1129 = vmatprep.subr.mxu0 0.0
  %1130 = vmatpush1.msra.mxu0 1.0
  %1131 = vmatprep.subr.mxu0 0.0
  %1132 = vmatpush1.msra.mxu0 1.0
  %1133 = vmatprep.subr.mxu0 0.0
  %1134 = vmatpush1.msra.mxu0 1.0
  %1135 = vmatprep.subr.mxu0 0.0
  %1136 = vmatpush1.msra.mxu0 1.0
  %1137 = vmatprep.subr.mxu0 0.0
  %1138 = vmatpush1.msra.mxu0 1.0
  %1139 = vmatprep.subr.mxu0 0.0
  %1140 = vmatpush1.msra.mxu0 1.0
  %1141 = vmatprep.subr.mxu0 0.0
  %1142 = vmatpush1.msra.mxu0 1.0
  %1143 = vmatprep.subr.mxu0 0.0
  %1144 = vmatpush1.msra.mxu0 1.0
  %1145 = vmatprep.subr.mxu0 0.0
  %1146 = vmatpush1.msra.mxu0 1.0
  %1147 = vmatprep.subr.mxu0 0.0
  %1148 = vmatpush1.msra.mxu0 1.0
  %1149 = vmatprep.subr.mxu0 0.0
  %1150 = vmatpush2.msra.mxu0 1.0
  %1151 = vmatprep.subr.mxu0 0.0
  %1152 = vmatpush2.msra.mxu0 1.0
  %1153 = vmatprep.subr.mxu0 0.0
  %1154 = vmatpush2.msra.mxu0 1.0
  %1155 = vmatprep.subr.mxu0 0.0
  %1156 = vmatpush2.msra.mxu0 1.0
  %1157 = vmatprep.subr.mxu0 0.0
  %1158 = vmatpush2.msra.mxu0 1.0
  %1159 = vmatprep.subr.mxu0 0.0
  %1160 = vmatpush2.msra.mxu0 1.0
  %1161 = vmatprep.subr.mxu0 0.0
  %1162 = vmatpush2.msra.mxu0 1.0
  %1163 = vmatprep.subr.mxu0 0.0
  %1164 = vmatpush2.msra.mxu0 1.0
  %1165 = vmatprep.subr.mxu0 0.0
  %1166 = vmatpush2.msra.mxu0 1.0
  %1167 = vmatprep.subr.mxu0 0.0
  %1168 = vmatpush2.msra.mxu0 1.0
  %1169 = vmatprep.subr.mxu0 0.0
  %1170 = vmatpush2.msra.mxu0 1.0
  %1171 = vmatprep.subr.mxu0 0.0
  %1172 = vmatpush2.msra.mxu0 1.0
  %1173 = vmatprep.subr.mxu0 0.0
  %1174 = vmatpush2.msra.mxu0 1.0
  %1175 = vmatprep.subr.mxu0 0.0
  %1176 = vmatpush2.msra.mxu0 1.0
  %1177 = vmatprep.subr.mxu0 0.0
  %1178 = vmatpush2.msra.mxu0 1.0
  %1179 = vmatprep.subr.mxu0 0.0
  %1180 = vmatpush2.msra.mxu0 1.0
  %v1181 = vand.u32 %v88, 4294901760
  %v1182 = vsub.f32 %v88, %v1181
  %v1183 = vand.u32 %v1182, 4294901760
  %v1184 = vsub.f32 %v1182, %v1183
  %v1185 = vand.u32 %v1184, 4294901760
  %1186 = vmatprep.mubr.f32.mxu0 %v1185
  %v1187 = vand.u32 %v86, 4294901760
  %v1188 = vsub.f32 %v86, %v1187
  %v1189 = vand.u32 %v1188, 4294901760
  %v1190 = vsub.f32 %v1188, %v1189
  %v1191 = vand.u32 %v1190, 4294901760
  %1192 = vmatmul.mubr.f32.gmra.mxu0 %v1191
  %v1193 = vpop.f32.mrf.mxu0
  %v1194 = vadd.f32 %v1107, %v1193
  %v1195 = vpop.f32.mrf.mxu0
  %v1196 = vand.u32 %v106, 4294901760
  %v1197 = vsub.f32 %v106, %v1196
  %v1198 = vand.u32 %v1197, 4294901760
  %v1199 = vsub.f32 %v1197, %v1198
  %v1200 = vand.u32 %v1199, 4294901760
  %1201 = vmatprep.mubr.f32.mxu0 %v1200
  %v1202 = vand.u32 %v104, 4294901760
  %v1203 = vsub.f32 %v104, %v1202
  %v1204 = vand.u32 %v1203, 4294901760
  %v1205 = vsub.f32 %v1203, %v1204
  %v1206 = vand.u32 %v1205, 4294901760
  %1207 = vmatmul.mubr.f32.gmra.mxu0 %v1206
  %v1208 = vpop.f32.mrf.mxu0
  %v1209 = vadd.f32 %v1114, %v1208
  %v1210 = vpop.f32.mrf.mxu0
  %1211 = vdwg.mxu0
  %1212 = vmatprep.subr.mxu0 0.0
  %1213 = vmatpush1.msra.mxu0 0.0
  %1214 = vmatprep.subr.mxu0 0.0
  %1215 = vmatpush1.msra.mxu0 0.0
  %1216 = vmatprep.subr.mxu0 0.0
  %1217 = vmatpush1.msra.mxu0 0.0
  %1218 = vmatprep.subr.mxu0 0.0
  %1219 = vmatpush1.msra.mxu0 0.0
  %1220 = vmatprep.subr.mxu0 0.0
  %1221 = vmatpush1.msra.mxu0 0.0
  %1222 = vmatprep.subr.mxu0 0.0
  %1223 = vmatpush1.msra.mxu0 0.0
  %1224 = vmatprep.subr.mxu0 0.0
  %1225 = vmatpush1.msra.mxu0 0.0
  %1226 = vmatprep.subr.mxu0 0.0
  %1227 = vmatpush1.msra.mxu0 0.0
  %1228 = vmatprep.subr.mxu0 0.0
  %1229 = vmatpush1.msra.mxu0 0.0
  %1230 = vmatprep.subr.mxu0 0.0
  %1231 = vmatpush1.msra.mxu0 0.0
  %1232 = vmatprep.subr.mxu0 0.0
  %1233 = vmatpush1.msra.mxu0 0.0
  %1234 = vmatprep.subr.mxu0 0.0
  %1235 = vmatpush1.msra.mxu0 0.0
  %1236 = vmatprep.subr.mxu0 0.0
  %1237 = vmatpush1.msra.mxu0 0.0
  %1238 = vmatprep.subr.mxu0 0.0
  %1239 = vmatpush1.msra.mxu0 0.0
  %1240 = vmatprep.subr.mxu0 0.0
  %1241 = vmatpush1.msra.mxu0 0.0
  %1242 = vmatprep.subr.mxu0 0.0
  %1243 = vmatpush1.msra.mxu0 0.0
  %1244 = vmatprep.subr.mxu0 0.0
  %1245 = vmatpush2.msra.mxu0 0.0
  %1246 = vmatprep.subr.mxu0 0.0
  %1247 = vmatpush2.msra.mxu0 0.0
  %1248 = vmatprep.subr.mxu0 0.0
  %1249 = vmatpush2.msra.mxu0 0.0
  %1250 = vmatprep.subr.mxu0 0.0
  %1251 = vmatpush2.msra.mxu0 0.0
  %1252 = vmatprep.subr.mxu0 0.0
  %1253 = vmatpush2.msra.mxu0 0.0
  %1254 = vmatprep.subr.mxu0 0.0
  %1255 = vmatpush2.msra.mxu0 0.0
  %1256 = vmatprep.subr.mxu0 0.0
  %1257 = vmatpush2.msra.mxu0 0.0
  %1258 = vmatprep.subr.mxu0 0.0
  %1259 = vmatpush2.msra.mxu0 0.0
  %1260 = vmatprep.subr.mxu0 0.0
  %1261 = vmatpush2.msra.mxu0 0.0
  %1262 = vmatprep.subr.mxu0 0.0
  %1263 = vmatpush2.msra.mxu0 0.0
  %1264 = vmatprep.subr.mxu0 0.0
  %1265 = vmatpush2.msra.mxu0 0.0
  %1266 = vmatprep.subr.mxu0 0.0
  %1267 = vmatpush2.msra.mxu0 0.0
  %1268 = vmatprep.subr.mxu0 0.0
  %1269 = vmatpush2.msra.mxu0 0.0
  %1270 = vmatprep.subr.mxu0 0.0
  %1271 = vmatpush2.msra.mxu0 0.0
  %1272 = vmatprep.subr.mxu0 0.0
  %1273 = vmatpush2.msra.mxu0 0.0
  %1274 = vmatprep.subr.mxu0 0.0
  %1275 = vmatpush2.msra.mxu0 0.0
  %v1276 = vand.u32 %v88, 4294901760
  %1277 = vmatprep.mubr.f32.mxu0 %v1276
  %v1278 = vand.u32 %v86, 4294901760
  %1279 = vmatmul.mubr.f32.gmra.mxu0 %v1278
  %v1280 = vpop.f32.mrf.mxu0
  %v1281 = vadd.f32 %v1194, %v1280
  %v1282 = vpop.f32.mrf.mxu0
  %v1283 = vand.u32 %v106, 4294901760
  %1284 = vmatprep.mubr.f32.mxu0 %v1283
  %v1285 = vand.u32 %v104, 4294901760
  %1286 = vmatmul.mubr.f32.gmra.mxu0 %v1285
  %v1287 = vpop.f32.mrf.mxu0
  %v1288 = vadd.f32 %v1209, %v1287
  %v1289 = vpop.f32.mrf.mxu0
  %1290 = vdwg.mxu0
  %1291 = vmatprep.subr.mxu0 0.0
  %1292 = vmatpush1.msra.mxu0 0.0
  %1293 = vmatprep.subr.mxu0 0.0
  %1294 = vmatpush1.msra.mxu0 0.0
  %1295 = vmatprep.subr.mxu0 0.0
  %1296 = vmatpush1.msra.mxu0 0.0
  %1297 = vmatprep.subr.mxu0 0.0
  %1298 = vmatpush1.msra.mxu0 0.0
  %1299 = vmatprep.subr.mxu0 0.0
  %1300 = vmatpush1.msra.mxu0 0.0
  %1301 = vmatprep.subr.mxu0 0.0
  %1302 = vmatpush1.msra.mxu0 0.0
  %1303 = vmatprep.subr.mxu0 0.0
  %1304 = vmatpush1.msra.mxu0 0.0
  %1305 = vmatprep.subr.mxu0 0.0
  %1306 = vmatpush1.msra.mxu0 0.0
  %1307 = vmatprep.subr.mxu0 0.0
  %1308 = vmatpush1.msra.mxu0 0.0
  %1309 = vmatprep.subr.mxu0 0.0
  %1310 = vmatpush1.msra.mxu0 0.0
  %1311 = vmatprep.subr.mxu0 0.0
  %1312 = vmatpush1.msra.mxu0 0.0
  %1313 = vmatprep.subr.mxu0 0.0
  %1314 = vmatpush1.msra.mxu0 0.0
  %1315 = vmatprep.subr.mxu0 0.0
  %1316 = vmatpush1.msra.mxu0 0.0
  %1317 = vmatprep.subr.mxu0 0.0
  %1318 = vmatpush1.msra.mxu0 0.0
  %1319 = vmatprep.subr.mxu0 0.0
  %1320 = vmatpush1.msra.mxu0 0.0
  %1321 = vmatprep.subr.mxu0 0.0
  %1322 = vmatpush1.msra.mxu0 0.0
  %1323 = vmatprep.subr.mxu0 0.0
  %1324 = vmatpush2.msra.mxu0 0.0
  %1325 = vmatprep.subr.mxu0 0.0
  %1326 = vmatpush2.msra.mxu0 0.0
  %1327 = vmatprep.subr.mxu0 0.0
  %1328 = vmatpush2.msra.mxu0 0.0
  %1329 = vmatprep.subr.mxu0 0.0
  %1330 = vmatpush2.msra.mxu0 0.0
  %1331 = vmatprep.subr.mxu0 0.0
  %1332 = vmatpush2.msra.mxu0 0.0
  %1333 = vmatprep.subr.mxu0 0.0
  %1334 = vmatpush2.msra.mxu0 0.0
  %1335 = vmatprep.subr.mxu0 0.0
  %1336 = vmatpush2.msra.mxu0 0.0
  %1337 = vmatprep.subr.mxu0 0.0
  %1338 = vmatpush2.msra.mxu0 0.0
  %1339 = vmatprep.subr.mxu0 0.0
  %1340 = vmatpush2.msra.mxu0 0.0
  %1341 = vmatprep.subr.mxu0 0.0
  %1342 = vmatpush2.msra.mxu0 0.0
  %1343 = vmatprep.subr.mxu0 0.0
  %1344 = vmatpush2.msra.mxu0 0.0
  %1345 = vmatprep.subr.mxu0 0.0
  %1346 = vmatpush2.msra.mxu0 0.0
  %1347 = vmatprep.subr.mxu0 0.0
  %1348 = vmatpush2.msra.mxu0 0.0
  %1349 = vmatprep.subr.mxu0 0.0
  %1350 = vmatpush2.msra.mxu0 0.0
  %1351 = vmatprep.subr.mxu0 0.0
  %1352 = vmatpush2.msra.mxu0 0.0
  %1353 = vmatprep.subr.mxu0 0.0
  %1354 = vmatpush2.msra.mxu0 0.0
  %v1355 = vand.u32 %v88, 4294901760
  %v1356 = vsub.f32 %v88, %v1355
  %1357 = vmatprep.mubr.f32.mxu0 %v1356
  %v1358 = vand.u32 %v86, 4294901760
  %v1359 = vsub.f32 %v86, %v1358
  %1360 = vmatmul.mubr.f32.gmra.mxu0 %v1359
  %v1361 = vpop.f32.mrf.mxu0
  %v1362 = vadd.f32 %v1281, %v1361
  %v1363 = vpop.f32.mrf.mxu0
  %v1364 = vand.u32 %v106, 4294901760
  %v1365 = vsub.f32 %v106, %v1364
  %1366 = vmatprep.mubr.f32.mxu0 %v1365
  %v1367 = vand.u32 %v104, 4294901760
  %v1368 = vsub.f32 %v104, %v1367
  %1369 = vmatmul.mubr.f32.gmra.mxu0 %v1368
  %v1370 = vpop.f32.mrf.mxu0
  %v1371 = vadd.f32 %v1288, %v1370
  %v1372 = vpop.f32.mrf.mxu0
  %1373 = vdwg.mxu0
  %1374 = vmatprep.subr.mxu0 0.0
  %1375 = vmatpush1.msra.mxu0 1.0
  %1376 = vmatprep.subr.mxu0 0.0
  %1377 = vmatpush1.msra.mxu0 1.0
  %1378 = vmatprep.subr.mxu0 0.0
  %1379 = vmatpush1.msra.mxu0 1.0
  %1380 = vmatprep.subr.mxu0 0.0
  %1381 = vmatpush1.msra.mxu0 1.0
  %1382 = vmatprep.subr.mxu0 0.0
  %1383 = vmatpush1.msra.mxu0 1.0
  %1384 = vmatprep.subr.mxu0 0.0
  %1385 = vmatpush1.msra.mxu0 1.0
  %1386 = vmatprep.subr.mxu0 0.0
  %1387 = vmatpush1.msra.mxu0 1.0
  %1388 = vmatprep.subr.mxu0 0.0
  %1389 = vmatpush1.msra.mxu0 1.0
  %1390 = vmatprep.subr.mxu0 0.0
  %1391 = vmatpush1.msra.mxu0 1.0
  %1392 = vmatprep.subr.mxu0 0.0
  %1393 = vmatpush1.msra.mxu0 1.0
  %1394 = vmatprep.subr.mxu0 0.0
  %1395 = vmatpush1.msra.mxu0 1.0
  %1396 = vmatprep.subr.mxu0 0.0
  %1397 = vmatpush1.msra.mxu0 1.0
  %1398 = vmatprep.subr.mxu0 0.0
  %1399 = vmatpush1.msra.mxu0 1.0
  %1400 = vmatprep.subr.mxu0 0.0
  %1401 = vmatpush1.msra.mxu0 1.0
  %1402 = vmatprep.subr.mxu0 0.0
  %1403 = vmatpush1.msra.mxu0 1.0
  %1404 = vmatprep.subr.mxu0 0.0
  %1405 = vmatpush1.msra.mxu0 1.0
  %1406 = vmatprep.subr.mxu0 0.0
  %1407 = vmatpush2.msra.mxu0 1.0
  %1408 = vmatprep.subr.mxu0 0.0
  %1409 = vmatpush2.msra.mxu0 1.0
  %1410 = vmatprep.subr.mxu0 0.0
  %1411 = vmatpush2.msra.mxu0 1.0
  %1412 = vmatprep.subr.mxu0 0.0
  %1413 = vmatpush2.msra.mxu0 1.0
  %1414 = vmatprep.subr.mxu0 0.0
  %1415 = vmatpush2.msra.mxu0 1.0
  %1416 = vmatprep.subr.mxu0 0.0
  %1417 = vmatpush2.msra.mxu0 1.0
  %1418 = vmatprep.subr.mxu0 0.0
  %1419 = vmatpush2.msra.mxu0 1.0
  %1420 = vmatprep.subr.mxu0 0.0
  %1421 = vmatpush2.msra.mxu0 1.0
  %1422 = vmatprep.subr.mxu0 0.0
  %1423 = vmatpush2.msra.mxu0 1.0
  %1424 = vmatprep.subr.mxu0 0.0
  %1425 = vmatpush2.msra.mxu0 1.0
  %1426 = vmatprep.subr.mxu0 0.0
  %1427 = vmatpush2.msra.mxu0 1.0
  %1428 = vmatprep.subr.mxu0 0.0
  %1429 = vmatpush2.msra.mxu0 1.0
  %1430 = vmatprep.subr.mxu0 0.0
  %1431 = vmatpush2.msra.mxu0 1.0
  %1432 = vmatprep.subr.mxu0 0.0
  %1433 = vmatpush2.msra.mxu0 1.0
  %1434 = vmatprep.subr.mxu0 0.0
  %1435 = vmatpush2.msra.mxu0 1.0
  %1436 = vmatprep.subr.mxu0 0.0
  %1437 = vmatpush2.msra.mxu0 1.0
  %v1438 = vand.u32 %v88, 4294901760
  %v1439 = vsub.f32 %v88, %v1438
  %v1440 = vand.u32 %v1439, 4294901760
  %1441 = vmatprep.mubr.f32.mxu0 %v1440
  %v1442 = vand.u32 %v86, 4294901760
  %v1443 = vsub.f32 %v86, %v1442
  %v1444 = vand.u32 %v1443, 4294901760
  %1445 = vmatmul.mubr.f32.gmra.mxu0 %v1444
  %v1446 = vpop.f32.mrf.mxu0
  %v1447 = vadd.f32 %v1362, %v1446
  %v1448 = vpop.f32.mrf.mxu0
  %v1449 = vand.u32 %v106, 4294901760
  %v1450 = vsub.f32 %v106, %v1449
  %v1451 = vand.u32 %v1450, 4294901760
  %1452 = vmatprep.mubr.f32.mxu0 %v1451
  %v1453 = vand.u32 %v104, 4294901760
  %v1454 = vsub.f32 %v104, %v1453
  %v1455 = vand.u32 %v1454, 4294901760
  %1456 = vmatmul.mubr.f32.gmra.mxu0 %v1455
  %v1457 = vpop.f32.mrf.mxu0
  %v1458 = vadd.f32 %v1371, %v1457
  %v1459 = vpop.f32.mrf.mxu0
  %1460 = vdwg.mxu0
  %1461 = vmatprep.subr.mxu0 0.0
  %1462 = vmatpush1.msra.mxu0 0.0
  %1463 = vmatprep.subr.mxu0 0.0
  %1464 = vmatpush1.msra.mxu0 0.0
  %1465 = vmatprep.subr.mxu0 0.0
  %1466 = vmatpush1.msra.mxu0 0.0
  %1467 = vmatprep.subr.mxu0 0.0
  %1468 = vmatpush1.msra.mxu0 0.0
  %1469 = vmatprep.subr.mxu0 0.0
  %1470 = vmatpush1.msra.mxu0 0.0
  %1471 = vmatprep.subr.mxu0 0.0
  %1472 = vmatpush1.msra.mxu0 0.0
  %1473 = vmatprep.subr.mxu0 0.0
  %1474 = vmatpush1.msra.mxu0 0.0
  %1475 = vmatprep.subr.mxu0 0.0
  %1476 = vmatpush1.msra.mxu0 0.0
  %1477 = vmatprep.subr.mxu0 0.0
  %1478 = vmatpush1.msra.mxu0 0.0
  %1479 = vmatprep.subr.mxu0 0.0
  %1480 = vmatpush1.msra.mxu0 0.0
  %1481 = vmatprep.subr.mxu0 0.0
  %1482 = vmatpush1.msra.mxu0 0.0
  %1483 = vmatprep.subr.mxu0 0.0
  %1484 = vmatpush1.msra.mxu0 0.0
  %1485 = vmatprep.subr.mxu0 0.0
  %1486 = vmatpush1.msra.mxu0 0.0
  %1487 = vmatprep.subr.mxu0 0.0
  %1488 = vmatpush1.msra.mxu0 0.0
  %1489 = vmatprep.subr.mxu0 0.0
  %1490 = vmatpush1.msra.mxu0 0.0
  %1491 = vmatprep.subr.mxu0 0.0
  %1492 = vmatpush1.msra.mxu0 0.0
  %1493 = vmatprep.subr.mxu0 0.0
  %1494 = vmatpush2.msra.mxu0 0.0
  %1495 = vmatprep.subr.mxu0 0.0
  %1496 = vmatpush2.msra.mxu0 0.0
  %1497 = vmatprep.subr.mxu0 0.0
  %1498 = vmatpush2.msra.mxu0 0.0
  %1499 = vmatprep.subr.mxu0 0.0
  %1500 = vmatpush2.msra.mxu0 0.0
  %1501 = vmatprep.subr.mxu0 0.0
  %1502 = vmatpush2.msra.mxu0 0.0
  %1503 = vmatprep.subr.mxu0 0.0
  %1504 = vmatpush2.msra.mxu0 0.0
  %1505 = vmatprep.subr.mxu0 0.0
  %1506 = vmatpush2.msra.mxu0 0.0
  %1507 = vmatprep.subr.mxu0 0.0
  %1508 = vmatpush2.msra.mxu0 0.0
  %1509 = vmatprep.subr.mxu0 0.0
  %1510 = vmatpush2.msra.mxu0 0.0
  %1511 = vmatprep.subr.mxu0 0.0
  %1512 = vmatpush2.msra.mxu0 0.0
  %1513 = vmatprep.subr.mxu0 0.0
  %1514 = vmatpush2.msra.mxu0 0.0
  %1515 = vmatprep.subr.mxu0 0.0
  %1516 = vmatpush2.msra.mxu0 0.0
  %1517 = vmatprep.subr.mxu0 0.0
  %1518 = vmatpush2.msra.mxu0 0.0
  %1519 = vmatprep.subr.mxu0 0.0
  %1520 = vmatpush2.msra.mxu0 0.0
  %1521 = vmatprep.subr.mxu0 0.0
  %1522 = vmatpush2.msra.mxu0 0.0
  %1523 = vmatprep.subr.mxu0 0.0
  %1524 = vmatpush2.msra.mxu0 0.0
  %v1525 = vand.u32 %v88, 4294901760
  %1526 = vmatprep.mubr.f32.mxu0 %v1525
  %v1527 = vand.u32 %v86, 4294901760
  %1528 = vmatmul.mubr.f32.gmra.mxu0 %v1527
  %v1529 = vpop.f32.mrf.mxu0
  %v1530 = vadd.f32 %v1447, %v1529
  %v1531 = vpop.f32.mrf.mxu0
  %v1532 = vand.u32 %v106, 4294901760
  %1533 = vmatprep.mubr.f32.mxu0 %v1532
  %v1534 = vand.u32 %v104, 4294901760
  %1535 = vmatmul.mubr.f32.gmra.mxu0 %v1534
  %v1536 = vpop.f32.mrf.mxu0
  %v1537 = vadd.f32 %v1458, %v1536
  %v1538 = vpop.f32.mrf.mxu0
  %1539 = vdwg.mxu0
  %1540 = vmatprep.subr.mxu0 0.0
  %1541 = vmatpush1.msra.mxu0 1.0
  %1542 = vmatprep.subr.mxu0 0.0
  %1543 = vmatpush1.msra.mxu0 1.0
  %1544 = vmatprep.subr.mxu0 0.0
  %1545 = vmatpush1.msra.mxu0 1.0
  %1546 = vmatprep.subr.mxu0 0.0
  %1547 = vmatpush1.msra.mxu0 1.0
  %1548 = vmatprep.subr.mxu0 0.0
  %1549 = vmatpush1.msra.mxu0 1.0
  %1550 = vmatprep.subr.mxu0 0.0
  %1551 = vmatpush1.msra.mxu0 1.0
  %1552 = vmatprep.subr.mxu0 0.0
  %1553 = vmatpush1.msra.mxu0 1.0
  %1554 = vmatprep.subr.mxu0 0.0
  %1555 = vmatpush1.msra.mxu0 1.0
  %1556 = vmatprep.subr.mxu0 0.0
  %1557 = vmatpush1.msra.mxu0 1.0
  %1558 = vmatprep.subr.mxu0 0.0
  %1559 = vmatpush1.msra.mxu0 1.0
  %1560 = vmatprep.subr.mxu0 0.0
  %1561 = vmatpush1.msra.mxu0 1.0
  %1562 = vmatprep.subr.mxu0 0.0
  %1563 = vmatpush1.msra.mxu0 1.0
  %1564 = vmatprep.subr.mxu0 0.0
  %1565 = vmatpush1.msra.mxu0 1.0
  %1566 = vmatprep.subr.mxu0 0.0
  %1567 = vmatpush1.msra.mxu0 1.0
  %1568 = vmatprep.subr.mxu0 0.0
  %1569 = vmatpush1.msra.mxu0 1.0
  %1570 = vmatprep.subr.mxu0 0.0
  %1571 = vmatpush1.msra.mxu0 1.0
  %1572 = vmatprep.subr.mxu0 0.0
  %1573 = vmatpush2.msra.mxu0 1.0
  %1574 = vmatprep.subr.mxu0 0.0
  %1575 = vmatpush2.msra.mxu0 1.0
  %1576 = vmatprep.subr.mxu0 0.0
  %1577 = vmatpush2.msra.mxu0 1.0
  %1578 = vmatprep.subr.mxu0 0.0
  %1579 = vmatpush2.msra.mxu0 1.0
  %1580 = vmatprep.subr.mxu0 0.0
  %1581 = vmatpush2.msra.mxu0 1.0
  %1582 = vmatprep.subr.mxu0 0.0
  %1583 = vmatpush2.msra.mxu0 1.0
  %1584 = vmatprep.subr.mxu0 0.0
  %1585 = vmatpush2.msra.mxu0 1.0
  %1586 = vmatprep.subr.mxu0 0.0
  %1587 = vmatpush2.msra.mxu0 1.0
  %1588 = vmatprep.subr.mxu0 0.0
  %1589 = vmatpush2.msra.mxu0 1.0
  %1590 = vmatprep.subr.mxu0 0.0
  %1591 = vmatpush2.msra.mxu0 1.0
  %1592 = vmatprep.subr.mxu0 0.0
  %1593 = vmatpush2.msra.mxu0 1.0
  %1594 = vmatprep.subr.mxu0 0.0
  %1595 = vmatpush2.msra.mxu0 1.0
  %1596 = vmatprep.subr.mxu0 0.0
  %1597 = vmatpush2.msra.mxu0 1.0
  %1598 = vmatprep.subr.mxu0 0.0
  %1599 = vmatpush2.msra.mxu0 1.0
  %1600 = vmatprep.subr.mxu0 0.0
  %1601 = vmatpush2.msra.mxu0 1.0
  %1602 = vmatprep.subr.mxu0 0.0
  %1603 = vmatpush2.msra.mxu0 1.0
  %v1604 = vand.u32 %v88, 4294901760
  %1605 = vmatprep.mubr.f32.mxu0 %v1604
  %v1606 = vand.u32 %v86, 4294901760
  %1607 = vmatmul.mubr.f32.gmra.mxu0 %v1606
  %v1608 = vpop.f32.mrf.mxu0
  %v1609 = vadd.f32 %v1530, %v1608
  %v1610 = vpop.f32.mrf.mxu0
  %v1611 = vand.u32 %v106, 4294901760
  %1612 = vmatprep.mubr.f32.mxu0 %v1611
  %v1613 = vand.u32 %v104, 4294901760
  %1614 = vmatmul.mubr.f32.gmra.mxu0 %v1613
  %v1615 = vpop.f32.mrf.mxu0
  %v1616 = vadd.f32 %v1537, %v1615
  %v1617 = vpop.f32.mrf.mxu0
  %1618 = vdwg.mxu0
  %1619 = vmatprep.subr.mxu0 0.0
  %1620 = vmatpush1.msra.mxu0 1.0
  %1621 = vmatprep.subr.mxu0 0.0
  %1622 = vmatpush1.msra.mxu0 1.0
  %1623 = vmatprep.subr.mxu0 0.0
  %1624 = vmatpush1.msra.mxu0 1.0
  %1625 = vmatprep.subr.mxu0 0.0
  %1626 = vmatpush1.msra.mxu0 1.0
  %1627 = vmatprep.subr.mxu0 0.0
  %1628 = vmatpush1.msra.mxu0 1.0
  %1629 = vmatprep.subr.mxu0 0.0
  %1630 = vmatpush1.msra.mxu0 1.0
  %1631 = vmatprep.subr.mxu0 0.0
  %1632 = vmatpush1.msra.mxu0 1.0
  %1633 = vmatprep.subr.mxu0 0.0
  %1634 = vmatpush1.msra.mxu0 1.0
  %1635 = vmatprep.subr.mxu0 0.0
  %1636 = vmatpush1.msra.mxu0 1.0
  %1637 = vmatprep.subr.mxu0 0.0
  %1638 = vmatpush1.msra.mxu0 1.0
  %1639 = vmatprep.subr.mxu0 0.0
  %1640 = vmatpush1.msra.mxu0 1.0
  %1641 = vmatprep.subr.mxu0 0.0
  %1642 = vmatpush1.msra.mxu0 1.0
  %1643 = vmatprep.subr.mxu0 0.0
  %1644 = vmatpush1.msra.mxu0 1.0
  %1645 = vmatprep.subr.mxu0 0.0
  %1646 = vmatpush1.msra.mxu0 1.0
  %1647 = vmatprep.subr.mxu0 0.0
  %1648 = vmatpush1.msra.mxu0 1.0
  %1649 = vmatprep.subr.mxu0 0.0
  %1650 = vmatpush1.msra.mxu0 1.0
  %1651 = vmatprep.subr.mxu0 0.0
  %1652 = vmatpush2.msra.mxu0 1.0
  %1653 = vmatprep.subr.mxu0 0.0
  %1654 = vmatpush2.msra.mxu0 1.0
  %1655 = vmatprep.subr.mxu0 0.0
  %1656 = vmatpush2.msra.mxu0 1.0
  %1657 = vmatprep.subr.mxu0 0.0
  %1658 = vmatpush2.msra.mxu0 1.0
  %1659 = vmatprep.subr.mxu0 0.0
  %1660 = vmatpush2.msra.mxu0 1.0
  %1661 = vmatprep.subr.mxu0 0.0
  %1662 = vmatpush2.msra.mxu0 1.0
  %1663 = vmatprep.subr.mxu0 0.0
  %1664 = vmatpush2.msra.mxu0 1.0
  %1665 = vmatprep.subr.mxu0 0.0
  %1666 = vmatpush2.msra.mxu0 1.0
  %1667 = vmatprep.subr.mxu0 0.0
  %1668 = vmatpush2.msra.mxu0 1.0
  %1669 = vmatprep.subr.mxu0 0.0
  %1670 = vmatpush2.msra.mxu0 1.0
  %1671 = vmatprep.subr.mxu0 0.0
  %1672 = vmatpush2.msra.mxu0 1.0
  %1673 = vmatprep.subr.mxu0 0.0
  %1674 = vmatpush2.msra.mxu0 1.0
  %1675 = vmatprep.subr.mxu0 0.0
  %1676 = vmatpush2.msra.mxu0 1.0
  %1677 = vmatprep.subr.mxu0 0.0
  %1678 = vmatpush2.msra.mxu0 1.0
  %1679 = vmatprep.subr.mxu0 0.0
  %1680 = vmatpush2.msra.mxu0 1.0
  %1681 = vmatprep.subr.mxu0 0.0
  %1682 = vmatpush2.msra.mxu0 1.0
  %v1683 = vand.u32 %v92, 4294901760
  %v1684 = vsub.f32 %v92, %v1683
  %v1685 = vand.u32 %v1684, 4294901760
  %v1686 = vsub.f32 %v1684, %v1685
  %v1687 = vand.u32 %v1686, 4294901760
  %1688 = vmatprep.mubr.f32.mxu0 %v1687
  %v1689 = vand.u32 %v90, 4294901760
  %v1690 = vsub.f32 %v90, %v1689
  %v1691 = vand.u32 %v1690, 4294901760
  %v1692 = vsub.f32 %v1690, %v1691
  %v1693 = vand.u32 %v1692, 4294901760
  %1694 = vmatmul.mubr.f32.gmra.mxu0 %v1693
  %v1695 = vpop.f32.mrf.mxu0
  %v1696 = vadd.f32 %v1609, %v1695
  %v1697 = vpop.f32.mrf.mxu0
  %v1698 = vand.u32 %v110, 4294901760
  %v1699 = vsub.f32 %v110, %v1698
  %v1700 = vand.u32 %v1699, 4294901760
  %v1701 = vsub.f32 %v1699, %v1700
  %v1702 = vand.u32 %v1701, 4294901760
  %1703 = vmatprep.mubr.f32.mxu0 %v1702
  %v1704 = vand.u32 %v108, 4294901760
  %v1705 = vsub.f32 %v108, %v1704
  %v1706 = vand.u32 %v1705, 4294901760
  %v1707 = vsub.f32 %v1705, %v1706
  %v1708 = vand.u32 %v1707, 4294901760
  %1709 = vmatmul.mubr.f32.gmra.mxu0 %v1708
  %v1710 = vpop.f32.mrf.mxu0
  %v1711 = vadd.f32 %v1616, %v1710
  %v1712 = vpop.f32.mrf.mxu0
  %1713 = vdwg.mxu0
  %1714 = vmatprep.subr.mxu0 0.0
  %1715 = vmatpush1.msra.mxu0 0.0
  %1716 = vmatprep.subr.mxu0 0.0
  %1717 = vmatpush1.msra.mxu0 0.0
  %1718 = vmatprep.subr.mxu0 0.0
  %1719 = vmatpush1.msra.mxu0 0.0
  %1720 = vmatprep.subr.mxu0 0.0
  %1721 = vmatpush1.msra.mxu0 0.0
  %1722 = vmatprep.subr.mxu0 0.0
  %1723 = vmatpush1.msra.mxu0 0.0
  %1724 = vmatprep.subr.mxu0 0.0
  %1725 = vmatpush1.msra.mxu0 0.0
  %1726 = vmatprep.subr.mxu0 0.0
  %1727 = vmatpush1.msra.mxu0 0.0
  %1728 = vmatprep.subr.mxu0 0.0
  %1729 = vmatpush1.msra.mxu0 0.0
  %1730 = vmatprep.subr.mxu0 0.0
  %1731 = vmatpush1.msra.mxu0 0.0
  %1732 = vmatprep.subr.mxu0 0.0
  %1733 = vmatpush1.msra.mxu0 0.0
  %1734 = vmatprep.subr.mxu0 0.0
  %1735 = vmatpush1.msra.mxu0 0.0
  %1736 = vmatprep.subr.mxu0 0.0
  %1737 = vmatpush1.msra.mxu0 0.0
  %1738 = vmatprep.subr.mxu0 0.0
  %1739 = vmatpush1.msra.mxu0 0.0
  %1740 = vmatprep.subr.mxu0 0.0
  %1741 = vmatpush1.msra.mxu0 0.0
  %1742 = vmatprep.subr.mxu0 0.0
  %1743 = vmatpush1.msra.mxu0 0.0
  %1744 = vmatprep.subr.mxu0 0.0
  %1745 = vmatpush1.msra.mxu0 0.0
  %1746 = vmatprep.subr.mxu0 0.0
  %1747 = vmatpush2.msra.mxu0 0.0
  %1748 = vmatprep.subr.mxu0 0.0
  %1749 = vmatpush2.msra.mxu0 0.0
  %1750 = vmatprep.subr.mxu0 0.0
  %1751 = vmatpush2.msra.mxu0 0.0
  %1752 = vmatprep.subr.mxu0 0.0
  %1753 = vmatpush2.msra.mxu0 0.0
  %1754 = vmatprep.subr.mxu0 0.0
  %1755 = vmatpush2.msra.mxu0 0.0
  %1756 = vmatprep.subr.mxu0 0.0
  %1757 = vmatpush2.msra.mxu0 0.0
  %1758 = vmatprep.subr.mxu0 0.0
  %1759 = vmatpush2.msra.mxu0 0.0
  %1760 = vmatprep.subr.mxu0 0.0
  %1761 = vmatpush2.msra.mxu0 0.0
  %1762 = vmatprep.subr.mxu0 0.0
  %1763 = vmatpush2.msra.mxu0 0.0
  %1764 = vmatprep.subr.mxu0 0.0
  %1765 = vmatpush2.msra.mxu0 0.0
  %1766 = vmatprep.subr.mxu0 0.0
  %1767 = vmatpush2.msra.mxu0 0.0
  %1768 = vmatprep.subr.mxu0 0.0
  %1769 = vmatpush2.msra.mxu0 0.0
  %1770 = vmatprep.subr.mxu0 0.0
  %1771 = vmatpush2.msra.mxu0 0.0
  %1772 = vmatprep.subr.mxu0 0.0
  %1773 = vmatpush2.msra.mxu0 0.0
  %1774 = vmatprep.subr.mxu0 0.0
  %1775 = vmatpush2.msra.mxu0 0.0
  %1776 = vmatprep.subr.mxu0 0.0
  %1777 = vmatpush2.msra.mxu0 0.0
  %v1778 = vand.u32 %v92, 4294901760
  %1779 = vmatprep.mubr.f32.mxu0 %v1778
  %v1780 = vand.u32 %v90, 4294901760
  %1781 = vmatmul.mubr.f32.gmra.mxu0 %v1780
  %v1782 = vpop.f32.mrf.mxu0
  %v1783 = vadd.f32 %v1696, %v1782
  %v1784 = vpop.f32.mrf.mxu0
  %v1785 = vand.u32 %v110, 4294901760
  %1786 = vmatprep.mubr.f32.mxu0 %v1785
  %v1787 = vand.u32 %v108, 4294901760
  %1788 = vmatmul.mubr.f32.gmra.mxu0 %v1787
  %v1789 = vpop.f32.mrf.mxu0
  %v1790 = vadd.f32 %v1711, %v1789
  %v1791 = vpop.f32.mrf.mxu0
  %1792 = vdwg.mxu0
  %1793 = vmatprep.subr.mxu0 0.0
  %1794 = vmatpush1.msra.mxu0 0.0
  %1795 = vmatprep.subr.mxu0 0.0
  %1796 = vmatpush1.msra.mxu0 0.0
  %1797 = vmatprep.subr.mxu0 0.0
  %1798 = vmatpush1.msra.mxu0 0.0
  %1799 = vmatprep.subr.mxu0 0.0
  %1800 = vmatpush1.msra.mxu0 0.0
  %1801 = vmatprep.subr.mxu0 0.0
  %1802 = vmatpush1.msra.mxu0 0.0
  %1803 = vmatprep.subr.mxu0 0.0
  %1804 = vmatpush1.msra.mxu0 0.0
  %1805 = vmatprep.subr.mxu0 0.0
  %1806 = vmatpush1.msra.mxu0 0.0
  %1807 = vmatprep.subr.mxu0 0.0
  %1808 = vmatpush1.msra.mxu0 0.0
  %1809 = vmatprep.subr.mxu0 0.0
  %1810 = vmatpush1.msra.mxu0 0.0
  %1811 = vmatprep.subr.mxu0 0.0
  %1812 = vmatpush1.msra.mxu0 0.0
  %1813 = vmatprep.subr.mxu0 0.0
  %1814 = vmatpush1.msra.mxu0 0.0
  %1815 = vmatprep.subr.mxu0 0.0
  %1816 = vmatpush1.msra.mxu0 0.0
  %1817 = vmatprep.subr.mxu0 0.0
  %1818 = vmatpush1.msra.mxu0 0.0
  %1819 = vmatprep.subr.mxu0 0.0
  %1820 = vmatpush1.msra.mxu0 0.0
  %1821 = vmatprep.subr.mxu0 0.0
  %1822 = vmatpush1.msra.mxu0 0.0
  %1823 = vmatprep.subr.mxu0 0.0
  %1824 = vmatpush1.msra.mxu0 0.0
  %1825 = vmatprep.subr.mxu0 0.0
  %1826 = vmatpush2.msra.mxu0 0.0
  %1827 = vmatprep.subr.mxu0 0.0
  %1828 = vmatpush2.msra.mxu0 0.0
  %1829 = vmatprep.subr.mxu0 0.0
  %1830 = vmatpush2.msra.mxu0 0.0
  %1831 = vmatprep.subr.mxu0 0.0
  %1832 = vmatpush2.msra.mxu0 0.0
  %1833 = vmatprep.subr.mxu0 0.0
  %1834 = vmatpush2.msra.mxu0 0.0
  %1835 = vmatprep.subr.mxu0 0.0
  %1836 = vmatpush2.msra.mxu0 0.0
  %1837 = vmatprep.subr.mxu0 0.0
  %1838 = vmatpush2.msra.mxu0 0.0
  %1839 = vmatprep.subr.mxu0 0.0
  %1840 = vmatpush2.msra.mxu0 0.0
  %1841 = vmatprep.subr.mxu0 0.0
  %1842 = vmatpush2.msra.mxu0 0.0
  %1843 = vmatprep.subr.mxu0 0.0
  %1844 = vmatpush2.msra.mxu0 0.0
  %1845 = vmatprep.subr.mxu0 0.0
  %1846 = vmatpush2.msra.mxu0 0.0
  %1847 = vmatprep.subr.mxu0 0.0
  %1848 = vmatpush2.msra.mxu0 0.0
  %1849 = vmatprep.subr.mxu0 0.0
  %1850 = vmatpush2.msra.mxu0 0.0
  %1851 = vmatprep.subr.mxu0 0.0
  %1852 = vmatpush2.msra.mxu0 0.0
  %1853 = vmatprep.subr.mxu0 0.0
  %1854 = vmatpush2.msra.mxu0 0.0
  %1855 = vmatprep.subr.mxu0 0.0
  %1856 = vmatpush2.msra.mxu0 0.0
  %v1857 = vand.u32 %v92, 4294901760
  %v1858 = vsub.f32 %v92, %v1857
  %1859 = vmatprep.mubr.f32.mxu0 %v1858
  %v1860 = vand.u32 %v90, 4294901760
  %v1861 = vsub.f32 %v90, %v1860
  %1862 = vmatmul.mubr.f32.gmra.mxu0 %v1861
  %v1863 = vpop.f32.mrf.mxu0
  %v1864 = vadd.f32 %v1783, %v1863
  %v1865 = vpop.f32.mrf.mxu0
  %v1866 = vand.u32 %v110, 4294901760
  %v1867 = vsub.f32 %v110, %v1866
  %1868 = vmatprep.mubr.f32.mxu0 %v1867
  %v1869 = vand.u32 %v108, 4294901760
  %v1870 = vsub.f32 %v108, %v1869
  %1871 = vmatmul.mubr.f32.gmra.mxu0 %v1870
  %v1872 = vpop.f32.mrf.mxu0
  %v1873 = vadd.f32 %v1790, %v1872
  %v1874 = vpop.f32.mrf.mxu0
  %1875 = vdwg.mxu0
  %1876 = vmatprep.subr.mxu0 0.0
  %1877 = vmatpush1.msra.mxu0 1.0
  %1878 = vmatprep.subr.mxu0 0.0
  %1879 = vmatpush1.msra.mxu0 1.0
  %1880 = vmatprep.subr.mxu0 0.0
  %1881 = vmatpush1.msra.mxu0 1.0
  %1882 = vmatprep.subr.mxu0 0.0
  %1883 = vmatpush1.msra.mxu0 1.0
  %1884 = vmatprep.subr.mxu0 0.0
  %1885 = vmatpush1.msra.mxu0 1.0
  %1886 = vmatprep.subr.mxu0 0.0
  %1887 = vmatpush1.msra.mxu0 1.0
  %1888 = vmatprep.subr.mxu0 0.0
  %1889 = vmatpush1.msra.mxu0 1.0
  %1890 = vmatprep.subr.mxu0 0.0
  %1891 = vmatpush1.msra.mxu0 1.0
  %1892 = vmatprep.subr.mxu0 0.0
  %1893 = vmatpush1.msra.mxu0 1.0
  %1894 = vmatprep.subr.mxu0 0.0
  %1895 = vmatpush1.msra.mxu0 1.0
  %1896 = vmatprep.subr.mxu0 0.0
  %1897 = vmatpush1.msra.mxu0 1.0
  %1898 = vmatprep.subr.mxu0 0.0
  %1899 = vmatpush1.msra.mxu0 1.0
  %1900 = vmatprep.subr.mxu0 0.0
  %1901 = vmatpush1.msra.mxu0 1.0
  %1902 = vmatprep.subr.mxu0 0.0
  %1903 = vmatpush1.msra.mxu0 1.0
  %1904 = vmatprep.subr.mxu0 0.0
  %1905 = vmatpush1.msra.mxu0 1.0
  %1906 = vmatprep.subr.mxu0 0.0
  %1907 = vmatpush1.msra.mxu0 1.0
  %1908 = vmatprep.subr.mxu0 0.0
  %1909 = vmatpush2.msra.mxu0 1.0
  %1910 = vmatprep.subr.mxu0 0.0
  %1911 = vmatpush2.msra.mxu0 1.0
  %1912 = vmatprep.subr.mxu0 0.0
  %1913 = vmatpush2.msra.mxu0 1.0
  %1914 = vmatprep.subr.mxu0 0.0
  %1915 = vmatpush2.msra.mxu0 1.0
  %1916 = vmatprep.subr.mxu0 0.0
  %1917 = vmatpush2.msra.mxu0 1.0
  %1918 = vmatprep.subr.mxu0 0.0
  %1919 = vmatpush2.msra.mxu0 1.0
  %1920 = vmatprep.subr.mxu0 0.0
  %1921 = vmatpush2.msra.mxu0 1.0
  %1922 = vmatprep.subr.mxu0 0.0
  %1923 = vmatpush2.msra.mxu0 1.0
  %1924 = vmatprep.subr.mxu0 0.0
  %1925 = vmatpush2.msra.mxu0 1.0
  %1926 = vmatprep.subr.mxu0 0.0
  %1927 = vmatpush2.msra.mxu0 1.0
  %1928 = vmatprep.subr.mxu0 0.0
  %1929 = vmatpush2.msra.mxu0 1.0
  %1930 = vmatprep.subr.mxu0 0.0
  %1931 = vmatpush2.msra.mxu0 1.0
  %1932 = vmatprep.subr.mxu0 0.0
  %1933 = vmatpush2.msra.mxu0 1.0
  %1934 = vmatprep.subr.mxu0 0.0
  %1935 = vmatpush2.msra.mxu0 1.0
  %1936 = vmatprep.subr.mxu0 0.0
  %1937 = vmatpush2.msra.mxu0 1.0
  %1938 = vmatprep.subr.mxu0 0.0
  %1939 = vmatpush2.msra.mxu0 1.0
  %v1940 = vand.u32 %v92, 4294901760
  %v1941 = vsub.f32 %v92, %v1940
  %v1942 = vand.u32 %v1941, 4294901760
  %1943 = vmatprep.mubr.f32.mxu0 %v1942
  %v1944 = vand.u32 %v90, 4294901760
  %v1945 = vsub.f32 %v90, %v1944
  %v1946 = vand.u32 %v1945, 4294901760
  %1947 = vmatmul.mubr.f32.gmra.mxu0 %v1946
  %v1948 = vpop.f32.mrf.mxu0
  %v1949 = vadd.f32 %v1864, %v1948
  %v1950 = vpop.f32.mrf.mxu0
  %v1951 = vand.u32 %v110, 4294901760
  %v1952 = vsub.f32 %v110, %v1951
  %v1953 = vand.u32 %v1952, 4294901760
  %1954 = vmatprep.mubr.f32.mxu0 %v1953
  %v1955 = vand.u32 %v108, 4294901760
  %v1956 = vsub.f32 %v108, %v1955
  %v1957 = vand.u32 %v1956, 4294901760
  %1958 = vmatmul.mubr.f32.gmra.mxu0 %v1957
  %v1959 = vpop.f32.mrf.mxu0
  %v1960 = vadd.f32 %v1873, %v1959
  %v1961 = vpop.f32.mrf.mxu0
  %1962 = vdwg.mxu0
  %1963 = vmatprep.subr.mxu0 0.0
  %1964 = vmatpush1.msra.mxu0 0.0
  %1965 = vmatprep.subr.mxu0 0.0
  %1966 = vmatpush1.msra.mxu0 0.0
  %1967 = vmatprep.subr.mxu0 0.0
  %1968 = vmatpush1.msra.mxu0 0.0
  %1969 = vmatprep.subr.mxu0 0.0
  %1970 = vmatpush1.msra.mxu0 0.0
  %1971 = vmatprep.subr.mxu0 0.0
  %1972 = vmatpush1.msra.mxu0 0.0
  %1973 = vmatprep.subr.mxu0 0.0
  %1974 = vmatpush1.msra.mxu0 0.0
  %1975 = vmatprep.subr.mxu0 0.0
  %1976 = vmatpush1.msra.mxu0 0.0
  %1977 = vmatprep.subr.mxu0 0.0
  %1978 = vmatpush1.msra.mxu0 0.0
  %1979 = vmatprep.subr.mxu0 0.0
  %1980 = vmatpush1.msra.mxu0 0.0
  %1981 = vmatprep.subr.mxu0 0.0
  %1982 = vmatpush1.msra.mxu0 0.0
  %1983 = vmatprep.subr.mxu0 0.0
  %1984 = vmatpush1.msra.mxu0 0.0
  %1985 = vmatprep.subr.mxu0 0.0
  %1986 = vmatpush1.msra.mxu0 0.0
  %1987 = vmatprep.subr.mxu0 0.0
  %1988 = vmatpush1.msra.mxu0 0.0
  %1989 = vmatprep.subr.mxu0 0.0
  %1990 = vmatpush1.msra.mxu0 0.0
  %1991 = vmatprep.subr.mxu0 0.0
  %1992 = vmatpush1.msra.mxu0 0.0
  %1993 = vmatprep.subr.mxu0 0.0
  %1994 = vmatpush1.msra.mxu0 0.0
  %1995 = vmatprep.subr.mxu0 0.0
  %1996 = vmatpush2.msra.mxu0 0.0
  %1997 = vmatprep.subr.mxu0 0.0
  %1998 = vmatpush2.msra.mxu0 0.0
  %1999 = vmatprep.subr.mxu0 0.0
  %2000 = vmatpush2.msra.mxu0 0.0
  %2001 = vmatprep.subr.mxu0 0.0
  %2002 = vmatpush2.msra.mxu0 0.0
  %2003 = vmatprep.subr.mxu0 0.0
  %2004 = vmatpush2.msra.mxu0 0.0
  %2005 = vmatprep.subr.mxu0 0.0
  %2006 = vmatpush2.msra.mxu0 0.0
  %2007 = vmatprep.subr.mxu0 0.0
  %2008 = vmatpush2.msra.mxu0 0.0
  %2009 = vmatprep.subr.mxu0 0.0
  %2010 = vmatpush2.msra.mxu0 0.0
  %2011 = vmatprep.subr.mxu0 0.0
  %2012 = vmatpush2.msra.mxu0 0.0
  %2013 = vmatprep.subr.mxu0 0.0
  %2014 = vmatpush2.msra.mxu0 0.0
  %2015 = vmatprep.subr.mxu0 0.0
  %2016 = vmatpush2.msra.mxu0 0.0
  %2017 = vmatprep.subr.mxu0 0.0
  %2018 = vmatpush2.msra.mxu0 0.0
  %2019 = vmatprep.subr.mxu0 0.0
  %2020 = vmatpush2.msra.mxu0 0.0
  %2021 = vmatprep.subr.mxu0 0.0
  %2022 = vmatpush2.msra.mxu0 0.0
  %2023 = vmatprep.subr.mxu0 0.0
  %2024 = vmatpush2.msra.mxu0 0.0
  %2025 = vmatprep.subr.mxu0 0.0
  %2026 = vmatpush2.msra.mxu0 0.0
  %v2027 = vand.u32 %v92, 4294901760
  %2028 = vmatprep.mubr.f32.mxu0 %v2027
  %v2029 = vand.u32 %v90, 4294901760
  %2030 = vmatmul.mubr.f32.gmra.mxu0 %v2029
  %v2031 = vpop.f32.mrf.mxu0
  %v2032 = vadd.f32 %v1949, %v2031
  %v2033 = vpop.f32.mrf.mxu0
  %v2034 = vand.u32 %v110, 4294901760
  %2035 = vmatprep.mubr.f32.mxu0 %v2034
  %v2036 = vand.u32 %v108, 4294901760
  %2037 = vmatmul.mubr.f32.gmra.mxu0 %v2036
  %v2038 = vpop.f32.mrf.mxu0
  %v2039 = vadd.f32 %v1960, %v2038
  %v2040 = vpop.f32.mrf.mxu0
  %2041 = vdwg.mxu0
  %2042 = vmatprep.subr.mxu0 0.0
  %2043 = vmatpush1.msra.mxu0 1.0
  %2044 = vmatprep.subr.mxu0 0.0
  %2045 = vmatpush1.msra.mxu0 1.0
  %2046 = vmatprep.subr.mxu0 0.0
  %2047 = vmatpush1.msra.mxu0 1.0
  %2048 = vmatprep.subr.mxu0 0.0
  %2049 = vmatpush1.msra.mxu0 1.0
  %2050 = vmatprep.subr.mxu0 0.0
  %2051 = vmatpush1.msra.mxu0 1.0
  %2052 = vmatprep.subr.mxu0 0.0
  %2053 = vmatpush1.msra.mxu0 1.0
  %2054 = vmatprep.subr.mxu0 0.0
  %2055 = vmatpush1.msra.mxu0 1.0
  %2056 = vmatprep.subr.mxu0 0.0
  %2057 = vmatpush1.msra.mxu0 1.0
  %2058 = vmatprep.subr.mxu0 0.0
  %2059 = vmatpush1.msra.mxu0 1.0
  %2060 = vmatprep.subr.mxu0 0.0
  %2061 = vmatpush1.msra.mxu0 1.0
  %2062 = vmatprep.subr.mxu0 0.0
  %2063 = vmatpush1.msra.mxu0 1.0
  %2064 = vmatprep.subr.mxu0 0.0
  %2065 = vmatpush1.msra.mxu0 1.0
  %2066 = vmatprep.subr.mxu0 0.0
  %2067 = vmatpush1.msra.mxu0 1.0
  %2068 = vmatprep.subr.mxu0 0.0
  %2069 = vmatpush1.msra.mxu0 1.0
  %2070 = vmatprep.subr.mxu0 0.0
  %2071 = vmatpush1.msra.mxu0 1.0
  %2072 = vmatprep.subr.mxu0 0.0
  %2073 = vmatpush1.msra.mxu0 1.0
  %2074 = vmatprep.subr.mxu0 0.0
  %2075 = vmatpush2.msra.mxu0 1.0
  %2076 = vmatprep.subr.mxu0 0.0
  %2077 = vmatpush2.msra.mxu0 1.0
  %2078 = vmatprep.subr.mxu0 0.0
  %2079 = vmatpush2.msra.mxu0 1.0
  %2080 = vmatprep.subr.mxu0 0.0
  %2081 = vmatpush2.msra.mxu0 1.0
  %2082 = vmatprep.subr.mxu0 0.0
  %2083 = vmatpush2.msra.mxu0 1.0
  %2084 = vmatprep.subr.mxu0 0.0
  %2085 = vmatpush2.msra.mxu0 1.0
  %2086 = vmatprep.subr.mxu0 0.0
  %2087 = vmatpush2.msra.mxu0 1.0
  %2088 = vmatprep.subr.mxu0 0.0
  %2089 = vmatpush2.msra.mxu0 1.0
  %2090 = vmatprep.subr.mxu0 0.0
  %2091 = vmatpush2.msra.mxu0 1.0
  %2092 = vmatprep.subr.mxu0 0.0
  %2093 = vmatpush2.msra.mxu0 1.0
  %2094 = vmatprep.subr.mxu0 0.0
  %2095 = vmatpush2.msra.mxu0 1.0
  %2096 = vmatprep.subr.mxu0 0.0
  %2097 = vmatpush2.msra.mxu0 1.0
  %2098 = vmatprep.subr.mxu0 0.0
  %2099 = vmatpush2.msra.mxu0 1.0
  %2100 = vmatprep.subr.mxu0 0.0
  %2101 = vmatpush2.msra.mxu0 1.0
  %2102 = vmatprep.subr.mxu0 0.0
  %2103 = vmatpush2.msra.mxu0 1.0
  %2104 = vmatprep.subr.mxu0 0.0
  %2105 = vmatpush2.msra.mxu0 1.0
  %v2106 = vand.u32 %v92, 4294901760
  %2107 = vmatprep.mubr.f32.mxu0 %v2106
  %v2108 = vand.u32 %v90, 4294901760
  %2109 = vmatmul.mubr.f32.gmra.mxu0 %v2108
  %v2110 = vpop.f32.mrf.mxu0
  %v2111 = vadd.f32 %v2032, %v2110
  %v2112 = vpop.f32.mrf.mxu0
  %v2113 = vand.u32 %v110, 4294901760
  %2114 = vmatprep.mubr.f32.mxu0 %v2113
  %v2115 = vand.u32 %v108, 4294901760
  %2116 = vmatmul.mubr.f32.gmra.mxu0 %v2115
  %v2117 = vpop.f32.mrf.mxu0
  %v2118 = vadd.f32 %v2039, %v2117
  %v2119 = vpop.f32.mrf.mxu0
  %2120 = vdwg.mxu0
  %2121 = vmatprep.subr.mxu0 0.0
  %2122 = vmatpush1.msra.mxu0 1.0
  %2123 = vmatprep.subr.mxu0 0.0
  %2124 = vmatpush1.msra.mxu0 1.0
  %2125 = vmatprep.subr.mxu0 0.0
  %2126 = vmatpush1.msra.mxu0 1.0
  %2127 = vmatprep.subr.mxu0 0.0
  %2128 = vmatpush1.msra.mxu0 1.0
  %2129 = vmatprep.subr.mxu0 0.0
  %2130 = vmatpush1.msra.mxu0 1.0
  %2131 = vmatprep.subr.mxu0 0.0
  %2132 = vmatpush1.msra.mxu0 1.0
  %2133 = vmatprep.subr.mxu0 0.0
  %2134 = vmatpush1.msra.mxu0 1.0
  %2135 = vmatprep.subr.mxu0 0.0
  %2136 = vmatpush1.msra.mxu0 1.0
  %2137 = vmatprep.subr.mxu0 0.0
  %2138 = vmatpush1.msra.mxu0 1.0
  %2139 = vmatprep.subr.mxu0 0.0
  %2140 = vmatpush1.msra.mxu0 1.0
  %2141 = vmatprep.subr.mxu0 0.0
  %2142 = vmatpush1.msra.mxu0 1.0
  %2143 = vmatprep.subr.mxu0 0.0
  %2144 = vmatpush1.msra.mxu0 1.0
  %2145 = vmatprep.subr.mxu0 0.0
  %2146 = vmatpush1.msra.mxu0 1.0
  %2147 = vmatprep.subr.mxu0 0.0
  %2148 = vmatpush1.msra.mxu0 1.0
  %2149 = vmatprep.subr.mxu0 0.0
  %2150 = vmatpush1.msra.mxu0 1.0
  %2151 = vmatprep.subr.mxu0 0.0
  %2152 = vmatpush1.msra.mxu0 1.0
  %2153 = vmatprep.subr.mxu0 0.0
  %2154 = vmatpush2.msra.mxu0 0.0
  %2155 = vmatprep.subr.mxu0 0.0
  %2156 = vmatpush2.msra.mxu0 0.0
  %2157 = vmatprep.subr.mxu0 0.0
  %2158 = vmatpush2.msra.mxu0 0.0
  %2159 = vmatprep.subr.mxu0 0.0
  %2160 = vmatpush2.msra.mxu0 0.0
  %2161 = vmatprep.subr.mxu0 0.0
  %2162 = vmatpush2.msra.mxu0 0.0
  %2163 = vmatprep.subr.mxu0 0.0
  %2164 = vmatpush2.msra.mxu0 0.0
  %2165 = vmatprep.subr.mxu0 0.0
  %2166 = vmatpush2.msra.mxu0 0.0
  %2167 = vmatprep.subr.mxu0 0.0
  %2168 = vmatpush2.msra.mxu0 0.0
  %2169 = vmatprep.subr.mxu0 0.0
  %2170 = vmatpush2.msra.mxu0 0.0
  %2171 = vmatprep.subr.mxu0 0.0
  %2172 = vmatpush2.msra.mxu0 0.0
  %2173 = vmatprep.subr.mxu0 0.0
  %2174 = vmatpush2.msra.mxu0 0.0
  %2175 = vmatprep.subr.mxu0 0.0
  %2176 = vmatpush2.msra.mxu0 0.0
  %2177 = vmatprep.subr.mxu0 0.0
  %2178 = vmatpush2.msra.mxu0 0.0
  %2179 = vmatprep.subr.mxu0 0.0
  %2180 = vmatpush2.msra.mxu0 0.0
  %2181 = vmatprep.subr.mxu0 0.0
  %2182 = vmatpush2.msra.mxu0 0.0
  %2183 = vmatprep.subr.mxu0 0.0
  %2184 = vmatpush2.msra.mxu0 0.0
  %2185 = vmatprep.mubr.f32.mxu0 0.0
  %v2186 = vand.u32 %v94, 4294901760
  %v2187 = vsub.f32 %v94, %v2186
  %v2188 = vand.u32 %v2187, 4294901760
  %v2189 = vsub.f32 %v2187, %v2188
  %v2190 = vand.u32 %v2189, 4294901760
  %2191 = vmatmul.mubr.f32.gmra.mxu0 %v2190
  %v2192 = vpop.f32.mrf.mxu0
  %v2193 = vadd.f32 %v2111, %v2192
  %v2194 = vpop.f32.mrf.mxu0
  %2195 = vmatprep.mubr.f32.mxu0 0.0
  %v2196 = vand.u32 %v112, 4294901760
  %v2197 = vsub.f32 %v112, %v2196
  %v2198 = vand.u32 %v2197, 4294901760
  %v2199 = vsub.f32 %v2197, %v2198
  %v2200 = vand.u32 %v2199, 4294901760
  %2201 = vmatmul.mubr.f32.gmra.mxu0 %v2200
  %v2202 = vpop.f32.mrf.mxu0
  %v2203 = vadd.f32 %v2118, %v2202
  %v2204 = vpop.f32.mrf.mxu0
  %2205 = vdwg.mxu0
  %2206 = vmatprep.subr.mxu0 0.0
  %2207 = vmatpush1.msra.mxu0 0.0
  %2208 = vmatprep.subr.mxu0 0.0
  %2209 = vmatpush1.msra.mxu0 0.0
  %2210 = vmatprep.subr.mxu0 0.0
  %2211 = vmatpush1.msra.mxu0 0.0
  %2212 = vmatprep.subr.mxu0 0.0
  %2213 = vmatpush1.msra.mxu0 0.0
  %2214 = vmatprep.subr.mxu0 0.0
  %2215 = vmatpush1.msra.mxu0 0.0
  %2216 = vmatprep.subr.mxu0 0.0
  %2217 = vmatpush1.msra.mxu0 0.0
  %2218 = vmatprep.subr.mxu0 0.0
  %2219 = vmatpush1.msra.mxu0 0.0
  %2220 = vmatprep.subr.mxu0 0.0
  %2221 = vmatpush1.msra.mxu0 0.0
  %2222 = vmatprep.subr.mxu0 0.0
  %2223 = vmatpush1.msra.mxu0 0.0
  %2224 = vmatprep.subr.mxu0 0.0
  %2225 = vmatpush1.msra.mxu0 0.0
  %2226 = vmatprep.subr.mxu0 0.0
  %2227 = vmatpush1.msra.mxu0 0.0
  %2228 = vmatprep.subr.mxu0 0.0
  %2229 = vmatpush1.msra.mxu0 0.0
  %2230 = vmatprep.subr.mxu0 0.0
  %2231 = vmatpush1.msra.mxu0 0.0
  %2232 = vmatprep.subr.mxu0 0.0
  %2233 = vmatpush1.msra.mxu0 0.0
  %2234 = vmatprep.subr.mxu0 0.0
  %2235 = vmatpush1.msra.mxu0 0.0
  %2236 = vmatprep.subr.mxu0 0.0
  %2237 = vmatpush1.msra.mxu0 0.0
  %2238 = vmatprep.subr.mxu0 0.0
  %2239 = vmatpush2.msra.mxu0 0.0
  %2240 = vmatprep.subr.mxu0 0.0
  %2241 = vmatpush2.msra.mxu0 0.0
  %2242 = vmatprep.subr.mxu0 0.0
  %2243 = vmatpush2.msra.mxu0 0.0
  %2244 = vmatprep.subr.mxu0 0.0
  %2245 = vmatpush2.msra.mxu0 0.0
  %2246 = vmatprep.subr.mxu0 0.0
  %2247 = vmatpush2.msra.mxu0 0.0
  %2248 = vmatprep.subr.mxu0 0.0
  %2249 = vmatpush2.msra.mxu0 0.0
  %2250 = vmatprep.subr.mxu0 0.0
  %2251 = vmatpush2.msra.mxu0 0.0
  %2252 = vmatprep.subr.mxu0 0.0
  %2253 = vmatpush2.msra.mxu0 0.0
  %2254 = vmatprep.subr.mxu0 0.0
  %2255 = vmatpush2.msra.mxu0 0.0
  %2256 = vmatprep.subr.mxu0 0.0
  %2257 = vmatpush2.msra.mxu0 0.0
  %2258 = vmatprep.subr.mxu0 0.0
  %2259 = vmatpush2.msra.mxu0 0.0
  %2260 = vmatprep.subr.mxu0 0.0
  %2261 = vmatpush2.msra.mxu0 0.0
  %2262 = vmatprep.subr.mxu0 0.0
  %2263 = vmatpush2.msra.mxu0 0.0
  %2264 = vmatprep.subr.mxu0 0.0
  %2265 = vmatpush2.msra.mxu0 0.0
  %2266 = vmatprep.subr.mxu0 0.0
  %2267 = vmatpush2.msra.mxu0 0.0
  %2268 = vmatprep.subr.mxu0 0.0
  %2269 = vmatpush2.msra.mxu0 0.0
  %2270 = vmatprep.mubr.f32.mxu0 0.0
  %v2271 = vand.u32 %v94, 4294901760
  %2272 = vmatmul.mubr.f32.gmra.mxu0 %v2271
  %v2273 = vpop.f32.mrf.mxu0
  %v2274 = vadd.f32 %v2193, %v2273
  %v2275 = vpop.f32.mrf.mxu0
  %2276 = vmatprep.mubr.f32.mxu0 0.0
  %v2277 = vand.u32 %v112, 4294901760
  %2278 = vmatmul.mubr.f32.gmra.mxu0 %v2277
  %v2279 = vpop.f32.mrf.mxu0
  %v2280 = vadd.f32 %v2203, %v2279
  %v2281 = vpop.f32.mrf.mxu0
  %2282 = vdwg.mxu0
  %2283 = vmatprep.subr.mxu0 0.0
  %2284 = vmatpush1.msra.mxu0 0.0
  %2285 = vmatprep.subr.mxu0 0.0
  %2286 = vmatpush1.msra.mxu0 0.0
  %2287 = vmatprep.subr.mxu0 0.0
  %2288 = vmatpush1.msra.mxu0 0.0
  %2289 = vmatprep.subr.mxu0 0.0
  %2290 = vmatpush1.msra.mxu0 0.0
  %2291 = vmatprep.subr.mxu0 0.0
  %2292 = vmatpush1.msra.mxu0 0.0
  %2293 = vmatprep.subr.mxu0 0.0
  %2294 = vmatpush1.msra.mxu0 0.0
  %2295 = vmatprep.subr.mxu0 0.0
  %2296 = vmatpush1.msra.mxu0 0.0
  %2297 = vmatprep.subr.mxu0 0.0
  %2298 = vmatpush1.msra.mxu0 0.0
  %2299 = vmatprep.subr.mxu0 0.0
  %2300 = vmatpush1.msra.mxu0 0.0
  %2301 = vmatprep.subr.mxu0 0.0
  %2302 = vmatpush1.msra.mxu0 0.0
  %2303 = vmatprep.subr.mxu0 0.0
  %2304 = vmatpush1.msra.mxu0 0.0
  %2305 = vmatprep.subr.mxu0 0.0
  %2306 = vmatpush1.msra.mxu0 0.0
  %2307 = vmatprep.subr.mxu0 0.0
  %2308 = vmatpush1.msra.mxu0 0.0
  %2309 = vmatprep.subr.mxu0 0.0
  %2310 = vmatpush1.msra.mxu0 0.0
  %2311 = vmatprep.subr.mxu0 0.0
  %2312 = vmatpush1.msra.mxu0 0.0
  %2313 = vmatprep.subr.mxu0 0.0
  %2314 = vmatpush1.msra.mxu0 0.0
  %2315 = vmatprep.subr.mxu0 0.0
  %2316 = vmatpush2.msra.mxu0 0.0
  %2317 = vmatprep.subr.mxu0 0.0
  %2318 = vmatpush2.msra.mxu0 0.0
  %2319 = vmatprep.subr.mxu0 0.0
  %2320 = vmatpush2.msra.mxu0 0.0
  %2321 = vmatprep.subr.mxu0 0.0
  %2322 = vmatpush2.msra.mxu0 0.0
  %2323 = vmatprep.subr.mxu0 0.0
  %2324 = vmatpush2.msra.mxu0 0.0
  %2325 = vmatprep.subr.mxu0 0.0
  %2326 = vmatpush2.msra.mxu0 0.0
  %2327 = vmatprep.subr.mxu0 0.0
  %2328 = vmatpush2.msra.mxu0 0.0
  %2329 = vmatprep.subr.mxu0 0.0
  %2330 = vmatpush2.msra.mxu0 0.0
  %2331 = vmatprep.subr.mxu0 0.0
  %2332 = vmatpush2.msra.mxu0 0.0
  %2333 = vmatprep.subr.mxu0 0.0
  %2334 = vmatpush2.msra.mxu0 0.0
  %2335 = vmatprep.subr.mxu0 0.0
  %2336 = vmatpush2.msra.mxu0 0.0
  %2337 = vmatprep.subr.mxu0 0.0
  %2338 = vmatpush2.msra.mxu0 0.0
  %2339 = vmatprep.subr.mxu0 0.0
  %2340 = vmatpush2.msra.mxu0 0.0
  %2341 = vmatprep.subr.mxu0 0.0
  %2342 = vmatpush2.msra.mxu0 0.0
  %2343 = vmatprep.subr.mxu0 0.0
  %2344 = vmatpush2.msra.mxu0 0.0
  %2345 = vmatprep.subr.mxu0 0.0
  %2346 = vmatpush2.msra.mxu0 0.0
  %2347 = vmatprep.mubr.f32.mxu0 0.0
  %v2348 = vand.u32 %v94, 4294901760
  %v2349 = vsub.f32 %v94, %v2348
  %2350 = vmatmul.mubr.f32.gmra.mxu0 %v2349
  %v2351 = vpop.f32.mrf.mxu0
  %v2352 = vadd.f32 %v2274, %v2351
  %v2353 = vpop.f32.mrf.mxu0
  %2354 = vmatprep.mubr.f32.mxu0 0.0
  %v2355 = vand.u32 %v112, 4294901760
  %v2356 = vsub.f32 %v112, %v2355
  %2357 = vmatmul.mubr.f32.gmra.mxu0 %v2356
  %v2358 = vpop.f32.mrf.mxu0
  %v2359 = vadd.f32 %v2280, %v2358
  %v2360 = vpop.f32.mrf.mxu0
  %2361 = vdwg.mxu0
  %2362 = vmatprep.subr.mxu0 0.0
  %2363 = vmatpush1.msra.mxu0 1.0
  %2364 = vmatprep.subr.mxu0 0.0
  %2365 = vmatpush1.msra.mxu0 1.0
  %2366 = vmatprep.subr.mxu0 0.0
  %2367 = vmatpush1.msra.mxu0 1.0
  %2368 = vmatprep.subr.mxu0 0.0
  %2369 = vmatpush1.msra.mxu0 1.0
  %2370 = vmatprep.subr.mxu0 0.0
  %2371 = vmatpush1.msra.mxu0 1.0
  %2372 = vmatprep.subr.mxu0 0.0
  %2373 = vmatpush1.msra.mxu0 1.0
  %2374 = vmatprep.subr.mxu0 0.0
  %2375 = vmatpush1.msra.mxu0 1.0
  %2376 = vmatprep.subr.mxu0 0.0
  %2377 = vmatpush1.msra.mxu0 1.0
  %2378 = vmatprep.subr.mxu0 0.0
  %2379 = vmatpush1.msra.mxu0 1.0
  %2380 = vmatprep.subr.mxu0 0.0
  %2381 = vmatpush1.msra.mxu0 1.0
  %2382 = vmatprep.subr.mxu0 0.0
  %2383 = vmatpush1.msra.mxu0 1.0
  %2384 = vmatprep.subr.mxu0 0.0
  %2385 = vmatpush1.msra.mxu0 1.0
  %2386 = vmatprep.subr.mxu0 0.0
  %2387 = vmatpush1.msra.mxu0 1.0
  %2388 = vmatprep.subr.mxu0 0.0
  %2389 = vmatpush1.msra.mxu0 1.0
  %2390 = vmatprep.subr.mxu0 0.0
  %2391 = vmatpush1.msra.mxu0 1.0
  %2392 = vmatprep.subr.mxu0 0.0
  %2393 = vmatpush1.msra.mxu0 1.0
  %2394 = vmatprep.subr.mxu0 0.0
  %2395 = vmatpush2.msra.mxu0 0.0
  %2396 = vmatprep.subr.mxu0 0.0
  %2397 = vmatpush2.msra.mxu0 0.0
  %2398 = vmatprep.subr.mxu0 0.0
  %2399 = vmatpush2.msra.mxu0 0.0
  %2400 = vmatprep.subr.mxu0 0.0
  %2401 = vmatpush2.msra.mxu0 0.0
  %2402 = vmatprep.subr.mxu0 0.0
  %2403 = vmatpush2.msra.mxu0 0.0
  %2404 = vmatprep.subr.mxu0 0.0
  %2405 = vmatpush2.msra.mxu0 0.0
  %2406 = vmatprep.subr.mxu0 0.0
  %2407 = vmatpush2.msra.mxu0 0.0
  %2408 = vmatprep.subr.mxu0 0.0
  %2409 = vmatpush2.msra.mxu0 0.0
  %2410 = vmatprep.subr.mxu0 0.0
  %2411 = vmatpush2.msra.mxu0 0.0
  %2412 = vmatprep.subr.mxu0 0.0
  %2413 = vmatpush2.msra.mxu0 0.0
  %2414 = vmatprep.subr.mxu0 0.0
  %2415 = vmatpush2.msra.mxu0 0.0
  %2416 = vmatprep.subr.mxu0 0.0
  %2417 = vmatpush2.msra.mxu0 0.0
  %2418 = vmatprep.subr.mxu0 0.0
  %2419 = vmatpush2.msra.mxu0 0.0
  %2420 = vmatprep.subr.mxu0 0.0
  %2421 = vmatpush2.msra.mxu0 0.0
  %2422 = vmatprep.subr.mxu0 0.0
  %2423 = vmatpush2.msra.mxu0 0.0
  %2424 = vmatprep.subr.mxu0 0.0
  %2425 = vmatpush2.msra.mxu0 0.0
  %2426 = vmatprep.mubr.f32.mxu0 0.0
  %v2427 = vand.u32 %v94, 4294901760
  %v2428 = vsub.f32 %v94, %v2427
  %v2429 = vand.u32 %v2428, 4294901760
  %2430 = vmatmul.mubr.f32.gmra.mxu0 %v2429
  %v2431 = vpop.f32.mrf.mxu0
  %v2432 = vadd.f32 %v2352, %v2431
  %v2433 = vpop.f32.mrf.mxu0
  %2434 = vmatprep.mubr.f32.mxu0 0.0
  %v2435 = vand.u32 %v112, 4294901760
  %v2436 = vsub.f32 %v112, %v2435
  %v2437 = vand.u32 %v2436, 4294901760
  %2438 = vmatmul.mubr.f32.gmra.mxu0 %v2437
  %v2439 = vpop.f32.mrf.mxu0
  %v2440 = vadd.f32 %v2359, %v2439
  %v2441 = vpop.f32.mrf.mxu0
  %2442 = vdwg.mxu0
  %2443 = vmatprep.subr.mxu0 0.0
  %2444 = vmatpush1.msra.mxu0 0.0
  %2445 = vmatprep.subr.mxu0 0.0
  %2446 = vmatpush1.msra.mxu0 0.0
  %2447 = vmatprep.subr.mxu0 0.0
  %2448 = vmatpush1.msra.mxu0 0.0
  %2449 = vmatprep.subr.mxu0 0.0
  %2450 = vmatpush1.msra.mxu0 0.0
  %2451 = vmatprep.subr.mxu0 0.0
  %2452 = vmatpush1.msra.mxu0 0.0
  %2453 = vmatprep.subr.mxu0 0.0
  %2454 = vmatpush1.msra.mxu0 0.0
  %2455 = vmatprep.subr.mxu0 0.0
  %2456 = vmatpush1.msra.mxu0 0.0
  %2457 = vmatprep.subr.mxu0 0.0
  %2458 = vmatpush1.msra.mxu0 0.0
  %2459 = vmatprep.subr.mxu0 0.0
  %2460 = vmatpush1.msra.mxu0 0.0
  %2461 = vmatprep.subr.mxu0 0.0
  %2462 = vmatpush1.msra.mxu0 0.0
  %2463 = vmatprep.subr.mxu0 0.0
  %2464 = vmatpush1.msra.mxu0 0.0
  %2465 = vmatprep.subr.mxu0 0.0
  %2466 = vmatpush1.msra.mxu0 0.0
  %2467 = vmatprep.subr.mxu0 0.0
  %2468 = vmatpush1.msra.mxu0 0.0
  %2469 = vmatprep.subr.mxu0 0.0
  %2470 = vmatpush1.msra.mxu0 0.0
  %2471 = vmatprep.subr.mxu0 0.0
  %2472 = vmatpush1.msra.mxu0 0.0
  %2473 = vmatprep.subr.mxu0 0.0
  %2474 = vmatpush1.msra.mxu0 0.0
  %2475 = vmatprep.subr.mxu0 0.0
  %2476 = vmatpush2.msra.mxu0 0.0
  %2477 = vmatprep.subr.mxu0 0.0
  %2478 = vmatpush2.msra.mxu0 0.0
  %2479 = vmatprep.subr.mxu0 0.0
  %2480 = vmatpush2.msra.mxu0 0.0
  %2481 = vmatprep.subr.mxu0 0.0
  %2482 = vmatpush2.msra.mxu0 0.0
  %2483 = vmatprep.subr.mxu0 0.0
  %2484 = vmatpush2.msra.mxu0 0.0
  %2485 = vmatprep.subr.mxu0 0.0
  %2486 = vmatpush2.msra.mxu0 0.0
  %2487 = vmatprep.subr.mxu0 0.0
  %2488 = vmatpush2.msra.mxu0 0.0
  %2489 = vmatprep.subr.mxu0 0.0
  %2490 = vmatpush2.msra.mxu0 0.0
  %2491 = vmatprep.subr.mxu0 0.0
  %2492 = vmatpush2.msra.mxu0 0.0
  %2493 = vmatprep.subr.mxu0 0.0
  %2494 = vmatpush2.msra.mxu0 0.0
  %2495 = vmatprep.subr.mxu0 0.0
  %2496 = vmatpush2.msra.mxu0 0.0
  %2497 = vmatprep.subr.mxu0 0.0
  %2498 = vmatpush2.msra.mxu0 0.0
  %2499 = vmatprep.subr.mxu0 0.0
  %2500 = vmatpush2.msra.mxu0 0.0
  %2501 = vmatprep.subr.mxu0 0.0
  %2502 = vmatpush2.msra.mxu0 0.0
  %2503 = vmatprep.subr.mxu0 0.0
  %2504 = vmatpush2.msra.mxu0 0.0
  %2505 = vmatprep.subr.mxu0 0.0
  %2506 = vmatpush2.msra.mxu0 0.0
  %2507 = vmatprep.mubr.f32.mxu0 0.0
  %v2508 = vand.u32 %v94, 4294901760
  %2509 = vmatmul.mubr.f32.gmra.mxu0 %v2508
  %v2510 = vpop.f32.mrf.mxu0
  %v2511 = vadd.f32 %v2432, %v2510
  %v2512 = vpop.f32.mrf.mxu0
  %2513 = vmatprep.mubr.f32.mxu0 0.0
  %v2514 = vand.u32 %v112, 4294901760
  %2515 = vmatmul.mubr.f32.gmra.mxu0 %v2514
  %v2516 = vpop.f32.mrf.mxu0
  %v2517 = vadd.f32 %v2440, %v2516
  %v2518 = vpop.f32.mrf.mxu0
  %2519 = vdwg.mxu0
  %2520 = vmatprep.subr.mxu0 0.0
  %2521 = vmatpush1.msra.mxu0 1.0
  %2522 = vmatprep.subr.mxu0 0.0
  %2523 = vmatpush1.msra.mxu0 1.0
  %2524 = vmatprep.subr.mxu0 0.0
  %2525 = vmatpush1.msra.mxu0 1.0
  %2526 = vmatprep.subr.mxu0 0.0
  %2527 = vmatpush1.msra.mxu0 1.0
  %2528 = vmatprep.subr.mxu0 0.0
  %2529 = vmatpush1.msra.mxu0 1.0
  %2530 = vmatprep.subr.mxu0 0.0
  %2531 = vmatpush1.msra.mxu0 1.0
  %2532 = vmatprep.subr.mxu0 0.0
  %2533 = vmatpush1.msra.mxu0 1.0
  %2534 = vmatprep.subr.mxu0 0.0
  %2535 = vmatpush1.msra.mxu0 1.0
  %2536 = vmatprep.subr.mxu0 0.0
  %2537 = vmatpush1.msra.mxu0 1.0
  %2538 = vmatprep.subr.mxu0 0.0
  %2539 = vmatpush1.msra.mxu0 1.0
  %2540 = vmatprep.subr.mxu0 0.0
  %2541 = vmatpush1.msra.mxu0 1.0
  %2542 = vmatprep.subr.mxu0 0.0
  %2543 = vmatpush1.msra.mxu0 1.0
  %2544 = vmatprep.subr.mxu0 0.0
  %2545 = vmatpush1.msra.mxu0 1.0
  %2546 = vmatprep.subr.mxu0 0.0
  %2547 = vmatpush1.msra.mxu0 1.0
  %2548 = vmatprep.subr.mxu0 0.0
  %2549 = vmatpush1.msra.mxu0 1.0
  %2550 = vmatprep.subr.mxu0 0.0
  %2551 = vmatpush1.msra.mxu0 1.0
  %2552 = vmatprep.subr.mxu0 0.0
  %2553 = vmatpush2.msra.mxu0 0.0
  %2554 = vmatprep.subr.mxu0 0.0
  %2555 = vmatpush2.msra.mxu0 0.0
  %2556 = vmatprep.subr.mxu0 0.0
  %2557 = vmatpush2.msra.mxu0 0.0
  %2558 = vmatprep.subr.mxu0 0.0
  %2559 = vmatpush2.msra.mxu0 0.0
  %2560 = vmatprep.subr.mxu0 0.0
  %2561 = vmatpush2.msra.mxu0 0.0
  %2562 = vmatprep.subr.mxu0 0.0
  %2563 = vmatpush2.msra.mxu0 0.0
  %2564 = vmatprep.subr.mxu0 0.0
  %2565 = vmatpush2.msra.mxu0 0.0
  %2566 = vmatprep.subr.mxu0 0.0
  %2567 = vmatpush2.msra.mxu0 0.0
  %2568 = vmatprep.subr.mxu0 0.0
  %2569 = vmatpush2.msra.mxu0 0.0
  %2570 = vmatprep.subr.mxu0 0.0
  %2571 = vmatpush2.msra.mxu0 0.0
  %2572 = vmatprep.subr.mxu0 0.0
  %2573 = vmatpush2.msra.mxu0 0.0
  %2574 = vmatprep.subr.mxu0 0.0
  %2575 = vmatpush2.msra.mxu0 0.0
  %2576 = vmatprep.subr.mxu0 0.0
  %2577 = vmatpush2.msra.mxu0 0.0
  %2578 = vmatprep.subr.mxu0 0.0
  %2579 = vmatpush2.msra.mxu0 0.0
  %2580 = vmatprep.subr.mxu0 0.0
  %2581 = vmatpush2.msra.mxu0 0.0
  %2582 = vmatprep.subr.mxu0 0.0
  %2583 = vmatpush2.msra.mxu0 0.0
  %2584 = vmatprep.mubr.f32.mxu0 0.0
  %v2585 = vand.u32 %v94, 4294901760
  %2586 = vmatmul.mubr.f32.gmra.mxu0 %v2585
  %v2587 = vpop.f32.mrf.mxu0
  %v2588 = vadd.f32 %v2511, %v2587
  %v2589 = vpop.f32.mrf.mxu0
  %2590 = vmatprep.mubr.f32.mxu0 0.0
  %v2591 = vand.u32 %v112, 4294901760
  %2592 = vmatmul.mubr.f32.gmra.mxu0 %v2591
  %v2593 = vpop.f32.mrf.mxu0
  %v2594 = vadd.f32 %v2517, %v2593
  %v2595 = vpop.f32.mrf.mxu0
  %2596 = vdwg.mxu0
  %v2597 = vlog2.pop %v2588
  %v2598 = vmul.f32 %v2597, 0.6931472
  %v2599 = vlog2.pop %v2594
  %v2600 = vmul.f32 %v2599, 0.6931472
  %v2601 = vld [vmem:[%s4] sm:$0xff]
  %v2602 = vld [vmem:[%s4 + $0x8] sm:$0x1]
  %v2605 = vlaneseq
  %v2606 = vshrl.u32 %v2605, 7
  %v2607 = vsub.s32 0, %v2606
  %v2608 = vrot.slane %v2601, %v2607
  %v2609 = vlaneseq
  %v2610 = vshrl.u32 %v2609, 7
  %v2611 = vsub.s32 1, %v2610
  %v2612 = vrot.slane %v2601, %v2611
  %v2613 = vlaneseq
  %v2614 = vshrl.u32 %v2613, 7
  %v2615 = vsub.s32 2, %v2614
  %v2616 = vrot.slane %v2601, %v2615
  %v2617 = vlaneseq
  %v2618 = vshrl.u32 %v2617, 7
  %v2619 = vsub.s32 3, %v2618
  %v2620 = vrot.slane %v2601, %v2619
  %v2621 = vlaneseq
  %v2622 = vshrl.u32 %v2621, 7
  %v2623 = vsub.s32 4, %v2622
  %v2624 = vrot.slane %v2601, %v2623
  %v2625 = vlaneseq
  %v2626 = vshrl.u32 %v2625, 7
  %v2627 = vsub.s32 5, %v2626
  %v2628 = vrot.slane %v2601, %v2627
  %v2629 = vlaneseq
  %v2630 = vshrl.u32 %v2629, 7
  %v2631 = vsub.s32 6, %v2630
  %v2632 = vrot.slane %v2601, %v2631
  %v2633 = vlaneseq
  %v2634 = vshrl.u32 %v2633, 7
  %v2635 = vsub.s32 7, %v2634
  %v2636 = vrot.slane %v2601, %v2635
  %v2637 = vlaneseq
  %v2638 = vshrl.u32 %v2637, 7
  %v2639 = vsub.s32 0, %v2638
  %v2640 = vrot.slane %v2602, %v2639
  %2651 = vset.pattern.permute.xlu0 3
  %2652 = vperm.xlu0 %2651, %v37
  %v2653 = vpop.permute.xlu0 %2652
  %2656 = vset.pattern.permute.xlu0 3
  %2657 = vperm.xlu0 %2656, %v38
  %v2658 = vpop.permute.xlu0 %2657
  %v2660 = vsub.f32 %v2608, %v2653
  %v2661 = vsub.f32 %v2612, %v2653
  %v2662 = vsub.f32 %v2616, %v2653
  %v2663 = vsub.f32 %v2620, %v2653
  %v2664 = vsub.f32 %v2624, %v2653
  %v2665 = vsub.f32 %v2628, %v2653
  %v2666 = vsub.f32 %v2632, %v2653
  %v2667 = vsub.f32 %v2636, %v2653
  %v2668 = vsub.f32 %v2640, %v2653
  %v2669 = vsub.f32 %v2608, %v2658
  %v2670 = vsub.f32 %v2612, %v2658
  %v2671 = vsub.f32 %v2616, %v2658
  %v2672 = vsub.f32 %v2620, %v2658
  %v2673 = vsub.f32 %v2624, %v2658
  %v2674 = vsub.f32 %v2628, %v2658
  %v2675 = vsub.f32 %v2632, %v2658
  %v2676 = vsub.f32 %v2636, %v2658
  %v2677 = vsub.f32 %v2640, %v2658
  %v2678 = vmin.f32 %v2660, 0.0
  %v2679 = vmin.f32 %v2661, 0.0
  %v2680 = vmin.f32 %v2662, 0.0
  %v2681 = vmin.f32 %v2663, 0.0
  %v2682 = vmin.f32 %v2664, 0.0
  %v2683 = vmin.f32 %v2665, 0.0
  %v2684 = vmin.f32 %v2666, 0.0
  %v2685 = vmin.f32 %v2667, 0.0
  %v2686 = vmin.f32 %v2668, 0.0
  %v2687 = vmin.f32 %v2669, 0.0
  %v2688 = vmin.f32 %v2670, 0.0
  %v2689 = vmin.f32 %v2671, 0.0
  %v2690 = vmin.f32 %v2672, 0.0
  %v2691 = vmin.f32 %v2673, 0.0
  %v2692 = vmin.f32 %v2674, 0.0
  %v2693 = vmin.f32 %v2675, 0.0
  %v2694 = vmin.f32 %v2676, 0.0
  %v2695 = vmin.f32 %v2677, 0.0
  %v2696 = vmul.f32 %v2678, 0.8
  %v2697 = vmul.f32 %v2679, 0.8
  %v2698 = vmul.f32 %v2680, 0.8
  %v2699 = vmul.f32 %v2681, 0.8
  %v2700 = vmul.f32 %v2682, 0.8
  %v2701 = vmul.f32 %v2683, 0.8
  %v2702 = vmul.f32 %v2684, 0.8
  %v2703 = vmul.f32 %v2685, 0.8
  %v2704 = vmul.f32 %v2686, 0.8
  %v2705 = vmul.f32 %v2687, 0.8
  %v2706 = vmul.f32 %v2688, 0.8
  %v2707 = vmul.f32 %v2689, 0.8
  %v2708 = vmul.f32 %v2690, 0.8
  %v2709 = vmul.f32 %v2691, 0.8
  %v2710 = vmul.f32 %v2692, 0.8
  %v2711 = vmul.f32 %v2693, 0.8
  %v2712 = vmul.f32 %v2694, 0.8
  %v2713 = vmul.f32 %v2695, 0.8
  %v2714 = vsub.f32 %v37, %v48
  %v2715 = vsub.f32 %v38, %v58
  %2718 = vrot.lane.b32.xlu0 %v2598, 4
  %v2719 = vpop.permute.xlu0 %2718
  %2720 = vrot.lane.b32.xlu0 %v2600, 4
  %v2721 = vpop.permute.xlu0 %2720
  %v2724 = vsub.f32 %v2714, %v2719
  %v2725 = vsub.f32 %v2715, %v2721
  %v2726 = vmax.f32 %v2724, -4.6051702
  %v2727 = vmax.f32 %v2725, -4.6051702
  %2728 = vset.pattern.permute.xlu0 0
  %2729 = vperm.xlu0 %2728, %v2598
  %v2730 = vpop.permute.xlu0 %2729
  %2732 = vset.pattern.permute.xlu0 0
  %2733 = vperm.xlu0 %2732, %v2600
  %v2734 = vpop.permute.xlu0 %2733
  %v2736 = vsub.f32 %v59, %v2730
  %v2737 = vsub.f32 %v60, %v2730
  %v2738 = vsub.f32 %v61, %v2730
  %v2739 = vsub.f32 %v62, %v2730
  %v2740 = vsub.f32 %v63, %v2730
  %v2741 = vsub.f32 %v64, %v2730
  %v2742 = vsub.f32 %v65, %v2730
  %v2743 = vsub.f32 %v66, %v2730
  %v2744 = vsub.f32 %v67, %v2730
  %v2745 = vsub.f32 %v68, %v2734
  %v2746 = vsub.f32 %v69, %v2734
  %v2747 = vsub.f32 %v70, %v2734
  %v2748 = vsub.f32 %v71, %v2734
  %v2749 = vsub.f32 %v72, %v2734
  %v2750 = vsub.f32 %v73, %v2734
  %v2751 = vsub.f32 %v74, %v2734
  %v2752 = vsub.f32 %v75, %v2734
  %v2753 = vsub.f32 %v76, %v2734
  %2755 = vset.pattern.permute.xlu0 4
  %2756 = vperm.xlu0 %2755, %v2726
  %v2757 = vpop.permute.xlu0 %2756
  %2760 = vset.pattern.permute.xlu0 4
  %2761 = vperm.xlu0 %2760, %v2727
  %v2762 = vpop.permute.xlu0 %2761
  %v2764 = vsub.f32 %v2736, %v2757
  %v2765 = vsub.f32 %v2737, %v2757
  %v2766 = vsub.f32 %v2738, %v2757
  %v2767 = vsub.f32 %v2739, %v2757
  %v2768 = vsub.f32 %v2740, %v2757
  %v2769 = vsub.f32 %v2741, %v2757
  %v2770 = vsub.f32 %v2742, %v2757
  %v2771 = vsub.f32 %v2743, %v2757
  %v2772 = vsub.f32 %v2744, %v2757
  %v2773 = vsub.f32 %v2745, %v2762
  %v2774 = vsub.f32 %v2746, %v2762
  %v2775 = vsub.f32 %v2747, %v2762
  %v2776 = vsub.f32 %v2748, %v2762
  %v2777 = vsub.f32 %v2749, %v2762
  %v2778 = vsub.f32 %v2750, %v2762
  %v2779 = vsub.f32 %v2751, %v2762
  %v2780 = vsub.f32 %v2752, %v2762
  %v2781 = vsub.f32 %v2753, %v2762
  %v2782 = vmax.f32 %v2764, 0.0
  %v2783 = vmax.f32 %v2765, 0.0
  %v2784 = vmax.f32 %v2766, 0.0
  %v2785 = vmax.f32 %v2767, 0.0
  %v2786 = vmax.f32 %v2768, 0.0
  %v2787 = vmax.f32 %v2769, 0.0
  %v2788 = vmax.f32 %v2770, 0.0
  %v2789 = vmax.f32 %v2771, 0.0
  %v2790 = vmax.f32 %v2772, 0.0
  %v2791 = vmax.f32 %v2773, 0.0
  %v2792 = vmax.f32 %v2774, 0.0
  %v2793 = vmax.f32 %v2775, 0.0
  %v2794 = vmax.f32 %v2776, 0.0
  %v2795 = vmax.f32 %v2777, 0.0
  %v2796 = vmax.f32 %v2778, 0.0
  %v2797 = vmax.f32 %v2779, 0.0
  %v2798 = vmax.f32 %v2780, 0.0
  %v2799 = vmax.f32 %v2781, 0.0
  %v2800 = vmul.f32 %v2782, 2.0
  %v2801 = vmul.f32 %v2783, 2.0
  %v2802 = vmul.f32 %v2784, 2.0
  %v2803 = vmul.f32 %v2785, 2.0
  %v2804 = vmul.f32 %v2786, 2.0
  %v2805 = vmul.f32 %v2787, 2.0
  %v2806 = vmul.f32 %v2788, 2.0
  %v2807 = vmul.f32 %v2789, 2.0
  %v2808 = vmul.f32 %v2790, 2.0
  %v2809 = vmul.f32 %v2791, 2.0
  %v2810 = vmul.f32 %v2792, 2.0
  %v2811 = vmul.f32 %v2793, 2.0
  %v2812 = vmul.f32 %v2794, 2.0
  %v2813 = vmul.f32 %v2795, 2.0
  %v2814 = vmul.f32 %v2796, 2.0
  %v2815 = vmul.f32 %v2797, 2.0
  %v2816 = vmul.f32 %v2798, 2.0
  %v2817 = vmul.f32 %v2799, 2.0
  %v2818 = vadd.f32 %v2696, %v2800
  %v2819 = vadd.f32 %v2697, %v2801
  %v2820 = vadd.f32 %v2698, %v2802
  %v2821 = vadd.f32 %v2699, %v2803
  %v2822 = vadd.f32 %v2700, %v2804
  %v2823 = vadd.f32 %v2701, %v2805
  %v2824 = vadd.f32 %v2702, %v2806
  %v2825 = vadd.f32 %v2703, %v2807
  %v2826 = vadd.f32 %v2704, %v2808
  %v2827 = vadd.f32 %v2705, %v2809
  %v2828 = vadd.f32 %v2706, %v2810
  %v2829 = vadd.f32 %v2707, %v2811
  %v2830 = vadd.f32 %v2708, %v2812
  %v2831 = vadd.f32 %v2709, %v2813
  %v2832 = vadd.f32 %v2710, %v2814
  %v2833 = vadd.f32 %v2711, %v2815
  %v2834 = vadd.f32 %v2712, %v2816
  %v2835 = vadd.f32 %v2713, %v2817
  %v2836 = vadd.f32 %v19, %v2818
  %v2837 = vadd.f32 %v20, %v2819
  %v2838 = vadd.f32 %v21, %v2820
  %v2839 = vadd.f32 %v22, %v2821
  %v2840 = vadd.f32 %v23, %v2822
  %v2841 = vadd.f32 %v24, %v2823
  %v2842 = vadd.f32 %v25, %v2824
  %v2843 = vadd.f32 %v26, %v2825
  %v2844 = vadd.f32 %v27, %v2826
  %v2845 = vadd.f32 %v28, %v2827
  %v2846 = vadd.f32 %v29, %v2828
  %v2847 = vadd.f32 %v30, %v2829
  %v2848 = vadd.f32 %v31, %v2830
  %v2849 = vadd.f32 %v32, %v2831
  %v2850 = vadd.f32 %v33, %v2832
  %v2851 = vadd.f32 %v34, %v2833
  %v2852 = vadd.f32 %v35, %v2834
  %v2853 = vadd.f32 %v36, %v2835
  %v2854 = vmax.f32 %v2836, %v2838
  %v2855 = vmax.f32 %v2837, %v2839
  %v2856 = vmax.f32 %v2854, %v2840
  %v2857 = vmax.f32 %v2855, %v2841
  %v2858 = vmax.f32 %v2856, %v2842
  %v2859 = vmax.f32 %v2857, %v2843
  %v2860 = vmax.f32 %v2858, %v2844
  %v2861 = vmax.f32 %v2860, %v2859
  %2862 = vmax.xlane.f32.xlu0 %v2861
  %v2863 = vpop.xlane.xlu0 %2862
  %v2864 = vmax.f32 %v2845, %v2847
  %v2865 = vmax.f32 %v2846, %v2848
  %v2866 = vmax.f32 %v2864, %v2849
  %v2867 = vmax.f32 %v2865, %v2850
  %v2868 = vmax.f32 %v2866, %v2851
  %v2869 = vmax.f32 %v2867, %v2852
  %v2870 = vmax.f32 %v2868, %v2853
  %v2871 = vmax.f32 %v2870, %v2869
  %2872 = vmax.xlane.f32.xlu0 %v2871
  %v2873 = vpop.xlane.xlu0 %2872
  %v2874 = vsub.f32 %v2836, %v2863
  %v2875 = vsub.f32 %v2837, %v2863
  %v2876 = vsub.f32 %v2838, %v2863
  %v2877 = vsub.f32 %v2839, %v2863
  %v2878 = vsub.f32 %v2840, %v2863
  %v2879 = vsub.f32 %v2841, %v2863
  %v2880 = vsub.f32 %v2842, %v2863
  %v2881 = vsub.f32 %v2843, %v2863
  %v2882 = vsub.f32 %v2844, %v2863
  %v2883 = vsub.f32 %v2845, %v2873
  %v2884 = vsub.f32 %v2846, %v2873
  %v2885 = vsub.f32 %v2847, %v2873
  %v2886 = vsub.f32 %v2848, %v2873
  %v2887 = vsub.f32 %v2849, %v2873
  %v2888 = vsub.f32 %v2850, %v2873
  %v2889 = vsub.f32 %v2851, %v2873
  %v2890 = vsub.f32 %v2852, %v2873
  %v2891 = vsub.f32 %v2853, %v2873
  %v2892 = vmul.f32 %v2874, 1.442695
  %v2893 = vpow.pop %v2892
  %v2894 = vmul.f32 %v2875, 1.442695
  %v2895 = vpow.pop %v2894
  %v2896 = vmul.f32 %v2876, 1.442695
  %v2897 = vpow.pop %v2896
  %v2898 = vmul.f32 %v2877, 1.442695
  %v2899 = vpow.pop %v2898
  %v2900 = vmul.f32 %v2878, 1.442695
  %v2901 = vpow.pop %v2900
  %v2902 = vmul.f32 %v2879, 1.442695
  %v2903 = vpow.pop %v2902
  %v2904 = vmul.f32 %v2880, 1.442695
  %v2905 = vpow.pop %v2904
  %v2906 = vmul.f32 %v2881, 1.442695
  %v2907 = vpow.pop %v2906
  %v2908 = vmul.f32 %v2882, 1.442695
  %v2909 = vpow.pop %v2908
  %v2910 = vmul.f32 %v2883, 1.442695
  %v2911 = vpow.pop %v2910
  %v2912 = vmul.f32 %v2884, 1.442695
  %v2913 = vpow.pop %v2912
  %v2914 = vmul.f32 %v2885, 1.442695
  %v2915 = vpow.pop %v2914
  %v2916 = vmul.f32 %v2886, 1.442695
  %v2917 = vpow.pop %v2916
  %v2918 = vmul.f32 %v2887, 1.442695
  %v2919 = vpow.pop %v2918
  %v2920 = vmul.f32 %v2888, 1.442695
  %v2921 = vpow.pop %v2920
  %v2922 = vmul.f32 %v2889, 1.442695
  %v2923 = vpow.pop %v2922
  %v2924 = vmul.f32 %v2890, 1.442695
  %v2925 = vpow.pop %v2924
  %v2926 = vmul.f32 %v2891, 1.442695
  %v2927 = vpow.pop %v2926
  %2928 = vmatprep.subr.mxu0 0.0
  %2929 = vmatpush1.msra.mxu0 1.0
  %2930 = vmatprep.subr.mxu0 0.0
  %2931 = vmatpush1.msra.mxu0 1.0
  %2932 = vmatprep.subr.mxu0 0.0
  %2933 = vmatpush1.msra.mxu0 1.0
  %2934 = vmatprep.subr.mxu0 0.0
  %2935 = vmatpush1.msra.mxu0 1.0
  %2936 = vmatprep.subr.mxu0 0.0
  %2937 = vmatpush1.msra.mxu0 1.0
  %2938 = vmatprep.subr.mxu0 0.0
  %2939 = vmatpush1.msra.mxu0 1.0
  %2940 = vmatprep.subr.mxu0 0.0
  %2941 = vmatpush1.msra.mxu0 1.0
  %2942 = vmatprep.subr.mxu0 0.0
  %2943 = vmatpush1.msra.mxu0 1.0
  %2944 = vmatprep.subr.mxu0 0.0
  %2945 = vmatpush1.msra.mxu0 1.0
  %2946 = vmatprep.subr.mxu0 0.0
  %2947 = vmatpush1.msra.mxu0 1.0
  %2948 = vmatprep.subr.mxu0 0.0
  %2949 = vmatpush1.msra.mxu0 1.0
  %2950 = vmatprep.subr.mxu0 0.0
  %2951 = vmatpush1.msra.mxu0 1.0
  %2952 = vmatprep.subr.mxu0 0.0
  %2953 = vmatpush1.msra.mxu0 1.0
  %2954 = vmatprep.subr.mxu0 0.0
  %2955 = vmatpush1.msra.mxu0 1.0
  %2956 = vmatprep.subr.mxu0 0.0
  %2957 = vmatpush1.msra.mxu0 1.0
  %2958 = vmatprep.subr.mxu0 0.0
  %2959 = vmatpush1.msra.mxu0 1.0
  %2960 = vmatprep.subr.mxu0 0.0
  %2961 = vmatpush2.msra.mxu0 1.0
  %2962 = vmatprep.subr.mxu0 0.0
  %2963 = vmatpush2.msra.mxu0 1.0
  %2964 = vmatprep.subr.mxu0 0.0
  %2965 = vmatpush2.msra.mxu0 1.0
  %2966 = vmatprep.subr.mxu0 0.0
  %2967 = vmatpush2.msra.mxu0 1.0
  %2968 = vmatprep.subr.mxu0 0.0
  %2969 = vmatpush2.msra.mxu0 1.0
  %2970 = vmatprep.subr.mxu0 0.0
  %2971 = vmatpush2.msra.mxu0 1.0
  %2972 = vmatprep.subr.mxu0 0.0
  %2973 = vmatpush2.msra.mxu0 1.0
  %2974 = vmatprep.subr.mxu0 0.0
  %2975 = vmatpush2.msra.mxu0 1.0
  %2976 = vmatprep.subr.mxu0 0.0
  %2977 = vmatpush2.msra.mxu0 1.0
  %2978 = vmatprep.subr.mxu0 0.0
  %2979 = vmatpush2.msra.mxu0 1.0
  %2980 = vmatprep.subr.mxu0 0.0
  %2981 = vmatpush2.msra.mxu0 1.0
  %2982 = vmatprep.subr.mxu0 0.0
  %2983 = vmatpush2.msra.mxu0 1.0
  %2984 = vmatprep.subr.mxu0 0.0
  %2985 = vmatpush2.msra.mxu0 1.0
  %2986 = vmatprep.subr.mxu0 0.0
  %2987 = vmatpush2.msra.mxu0 1.0
  %2988 = vmatprep.subr.mxu0 0.0
  %2989 = vmatpush2.msra.mxu0 1.0
  %2990 = vmatprep.subr.mxu0 0.0
  %2991 = vmatpush2.msra.mxu0 1.0
  %v2992 = vand.u32 %v2895, 4294901760
  %v2993 = vsub.f32 %v2895, %v2992
  %v2994 = vand.u32 %v2993, 4294901760
  %v2995 = vsub.f32 %v2993, %v2994
  %v2996 = vand.u32 %v2995, 4294901760
  %2997 = vmatprep.mubr.f32.mxu0 %v2996
  %v2998 = vand.u32 %v2893, 4294901760
  %v2999 = vsub.f32 %v2893, %v2998
  %v3000 = vand.u32 %v2999, 4294901760
  %v3001 = vsub.f32 %v2999, %v3000
  %v3002 = vand.u32 %v3001, 4294901760
  %3003 = vmatmul.mubr.f32.gmra.mxu0 %v3002
  %v3004 = vpop.f32.mrf.mxu0
  %v3005 = vadd.f32 0.0, %v3004
  %v3006 = vpop.f32.mrf.mxu0
  %v3007 = vand.u32 %v2913, 4294901760
  %v3008 = vsub.f32 %v2913, %v3007
  %v3009 = vand.u32 %v3008, 4294901760
  %v3010 = vsub.f32 %v3008, %v3009
  %v3011 = vand.u32 %v3010, 4294901760
  %3012 = vmatprep.mubr.f32.mxu0 %v3011
  %v3013 = vand.u32 %v2911, 4294901760
  %v3014 = vsub.f32 %v2911, %v3013
  %v3015 = vand.u32 %v3014, 4294901760
  %v3016 = vsub.f32 %v3014, %v3015
  %v3017 = vand.u32 %v3016, 4294901760
  %3018 = vmatmul.mubr.f32.gmra.mxu0 %v3017
  %v3019 = vpop.f32.mrf.mxu0
  %v3020 = vadd.f32 0.0, %v3019
  %v3021 = vpop.f32.mrf.mxu0
  %3022 = vdwg.mxu0
  %3023 = vmatprep.subr.mxu0 0.0
  %3024 = vmatpush1.msra.mxu0 0.0
  %3025 = vmatprep.subr.mxu0 0.0
  %3026 = vmatpush1.msra.mxu0 0.0
  %3027 = vmatprep.subr.mxu0 0.0
  %3028 = vmatpush1.msra.mxu0 0.0
  %3029 = vmatprep.subr.mxu0 0.0
  %3030 = vmatpush1.msra.mxu0 0.0
  %3031 = vmatprep.subr.mxu0 0.0
  %3032 = vmatpush1.msra.mxu0 0.0
  %3033 = vmatprep.subr.mxu0 0.0
  %3034 = vmatpush1.msra.mxu0 0.0
  %3035 = vmatprep.subr.mxu0 0.0
  %3036 = vmatpush1.msra.mxu0 0.0
  %3037 = vmatprep.subr.mxu0 0.0
  %3038 = vmatpush1.msra.mxu0 0.0
  %3039 = vmatprep.subr.mxu0 0.0
  %3040 = vmatpush1.msra.mxu0 0.0
  %3041 = vmatprep.subr.mxu0 0.0
  %3042 = vmatpush1.msra.mxu0 0.0
  %3043 = vmatprep.subr.mxu0 0.0
  %3044 = vmatpush1.msra.mxu0 0.0
  %3045 = vmatprep.subr.mxu0 0.0
  %3046 = vmatpush1.msra.mxu0 0.0
  %3047 = vmatprep.subr.mxu0 0.0
  %3048 = vmatpush1.msra.mxu0 0.0
  %3049 = vmatprep.subr.mxu0 0.0
  %3050 = vmatpush1.msra.mxu0 0.0
  %3051 = vmatprep.subr.mxu0 0.0
  %3052 = vmatpush1.msra.mxu0 0.0
  %3053 = vmatprep.subr.mxu0 0.0
  %3054 = vmatpush1.msra.mxu0 0.0
  %3055 = vmatprep.subr.mxu0 0.0
  %3056 = vmatpush2.msra.mxu0 0.0
  %3057 = vmatprep.subr.mxu0 0.0
  %3058 = vmatpush2.msra.mxu0 0.0
  %3059 = vmatprep.subr.mxu0 0.0
  %3060 = vmatpush2.msra.mxu0 0.0
  %3061 = vmatprep.subr.mxu0 0.0
  %3062 = vmatpush2.msra.mxu0 0.0
  %3063 = vmatprep.subr.mxu0 0.0
  %3064 = vmatpush2.msra.mxu0 0.0
  %3065 = vmatprep.subr.mxu0 0.0
  %3066 = vmatpush2.msra.mxu0 0.0
  %3067 = vmatprep.subr.mxu0 0.0
  %3068 = vmatpush2.msra.mxu0 0.0
  %3069 = vmatprep.subr.mxu0 0.0
  %3070 = vmatpush2.msra.mxu0 0.0
  %3071 = vmatprep.subr.mxu0 0.0
  %3072 = vmatpush2.msra.mxu0 0.0
  %3073 = vmatprep.subr.mxu0 0.0
  %3074 = vmatpush2.msra.mxu0 0.0
  %3075 = vmatprep.subr.mxu0 0.0
  %3076 = vmatpush2.msra.mxu0 0.0
  %3077 = vmatprep.subr.mxu0 0.0
  %3078 = vmatpush2.msra.mxu0 0.0
  %3079 = vmatprep.subr.mxu0 0.0
  %3080 = vmatpush2.msra.mxu0 0.0
  %3081 = vmatprep.subr.mxu0 0.0
  %3082 = vmatpush2.msra.mxu0 0.0
  %3083 = vmatprep.subr.mxu0 0.0
  %3084 = vmatpush2.msra.mxu0 0.0
  %3085 = vmatprep.subr.mxu0 0.0
  %3086 = vmatpush2.msra.mxu0 0.0
  %v3087 = vand.u32 %v2895, 4294901760
  %3088 = vmatprep.mubr.f32.mxu0 %v3087
  %v3089 = vand.u32 %v2893, 4294901760
  %3090 = vmatmul.mubr.f32.gmra.mxu0 %v3089
  %v3091 = vpop.f32.mrf.mxu0
  %v3092 = vadd.f32 %v3005, %v3091
  %v3093 = vpop.f32.mrf.mxu0
  %v3094 = vand.u32 %v2913, 4294901760
  %3095 = vmatprep.mubr.f32.mxu0 %v3094
  %v3096 = vand.u32 %v2911, 4294901760
  %3097 = vmatmul.mubr.f32.gmra.mxu0 %v3096
  %v3098 = vpop.f32.mrf.mxu0
  %v3099 = vadd.f32 %v3020, %v3098
  %v3100 = vpop.f32.mrf.mxu0
  %3101 = vdwg.mxu0
  %3102 = vmatprep.subr.mxu0 0.0
  %3103 = vmatpush1.msra.mxu0 0.0
  %3104 = vmatprep.subr.mxu0 0.0
  %3105 = vmatpush1.msra.mxu0 0.0
  %3106 = vmatprep.subr.mxu0 0.0
  %3107 = vmatpush1.msra.mxu0 0.0
  %3108 = vmatprep.subr.mxu0 0.0
  %3109 = vmatpush1.msra.mxu0 0.0
  %3110 = vmatprep.subr.mxu0 0.0
  %3111 = vmatpush1.msra.mxu0 0.0
  %3112 = vmatprep.subr.mxu0 0.0
  %3113 = vmatpush1.msra.mxu0 0.0
  %3114 = vmatprep.subr.mxu0 0.0
  %3115 = vmatpush1.msra.mxu0 0.0
  %3116 = vmatprep.subr.mxu0 0.0
  %3117 = vmatpush1.msra.mxu0 0.0
  %3118 = vmatprep.subr.mxu0 0.0
  %3119 = vmatpush1.msra.mxu0 0.0
  %3120 = vmatprep.subr.mxu0 0.0
  %3121 = vmatpush1.msra.mxu0 0.0
  %3122 = vmatprep.subr.mxu0 0.0
  %3123 = vmatpush1.msra.mxu0 0.0
  %3124 = vmatprep.subr.mxu0 0.0
  %3125 = vmatpush1.msra.mxu0 0.0
  %3126 = vmatprep.subr.mxu0 0.0
  %3127 = vmatpush1.msra.mxu0 0.0
  %3128 = vmatprep.subr.mxu0 0.0
  %3129 = vmatpush1.msra.mxu0 0.0
  %3130 = vmatprep.subr.mxu0 0.0
  %3131 = vmatpush1.msra.mxu0 0.0
  %3132 = vmatprep.subr.mxu0 0.0
  %3133 = vmatpush1.msra.mxu0 0.0
  %3134 = vmatprep.subr.mxu0 0.0
  %3135 = vmatpush2.msra.mxu0 0.0
  %3136 = vmatprep.subr.mxu0 0.0
  %3137 = vmatpush2.msra.mxu0 0.0
  %3138 = vmatprep.subr.mxu0 0.0
  %3139 = vmatpush2.msra.mxu0 0.0
  %3140 = vmatprep.subr.mxu0 0.0
  %3141 = vmatpush2.msra.mxu0 0.0
  %3142 = vmatprep.subr.mxu0 0.0
  %3143 = vmatpush2.msra.mxu0 0.0
  %3144 = vmatprep.subr.mxu0 0.0
  %3145 = vmatpush2.msra.mxu0 0.0
  %3146 = vmatprep.subr.mxu0 0.0
  %3147 = vmatpush2.msra.mxu0 0.0
  %3148 = vmatprep.subr.mxu0 0.0
  %3149 = vmatpush2.msra.mxu0 0.0
  %3150 = vmatprep.subr.mxu0 0.0
  %3151 = vmatpush2.msra.mxu0 0.0
  %3152 = vmatprep.subr.mxu0 0.0
  %3153 = vmatpush2.msra.mxu0 0.0
  %3154 = vmatprep.subr.mxu0 0.0
  %3155 = vmatpush2.msra.mxu0 0.0
  %3156 = vmatprep.subr.mxu0 0.0
  %3157 = vmatpush2.msra.mxu0 0.0
  %3158 = vmatprep.subr.mxu0 0.0
  %3159 = vmatpush2.msra.mxu0 0.0
  %3160 = vmatprep.subr.mxu0 0.0
  %3161 = vmatpush2.msra.mxu0 0.0
  %3162 = vmatprep.subr.mxu0 0.0
  %3163 = vmatpush2.msra.mxu0 0.0
  %3164 = vmatprep.subr.mxu0 0.0
  %3165 = vmatpush2.msra.mxu0 0.0
  %v3166 = vand.u32 %v2895, 4294901760
  %v3167 = vsub.f32 %v2895, %v3166
  %3168 = vmatprep.mubr.f32.mxu0 %v3167
  %v3169 = vand.u32 %v2893, 4294901760
  %v3170 = vsub.f32 %v2893, %v3169
  %3171 = vmatmul.mubr.f32.gmra.mxu0 %v3170
  %v3172 = vpop.f32.mrf.mxu0
  %v3173 = vadd.f32 %v3092, %v3172
  %v3174 = vpop.f32.mrf.mxu0
  %v3175 = vand.u32 %v2913, 4294901760
  %v3176 = vsub.f32 %v2913, %v3175
  %3177 = vmatprep.mubr.f32.mxu0 %v3176
  %v3178 = vand.u32 %v2911, 4294901760
  %v3179 = vsub.f32 %v2911, %v3178
  %3180 = vmatmul.mubr.f32.gmra.mxu0 %v3179
  %v3181 = vpop.f32.mrf.mxu0
  %v3182 = vadd.f32 %v3099, %v3181
  %v3183 = vpop.f32.mrf.mxu0
  %3184 = vdwg.mxu0
  %3185 = vmatprep.subr.mxu0 0.0
  %3186 = vmatpush1.msra.mxu0 1.0
  %3187 = vmatprep.subr.mxu0 0.0
  %3188 = vmatpush1.msra.mxu0 1.0
  %3189 = vmatprep.subr.mxu0 0.0
  %3190 = vmatpush1.msra.mxu0 1.0
  %3191 = vmatprep.subr.mxu0 0.0
  %3192 = vmatpush1.msra.mxu0 1.0
  %3193 = vmatprep.subr.mxu0 0.0
  %3194 = vmatpush1.msra.mxu0 1.0
  %3195 = vmatprep.subr.mxu0 0.0
  %3196 = vmatpush1.msra.mxu0 1.0
  %3197 = vmatprep.subr.mxu0 0.0
  %3198 = vmatpush1.msra.mxu0 1.0
  %3199 = vmatprep.subr.mxu0 0.0
  %3200 = vmatpush1.msra.mxu0 1.0
  %3201 = vmatprep.subr.mxu0 0.0
  %3202 = vmatpush1.msra.mxu0 1.0
  %3203 = vmatprep.subr.mxu0 0.0
  %3204 = vmatpush1.msra.mxu0 1.0
  %3205 = vmatprep.subr.mxu0 0.0
  %3206 = vmatpush1.msra.mxu0 1.0
  %3207 = vmatprep.subr.mxu0 0.0
  %3208 = vmatpush1.msra.mxu0 1.0
  %3209 = vmatprep.subr.mxu0 0.0
  %3210 = vmatpush1.msra.mxu0 1.0
  %3211 = vmatprep.subr.mxu0 0.0
  %3212 = vmatpush1.msra.mxu0 1.0
  %3213 = vmatprep.subr.mxu0 0.0
  %3214 = vmatpush1.msra.mxu0 1.0
  %3215 = vmatprep.subr.mxu0 0.0
  %3216 = vmatpush1.msra.mxu0 1.0
  %3217 = vmatprep.subr.mxu0 0.0
  %3218 = vmatpush2.msra.mxu0 1.0
  %3219 = vmatprep.subr.mxu0 0.0
  %3220 = vmatpush2.msra.mxu0 1.0
  %3221 = vmatprep.subr.mxu0 0.0
  %3222 = vmatpush2.msra.mxu0 1.0
  %3223 = vmatprep.subr.mxu0 0.0
  %3224 = vmatpush2.msra.mxu0 1.0
  %3225 = vmatprep.subr.mxu0 0.0
  %3226 = vmatpush2.msra.mxu0 1.0
  %3227 = vmatprep.subr.mxu0 0.0
  %3228 = vmatpush2.msra.mxu0 1.0
  %3229 = vmatprep.subr.mxu0 0.0
  %3230 = vmatpush2.msra.mxu0 1.0
  %3231 = vmatprep.subr.mxu0 0.0
  %3232 = vmatpush2.msra.mxu0 1.0
  %3233 = vmatprep.subr.mxu0 0.0
  %3234 = vmatpush2.msra.mxu0 1.0
  %3235 = vmatprep.subr.mxu0 0.0
  %3236 = vmatpush2.msra.mxu0 1.0
  %3237 = vmatprep.subr.mxu0 0.0
  %3238 = vmatpush2.msra.mxu0 1.0
  %3239 = vmatprep.subr.mxu0 0.0
  %3240 = vmatpush2.msra.mxu0 1.0
  %3241 = vmatprep.subr.mxu0 0.0
  %3242 = vmatpush2.msra.mxu0 1.0
  %3243 = vmatprep.subr.mxu0 0.0
  %3244 = vmatpush2.msra.mxu0 1.0
  %3245 = vmatprep.subr.mxu0 0.0
  %3246 = vmatpush2.msra.mxu0 1.0
  %3247 = vmatprep.subr.mxu0 0.0
  %3248 = vmatpush2.msra.mxu0 1.0
  %v3249 = vand.u32 %v2895, 4294901760
  %v3250 = vsub.f32 %v2895, %v3249
  %v3251 = vand.u32 %v3250, 4294901760
  %3252 = vmatprep.mubr.f32.mxu0 %v3251
  %v3253 = vand.u32 %v2893, 4294901760
  %v3254 = vsub.f32 %v2893, %v3253
  %v3255 = vand.u32 %v3254, 4294901760
  %3256 = vmatmul.mubr.f32.gmra.mxu0 %v3255
  %v3257 = vpop.f32.mrf.mxu0
  %v3258 = vadd.f32 %v3173, %v3257
  %v3259 = vpop.f32.mrf.mxu0
  %v3260 = vand.u32 %v2913, 4294901760
  %v3261 = vsub.f32 %v2913, %v3260
  %v3262 = vand.u32 %v3261, 4294901760
  %3263 = vmatprep.mubr.f32.mxu0 %v3262
  %v3264 = vand.u32 %v2911, 4294901760
  %v3265 = vsub.f32 %v2911, %v3264
  %v3266 = vand.u32 %v3265, 4294901760
  %3267 = vmatmul.mubr.f32.gmra.mxu0 %v3266
  %v3268 = vpop.f32.mrf.mxu0
  %v3269 = vadd.f32 %v3182, %v3268
  %v3270 = vpop.f32.mrf.mxu0
  %3271 = vdwg.mxu0
  %3272 = vmatprep.subr.mxu0 0.0
  %3273 = vmatpush1.msra.mxu0 0.0
  %3274 = vmatprep.subr.mxu0 0.0
  %3275 = vmatpush1.msra.mxu0 0.0
  %3276 = vmatprep.subr.mxu0 0.0
  %3277 = vmatpush1.msra.mxu0 0.0
  %3278 = vmatprep.subr.mxu0 0.0
  %3279 = vmatpush1.msra.mxu0 0.0
  %3280 = vmatprep.subr.mxu0 0.0
  %3281 = vmatpush1.msra.mxu0 0.0
  %3282 = vmatprep.subr.mxu0 0.0
  %3283 = vmatpush1.msra.mxu0 0.0
  %3284 = vmatprep.subr.mxu0 0.0
  %3285 = vmatpush1.msra.mxu0 0.0
  %3286 = vmatprep.subr.mxu0 0.0
  %3287 = vmatpush1.msra.mxu0 0.0
  %3288 = vmatprep.subr.mxu0 0.0
  %3289 = vmatpush1.msra.mxu0 0.0
  %3290 = vmatprep.subr.mxu0 0.0
  %3291 = vmatpush1.msra.mxu0 0.0
  %3292 = vmatprep.subr.mxu0 0.0
  %3293 = vmatpush1.msra.mxu0 0.0
  %3294 = vmatprep.subr.mxu0 0.0
  %3295 = vmatpush1.msra.mxu0 0.0
  %3296 = vmatprep.subr.mxu0 0.0
  %3297 = vmatpush1.msra.mxu0 0.0
  %3298 = vmatprep.subr.mxu0 0.0
  %3299 = vmatpush1.msra.mxu0 0.0
  %3300 = vmatprep.subr.mxu0 0.0
  %3301 = vmatpush1.msra.mxu0 0.0
  %3302 = vmatprep.subr.mxu0 0.0
  %3303 = vmatpush1.msra.mxu0 0.0
  %3304 = vmatprep.subr.mxu0 0.0
  %3305 = vmatpush2.msra.mxu0 0.0
  %3306 = vmatprep.subr.mxu0 0.0
  %3307 = vmatpush2.msra.mxu0 0.0
  %3308 = vmatprep.subr.mxu0 0.0
  %3309 = vmatpush2.msra.mxu0 0.0
  %3310 = vmatprep.subr.mxu0 0.0
  %3311 = vmatpush2.msra.mxu0 0.0
  %3312 = vmatprep.subr.mxu0 0.0
  %3313 = vmatpush2.msra.mxu0 0.0
  %3314 = vmatprep.subr.mxu0 0.0
  %3315 = vmatpush2.msra.mxu0 0.0
  %3316 = vmatprep.subr.mxu0 0.0
  %3317 = vmatpush2.msra.mxu0 0.0
  %3318 = vmatprep.subr.mxu0 0.0
  %3319 = vmatpush2.msra.mxu0 0.0
  %3320 = vmatprep.subr.mxu0 0.0
  %3321 = vmatpush2.msra.mxu0 0.0
  %3322 = vmatprep.subr.mxu0 0.0
  %3323 = vmatpush2.msra.mxu0 0.0
  %3324 = vmatprep.subr.mxu0 0.0
  %3325 = vmatpush2.msra.mxu0 0.0
  %3326 = vmatprep.subr.mxu0 0.0
  %3327 = vmatpush2.msra.mxu0 0.0
  %3328 = vmatprep.subr.mxu0 0.0
  %3329 = vmatpush2.msra.mxu0 0.0
  %3330 = vmatprep.subr.mxu0 0.0
  %3331 = vmatpush2.msra.mxu0 0.0
  %3332 = vmatprep.subr.mxu0 0.0
  %3333 = vmatpush2.msra.mxu0 0.0
  %3334 = vmatprep.subr.mxu0 0.0
  %3335 = vmatpush2.msra.mxu0 0.0
  %v3336 = vand.u32 %v2895, 4294901760
  %3337 = vmatprep.mubr.f32.mxu0 %v3336
  %v3338 = vand.u32 %v2893, 4294901760
  %3339 = vmatmul.mubr.f32.gmra.mxu0 %v3338
  %v3340 = vpop.f32.mrf.mxu0
  %v3341 = vadd.f32 %v3258, %v3340
  %v3342 = vpop.f32.mrf.mxu0
  %v3343 = vand.u32 %v2913, 4294901760
  %3344 = vmatprep.mubr.f32.mxu0 %v3343
  %v3345 = vand.u32 %v2911, 4294901760
  %3346 = vmatmul.mubr.f32.gmra.mxu0 %v3345
  %v3347 = vpop.f32.mrf.mxu0
  %v3348 = vadd.f32 %v3269, %v3347
  %v3349 = vpop.f32.mrf.mxu0
  %3350 = vdwg.mxu0
  %3351 = vmatprep.subr.mxu0 0.0
  %3352 = vmatpush1.msra.mxu0 1.0
  %3353 = vmatprep.subr.mxu0 0.0
  %3354 = vmatpush1.msra.mxu0 1.0
  %3355 = vmatprep.subr.mxu0 0.0
  %3356 = vmatpush1.msra.mxu0 1.0
  %3357 = vmatprep.subr.mxu0 0.0
  %3358 = vmatpush1.msra.mxu0 1.0
  %3359 = vmatprep.subr.mxu0 0.0
  %3360 = vmatpush1.msra.mxu0 1.0
  %3361 = vmatprep.subr.mxu0 0.0
  %3362 = vmatpush1.msra.mxu0 1.0
  %3363 = vmatprep.subr.mxu0 0.0
  %3364 = vmatpush1.msra.mxu0 1.0
  %3365 = vmatprep.subr.mxu0 0.0
  %3366 = vmatpush1.msra.mxu0 1.0
  %3367 = vmatprep.subr.mxu0 0.0
  %3368 = vmatpush1.msra.mxu0 1.0
  %3369 = vmatprep.subr.mxu0 0.0
  %3370 = vmatpush1.msra.mxu0 1.0
  %3371 = vmatprep.subr.mxu0 0.0
  %3372 = vmatpush1.msra.mxu0 1.0
  %3373 = vmatprep.subr.mxu0 0.0
  %3374 = vmatpush1.msra.mxu0 1.0
  %3375 = vmatprep.subr.mxu0 0.0
  %3376 = vmatpush1.msra.mxu0 1.0
  %3377 = vmatprep.subr.mxu0 0.0
  %3378 = vmatpush1.msra.mxu0 1.0
  %3379 = vmatprep.subr.mxu0 0.0
  %3380 = vmatpush1.msra.mxu0 1.0
  %3381 = vmatprep.subr.mxu0 0.0
  %3382 = vmatpush1.msra.mxu0 1.0
  %3383 = vmatprep.subr.mxu0 0.0
  %3384 = vmatpush2.msra.mxu0 1.0
  %3385 = vmatprep.subr.mxu0 0.0
  %3386 = vmatpush2.msra.mxu0 1.0
  %3387 = vmatprep.subr.mxu0 0.0
  %3388 = vmatpush2.msra.mxu0 1.0
  %3389 = vmatprep.subr.mxu0 0.0
  %3390 = vmatpush2.msra.mxu0 1.0
  %3391 = vmatprep.subr.mxu0 0.0
  %3392 = vmatpush2.msra.mxu0 1.0
  %3393 = vmatprep.subr.mxu0 0.0
  %3394 = vmatpush2.msra.mxu0 1.0
  %3395 = vmatprep.subr.mxu0 0.0
  %3396 = vmatpush2.msra.mxu0 1.0
  %3397 = vmatprep.subr.mxu0 0.0
  %3398 = vmatpush2.msra.mxu0 1.0
  %3399 = vmatprep.subr.mxu0 0.0
  %3400 = vmatpush2.msra.mxu0 1.0
  %3401 = vmatprep.subr.mxu0 0.0
  %3402 = vmatpush2.msra.mxu0 1.0
  %3403 = vmatprep.subr.mxu0 0.0
  %3404 = vmatpush2.msra.mxu0 1.0
  %3405 = vmatprep.subr.mxu0 0.0
  %3406 = vmatpush2.msra.mxu0 1.0
  %3407 = vmatprep.subr.mxu0 0.0
  %3408 = vmatpush2.msra.mxu0 1.0
  %3409 = vmatprep.subr.mxu0 0.0
  %3410 = vmatpush2.msra.mxu0 1.0
  %3411 = vmatprep.subr.mxu0 0.0
  %3412 = vmatpush2.msra.mxu0 1.0
  %3413 = vmatprep.subr.mxu0 0.0
  %3414 = vmatpush2.msra.mxu0 1.0
  %v3415 = vand.u32 %v2895, 4294901760
  %3416 = vmatprep.mubr.f32.mxu0 %v3415
  %v3417 = vand.u32 %v2893, 4294901760
  %3418 = vmatmul.mubr.f32.gmra.mxu0 %v3417
  %v3419 = vpop.f32.mrf.mxu0
  %v3420 = vadd.f32 %v3341, %v3419
  %v3421 = vpop.f32.mrf.mxu0
  %v3422 = vand.u32 %v2913, 4294901760
  %3423 = vmatprep.mubr.f32.mxu0 %v3422
  %v3424 = vand.u32 %v2911, 4294901760
  %3425 = vmatmul.mubr.f32.gmra.mxu0 %v3424
  %v3426 = vpop.f32.mrf.mxu0
  %v3427 = vadd.f32 %v3348, %v3426
  %v3428 = vpop.f32.mrf.mxu0
  %3429 = vdwg.mxu0
  %3430 = vmatprep.subr.mxu0 0.0
  %3431 = vmatpush1.msra.mxu0 1.0
  %3432 = vmatprep.subr.mxu0 0.0
  %3433 = vmatpush1.msra.mxu0 1.0
  %3434 = vmatprep.subr.mxu0 0.0
  %3435 = vmatpush1.msra.mxu0 1.0
  %3436 = vmatprep.subr.mxu0 0.0
  %3437 = vmatpush1.msra.mxu0 1.0
  %3438 = vmatprep.subr.mxu0 0.0
  %3439 = vmatpush1.msra.mxu0 1.0
  %3440 = vmatprep.subr.mxu0 0.0
  %3441 = vmatpush1.msra.mxu0 1.0
  %3442 = vmatprep.subr.mxu0 0.0
  %3443 = vmatpush1.msra.mxu0 1.0
  %3444 = vmatprep.subr.mxu0 0.0
  %3445 = vmatpush1.msra.mxu0 1.0
  %3446 = vmatprep.subr.mxu0 0.0
  %3447 = vmatpush1.msra.mxu0 1.0
  %3448 = vmatprep.subr.mxu0 0.0
  %3449 = vmatpush1.msra.mxu0 1.0
  %3450 = vmatprep.subr.mxu0 0.0
  %3451 = vmatpush1.msra.mxu0 1.0
  %3452 = vmatprep.subr.mxu0 0.0
  %3453 = vmatpush1.msra.mxu0 1.0
  %3454 = vmatprep.subr.mxu0 0.0
  %3455 = vmatpush1.msra.mxu0 1.0
  %3456 = vmatprep.subr.mxu0 0.0
  %3457 = vmatpush1.msra.mxu0 1.0
  %3458 = vmatprep.subr.mxu0 0.0
  %3459 = vmatpush1.msra.mxu0 1.0
  %3460 = vmatprep.subr.mxu0 0.0
  %3461 = vmatpush1.msra.mxu0 1.0
  %3462 = vmatprep.subr.mxu0 0.0
  %3463 = vmatpush2.msra.mxu0 1.0
  %3464 = vmatprep.subr.mxu0 0.0
  %3465 = vmatpush2.msra.mxu0 1.0
  %3466 = vmatprep.subr.mxu0 0.0
  %3467 = vmatpush2.msra.mxu0 1.0
  %3468 = vmatprep.subr.mxu0 0.0
  %3469 = vmatpush2.msra.mxu0 1.0
  %3470 = vmatprep.subr.mxu0 0.0
  %3471 = vmatpush2.msra.mxu0 1.0
  %3472 = vmatprep.subr.mxu0 0.0
  %3473 = vmatpush2.msra.mxu0 1.0
  %3474 = vmatprep.subr.mxu0 0.0
  %3475 = vmatpush2.msra.mxu0 1.0
  %3476 = vmatprep.subr.mxu0 0.0
  %3477 = vmatpush2.msra.mxu0 1.0
  %3478 = vmatprep.subr.mxu0 0.0
  %3479 = vmatpush2.msra.mxu0 1.0
  %3480 = vmatprep.subr.mxu0 0.0
  %3481 = vmatpush2.msra.mxu0 1.0
  %3482 = vmatprep.subr.mxu0 0.0
  %3483 = vmatpush2.msra.mxu0 1.0
  %3484 = vmatprep.subr.mxu0 0.0
  %3485 = vmatpush2.msra.mxu0 1.0
  %3486 = vmatprep.subr.mxu0 0.0
  %3487 = vmatpush2.msra.mxu0 1.0
  %3488 = vmatprep.subr.mxu0 0.0
  %3489 = vmatpush2.msra.mxu0 1.0
  %3490 = vmatprep.subr.mxu0 0.0
  %3491 = vmatpush2.msra.mxu0 1.0
  %3492 = vmatprep.subr.mxu0 0.0
  %3493 = vmatpush2.msra.mxu0 1.0
  %v3494 = vand.u32 %v2899, 4294901760
  %v3495 = vsub.f32 %v2899, %v3494
  %v3496 = vand.u32 %v3495, 4294901760
  %v3497 = vsub.f32 %v3495, %v3496
  %v3498 = vand.u32 %v3497, 4294901760
  %3499 = vmatprep.mubr.f32.mxu0 %v3498
  %v3500 = vand.u32 %v2897, 4294901760
  %v3501 = vsub.f32 %v2897, %v3500
  %v3502 = vand.u32 %v3501, 4294901760
  %v3503 = vsub.f32 %v3501, %v3502
  %v3504 = vand.u32 %v3503, 4294901760
  %3505 = vmatmul.mubr.f32.gmra.mxu0 %v3504
  %v3506 = vpop.f32.mrf.mxu0
  %v3507 = vadd.f32 %v3420, %v3506
  %v3508 = vpop.f32.mrf.mxu0
  %v3509 = vand.u32 %v2917, 4294901760
  %v3510 = vsub.f32 %v2917, %v3509
  %v3511 = vand.u32 %v3510, 4294901760
  %v3512 = vsub.f32 %v3510, %v3511
  %v3513 = vand.u32 %v3512, 4294901760
  %3514 = vmatprep.mubr.f32.mxu0 %v3513
  %v3515 = vand.u32 %v2915, 4294901760
  %v3516 = vsub.f32 %v2915, %v3515
  %v3517 = vand.u32 %v3516, 4294901760
  %v3518 = vsub.f32 %v3516, %v3517
  %v3519 = vand.u32 %v3518, 4294901760
  %3520 = vmatmul.mubr.f32.gmra.mxu0 %v3519
  %v3521 = vpop.f32.mrf.mxu0
  %v3522 = vadd.f32 %v3427, %v3521
  %v3523 = vpop.f32.mrf.mxu0
  %3524 = vdwg.mxu0
  %3525 = vmatprep.subr.mxu0 0.0
  %3526 = vmatpush1.msra.mxu0 0.0
  %3527 = vmatprep.subr.mxu0 0.0
  %3528 = vmatpush1.msra.mxu0 0.0
  %3529 = vmatprep.subr.mxu0 0.0
  %3530 = vmatpush1.msra.mxu0 0.0
  %3531 = vmatprep.subr.mxu0 0.0
  %3532 = vmatpush1.msra.mxu0 0.0
  %3533 = vmatprep.subr.mxu0 0.0
  %3534 = vmatpush1.msra.mxu0 0.0
  %3535 = vmatprep.subr.mxu0 0.0
  %3536 = vmatpush1.msra.mxu0 0.0
  %3537 = vmatprep.subr.mxu0 0.0
  %3538 = vmatpush1.msra.mxu0 0.0
  %3539 = vmatprep.subr.mxu0 0.0
  %3540 = vmatpush1.msra.mxu0 0.0
  %3541 = vmatprep.subr.mxu0 0.0
  %3542 = vmatpush1.msra.mxu0 0.0
  %3543 = vmatprep.subr.mxu0 0.0
  %3544 = vmatpush1.msra.mxu0 0.0
  %3545 = vmatprep.subr.mxu0 0.0
  %3546 = vmatpush1.msra.mxu0 0.0
  %3547 = vmatprep.subr.mxu0 0.0
  %3548 = vmatpush1.msra.mxu0 0.0
  %3549 = vmatprep.subr.mxu0 0.0
  %3550 = vmatpush1.msra.mxu0 0.0
  %3551 = vmatprep.subr.mxu0 0.0
  %3552 = vmatpush1.msra.mxu0 0.0
  %3553 = vmatprep.subr.mxu0 0.0
  %3554 = vmatpush1.msra.mxu0 0.0
  %3555 = vmatprep.subr.mxu0 0.0
  %3556 = vmatpush1.msra.mxu0 0.0
  %3557 = vmatprep.subr.mxu0 0.0
  %3558 = vmatpush2.msra.mxu0 0.0
  %3559 = vmatprep.subr.mxu0 0.0
  %3560 = vmatpush2.msra.mxu0 0.0
  %3561 = vmatprep.subr.mxu0 0.0
  %3562 = vmatpush2.msra.mxu0 0.0
  %3563 = vmatprep.subr.mxu0 0.0
  %3564 = vmatpush2.msra.mxu0 0.0
  %3565 = vmatprep.subr.mxu0 0.0
  %3566 = vmatpush2.msra.mxu0 0.0
  %3567 = vmatprep.subr.mxu0 0.0
  %3568 = vmatpush2.msra.mxu0 0.0
  %3569 = vmatprep.subr.mxu0 0.0
  %3570 = vmatpush2.msra.mxu0 0.0
  %3571 = vmatprep.subr.mxu0 0.0
  %3572 = vmatpush2.msra.mxu0 0.0
  %3573 = vmatprep.subr.mxu0 0.0
  %3574 = vmatpush2.msra.mxu0 0.0
  %3575 = vmatprep.subr.mxu0 0.0
  %3576 = vmatpush2.msra.mxu0 0.0
  %3577 = vmatprep.subr.mxu0 0.0
  %3578 = vmatpush2.msra.mxu0 0.0
  %3579 = vmatprep.subr.mxu0 0.0
  %3580 = vmatpush2.msra.mxu0 0.0
  %3581 = vmatprep.subr.mxu0 0.0
  %3582 = vmatpush2.msra.mxu0 0.0
  %3583 = vmatprep.subr.mxu0 0.0
  %3584 = vmatpush2.msra.mxu0 0.0
  %3585 = vmatprep.subr.mxu0 0.0
  %3586 = vmatpush2.msra.mxu0 0.0
  %3587 = vmatprep.subr.mxu0 0.0
  %3588 = vmatpush2.msra.mxu0 0.0
  %v3589 = vand.u32 %v2899, 4294901760
  %3590 = vmatprep.mubr.f32.mxu0 %v3589
  %v3591 = vand.u32 %v2897, 4294901760
  %3592 = vmatmul.mubr.f32.gmra.mxu0 %v3591
  %v3593 = vpop.f32.mrf.mxu0
  %v3594 = vadd.f32 %v3507, %v3593
  %v3595 = vpop.f32.mrf.mxu0
  %v3596 = vand.u32 %v2917, 4294901760
  %3597 = vmatprep.mubr.f32.mxu0 %v3596
  %v3598 = vand.u32 %v2915, 4294901760
  %3599 = vmatmul.mubr.f32.gmra.mxu0 %v3598
  %v3600 = vpop.f32.mrf.mxu0
  %v3601 = vadd.f32 %v3522, %v3600
  %v3602 = vpop.f32.mrf.mxu0
  %3603 = vdwg.mxu0
  %3604 = vmatprep.subr.mxu0 0.0
  %3605 = vmatpush1.msra.mxu0 0.0
  %3606 = vmatprep.subr.mxu0 0.0
  %3607 = vmatpush1.msra.mxu0 0.0
  %3608 = vmatprep.subr.mxu0 0.0
  %3609 = vmatpush1.msra.mxu0 0.0
  %3610 = vmatprep.subr.mxu0 0.0
  %3611 = vmatpush1.msra.mxu0 0.0
  %3612 = vmatprep.subr.mxu0 0.0
  %3613 = vmatpush1.msra.mxu0 0.0
  %3614 = vmatprep.subr.mxu0 0.0
  %3615 = vmatpush1.msra.mxu0 0.0
  %3616 = vmatprep.subr.mxu0 0.0
  %3617 = vmatpush1.msra.mxu0 0.0
  %3618 = vmatprep.subr.mxu0 0.0
  %3619 = vmatpush1.msra.mxu0 0.0
  %3620 = vmatprep.subr.mxu0 0.0
  %3621 = vmatpush1.msra.mxu0 0.0
  %3622 = vmatprep.subr.mxu0 0.0
  %3623 = vmatpush1.msra.mxu0 0.0
  %3624 = vmatprep.subr.mxu0 0.0
  %3625 = vmatpush1.msra.mxu0 0.0
  %3626 = vmatprep.subr.mxu0 0.0
  %3627 = vmatpush1.msra.mxu0 0.0
  %3628 = vmatprep.subr.mxu0 0.0
  %3629 = vmatpush1.msra.mxu0 0.0
  %3630 = vmatprep.subr.mxu0 0.0
  %3631 = vmatpush1.msra.mxu0 0.0
  %3632 = vmatprep.subr.mxu0 0.0
  %3633 = vmatpush1.msra.mxu0 0.0
  %3634 = vmatprep.subr.mxu0 0.0
  %3635 = vmatpush1.msra.mxu0 0.0
  %3636 = vmatprep.subr.mxu0 0.0
  %3637 = vmatpush2.msra.mxu0 0.0
  %3638 = vmatprep.subr.mxu0 0.0
  %3639 = vmatpush2.msra.mxu0 0.0
  %3640 = vmatprep.subr.mxu0 0.0
  %3641 = vmatpush2.msra.mxu0 0.0
  %3642 = vmatprep.subr.mxu0 0.0
  %3643 = vmatpush2.msra.mxu0 0.0
  %3644 = vmatprep.subr.mxu0 0.0
  %3645 = vmatpush2.msra.mxu0 0.0
  %3646 = vmatprep.subr.mxu0 0.0
  %3647 = vmatpush2.msra.mxu0 0.0
  %3648 = vmatprep.subr.mxu0 0.0
  %3649 = vmatpush2.msra.mxu0 0.0
  %3650 = vmatprep.subr.mxu0 0.0
  %3651 = vmatpush2.msra.mxu0 0.0
  %3652 = vmatprep.subr.mxu0 0.0
  %3653 = vmatpush2.msra.mxu0 0.0
  %3654 = vmatprep.subr.mxu0 0.0
  %3655 = vmatpush2.msra.mxu0 0.0
  %3656 = vmatprep.subr.mxu0 0.0
  %3657 = vmatpush2.msra.mxu0 0.0
  %3658 = vmatprep.subr.mxu0 0.0
  %3659 = vmatpush2.msra.mxu0 0.0
  %3660 = vmatprep.subr.mxu0 0.0
  %3661 = vmatpush2.msra.mxu0 0.0
  %3662 = vmatprep.subr.mxu0 0.0
  %3663 = vmatpush2.msra.mxu0 0.0
  %3664 = vmatprep.subr.mxu0 0.0
  %3665 = vmatpush2.msra.mxu0 0.0
  %3666 = vmatprep.subr.mxu0 0.0
  %3667 = vmatpush2.msra.mxu0 0.0
  %v3668 = vand.u32 %v2899, 4294901760
  %v3669 = vsub.f32 %v2899, %v3668
  %3670 = vmatprep.mubr.f32.mxu0 %v3669
  %v3671 = vand.u32 %v2897, 4294901760
  %v3672 = vsub.f32 %v2897, %v3671
  %3673 = vmatmul.mubr.f32.gmra.mxu0 %v3672
  %v3674 = vpop.f32.mrf.mxu0
  %v3675 = vadd.f32 %v3594, %v3674
  %v3676 = vpop.f32.mrf.mxu0
  %v3677 = vand.u32 %v2917, 4294901760
  %v3678 = vsub.f32 %v2917, %v3677
  %3679 = vmatprep.mubr.f32.mxu0 %v3678
  %v3680 = vand.u32 %v2915, 4294901760
  %v3681 = vsub.f32 %v2915, %v3680
  %3682 = vmatmul.mubr.f32.gmra.mxu0 %v3681
  %v3683 = vpop.f32.mrf.mxu0
  %v3684 = vadd.f32 %v3601, %v3683
  %v3685 = vpop.f32.mrf.mxu0
  %3686 = vdwg.mxu0
  %3687 = vmatprep.subr.mxu0 0.0
  %3688 = vmatpush1.msra.mxu0 1.0
  %3689 = vmatprep.subr.mxu0 0.0
  %3690 = vmatpush1.msra.mxu0 1.0
  %3691 = vmatprep.subr.mxu0 0.0
  %3692 = vmatpush1.msra.mxu0 1.0
  %3693 = vmatprep.subr.mxu0 0.0
  %3694 = vmatpush1.msra.mxu0 1.0
  %3695 = vmatprep.subr.mxu0 0.0
  %3696 = vmatpush1.msra.mxu0 1.0
  %3697 = vmatprep.subr.mxu0 0.0
  %3698 = vmatpush1.msra.mxu0 1.0
  %3699 = vmatprep.subr.mxu0 0.0
  %3700 = vmatpush1.msra.mxu0 1.0
  %3701 = vmatprep.subr.mxu0 0.0
  %3702 = vmatpush1.msra.mxu0 1.0
  %3703 = vmatprep.subr.mxu0 0.0
  %3704 = vmatpush1.msra.mxu0 1.0
  %3705 = vmatprep.subr.mxu0 0.0
  %3706 = vmatpush1.msra.mxu0 1.0
  %3707 = vmatprep.subr.mxu0 0.0
  %3708 = vmatpush1.msra.mxu0 1.0
  %3709 = vmatprep.subr.mxu0 0.0
  %3710 = vmatpush1.msra.mxu0 1.0
  %3711 = vmatprep.subr.mxu0 0.0
  %3712 = vmatpush1.msra.mxu0 1.0
  %3713 = vmatprep.subr.mxu0 0.0
  %3714 = vmatpush1.msra.mxu0 1.0
  %3715 = vmatprep.subr.mxu0 0.0
  %3716 = vmatpush1.msra.mxu0 1.0
  %3717 = vmatprep.subr.mxu0 0.0
  %3718 = vmatpush1.msra.mxu0 1.0
  %3719 = vmatprep.subr.mxu0 0.0
  %3720 = vmatpush2.msra.mxu0 1.0
  %3721 = vmatprep.subr.mxu0 0.0
  %3722 = vmatpush2.msra.mxu0 1.0
  %3723 = vmatprep.subr.mxu0 0.0
  %3724 = vmatpush2.msra.mxu0 1.0
  %3725 = vmatprep.subr.mxu0 0.0
  %3726 = vmatpush2.msra.mxu0 1.0
  %3727 = vmatprep.subr.mxu0 0.0
  %3728 = vmatpush2.msra.mxu0 1.0
  %3729 = vmatprep.subr.mxu0 0.0
  %3730 = vmatpush2.msra.mxu0 1.0
  %3731 = vmatprep.subr.mxu0 0.0
  %3732 = vmatpush2.msra.mxu0 1.0
  %3733 = vmatprep.subr.mxu0 0.0
  %3734 = vmatpush2.msra.mxu0 1.0
  %3735 = vmatprep.subr.mxu0 0.0
  %3736 = vmatpush2.msra.mxu0 1.0
  %3737 = vmatprep.subr.mxu0 0.0
  %3738 = vmatpush2.msra.mxu0 1.0
  %3739 = vmatprep.subr.mxu0 0.0
  %3740 = vmatpush2.msra.mxu0 1.0
  %3741 = vmatprep.subr.mxu0 0.0
  %3742 = vmatpush2.msra.mxu0 1.0
  %3743 = vmatprep.subr.mxu0 0.0
  %3744 = vmatpush2.msra.mxu0 1.0
  %3745 = vmatprep.subr.mxu0 0.0
  %3746 = vmatpush2.msra.mxu0 1.0
  %3747 = vmatprep.subr.mxu0 0.0
  %3748 = vmatpush2.msra.mxu0 1.0
  %3749 = vmatprep.subr.mxu0 0.0
  %3750 = vmatpush2.msra.mxu0 1.0
  %v3751 = vand.u32 %v2899, 4294901760
  %v3752 = vsub.f32 %v2899, %v3751
  %v3753 = vand.u32 %v3752, 4294901760
  %3754 = vmatprep.mubr.f32.mxu0 %v3753
  %v3755 = vand.u32 %v2897, 4294901760
  %v3756 = vsub.f32 %v2897, %v3755
  %v3757 = vand.u32 %v3756, 4294901760
  %3758 = vmatmul.mubr.f32.gmra.mxu0 %v3757
  %v3759 = vpop.f32.mrf.mxu0
  %v3760 = vadd.f32 %v3675, %v3759
  %v3761 = vpop.f32.mrf.mxu0
  %v3762 = vand.u32 %v2917, 4294901760
  %v3763 = vsub.f32 %v2917, %v3762
  %v3764 = vand.u32 %v3763, 4294901760
  %3765 = vmatprep.mubr.f32.mxu0 %v3764
  %v3766 = vand.u32 %v2915, 4294901760
  %v3767 = vsub.f32 %v2915, %v3766
  %v3768 = vand.u32 %v3767, 4294901760
  %3769 = vmatmul.mubr.f32.gmra.mxu0 %v3768
  %v3770 = vpop.f32.mrf.mxu0
  %v3771 = vadd.f32 %v3684, %v3770
  %v3772 = vpop.f32.mrf.mxu0
  %3773 = vdwg.mxu0
  %3774 = vmatprep.subr.mxu0 0.0
  %3775 = vmatpush1.msra.mxu0 0.0
  %3776 = vmatprep.subr.mxu0 0.0
  %3777 = vmatpush1.msra.mxu0 0.0
  %3778 = vmatprep.subr.mxu0 0.0
  %3779 = vmatpush1.msra.mxu0 0.0
  %3780 = vmatprep.subr.mxu0 0.0
  %3781 = vmatpush1.msra.mxu0 0.0
  %3782 = vmatprep.subr.mxu0 0.0
  %3783 = vmatpush1.msra.mxu0 0.0
  %3784 = vmatprep.subr.mxu0 0.0
  %3785 = vmatpush1.msra.mxu0 0.0
  %3786 = vmatprep.subr.mxu0 0.0
  %3787 = vmatpush1.msra.mxu0 0.0
  %3788 = vmatprep.subr.mxu0 0.0
  %3789 = vmatpush1.msra.mxu0 0.0
  %3790 = vmatprep.subr.mxu0 0.0
  %3791 = vmatpush1.msra.mxu0 0.0
  %3792 = vmatprep.subr.mxu0 0.0
  %3793 = vmatpush1.msra.mxu0 0.0
  %3794 = vmatprep.subr.mxu0 0.0
  %3795 = vmatpush1.msra.mxu0 0.0
  %3796 = vmatprep.subr.mxu0 0.0
  %3797 = vmatpush1.msra.mxu0 0.0
  %3798 = vmatprep.subr.mxu0 0.0
  %3799 = vmatpush1.msra.mxu0 0.0
  %3800 = vmatprep.subr.mxu0 0.0
  %3801 = vmatpush1.msra.mxu0 0.0
  %3802 = vmatprep.subr.mxu0 0.0
  %3803 = vmatpush1.msra.mxu0 0.0
  %3804 = vmatprep.subr.mxu0 0.0
  %3805 = vmatpush1.msra.mxu0 0.0
  %3806 = vmatprep.subr.mxu0 0.0
  %3807 = vmatpush2.msra.mxu0 0.0
  %3808 = vmatprep.subr.mxu0 0.0
  %3809 = vmatpush2.msra.mxu0 0.0
  %3810 = vmatprep.subr.mxu0 0.0
  %3811 = vmatpush2.msra.mxu0 0.0
  %3812 = vmatprep.subr.mxu0 0.0
  %3813 = vmatpush2.msra.mxu0 0.0
  %3814 = vmatprep.subr.mxu0 0.0
  %3815 = vmatpush2.msra.mxu0 0.0
  %3816 = vmatprep.subr.mxu0 0.0
  %3817 = vmatpush2.msra.mxu0 0.0
  %3818 = vmatprep.subr.mxu0 0.0
  %3819 = vmatpush2.msra.mxu0 0.0
  %3820 = vmatprep.subr.mxu0 0.0
  %3821 = vmatpush2.msra.mxu0 0.0
  %3822 = vmatprep.subr.mxu0 0.0
  %3823 = vmatpush2.msra.mxu0 0.0
  %3824 = vmatprep.subr.mxu0 0.0
  %3825 = vmatpush2.msra.mxu0 0.0
  %3826 = vmatprep.subr.mxu0 0.0
  %3827 = vmatpush2.msra.mxu0 0.0
  %3828 = vmatprep.subr.mxu0 0.0
  %3829 = vmatpush2.msra.mxu0 0.0
  %3830 = vmatprep.subr.mxu0 0.0
  %3831 = vmatpush2.msra.mxu0 0.0
  %3832 = vmatprep.subr.mxu0 0.0
  %3833 = vmatpush2.msra.mxu0 0.0
  %3834 = vmatprep.subr.mxu0 0.0
  %3835 = vmatpush2.msra.mxu0 0.0
  %3836 = vmatprep.subr.mxu0 0.0
  %3837 = vmatpush2.msra.mxu0 0.0
  %v3838 = vand.u32 %v2899, 4294901760
  %3839 = vmatprep.mubr.f32.mxu0 %v3838
  %v3840 = vand.u32 %v2897, 4294901760
  %3841 = vmatmul.mubr.f32.gmra.mxu0 %v3840
  %v3842 = vpop.f32.mrf.mxu0
  %v3843 = vadd.f32 %v3760, %v3842
  %v3844 = vpop.f32.mrf.mxu0
  %v3845 = vand.u32 %v2917, 4294901760
  %3846 = vmatprep.mubr.f32.mxu0 %v3845
  %v3847 = vand.u32 %v2915, 4294901760
  %3848 = vmatmul.mubr.f32.gmra.mxu0 %v3847
  %v3849 = vpop.f32.mrf.mxu0
  %v3850 = vadd.f32 %v3771, %v3849
  %v3851 = vpop.f32.mrf.mxu0
  %3852 = vdwg.mxu0
  %3853 = vmatprep.subr.mxu0 0.0
  %3854 = vmatpush1.msra.mxu0 1.0
  %3855 = vmatprep.subr.mxu0 0.0
  %3856 = vmatpush1.msra.mxu0 1.0
  %3857 = vmatprep.subr.mxu0 0.0
  %3858 = vmatpush1.msra.mxu0 1.0
  %3859 = vmatprep.subr.mxu0 0.0
  %3860 = vmatpush1.msra.mxu0 1.0
  %3861 = vmatprep.subr.mxu0 0.0
  %3862 = vmatpush1.msra.mxu0 1.0
  %3863 = vmatprep.subr.mxu0 0.0
  %3864 = vmatpush1.msra.mxu0 1.0
  %3865 = vmatprep.subr.mxu0 0.0
  %3866 = vmatpush1.msra.mxu0 1.0
  %3867 = vmatprep.subr.mxu0 0.0
  %3868 = vmatpush1.msra.mxu0 1.0
  %3869 = vmatprep.subr.mxu0 0.0
  %3870 = vmatpush1.msra.mxu0 1.0
  %3871 = vmatprep.subr.mxu0 0.0
  %3872 = vmatpush1.msra.mxu0 1.0
  %3873 = vmatprep.subr.mxu0 0.0
  %3874 = vmatpush1.msra.mxu0 1.0
  %3875 = vmatprep.subr.mxu0 0.0
  %3876 = vmatpush1.msra.mxu0 1.0
  %3877 = vmatprep.subr.mxu0 0.0
  %3878 = vmatpush1.msra.mxu0 1.0
  %3879 = vmatprep.subr.mxu0 0.0
  %3880 = vmatpush1.msra.mxu0 1.0
  %3881 = vmatprep.subr.mxu0 0.0
  %3882 = vmatpush1.msra.mxu0 1.0
  %3883 = vmatprep.subr.mxu0 0.0
  %3884 = vmatpush1.msra.mxu0 1.0
  %3885 = vmatprep.subr.mxu0 0.0
  %3886 = vmatpush2.msra.mxu0 1.0
  %3887 = vmatprep.subr.mxu0 0.0
  %3888 = vmatpush2.msra.mxu0 1.0
  %3889 = vmatprep.subr.mxu0 0.0
  %3890 = vmatpush2.msra.mxu0 1.0
  %3891 = vmatprep.subr.mxu0 0.0
  %3892 = vmatpush2.msra.mxu0 1.0
  %3893 = vmatprep.subr.mxu0 0.0
  %3894 = vmatpush2.msra.mxu0 1.0
  %3895 = vmatprep.subr.mxu0 0.0
  %3896 = vmatpush2.msra.mxu0 1.0
  %3897 = vmatprep.subr.mxu0 0.0
  %3898 = vmatpush2.msra.mxu0 1.0
  %3899 = vmatprep.subr.mxu0 0.0
  %3900 = vmatpush2.msra.mxu0 1.0
  %3901 = vmatprep.subr.mxu0 0.0
  %3902 = vmatpush2.msra.mxu0 1.0
  %3903 = vmatprep.subr.mxu0 0.0
  %3904 = vmatpush2.msra.mxu0 1.0
  %3905 = vmatprep.subr.mxu0 0.0
  %3906 = vmatpush2.msra.mxu0 1.0
  %3907 = vmatprep.subr.mxu0 0.0
  %3908 = vmatpush2.msra.mxu0 1.0
  %3909 = vmatprep.subr.mxu0 0.0
  %3910 = vmatpush2.msra.mxu0 1.0
  %3911 = vmatprep.subr.mxu0 0.0
  %3912 = vmatpush2.msra.mxu0 1.0
  %3913 = vmatprep.subr.mxu0 0.0
  %3914 = vmatpush2.msra.mxu0 1.0
  %3915 = vmatprep.subr.mxu0 0.0
  %3916 = vmatpush2.msra.mxu0 1.0
  %v3917 = vand.u32 %v2899, 4294901760
  %3918 = vmatprep.mubr.f32.mxu0 %v3917
  %v3919 = vand.u32 %v2897, 4294901760
  %3920 = vmatmul.mubr.f32.gmra.mxu0 %v3919
  %v3921 = vpop.f32.mrf.mxu0
  %v3922 = vadd.f32 %v3843, %v3921
  %v3923 = vpop.f32.mrf.mxu0
  %v3924 = vand.u32 %v2917, 4294901760
  %3925 = vmatprep.mubr.f32.mxu0 %v3924
  %v3926 = vand.u32 %v2915, 4294901760
  %3927 = vmatmul.mubr.f32.gmra.mxu0 %v3926
  %v3928 = vpop.f32.mrf.mxu0
  %v3929 = vadd.f32 %v3850, %v3928
  %v3930 = vpop.f32.mrf.mxu0
  %3931 = vdwg.mxu0
  %3932 = vmatprep.subr.mxu0 0.0
  %3933 = vmatpush1.msra.mxu0 1.0
  %3934 = vmatprep.subr.mxu0 0.0
  %3935 = vmatpush1.msra.mxu0 1.0
  %3936 = vmatprep.subr.mxu0 0.0
  %3937 = vmatpush1.msra.mxu0 1.0
  %3938 = vmatprep.subr.mxu0 0.0
  %3939 = vmatpush1.msra.mxu0 1.0
  %3940 = vmatprep.subr.mxu0 0.0
  %3941 = vmatpush1.msra.mxu0 1.0
  %3942 = vmatprep.subr.mxu0 0.0
  %3943 = vmatpush1.msra.mxu0 1.0
  %3944 = vmatprep.subr.mxu0 0.0
  %3945 = vmatpush1.msra.mxu0 1.0
  %3946 = vmatprep.subr.mxu0 0.0
  %3947 = vmatpush1.msra.mxu0 1.0
  %3948 = vmatprep.subr.mxu0 0.0
  %3949 = vmatpush1.msra.mxu0 1.0
  %3950 = vmatprep.subr.mxu0 0.0
  %3951 = vmatpush1.msra.mxu0 1.0
  %3952 = vmatprep.subr.mxu0 0.0
  %3953 = vmatpush1.msra.mxu0 1.0
  %3954 = vmatprep.subr.mxu0 0.0
  %3955 = vmatpush1.msra.mxu0 1.0
  %3956 = vmatprep.subr.mxu0 0.0
  %3957 = vmatpush1.msra.mxu0 1.0
  %3958 = vmatprep.subr.mxu0 0.0
  %3959 = vmatpush1.msra.mxu0 1.0
  %3960 = vmatprep.subr.mxu0 0.0
  %3961 = vmatpush1.msra.mxu0 1.0
  %3962 = vmatprep.subr.mxu0 0.0
  %3963 = vmatpush1.msra.mxu0 1.0
  %3964 = vmatprep.subr.mxu0 0.0
  %3965 = vmatpush2.msra.mxu0 1.0
  %3966 = vmatprep.subr.mxu0 0.0
  %3967 = vmatpush2.msra.mxu0 1.0
  %3968 = vmatprep.subr.mxu0 0.0
  %3969 = vmatpush2.msra.mxu0 1.0
  %3970 = vmatprep.subr.mxu0 0.0
  %3971 = vmatpush2.msra.mxu0 1.0
  %3972 = vmatprep.subr.mxu0 0.0
  %3973 = vmatpush2.msra.mxu0 1.0
  %3974 = vmatprep.subr.mxu0 0.0
  %3975 = vmatpush2.msra.mxu0 1.0
  %3976 = vmatprep.subr.mxu0 0.0
  %3977 = vmatpush2.msra.mxu0 1.0
  %3978 = vmatprep.subr.mxu0 0.0
  %3979 = vmatpush2.msra.mxu0 1.0
  %3980 = vmatprep.subr.mxu0 0.0
  %3981 = vmatpush2.msra.mxu0 1.0
  %3982 = vmatprep.subr.mxu0 0.0
  %3983 = vmatpush2.msra.mxu0 1.0
  %3984 = vmatprep.subr.mxu0 0.0
  %3985 = vmatpush2.msra.mxu0 1.0
  %3986 = vmatprep.subr.mxu0 0.0
  %3987 = vmatpush2.msra.mxu0 1.0
  %3988 = vmatprep.subr.mxu0 0.0
  %3989 = vmatpush2.msra.mxu0 1.0
  %3990 = vmatprep.subr.mxu0 0.0
  %3991 = vmatpush2.msra.mxu0 1.0
  %3992 = vmatprep.subr.mxu0 0.0
  %3993 = vmatpush2.msra.mxu0 1.0
  %3994 = vmatprep.subr.mxu0 0.0
  %3995 = vmatpush2.msra.mxu0 1.0
  %v3996 = vand.u32 %v2903, 4294901760
  %v3997 = vsub.f32 %v2903, %v3996
  %v3998 = vand.u32 %v3997, 4294901760
  %v3999 = vsub.f32 %v3997, %v3998
  %v4000 = vand.u32 %v3999, 4294901760
  %4001 = vmatprep.mubr.f32.mxu0 %v4000
  %v4002 = vand.u32 %v2901, 4294901760
  %v4003 = vsub.f32 %v2901, %v4002
  %v4004 = vand.u32 %v4003, 4294901760
  %v4005 = vsub.f32 %v4003, %v4004
  %v4006 = vand.u32 %v4005, 4294901760
  %4007 = vmatmul.mubr.f32.gmra.mxu0 %v4006
  %v4008 = vpop.f32.mrf.mxu0
  %v4009 = vadd.f32 %v3922, %v4008
  %v4010 = vpop.f32.mrf.mxu0
  %v4011 = vand.u32 %v2921, 4294901760
  %v4012 = vsub.f32 %v2921, %v4011
  %v4013 = vand.u32 %v4012, 4294901760
  %v4014 = vsub.f32 %v4012, %v4013
  %v4015 = vand.u32 %v4014, 4294901760
  %4016 = vmatprep.mubr.f32.mxu0 %v4015
  %v4017 = vand.u32 %v2919, 4294901760
  %v4018 = vsub.f32 %v2919, %v4017
  %v4019 = vand.u32 %v4018, 4294901760
  %v4020 = vsub.f32 %v4018, %v4019
  %v4021 = vand.u32 %v4020, 4294901760
  %4022 = vmatmul.mubr.f32.gmra.mxu0 %v4021
  %v4023 = vpop.f32.mrf.mxu0
  %v4024 = vadd.f32 %v3929, %v4023
  %v4025 = vpop.f32.mrf.mxu0
  %4026 = vdwg.mxu0
  %4027 = vmatprep.subr.mxu0 0.0
  %4028 = vmatpush1.msra.mxu0 0.0
  %4029 = vmatprep.subr.mxu0 0.0
  %4030 = vmatpush1.msra.mxu0 0.0
  %4031 = vmatprep.subr.mxu0 0.0
  %4032 = vmatpush1.msra.mxu0 0.0
  %4033 = vmatprep.subr.mxu0 0.0
  %4034 = vmatpush1.msra.mxu0 0.0
  %4035 = vmatprep.subr.mxu0 0.0
  %4036 = vmatpush1.msra.mxu0 0.0
  %4037 = vmatprep.subr.mxu0 0.0
  %4038 = vmatpush1.msra.mxu0 0.0
  %4039 = vmatprep.subr.mxu0 0.0
  %4040 = vmatpush1.msra.mxu0 0.0
  %4041 = vmatprep.subr.mxu0 0.0
  %4042 = vmatpush1.msra.mxu0 0.0
  %4043 = vmatprep.subr.mxu0 0.0
  %4044 = vmatpush1.msra.mxu0 0.0
  %4045 = vmatprep.subr.mxu0 0.0
  %4046 = vmatpush1.msra.mxu0 0.0
  %4047 = vmatprep.subr.mxu0 0.0
  %4048 = vmatpush1.msra.mxu0 0.0
  %4049 = vmatprep.subr.mxu0 0.0
  %4050 = vmatpush1.msra.mxu0 0.0
  %4051 = vmatprep.subr.mxu0 0.0
  %4052 = vmatpush1.msra.mxu0 0.0
  %4053 = vmatprep.subr.mxu0 0.0
  %4054 = vmatpush1.msra.mxu0 0.0
  %4055 = vmatprep.subr.mxu0 0.0
  %4056 = vmatpush1.msra.mxu0 0.0
  %4057 = vmatprep.subr.mxu0 0.0
  %4058 = vmatpush1.msra.mxu0 0.0
  %4059 = vmatprep.subr.mxu0 0.0
  %4060 = vmatpush2.msra.mxu0 0.0
  %4061 = vmatprep.subr.mxu0 0.0
  %4062 = vmatpush2.msra.mxu0 0.0
  %4063 = vmatprep.subr.mxu0 0.0
  %4064 = vmatpush2.msra.mxu0 0.0
  %4065 = vmatprep.subr.mxu0 0.0
  %4066 = vmatpush2.msra.mxu0 0.0
  %4067 = vmatprep.subr.mxu0 0.0
  %4068 = vmatpush2.msra.mxu0 0.0
  %4069 = vmatprep.subr.mxu0 0.0
  %4070 = vmatpush2.msra.mxu0 0.0
  %4071 = vmatprep.subr.mxu0 0.0
  %4072 = vmatpush2.msra.mxu0 0.0
  %4073 = vmatprep.subr.mxu0 0.0
  %4074 = vmatpush2.msra.mxu0 0.0
  %4075 = vmatprep.subr.mxu0 0.0
  %4076 = vmatpush2.msra.mxu0 0.0
  %4077 = vmatprep.subr.mxu0 0.0
  %4078 = vmatpush2.msra.mxu0 0.0
  %4079 = vmatprep.subr.mxu0 0.0
  %4080 = vmatpush2.msra.mxu0 0.0
  %4081 = vmatprep.subr.mxu0 0.0
  %4082 = vmatpush2.msra.mxu0 0.0
  %4083 = vmatprep.subr.mxu0 0.0
  %4084 = vmatpush2.msra.mxu0 0.0
  %4085 = vmatprep.subr.mxu0 0.0
  %4086 = vmatpush2.msra.mxu0 0.0
  %4087 = vmatprep.subr.mxu0 0.0
  %4088 = vmatpush2.msra.mxu0 0.0
  %4089 = vmatprep.subr.mxu0 0.0
  %4090 = vmatpush2.msra.mxu0 0.0
  %v4091 = vand.u32 %v2903, 4294901760
  %4092 = vmatprep.mubr.f32.mxu0 %v4091
  %v4093 = vand.u32 %v2901, 4294901760
  %4094 = vmatmul.mubr.f32.gmra.mxu0 %v4093
  %v4095 = vpop.f32.mrf.mxu0
  %v4096 = vadd.f32 %v4009, %v4095
  %v4097 = vpop.f32.mrf.mxu0
  %v4098 = vand.u32 %v2921, 4294901760
  %4099 = vmatprep.mubr.f32.mxu0 %v4098
  %v4100 = vand.u32 %v2919, 4294901760
  %4101 = vmatmul.mubr.f32.gmra.mxu0 %v4100
  %v4102 = vpop.f32.mrf.mxu0
  %v4103 = vadd.f32 %v4024, %v4102
  %v4104 = vpop.f32.mrf.mxu0
  %4105 = vdwg.mxu0
  %4106 = vmatprep.subr.mxu0 0.0
  %4107 = vmatpush1.msra.mxu0 0.0
  %4108 = vmatprep.subr.mxu0 0.0
  %4109 = vmatpush1.msra.mxu0 0.0
  %4110 = vmatprep.subr.mxu0 0.0
  %4111 = vmatpush1.msra.mxu0 0.0
  %4112 = vmatprep.subr.mxu0 0.0
  %4113 = vmatpush1.msra.mxu0 0.0
  %4114 = vmatprep.subr.mxu0 0.0
  %4115 = vmatpush1.msra.mxu0 0.0
  %4116 = vmatprep.subr.mxu0 0.0
  %4117 = vmatpush1.msra.mxu0 0.0
  %4118 = vmatprep.subr.mxu0 0.0
  %4119 = vmatpush1.msra.mxu0 0.0
  %4120 = vmatprep.subr.mxu0 0.0
  %4121 = vmatpush1.msra.mxu0 0.0
  %4122 = vmatprep.subr.mxu0 0.0
  %4123 = vmatpush1.msra.mxu0 0.0
  %4124 = vmatprep.subr.mxu0 0.0
  %4125 = vmatpush1.msra.mxu0 0.0
  %4126 = vmatprep.subr.mxu0 0.0
  %4127 = vmatpush1.msra.mxu0 0.0
  %4128 = vmatprep.subr.mxu0 0.0
  %4129 = vmatpush1.msra.mxu0 0.0
  %4130 = vmatprep.subr.mxu0 0.0
  %4131 = vmatpush1.msra.mxu0 0.0
  %4132 = vmatprep.subr.mxu0 0.0
  %4133 = vmatpush1.msra.mxu0 0.0
  %4134 = vmatprep.subr.mxu0 0.0
  %4135 = vmatpush1.msra.mxu0 0.0
  %4136 = vmatprep.subr.mxu0 0.0
  %4137 = vmatpush1.msra.mxu0 0.0
  %4138 = vmatprep.subr.mxu0 0.0
  %4139 = vmatpush2.msra.mxu0 0.0
  %4140 = vmatprep.subr.mxu0 0.0
  %4141 = vmatpush2.msra.mxu0 0.0
  %4142 = vmatprep.subr.mxu0 0.0
  %4143 = vmatpush2.msra.mxu0 0.0
  %4144 = vmatprep.subr.mxu0 0.0
  %4145 = vmatpush2.msra.mxu0 0.0
  %4146 = vmatprep.subr.mxu0 0.0
  %4147 = vmatpush2.msra.mxu0 0.0
  %4148 = vmatprep.subr.mxu0 0.0
  %4149 = vmatpush2.msra.mxu0 0.0
  %4150 = vmatprep.subr.mxu0 0.0
  %4151 = vmatpush2.msra.mxu0 0.0
  %4152 = vmatprep.subr.mxu0 0.0
  %4153 = vmatpush2.msra.mxu0 0.0
  %4154 = vmatprep.subr.mxu0 0.0
  %4155 = vmatpush2.msra.mxu0 0.0
  %4156 = vmatprep.subr.mxu0 0.0
  %4157 = vmatpush2.msra.mxu0 0.0
  %4158 = vmatprep.subr.mxu0 0.0
  %4159 = vmatpush2.msra.mxu0 0.0
  %4160 = vmatprep.subr.mxu0 0.0
  %4161 = vmatpush2.msra.mxu0 0.0
  %4162 = vmatprep.subr.mxu0 0.0
  %4163 = vmatpush2.msra.mxu0 0.0
  %4164 = vmatprep.subr.mxu0 0.0
  %4165 = vmatpush2.msra.mxu0 0.0
  %4166 = vmatprep.subr.mxu0 0.0
  %4167 = vmatpush2.msra.mxu0 0.0
  %4168 = vmatprep.subr.mxu0 0.0
  %4169 = vmatpush2.msra.mxu0 0.0
  %v4170 = vand.u32 %v2903, 4294901760
  %v4171 = vsub.f32 %v2903, %v4170
  %4172 = vmatprep.mubr.f32.mxu0 %v4171
  %v4173 = vand.u32 %v2901, 4294901760
  %v4174 = vsub.f32 %v2901, %v4173
  %4175 = vmatmul.mubr.f32.gmra.mxu0 %v4174
  %v4176 = vpop.f32.mrf.mxu0
  %v4177 = vadd.f32 %v4096, %v4176
  %v4178 = vpop.f32.mrf.mxu0
  %v4179 = vand.u32 %v2921, 4294901760
  %v4180 = vsub.f32 %v2921, %v4179
  %4181 = vmatprep.mubr.f32.mxu0 %v4180
  %v4182 = vand.u32 %v2919, 4294901760
  %v4183 = vsub.f32 %v2919, %v4182
  %4184 = vmatmul.mubr.f32.gmra.mxu0 %v4183
  %v4185 = vpop.f32.mrf.mxu0
  %v4186 = vadd.f32 %v4103, %v4185
  %v4187 = vpop.f32.mrf.mxu0
  %4188 = vdwg.mxu0
  %4189 = vmatprep.subr.mxu0 0.0
  %4190 = vmatpush1.msra.mxu0 1.0
  %4191 = vmatprep.subr.mxu0 0.0
  %4192 = vmatpush1.msra.mxu0 1.0
  %4193 = vmatprep.subr.mxu0 0.0
  %4194 = vmatpush1.msra.mxu0 1.0
  %4195 = vmatprep.subr.mxu0 0.0
  %4196 = vmatpush1.msra.mxu0 1.0
  %4197 = vmatprep.subr.mxu0 0.0
  %4198 = vmatpush1.msra.mxu0 1.0
  %4199 = vmatprep.subr.mxu0 0.0
  %4200 = vmatpush1.msra.mxu0 1.0
  %4201 = vmatprep.subr.mxu0 0.0
  %4202 = vmatpush1.msra.mxu0 1.0
  %4203 = vmatprep.subr.mxu0 0.0
  %4204 = vmatpush1.msra.mxu0 1.0
  %4205 = vmatprep.subr.mxu0 0.0
  %4206 = vmatpush1.msra.mxu0 1.0
  %4207 = vmatprep.subr.mxu0 0.0
  %4208 = vmatpush1.msra.mxu0 1.0
  %4209 = vmatprep.subr.mxu0 0.0
  %4210 = vmatpush1.msra.mxu0 1.0
  %4211 = vmatprep.subr.mxu0 0.0
  %4212 = vmatpush1.msra.mxu0 1.0
  %4213 = vmatprep.subr.mxu0 0.0
  %4214 = vmatpush1.msra.mxu0 1.0
  %4215 = vmatprep.subr.mxu0 0.0
  %4216 = vmatpush1.msra.mxu0 1.0
  %4217 = vmatprep.subr.mxu0 0.0
  %4218 = vmatpush1.msra.mxu0 1.0
  %4219 = vmatprep.subr.mxu0 0.0
  %4220 = vmatpush1.msra.mxu0 1.0
  %4221 = vmatprep.subr.mxu0 0.0
  %4222 = vmatpush2.msra.mxu0 1.0
  %4223 = vmatprep.subr.mxu0 0.0
  %4224 = vmatpush2.msra.mxu0 1.0
  %4225 = vmatprep.subr.mxu0 0.0
  %4226 = vmatpush2.msra.mxu0 1.0
  %4227 = vmatprep.subr.mxu0 0.0
  %4228 = vmatpush2.msra.mxu0 1.0
  %4229 = vmatprep.subr.mxu0 0.0
  %4230 = vmatpush2.msra.mxu0 1.0
  %4231 = vmatprep.subr.mxu0 0.0
  %4232 = vmatpush2.msra.mxu0 1.0
  %4233 = vmatprep.subr.mxu0 0.0
  %4234 = vmatpush2.msra.mxu0 1.0
  %4235 = vmatprep.subr.mxu0 0.0
  %4236 = vmatpush2.msra.mxu0 1.0
  %4237 = vmatprep.subr.mxu0 0.0
  %4238 = vmatpush2.msra.mxu0 1.0
  %4239 = vmatprep.subr.mxu0 0.0
  %4240 = vmatpush2.msra.mxu0 1.0
  %4241 = vmatprep.subr.mxu0 0.0
  %4242 = vmatpush2.msra.mxu0 1.0
  %4243 = vmatprep.subr.mxu0 0.0
  %4244 = vmatpush2.msra.mxu0 1.0
  %4245 = vmatprep.subr.mxu0 0.0
  %4246 = vmatpush2.msra.mxu0 1.0
  %4247 = vmatprep.subr.mxu0 0.0
  %4248 = vmatpush2.msra.mxu0 1.0
  %4249 = vmatprep.subr.mxu0 0.0
  %4250 = vmatpush2.msra.mxu0 1.0
  %4251 = vmatprep.subr.mxu0 0.0
  %4252 = vmatpush2.msra.mxu0 1.0
  %v4253 = vand.u32 %v2903, 4294901760
  %v4254 = vsub.f32 %v2903, %v4253
  %v4255 = vand.u32 %v4254, 4294901760
  %4256 = vmatprep.mubr.f32.mxu0 %v4255
  %v4257 = vand.u32 %v2901, 4294901760
  %v4258 = vsub.f32 %v2901, %v4257
  %v4259 = vand.u32 %v4258, 4294901760
  %4260 = vmatmul.mubr.f32.gmra.mxu0 %v4259
  %v4261 = vpop.f32.mrf.mxu0
  %v4262 = vadd.f32 %v4177, %v4261
  %v4263 = vpop.f32.mrf.mxu0
  %v4264 = vand.u32 %v2921, 4294901760
  %v4265 = vsub.f32 %v2921, %v4264
  %v4266 = vand.u32 %v4265, 4294901760
  %4267 = vmatprep.mubr.f32.mxu0 %v4266
  %v4268 = vand.u32 %v2919, 4294901760
  %v4269 = vsub.f32 %v2919, %v4268
  %v4270 = vand.u32 %v4269, 4294901760
  %4271 = vmatmul.mubr.f32.gmra.mxu0 %v4270
  %v4272 = vpop.f32.mrf.mxu0
  %v4273 = vadd.f32 %v4186, %v4272
  %v4274 = vpop.f32.mrf.mxu0
  %4275 = vdwg.mxu0
  %4276 = vmatprep.subr.mxu0 0.0
  %4277 = vmatpush1.msra.mxu0 0.0
  %4278 = vmatprep.subr.mxu0 0.0
  %4279 = vmatpush1.msra.mxu0 0.0
  %4280 = vmatprep.subr.mxu0 0.0
  %4281 = vmatpush1.msra.mxu0 0.0
  %4282 = vmatprep.subr.mxu0 0.0
  %4283 = vmatpush1.msra.mxu0 0.0
  %4284 = vmatprep.subr.mxu0 0.0
  %4285 = vmatpush1.msra.mxu0 0.0
  %4286 = vmatprep.subr.mxu0 0.0
  %4287 = vmatpush1.msra.mxu0 0.0
  %4288 = vmatprep.subr.mxu0 0.0
  %4289 = vmatpush1.msra.mxu0 0.0
  %4290 = vmatprep.subr.mxu0 0.0
  %4291 = vmatpush1.msra.mxu0 0.0
  %4292 = vmatprep.subr.mxu0 0.0
  %4293 = vmatpush1.msra.mxu0 0.0
  %4294 = vmatprep.subr.mxu0 0.0
  %4295 = vmatpush1.msra.mxu0 0.0
  %4296 = vmatprep.subr.mxu0 0.0
  %4297 = vmatpush1.msra.mxu0 0.0
  %4298 = vmatprep.subr.mxu0 0.0
  %4299 = vmatpush1.msra.mxu0 0.0
  %4300 = vmatprep.subr.mxu0 0.0
  %4301 = vmatpush1.msra.mxu0 0.0
  %4302 = vmatprep.subr.mxu0 0.0
  %4303 = vmatpush1.msra.mxu0 0.0
  %4304 = vmatprep.subr.mxu0 0.0
  %4305 = vmatpush1.msra.mxu0 0.0
  %4306 = vmatprep.subr.mxu0 0.0
  %4307 = vmatpush1.msra.mxu0 0.0
  %4308 = vmatprep.subr.mxu0 0.0
  %4309 = vmatpush2.msra.mxu0 0.0
  %4310 = vmatprep.subr.mxu0 0.0
  %4311 = vmatpush2.msra.mxu0 0.0
  %4312 = vmatprep.subr.mxu0 0.0
  %4313 = vmatpush2.msra.mxu0 0.0
  %4314 = vmatprep.subr.mxu0 0.0
  %4315 = vmatpush2.msra.mxu0 0.0
  %4316 = vmatprep.subr.mxu0 0.0
  %4317 = vmatpush2.msra.mxu0 0.0
  %4318 = vmatprep.subr.mxu0 0.0
  %4319 = vmatpush2.msra.mxu0 0.0
  %4320 = vmatprep.subr.mxu0 0.0
  %4321 = vmatpush2.msra.mxu0 0.0
  %4322 = vmatprep.subr.mxu0 0.0
  %4323 = vmatpush2.msra.mxu0 0.0
  %4324 = vmatprep.subr.mxu0 0.0
  %4325 = vmatpush2.msra.mxu0 0.0
  %4326 = vmatprep.subr.mxu0 0.0
  %4327 = vmatpush2.msra.mxu0 0.0
  %4328 = vmatprep.subr.mxu0 0.0
  %4329 = vmatpush2.msra.mxu0 0.0
  %4330 = vmatprep.subr.mxu0 0.0
  %4331 = vmatpush2.msra.mxu0 0.0
  %4332 = vmatprep.subr.mxu0 0.0
  %4333 = vmatpush2.msra.mxu0 0.0
  %4334 = vmatprep.subr.mxu0 0.0
  %4335 = vmatpush2.msra.mxu0 0.0
  %4336 = vmatprep.subr.mxu0 0.0
  %4337 = vmatpush2.msra.mxu0 0.0
  %4338 = vmatprep.subr.mxu0 0.0
  %4339 = vmatpush2.msra.mxu0 0.0
  %v4340 = vand.u32 %v2903, 4294901760
  %4341 = vmatprep.mubr.f32.mxu0 %v4340
  %v4342 = vand.u32 %v2901, 4294901760
  %4343 = vmatmul.mubr.f32.gmra.mxu0 %v4342
  %v4344 = vpop.f32.mrf.mxu0
  %v4345 = vadd.f32 %v4262, %v4344
  %v4346 = vpop.f32.mrf.mxu0
  %v4347 = vand.u32 %v2921, 4294901760
  %4348 = vmatprep.mubr.f32.mxu0 %v4347
  %v4349 = vand.u32 %v2919, 4294901760
  %4350 = vmatmul.mubr.f32.gmra.mxu0 %v4349
  %v4351 = vpop.f32.mrf.mxu0
  %v4352 = vadd.f32 %v4273, %v4351
  %v4353 = vpop.f32.mrf.mxu0
  %4354 = vdwg.mxu0
  %4355 = vmatprep.subr.mxu0 0.0
  %4356 = vmatpush1.msra.mxu0 1.0
  %4357 = vmatprep.subr.mxu0 0.0
  %4358 = vmatpush1.msra.mxu0 1.0
  %4359 = vmatprep.subr.mxu0 0.0
  %4360 = vmatpush1.msra.mxu0 1.0
  %4361 = vmatprep.subr.mxu0 0.0
  %4362 = vmatpush1.msra.mxu0 1.0
  %4363 = vmatprep.subr.mxu0 0.0
  %4364 = vmatpush1.msra.mxu0 1.0
  %4365 = vmatprep.subr.mxu0 0.0
  %4366 = vmatpush1.msra.mxu0 1.0
  %4367 = vmatprep.subr.mxu0 0.0
  %4368 = vmatpush1.msra.mxu0 1.0
  %4369 = vmatprep.subr.mxu0 0.0
  %4370 = vmatpush1.msra.mxu0 1.0
  %4371 = vmatprep.subr.mxu0 0.0
  %4372 = vmatpush1.msra.mxu0 1.0
  %4373 = vmatprep.subr.mxu0 0.0
  %4374 = vmatpush1.msra.mxu0 1.0
  %4375 = vmatprep.subr.mxu0 0.0
  %4376 = vmatpush1.msra.mxu0 1.0
  %4377 = vmatprep.subr.mxu0 0.0
  %4378 = vmatpush1.msra.mxu0 1.0
  %4379 = vmatprep.subr.mxu0 0.0
  %4380 = vmatpush1.msra.mxu0 1.0
  %4381 = vmatprep.subr.mxu0 0.0
  %4382 = vmatpush1.msra.mxu0 1.0
  %4383 = vmatprep.subr.mxu0 0.0
  %4384 = vmatpush1.msra.mxu0 1.0
  %4385 = vmatprep.subr.mxu0 0.0
  %4386 = vmatpush1.msra.mxu0 1.0
  %4387 = vmatprep.subr.mxu0 0.0
  %4388 = vmatpush2.msra.mxu0 1.0
  %4389 = vmatprep.subr.mxu0 0.0
  %4390 = vmatpush2.msra.mxu0 1.0
  %4391 = vmatprep.subr.mxu0 0.0
  %4392 = vmatpush2.msra.mxu0 1.0
  %4393 = vmatprep.subr.mxu0 0.0
  %4394 = vmatpush2.msra.mxu0 1.0
  %4395 = vmatprep.subr.mxu0 0.0
  %4396 = vmatpush2.msra.mxu0 1.0
  %4397 = vmatprep.subr.mxu0 0.0
  %4398 = vmatpush2.msra.mxu0 1.0
  %4399 = vmatprep.subr.mxu0 0.0
  %4400 = vmatpush2.msra.mxu0 1.0
  %4401 = vmatprep.subr.mxu0 0.0
  %4402 = vmatpush2.msra.mxu0 1.0
  %4403 = vmatprep.subr.mxu0 0.0
  %4404 = vmatpush2.msra.mxu0 1.0
  %4405 = vmatprep.subr.mxu0 0.0
  %4406 = vmatpush2.msra.mxu0 1.0
  %4407 = vmatprep.subr.mxu0 0.0
  %4408 = vmatpush2.msra.mxu0 1.0
  %4409 = vmatprep.subr.mxu0 0.0
  %4410 = vmatpush2.msra.mxu0 1.0
  %4411 = vmatprep.subr.mxu0 0.0
  %4412 = vmatpush2.msra.mxu0 1.0
  %4413 = vmatprep.subr.mxu0 0.0
  %4414 = vmatpush2.msra.mxu0 1.0
  %4415 = vmatprep.subr.mxu0 0.0
  %4416 = vmatpush2.msra.mxu0 1.0
  %4417 = vmatprep.subr.mxu0 0.0
  %4418 = vmatpush2.msra.mxu0 1.0
  %v4419 = vand.u32 %v2903, 4294901760
  %4420 = vmatprep.mubr.f32.mxu0 %v4419
  %v4421 = vand.u32 %v2901, 4294901760
  %4422 = vmatmul.mubr.f32.gmra.mxu0 %v4421
  %v4423 = vpop.f32.mrf.mxu0
  %v4424 = vadd.f32 %v4345, %v4423
  %v4425 = vpop.f32.mrf.mxu0
  %v4426 = vand.u32 %v2921, 4294901760
  %4427 = vmatprep.mubr.f32.mxu0 %v4426
  %v4428 = vand.u32 %v2919, 4294901760
  %4429 = vmatmul.mubr.f32.gmra.mxu0 %v4428
  %v4430 = vpop.f32.mrf.mxu0
  %v4431 = vadd.f32 %v4352, %v4430
  %v4432 = vpop.f32.mrf.mxu0
  %4433 = vdwg.mxu0
  %4434 = vmatprep.subr.mxu0 0.0
  %4435 = vmatpush1.msra.mxu0 1.0
  %4436 = vmatprep.subr.mxu0 0.0
  %4437 = vmatpush1.msra.mxu0 1.0
  %4438 = vmatprep.subr.mxu0 0.0
  %4439 = vmatpush1.msra.mxu0 1.0
  %4440 = vmatprep.subr.mxu0 0.0
  %4441 = vmatpush1.msra.mxu0 1.0
  %4442 = vmatprep.subr.mxu0 0.0
  %4443 = vmatpush1.msra.mxu0 1.0
  %4444 = vmatprep.subr.mxu0 0.0
  %4445 = vmatpush1.msra.mxu0 1.0
  %4446 = vmatprep.subr.mxu0 0.0
  %4447 = vmatpush1.msra.mxu0 1.0
  %4448 = vmatprep.subr.mxu0 0.0
  %4449 = vmatpush1.msra.mxu0 1.0
  %4450 = vmatprep.subr.mxu0 0.0
  %4451 = vmatpush1.msra.mxu0 1.0
  %4452 = vmatprep.subr.mxu0 0.0
  %4453 = vmatpush1.msra.mxu0 1.0
  %4454 = vmatprep.subr.mxu0 0.0
  %4455 = vmatpush1.msra.mxu0 1.0
  %4456 = vmatprep.subr.mxu0 0.0
  %4457 = vmatpush1.msra.mxu0 1.0
  %4458 = vmatprep.subr.mxu0 0.0
  %4459 = vmatpush1.msra.mxu0 1.0
  %4460 = vmatprep.subr.mxu0 0.0
  %4461 = vmatpush1.msra.mxu0 1.0
  %4462 = vmatprep.subr.mxu0 0.0
  %4463 = vmatpush1.msra.mxu0 1.0
  %4464 = vmatprep.subr.mxu0 0.0
  %4465 = vmatpush1.msra.mxu0 1.0
  %4466 = vmatprep.subr.mxu0 0.0
  %4467 = vmatpush2.msra.mxu0 1.0
  %4468 = vmatprep.subr.mxu0 0.0
  %4469 = vmatpush2.msra.mxu0 1.0
  %4470 = vmatprep.subr.mxu0 0.0
  %4471 = vmatpush2.msra.mxu0 1.0
  %4472 = vmatprep.subr.mxu0 0.0
  %4473 = vmatpush2.msra.mxu0 1.0
  %4474 = vmatprep.subr.mxu0 0.0
  %4475 = vmatpush2.msra.mxu0 1.0
  %4476 = vmatprep.subr.mxu0 0.0
  %4477 = vmatpush2.msra.mxu0 1.0
  %4478 = vmatprep.subr.mxu0 0.0
  %4479 = vmatpush2.msra.mxu0 1.0
  %4480 = vmatprep.subr.mxu0 0.0
  %4481 = vmatpush2.msra.mxu0 1.0
  %4482 = vmatprep.subr.mxu0 0.0
  %4483 = vmatpush2.msra.mxu0 1.0
  %4484 = vmatprep.subr.mxu0 0.0
  %4485 = vmatpush2.msra.mxu0 1.0
  %4486 = vmatprep.subr.mxu0 0.0
  %4487 = vmatpush2.msra.mxu0 1.0
  %4488 = vmatprep.subr.mxu0 0.0
  %4489 = vmatpush2.msra.mxu0 1.0
  %4490 = vmatprep.subr.mxu0 0.0
  %4491 = vmatpush2.msra.mxu0 1.0
  %4492 = vmatprep.subr.mxu0 0.0
  %4493 = vmatpush2.msra.mxu0 1.0
  %4494 = vmatprep.subr.mxu0 0.0
  %4495 = vmatpush2.msra.mxu0 1.0
  %4496 = vmatprep.subr.mxu0 0.0
  %4497 = vmatpush2.msra.mxu0 1.0
  %v4498 = vand.u32 %v2907, 4294901760
  %v4499 = vsub.f32 %v2907, %v4498
  %v4500 = vand.u32 %v4499, 4294901760
  %v4501 = vsub.f32 %v4499, %v4500
  %v4502 = vand.u32 %v4501, 4294901760
  %4503 = vmatprep.mubr.f32.mxu0 %v4502
  %v4504 = vand.u32 %v2905, 4294901760
  %v4505 = vsub.f32 %v2905, %v4504
  %v4506 = vand.u32 %v4505, 4294901760
  %v4507 = vsub.f32 %v4505, %v4506
  %v4508 = vand.u32 %v4507, 4294901760
  %4509 = vmatmul.mubr.f32.gmra.mxu0 %v4508
  %v4510 = vpop.f32.mrf.mxu0
  %v4511 = vadd.f32 %v4424, %v4510
  %v4512 = vpop.f32.mrf.mxu0
  %v4513 = vand.u32 %v2925, 4294901760
  %v4514 = vsub.f32 %v2925, %v4513
  %v4515 = vand.u32 %v4514, 4294901760
  %v4516 = vsub.f32 %v4514, %v4515
  %v4517 = vand.u32 %v4516, 4294901760
  %4518 = vmatprep.mubr.f32.mxu0 %v4517
  %v4519 = vand.u32 %v2923, 4294901760
  %v4520 = vsub.f32 %v2923, %v4519
  %v4521 = vand.u32 %v4520, 4294901760
  %v4522 = vsub.f32 %v4520, %v4521
  %v4523 = vand.u32 %v4522, 4294901760
  %4524 = vmatmul.mubr.f32.gmra.mxu0 %v4523
  %v4525 = vpop.f32.mrf.mxu0
  %v4526 = vadd.f32 %v4431, %v4525
  %v4527 = vpop.f32.mrf.mxu0
  %4528 = vdwg.mxu0
  %4529 = vmatprep.subr.mxu0 0.0
  %4530 = vmatpush1.msra.mxu0 0.0
  %4531 = vmatprep.subr.mxu0 0.0
  %4532 = vmatpush1.msra.mxu0 0.0
  %4533 = vmatprep.subr.mxu0 0.0
  %4534 = vmatpush1.msra.mxu0 0.0
  %4535 = vmatprep.subr.mxu0 0.0
  %4536 = vmatpush1.msra.mxu0 0.0
  %4537 = vmatprep.subr.mxu0 0.0
  %4538 = vmatpush1.msra.mxu0 0.0
  %4539 = vmatprep.subr.mxu0 0.0
  %4540 = vmatpush1.msra.mxu0 0.0
  %4541 = vmatprep.subr.mxu0 0.0
  %4542 = vmatpush1.msra.mxu0 0.0
  %4543 = vmatprep.subr.mxu0 0.0
  %4544 = vmatpush1.msra.mxu0 0.0
  %4545 = vmatprep.subr.mxu0 0.0
  %4546 = vmatpush1.msra.mxu0 0.0
  %4547 = vmatprep.subr.mxu0 0.0
  %4548 = vmatpush1.msra.mxu0 0.0
  %4549 = vmatprep.subr.mxu0 0.0
  %4550 = vmatpush1.msra.mxu0 0.0
  %4551 = vmatprep.subr.mxu0 0.0
  %4552 = vmatpush1.msra.mxu0 0.0
  %4553 = vmatprep.subr.mxu0 0.0
  %4554 = vmatpush1.msra.mxu0 0.0
  %4555 = vmatprep.subr.mxu0 0.0
  %4556 = vmatpush1.msra.mxu0 0.0
  %4557 = vmatprep.subr.mxu0 0.0
  %4558 = vmatpush1.msra.mxu0 0.0
  %4559 = vmatprep.subr.mxu0 0.0
  %4560 = vmatpush1.msra.mxu0 0.0
  %4561 = vmatprep.subr.mxu0 0.0
  %4562 = vmatpush2.msra.mxu0 0.0
  %4563 = vmatprep.subr.mxu0 0.0
  %4564 = vmatpush2.msra.mxu0 0.0
  %4565 = vmatprep.subr.mxu0 0.0
  %4566 = vmatpush2.msra.mxu0 0.0
  %4567 = vmatprep.subr.mxu0 0.0
  %4568 = vmatpush2.msra.mxu0 0.0
  %4569 = vmatprep.subr.mxu0 0.0
  %4570 = vmatpush2.msra.mxu0 0.0
  %4571 = vmatprep.subr.mxu0 0.0
  %4572 = vmatpush2.msra.mxu0 0.0
  %4573 = vmatprep.subr.mxu0 0.0
  %4574 = vmatpush2.msra.mxu0 0.0
  %4575 = vmatprep.subr.mxu0 0.0
  %4576 = vmatpush2.msra.mxu0 0.0
  %4577 = vmatprep.subr.mxu0 0.0
  %4578 = vmatpush2.msra.mxu0 0.0
  %4579 = vmatprep.subr.mxu0 0.0
  %4580 = vmatpush2.msra.mxu0 0.0
  %4581 = vmatprep.subr.mxu0 0.0
  %4582 = vmatpush2.msra.mxu0 0.0
  %4583 = vmatprep.subr.mxu0 0.0
  %4584 = vmatpush2.msra.mxu0 0.0
  %4585 = vmatprep.subr.mxu0 0.0
  %4586 = vmatpush2.msra.mxu0 0.0
  %4587 = vmatprep.subr.mxu0 0.0
  %4588 = vmatpush2.msra.mxu0 0.0
  %4589 = vmatprep.subr.mxu0 0.0
  %4590 = vmatpush2.msra.mxu0 0.0
  %4591 = vmatprep.subr.mxu0 0.0
  %4592 = vmatpush2.msra.mxu0 0.0
  %v4593 = vand.u32 %v2907, 4294901760
  %4594 = vmatprep.mubr.f32.mxu0 %v4593
  %v4595 = vand.u32 %v2905, 4294901760
  %4596 = vmatmul.mubr.f32.gmra.mxu0 %v4595
  %v4597 = vpop.f32.mrf.mxu0
  %v4598 = vadd.f32 %v4511, %v4597
  %v4599 = vpop.f32.mrf.mxu0
  %v4600 = vand.u32 %v2925, 4294901760
  %4601 = vmatprep.mubr.f32.mxu0 %v4600
  %v4602 = vand.u32 %v2923, 4294901760
  %4603 = vmatmul.mubr.f32.gmra.mxu0 %v4602
  %v4604 = vpop.f32.mrf.mxu0
  %v4605 = vadd.f32 %v4526, %v4604
  %v4606 = vpop.f32.mrf.mxu0
  %4607 = vdwg.mxu0
  %4608 = vmatprep.subr.mxu0 0.0
  %4609 = vmatpush1.msra.mxu0 0.0
  %4610 = vmatprep.subr.mxu0 0.0
  %4611 = vmatpush1.msra.mxu0 0.0
  %4612 = vmatprep.subr.mxu0 0.0
  %4613 = vmatpush1.msra.mxu0 0.0
  %4614 = vmatprep.subr.mxu0 0.0
  %4615 = vmatpush1.msra.mxu0 0.0
  %4616 = vmatprep.subr.mxu0 0.0
  %4617 = vmatpush1.msra.mxu0 0.0
  %4618 = vmatprep.subr.mxu0 0.0
  %4619 = vmatpush1.msra.mxu0 0.0
  %4620 = vmatprep.subr.mxu0 0.0
  %4621 = vmatpush1.msra.mxu0 0.0
  %4622 = vmatprep.subr.mxu0 0.0
  %4623 = vmatpush1.msra.mxu0 0.0
  %4624 = vmatprep.subr.mxu0 0.0
  %4625 = vmatpush1.msra.mxu0 0.0
  %4626 = vmatprep.subr.mxu0 0.0
  %4627 = vmatpush1.msra.mxu0 0.0
  %4628 = vmatprep.subr.mxu0 0.0
  %4629 = vmatpush1.msra.mxu0 0.0
  %4630 = vmatprep.subr.mxu0 0.0
  %4631 = vmatpush1.msra.mxu0 0.0
  %4632 = vmatprep.subr.mxu0 0.0
  %4633 = vmatpush1.msra.mxu0 0.0
  %4634 = vmatprep.subr.mxu0 0.0
  %4635 = vmatpush1.msra.mxu0 0.0
  %4636 = vmatprep.subr.mxu0 0.0
  %4637 = vmatpush1.msra.mxu0 0.0
  %4638 = vmatprep.subr.mxu0 0.0
  %4639 = vmatpush1.msra.mxu0 0.0
  %4640 = vmatprep.subr.mxu0 0.0
  %4641 = vmatpush2.msra.mxu0 0.0
  %4642 = vmatprep.subr.mxu0 0.0
  %4643 = vmatpush2.msra.mxu0 0.0
  %4644 = vmatprep.subr.mxu0 0.0
  %4645 = vmatpush2.msra.mxu0 0.0
  %4646 = vmatprep.subr.mxu0 0.0
  %4647 = vmatpush2.msra.mxu0 0.0
  %4648 = vmatprep.subr.mxu0 0.0
  %4649 = vmatpush2.msra.mxu0 0.0
  %4650 = vmatprep.subr.mxu0 0.0
  %4651 = vmatpush2.msra.mxu0 0.0
  %4652 = vmatprep.subr.mxu0 0.0
  %4653 = vmatpush2.msra.mxu0 0.0
  %4654 = vmatprep.subr.mxu0 0.0
  %4655 = vmatpush2.msra.mxu0 0.0
  %4656 = vmatprep.subr.mxu0 0.0
  %4657 = vmatpush2.msra.mxu0 0.0
  %4658 = vmatprep.subr.mxu0 0.0
  %4659 = vmatpush2.msra.mxu0 0.0
  %4660 = vmatprep.subr.mxu0 0.0
  %4661 = vmatpush2.msra.mxu0 0.0
  %4662 = vmatprep.subr.mxu0 0.0
  %4663 = vmatpush2.msra.mxu0 0.0
  %4664 = vmatprep.subr.mxu0 0.0
  %4665 = vmatpush2.msra.mxu0 0.0
  %4666 = vmatprep.subr.mxu0 0.0
  %4667 = vmatpush2.msra.mxu0 0.0
  %4668 = vmatprep.subr.mxu0 0.0
  %4669 = vmatpush2.msra.mxu0 0.0
  %4670 = vmatprep.subr.mxu0 0.0
  %4671 = vmatpush2.msra.mxu0 0.0
  %v4672 = vand.u32 %v2907, 4294901760
  %v4673 = vsub.f32 %v2907, %v4672
  %4674 = vmatprep.mubr.f32.mxu0 %v4673
  %v4675 = vand.u32 %v2905, 4294901760
  %v4676 = vsub.f32 %v2905, %v4675
  %4677 = vmatmul.mubr.f32.gmra.mxu0 %v4676
  %v4678 = vpop.f32.mrf.mxu0
  %v4679 = vadd.f32 %v4598, %v4678
  %v4680 = vpop.f32.mrf.mxu0
  %v4681 = vand.u32 %v2925, 4294901760
  %v4682 = vsub.f32 %v2925, %v4681
  %4683 = vmatprep.mubr.f32.mxu0 %v4682
  %v4684 = vand.u32 %v2923, 4294901760
  %v4685 = vsub.f32 %v2923, %v4684
  %4686 = vmatmul.mubr.f32.gmra.mxu0 %v4685
  %v4687 = vpop.f32.mrf.mxu0
  %v4688 = vadd.f32 %v4605, %v4687
  %v4689 = vpop.f32.mrf.mxu0
  %4690 = vdwg.mxu0
  %4691 = vmatprep.subr.mxu0 0.0
  %4692 = vmatpush1.msra.mxu0 1.0
  %4693 = vmatprep.subr.mxu0 0.0
  %4694 = vmatpush1.msra.mxu0 1.0
  %4695 = vmatprep.subr.mxu0 0.0
  %4696 = vmatpush1.msra.mxu0 1.0
  %4697 = vmatprep.subr.mxu0 0.0
  %4698 = vmatpush1.msra.mxu0 1.0
  %4699 = vmatprep.subr.mxu0 0.0
  %4700 = vmatpush1.msra.mxu0 1.0
  %4701 = vmatprep.subr.mxu0 0.0
  %4702 = vmatpush1.msra.mxu0 1.0
  %4703 = vmatprep.subr.mxu0 0.0
  %4704 = vmatpush1.msra.mxu0 1.0
  %4705 = vmatprep.subr.mxu0 0.0
  %4706 = vmatpush1.msra.mxu0 1.0
  %4707 = vmatprep.subr.mxu0 0.0
  %4708 = vmatpush1.msra.mxu0 1.0
  %4709 = vmatprep.subr.mxu0 0.0
  %4710 = vmatpush1.msra.mxu0 1.0
  %4711 = vmatprep.subr.mxu0 0.0
  %4712 = vmatpush1.msra.mxu0 1.0
  %4713 = vmatprep.subr.mxu0 0.0
  %4714 = vmatpush1.msra.mxu0 1.0
  %4715 = vmatprep.subr.mxu0 0.0
  %4716 = vmatpush1.msra.mxu0 1.0
  %4717 = vmatprep.subr.mxu0 0.0
  %4718 = vmatpush1.msra.mxu0 1.0
  %4719 = vmatprep.subr.mxu0 0.0
  %4720 = vmatpush1.msra.mxu0 1.0
  %4721 = vmatprep.subr.mxu0 0.0
  %4722 = vmatpush1.msra.mxu0 1.0
  %4723 = vmatprep.subr.mxu0 0.0
  %4724 = vmatpush2.msra.mxu0 1.0
  %4725 = vmatprep.subr.mxu0 0.0
  %4726 = vmatpush2.msra.mxu0 1.0
  %4727 = vmatprep.subr.mxu0 0.0
  %4728 = vmatpush2.msra.mxu0 1.0
  %4729 = vmatprep.subr.mxu0 0.0
  %4730 = vmatpush2.msra.mxu0 1.0
  %4731 = vmatprep.subr.mxu0 0.0
  %4732 = vmatpush2.msra.mxu0 1.0
  %4733 = vmatprep.subr.mxu0 0.0
  %4734 = vmatpush2.msra.mxu0 1.0
  %4735 = vmatprep.subr.mxu0 0.0
  %4736 = vmatpush2.msra.mxu0 1.0
  %4737 = vmatprep.subr.mxu0 0.0
  %4738 = vmatpush2.msra.mxu0 1.0
  %4739 = vmatprep.subr.mxu0 0.0
  %4740 = vmatpush2.msra.mxu0 1.0
  %4741 = vmatprep.subr.mxu0 0.0
  %4742 = vmatpush2.msra.mxu0 1.0
  %4743 = vmatprep.subr.mxu0 0.0
  %4744 = vmatpush2.msra.mxu0 1.0
  %4745 = vmatprep.subr.mxu0 0.0
  %4746 = vmatpush2.msra.mxu0 1.0
  %4747 = vmatprep.subr.mxu0 0.0
  %4748 = vmatpush2.msra.mxu0 1.0
  %4749 = vmatprep.subr.mxu0 0.0
  %4750 = vmatpush2.msra.mxu0 1.0
  %4751 = vmatprep.subr.mxu0 0.0
  %4752 = vmatpush2.msra.mxu0 1.0
  %4753 = vmatprep.subr.mxu0 0.0
  %4754 = vmatpush2.msra.mxu0 1.0
  %v4755 = vand.u32 %v2907, 4294901760
  %v4756 = vsub.f32 %v2907, %v4755
  %v4757 = vand.u32 %v4756, 4294901760
  %4758 = vmatprep.mubr.f32.mxu0 %v4757
  %v4759 = vand.u32 %v2905, 4294901760
  %v4760 = vsub.f32 %v2905, %v4759
  %v4761 = vand.u32 %v4760, 4294901760
  %4762 = vmatmul.mubr.f32.gmra.mxu0 %v4761
  %v4763 = vpop.f32.mrf.mxu0
  %v4764 = vadd.f32 %v4679, %v4763
  %v4765 = vpop.f32.mrf.mxu0
  %v4766 = vand.u32 %v2925, 4294901760
  %v4767 = vsub.f32 %v2925, %v4766
  %v4768 = vand.u32 %v4767, 4294901760
  %4769 = vmatprep.mubr.f32.mxu0 %v4768
  %v4770 = vand.u32 %v2923, 4294901760
  %v4771 = vsub.f32 %v2923, %v4770
  %v4772 = vand.u32 %v4771, 4294901760
  %4773 = vmatmul.mubr.f32.gmra.mxu0 %v4772
  %v4774 = vpop.f32.mrf.mxu0
  %v4775 = vadd.f32 %v4688, %v4774
  %v4776 = vpop.f32.mrf.mxu0
  %4777 = vdwg.mxu0
  %4778 = vmatprep.subr.mxu0 0.0
  %4779 = vmatpush1.msra.mxu0 0.0
  %4780 = vmatprep.subr.mxu0 0.0
  %4781 = vmatpush1.msra.mxu0 0.0
  %4782 = vmatprep.subr.mxu0 0.0
  %4783 = vmatpush1.msra.mxu0 0.0
  %4784 = vmatprep.subr.mxu0 0.0
  %4785 = vmatpush1.msra.mxu0 0.0
  %4786 = vmatprep.subr.mxu0 0.0
  %4787 = vmatpush1.msra.mxu0 0.0
  %4788 = vmatprep.subr.mxu0 0.0
  %4789 = vmatpush1.msra.mxu0 0.0
  %4790 = vmatprep.subr.mxu0 0.0
  %4791 = vmatpush1.msra.mxu0 0.0
  %4792 = vmatprep.subr.mxu0 0.0
  %4793 = vmatpush1.msra.mxu0 0.0
  %4794 = vmatprep.subr.mxu0 0.0
  %4795 = vmatpush1.msra.mxu0 0.0
  %4796 = vmatprep.subr.mxu0 0.0
  %4797 = vmatpush1.msra.mxu0 0.0
  %4798 = vmatprep.subr.mxu0 0.0
  %4799 = vmatpush1.msra.mxu0 0.0
  %4800 = vmatprep.subr.mxu0 0.0
  %4801 = vmatpush1.msra.mxu0 0.0
  %4802 = vmatprep.subr.mxu0 0.0
  %4803 = vmatpush1.msra.mxu0 0.0
  %4804 = vmatprep.subr.mxu0 0.0
  %4805 = vmatpush1.msra.mxu0 0.0
  %4806 = vmatprep.subr.mxu0 0.0
  %4807 = vmatpush1.msra.mxu0 0.0
  %4808 = vmatprep.subr.mxu0 0.0
  %4809 = vmatpush1.msra.mxu0 0.0
  %4810 = vmatprep.subr.mxu0 0.0
  %4811 = vmatpush2.msra.mxu0 0.0
  %4812 = vmatprep.subr.mxu0 0.0
  %4813 = vmatpush2.msra.mxu0 0.0
  %4814 = vmatprep.subr.mxu0 0.0
  %4815 = vmatpush2.msra.mxu0 0.0
  %4816 = vmatprep.subr.mxu0 0.0
  %4817 = vmatpush2.msra.mxu0 0.0
  %4818 = vmatprep.subr.mxu0 0.0
  %4819 = vmatpush2.msra.mxu0 0.0
  %4820 = vmatprep.subr.mxu0 0.0
  %4821 = vmatpush2.msra.mxu0 0.0
  %4822 = vmatprep.subr.mxu0 0.0
  %4823 = vmatpush2.msra.mxu0 0.0
  %4824 = vmatprep.subr.mxu0 0.0
  %4825 = vmatpush2.msra.mxu0 0.0
  %4826 = vmatprep.subr.mxu0 0.0
  %4827 = vmatpush2.msra.mxu0 0.0
  %4828 = vmatprep.subr.mxu0 0.0
  %4829 = vmatpush2.msra.mxu0 0.0
  %4830 = vmatprep.subr.mxu0 0.0
  %4831 = vmatpush2.msra.mxu0 0.0
  %4832 = vmatprep.subr.mxu0 0.0
  %4833 = vmatpush2.msra.mxu0 0.0
  %4834 = vmatprep.subr.mxu0 0.0
  %4835 = vmatpush2.msra.mxu0 0.0
  %4836 = vmatprep.subr.mxu0 0.0
  %4837 = vmatpush2.msra.mxu0 0.0
  %4838 = vmatprep.subr.mxu0 0.0
  %4839 = vmatpush2.msra.mxu0 0.0
  %4840 = vmatprep.subr.mxu0 0.0
  %4841 = vmatpush2.msra.mxu0 0.0
  %v4842 = vand.u32 %v2907, 4294901760
  %4843 = vmatprep.mubr.f32.mxu0 %v4842
  %v4844 = vand.u32 %v2905, 4294901760
  %4845 = vmatmul.mubr.f32.gmra.mxu0 %v4844
  %v4846 = vpop.f32.mrf.mxu0
  %v4847 = vadd.f32 %v4764, %v4846
  %v4848 = vpop.f32.mrf.mxu0
  %v4849 = vand.u32 %v2925, 4294901760
  %4850 = vmatprep.mubr.f32.mxu0 %v4849
  %v4851 = vand.u32 %v2923, 4294901760
  %4852 = vmatmul.mubr.f32.gmra.mxu0 %v4851
  %v4853 = vpop.f32.mrf.mxu0
  %v4854 = vadd.f32 %v4775, %v4853
  %v4855 = vpop.f32.mrf.mxu0
  %4856 = vdwg.mxu0
  %4857 = vmatprep.subr.mxu0 0.0
  %4858 = vmatpush1.msra.mxu0 1.0
  %4859 = vmatprep.subr.mxu0 0.0
  %4860 = vmatpush1.msra.mxu0 1.0
  %4861 = vmatprep.subr.mxu0 0.0
  %4862 = vmatpush1.msra.mxu0 1.0
  %4863 = vmatprep.subr.mxu0 0.0
  %4864 = vmatpush1.msra.mxu0 1.0
  %4865 = vmatprep.subr.mxu0 0.0
  %4866 = vmatpush1.msra.mxu0 1.0
  %4867 = vmatprep.subr.mxu0 0.0
  %4868 = vmatpush1.msra.mxu0 1.0
  %4869 = vmatprep.subr.mxu0 0.0
  %4870 = vmatpush1.msra.mxu0 1.0
  %4871 = vmatprep.subr.mxu0 0.0
  %4872 = vmatpush1.msra.mxu0 1.0
  %4873 = vmatprep.subr.mxu0 0.0
  %4874 = vmatpush1.msra.mxu0 1.0
  %4875 = vmatprep.subr.mxu0 0.0
  %4876 = vmatpush1.msra.mxu0 1.0
  %4877 = vmatprep.subr.mxu0 0.0
  %4878 = vmatpush1.msra.mxu0 1.0
  %4879 = vmatprep.subr.mxu0 0.0
  %4880 = vmatpush1.msra.mxu0 1.0
  %4881 = vmatprep.subr.mxu0 0.0
  %4882 = vmatpush1.msra.mxu0 1.0
  %4883 = vmatprep.subr.mxu0 0.0
  %4884 = vmatpush1.msra.mxu0 1.0
  %4885 = vmatprep.subr.mxu0 0.0
  %4886 = vmatpush1.msra.mxu0 1.0
  %4887 = vmatprep.subr.mxu0 0.0
  %4888 = vmatpush1.msra.mxu0 1.0
  %4889 = vmatprep.subr.mxu0 0.0
  %4890 = vmatpush2.msra.mxu0 1.0
  %4891 = vmatprep.subr.mxu0 0.0
  %4892 = vmatpush2.msra.mxu0 1.0
  %4893 = vmatprep.subr.mxu0 0.0
  %4894 = vmatpush2.msra.mxu0 1.0
  %4895 = vmatprep.subr.mxu0 0.0
  %4896 = vmatpush2.msra.mxu0 1.0
  %4897 = vmatprep.subr.mxu0 0.0
  %4898 = vmatpush2.msra.mxu0 1.0
  %4899 = vmatprep.subr.mxu0 0.0
  %4900 = vmatpush2.msra.mxu0 1.0
  %4901 = vmatprep.subr.mxu0 0.0
  %4902 = vmatpush2.msra.mxu0 1.0
  %4903 = vmatprep.subr.mxu0 0.0
  %4904 = vmatpush2.msra.mxu0 1.0
  %4905 = vmatprep.subr.mxu0 0.0
  %4906 = vmatpush2.msra.mxu0 1.0
  %4907 = vmatprep.subr.mxu0 0.0
  %4908 = vmatpush2.msra.mxu0 1.0
  %4909 = vmatprep.subr.mxu0 0.0
  %4910 = vmatpush2.msra.mxu0 1.0
  %4911 = vmatprep.subr.mxu0 0.0
  %4912 = vmatpush2.msra.mxu0 1.0
  %4913 = vmatprep.subr.mxu0 0.0
  %4914 = vmatpush2.msra.mxu0 1.0
  %4915 = vmatprep.subr.mxu0 0.0
  %4916 = vmatpush2.msra.mxu0 1.0
  %4917 = vmatprep.subr.mxu0 0.0
  %4918 = vmatpush2.msra.mxu0 1.0
  %4919 = vmatprep.subr.mxu0 0.0
  %4920 = vmatpush2.msra.mxu0 1.0
  %v4921 = vand.u32 %v2907, 4294901760
  %4922 = vmatprep.mubr.f32.mxu0 %v4921
  %v4923 = vand.u32 %v2905, 4294901760
  %4924 = vmatmul.mubr.f32.gmra.mxu0 %v4923
  %v4925 = vpop.f32.mrf.mxu0
  %v4926 = vadd.f32 %v4847, %v4925
  %v4927 = vpop.f32.mrf.mxu0
  %v4928 = vand.u32 %v2925, 4294901760
  %4929 = vmatprep.mubr.f32.mxu0 %v4928
  %v4930 = vand.u32 %v2923, 4294901760
  %4931 = vmatmul.mubr.f32.gmra.mxu0 %v4930
  %v4932 = vpop.f32.mrf.mxu0
  %v4933 = vadd.f32 %v4854, %v4932
  %v4934 = vpop.f32.mrf.mxu0
  %4935 = vdwg.mxu0
  %4936 = vmatprep.subr.mxu0 0.0
  %4937 = vmatpush1.msra.mxu0 1.0
  %4938 = vmatprep.subr.mxu0 0.0
  %4939 = vmatpush1.msra.mxu0 1.0
  %4940 = vmatprep.subr.mxu0 0.0
  %4941 = vmatpush1.msra.mxu0 1.0
  %4942 = vmatprep.subr.mxu0 0.0
  %4943 = vmatpush1.msra.mxu0 1.0
  %4944 = vmatprep.subr.mxu0 0.0
  %4945 = vmatpush1.msra.mxu0 1.0
  %4946 = vmatprep.subr.mxu0 0.0
  %4947 = vmatpush1.msra.mxu0 1.0
  %4948 = vmatprep.subr.mxu0 0.0
  %4949 = vmatpush1.msra.mxu0 1.0
  %4950 = vmatprep.subr.mxu0 0.0
  %4951 = vmatpush1.msra.mxu0 1.0
  %4952 = vmatprep.subr.mxu0 0.0
  %4953 = vmatpush1.msra.mxu0 1.0
  %4954 = vmatprep.subr.mxu0 0.0
  %4955 = vmatpush1.msra.mxu0 1.0
  %4956 = vmatprep.subr.mxu0 0.0
  %4957 = vmatpush1.msra.mxu0 1.0
  %4958 = vmatprep.subr.mxu0 0.0
  %4959 = vmatpush1.msra.mxu0 1.0
  %4960 = vmatprep.subr.mxu0 0.0
  %4961 = vmatpush1.msra.mxu0 1.0
  %4962 = vmatprep.subr.mxu0 0.0
  %4963 = vmatpush1.msra.mxu0 1.0
  %4964 = vmatprep.subr.mxu0 0.0
  %4965 = vmatpush1.msra.mxu0 1.0
  %4966 = vmatprep.subr.mxu0 0.0
  %4967 = vmatpush1.msra.mxu0 1.0
  %4968 = vmatprep.subr.mxu0 0.0
  %4969 = vmatpush2.msra.mxu0 0.0
  %4970 = vmatprep.subr.mxu0 0.0
  %4971 = vmatpush2.msra.mxu0 0.0
  %4972 = vmatprep.subr.mxu0 0.0
  %4973 = vmatpush2.msra.mxu0 0.0
  %4974 = vmatprep.subr.mxu0 0.0
  %4975 = vmatpush2.msra.mxu0 0.0
  %4976 = vmatprep.subr.mxu0 0.0
  %4977 = vmatpush2.msra.mxu0 0.0
  %4978 = vmatprep.subr.mxu0 0.0
  %4979 = vmatpush2.msra.mxu0 0.0
  %4980 = vmatprep.subr.mxu0 0.0
  %4981 = vmatpush2.msra.mxu0 0.0
  %4982 = vmatprep.subr.mxu0 0.0
  %4983 = vmatpush2.msra.mxu0 0.0
  %4984 = vmatprep.subr.mxu0 0.0
  %4985 = vmatpush2.msra.mxu0 0.0
  %4986 = vmatprep.subr.mxu0 0.0
  %4987 = vmatpush2.msra.mxu0 0.0
  %4988 = vmatprep.subr.mxu0 0.0
  %4989 = vmatpush2.msra.mxu0 0.0
  %4990 = vmatprep.subr.mxu0 0.0
  %4991 = vmatpush2.msra.mxu0 0.0
  %4992 = vmatprep.subr.mxu0 0.0
  %4993 = vmatpush2.msra.mxu0 0.0
  %4994 = vmatprep.subr.mxu0 0.0
  %4995 = vmatpush2.msra.mxu0 0.0
  %4996 = vmatprep.subr.mxu0 0.0
  %4997 = vmatpush2.msra.mxu0 0.0
  %4998 = vmatprep.subr.mxu0 0.0
  %4999 = vmatpush2.msra.mxu0 0.0
  %5000 = vmatprep.mubr.f32.mxu0 0.0
  %v5001 = vand.u32 %v2909, 4294901760
  %v5002 = vsub.f32 %v2909, %v5001
  %v5003 = vand.u32 %v5002, 4294901760
  %v5004 = vsub.f32 %v5002, %v5003
  %v5005 = vand.u32 %v5004, 4294901760
  %5006 = vmatmul.mubr.f32.gmra.mxu0 %v5005
  %v5007 = vpop.f32.mrf.mxu0
  %v5008 = vadd.f32 %v4926, %v5007
  %v5009 = vpop.f32.mrf.mxu0
  %5010 = vmatprep.mubr.f32.mxu0 0.0
  %v5011 = vand.u32 %v2927, 4294901760
  %v5012 = vsub.f32 %v2927, %v5011
  %v5013 = vand.u32 %v5012, 4294901760
  %v5014 = vsub.f32 %v5012, %v5013
  %v5015 = vand.u32 %v5014, 4294901760
  %5016 = vmatmul.mubr.f32.gmra.mxu0 %v5015
  %v5017 = vpop.f32.mrf.mxu0
  %v5018 = vadd.f32 %v4933, %v5017
  %v5019 = vpop.f32.mrf.mxu0
  %5020 = vdwg.mxu0
  %5021 = vmatprep.subr.mxu0 0.0
  %5022 = vmatpush1.msra.mxu0 0.0
  %5023 = vmatprep.subr.mxu0 0.0
  %5024 = vmatpush1.msra.mxu0 0.0
  %5025 = vmatprep.subr.mxu0 0.0
  %5026 = vmatpush1.msra.mxu0 0.0
  %5027 = vmatprep.subr.mxu0 0.0
  %5028 = vmatpush1.msra.mxu0 0.0
  %5029 = vmatprep.subr.mxu0 0.0
  %5030 = vmatpush1.msra.mxu0 0.0
  %5031 = vmatprep.subr.mxu0 0.0
  %5032 = vmatpush1.msra.mxu0 0.0
  %5033 = vmatprep.subr.mxu0 0.0
  %5034 = vmatpush1.msra.mxu0 0.0
  %5035 = vmatprep.subr.mxu0 0.0
  %5036 = vmatpush1.msra.mxu0 0.0
  %5037 = vmatprep.subr.mxu0 0.0
  %5038 = vmatpush1.msra.mxu0 0.0
  %5039 = vmatprep.subr.mxu0 0.0
  %5040 = vmatpush1.msra.mxu0 0.0
  %5041 = vmatprep.subr.mxu0 0.0
  %5042 = vmatpush1.msra.mxu0 0.0
  %5043 = vmatprep.subr.mxu0 0.0
  %5044 = vmatpush1.msra.mxu0 0.0
  %5045 = vmatprep.subr.mxu0 0.0
  %5046 = vmatpush1.msra.mxu0 0.0
  %5047 = vmatprep.subr.mxu0 0.0
  %5048 = vmatpush1.msra.mxu0 0.0
  %5049 = vmatprep.subr.mxu0 0.0
  %5050 = vmatpush1.msra.mxu0 0.0
  %5051 = vmatprep.subr.mxu0 0.0
  %5052 = vmatpush1.msra.mxu0 0.0
  %5053 = vmatprep.subr.mxu0 0.0
  %5054 = vmatpush2.msra.mxu0 0.0
  %5055 = vmatprep.subr.mxu0 0.0
  %5056 = vmatpush2.msra.mxu0 0.0
  %5057 = vmatprep.subr.mxu0 0.0
  %5058 = vmatpush2.msra.mxu0 0.0
  %5059 = vmatprep.subr.mxu0 0.0
  %5060 = vmatpush2.msra.mxu0 0.0
  %5061 = vmatprep.subr.mxu0 0.0
  %5062 = vmatpush2.msra.mxu0 0.0
  %5063 = vmatprep.subr.mxu0 0.0
  %5064 = vmatpush2.msra.mxu0 0.0
  %5065 = vmatprep.subr.mxu0 0.0
  %5066 = vmatpush2.msra.mxu0 0.0
  %5067 = vmatprep.subr.mxu0 0.0
  %5068 = vmatpush2.msra.mxu0 0.0
  %5069 = vmatprep.subr.mxu0 0.0
  %5070 = vmatpush2.msra.mxu0 0.0
  %5071 = vmatprep.subr.mxu0 0.0
  %5072 = vmatpush2.msra.mxu0 0.0
  %5073 = vmatprep.subr.mxu0 0.0
  %5074 = vmatpush2.msra.mxu0 0.0
  %5075 = vmatprep.subr.mxu0 0.0
  %5076 = vmatpush2.msra.mxu0 0.0
  %5077 = vmatprep.subr.mxu0 0.0
  %5078 = vmatpush2.msra.mxu0 0.0
  %5079 = vmatprep.subr.mxu0 0.0
  %5080 = vmatpush2.msra.mxu0 0.0
  %5081 = vmatprep.subr.mxu0 0.0
  %5082 = vmatpush2.msra.mxu0 0.0
  %5083 = vmatprep.subr.mxu0 0.0
  %5084 = vmatpush2.msra.mxu0 0.0
  %5085 = vmatprep.mubr.f32.mxu0 0.0
  %v5086 = vand.u32 %v2909, 4294901760
  %5087 = vmatmul.mubr.f32.gmra.mxu0 %v5086
  %v5088 = vpop.f32.mrf.mxu0
  %v5089 = vadd.f32 %v5008, %v5088
  %v5090 = vpop.f32.mrf.mxu0
  %5091 = vmatprep.mubr.f32.mxu0 0.0
  %v5092 = vand.u32 %v2927, 4294901760
  %5093 = vmatmul.mubr.f32.gmra.mxu0 %v5092
  %v5094 = vpop.f32.mrf.mxu0
  %v5095 = vadd.f32 %v5018, %v5094
  %v5096 = vpop.f32.mrf.mxu0
  %5097 = vdwg.mxu0
  %5098 = vmatprep.subr.mxu0 0.0
  %5099 = vmatpush1.msra.mxu0 0.0
  %5100 = vmatprep.subr.mxu0 0.0
  %5101 = vmatpush1.msra.mxu0 0.0
  %5102 = vmatprep.subr.mxu0 0.0
  %5103 = vmatpush1.msra.mxu0 0.0
  %5104 = vmatprep.subr.mxu0 0.0
  %5105 = vmatpush1.msra.mxu0 0.0
  %5106 = vmatprep.subr.mxu0 0.0
  %5107 = vmatpush1.msra.mxu0 0.0
  %5108 = vmatprep.subr.mxu0 0.0
  %5109 = vmatpush1.msra.mxu0 0.0
  %5110 = vmatprep.subr.mxu0 0.0
  %5111 = vmatpush1.msra.mxu0 0.0
  %5112 = vmatprep.subr.mxu0 0.0
  %5113 = vmatpush1.msra.mxu0 0.0
  %5114 = vmatprep.subr.mxu0 0.0
  %5115 = vmatpush1.msra.mxu0 0.0
  %5116 = vmatprep.subr.mxu0 0.0
  %5117 = vmatpush1.msra.mxu0 0.0
  %5118 = vmatprep.subr.mxu0 0.0
  %5119 = vmatpush1.msra.mxu0 0.0
  %5120 = vmatprep.subr.mxu0 0.0
  %5121 = vmatpush1.msra.mxu0 0.0
  %5122 = vmatprep.subr.mxu0 0.0
  %5123 = vmatpush1.msra.mxu0 0.0
  %5124 = vmatprep.subr.mxu0 0.0
  %5125 = vmatpush1.msra.mxu0 0.0
  %5126 = vmatprep.subr.mxu0 0.0
  %5127 = vmatpush1.msra.mxu0 0.0
  %5128 = vmatprep.subr.mxu0 0.0
  %5129 = vmatpush1.msra.mxu0 0.0
  %5130 = vmatprep.subr.mxu0 0.0
  %5131 = vmatpush2.msra.mxu0 0.0
  %5132 = vmatprep.subr.mxu0 0.0
  %5133 = vmatpush2.msra.mxu0 0.0
  %5134 = vmatprep.subr.mxu0 0.0
  %5135 = vmatpush2.msra.mxu0 0.0
  %5136 = vmatprep.subr.mxu0 0.0
  %5137 = vmatpush2.msra.mxu0 0.0
  %5138 = vmatprep.subr.mxu0 0.0
  %5139 = vmatpush2.msra.mxu0 0.0
  %5140 = vmatprep.subr.mxu0 0.0
  %5141 = vmatpush2.msra.mxu0 0.0
  %5142 = vmatprep.subr.mxu0 0.0
  %5143 = vmatpush2.msra.mxu0 0.0
  %5144 = vmatprep.subr.mxu0 0.0
  %5145 = vmatpush2.msra.mxu0 0.0
  %5146 = vmatprep.subr.mxu0 0.0
  %5147 = vmatpush2.msra.mxu0 0.0
  %5148 = vmatprep.subr.mxu0 0.0
  %5149 = vmatpush2.msra.mxu0 0.0
  %5150 = vmatprep.subr.mxu0 0.0
  %5151 = vmatpush2.msra.mxu0 0.0
  %5152 = vmatprep.subr.mxu0 0.0
  %5153 = vmatpush2.msra.mxu0 0.0
  %5154 = vmatprep.subr.mxu0 0.0
  %5155 = vmatpush2.msra.mxu0 0.0
  %5156 = vmatprep.subr.mxu0 0.0
  %5157 = vmatpush2.msra.mxu0 0.0
  %5158 = vmatprep.subr.mxu0 0.0
  %5159 = vmatpush2.msra.mxu0 0.0
  %5160 = vmatprep.subr.mxu0 0.0
  %5161 = vmatpush2.msra.mxu0 0.0
  %5162 = vmatprep.mubr.f32.mxu0 0.0
  %v5163 = vand.u32 %v2909, 4294901760
  %v5164 = vsub.f32 %v2909, %v5163
  %5165 = vmatmul.mubr.f32.gmra.mxu0 %v5164
  %v5166 = vpop.f32.mrf.mxu0
  %v5167 = vadd.f32 %v5089, %v5166
  %v5168 = vpop.f32.mrf.mxu0
  %5169 = vmatprep.mubr.f32.mxu0 0.0
  %v5170 = vand.u32 %v2927, 4294901760
  %v5171 = vsub.f32 %v2927, %v5170
  %5172 = vmatmul.mubr.f32.gmra.mxu0 %v5171
  %v5173 = vpop.f32.mrf.mxu0
  %v5174 = vadd.f32 %v5095, %v5173
  %v5175 = vpop.f32.mrf.mxu0
  %5176 = vdwg.mxu0
  %5177 = vmatprep.subr.mxu0 0.0
  %5178 = vmatpush1.msra.mxu0 1.0
  %5179 = vmatprep.subr.mxu0 0.0
  %5180 = vmatpush1.msra.mxu0 1.0
  %5181 = vmatprep.subr.mxu0 0.0
  %5182 = vmatpush1.msra.mxu0 1.0
  %5183 = vmatprep.subr.mxu0 0.0
  %5184 = vmatpush1.msra.mxu0 1.0
  %5185 = vmatprep.subr.mxu0 0.0
  %5186 = vmatpush1.msra.mxu0 1.0
  %5187 = vmatprep.subr.mxu0 0.0
  %5188 = vmatpush1.msra.mxu0 1.0
  %5189 = vmatprep.subr.mxu0 0.0
  %5190 = vmatpush1.msra.mxu0 1.0
  %5191 = vmatprep.subr.mxu0 0.0
  %5192 = vmatpush1.msra.mxu0 1.0
  %5193 = vmatprep.subr.mxu0 0.0
  %5194 = vmatpush1.msra.mxu0 1.0
  %5195 = vmatprep.subr.mxu0 0.0
  %5196 = vmatpush1.msra.mxu0 1.0
  %5197 = vmatprep.subr.mxu0 0.0
  %5198 = vmatpush1.msra.mxu0 1.0
  %5199 = vmatprep.subr.mxu0 0.0
  %5200 = vmatpush1.msra.mxu0 1.0
  %5201 = vmatprep.subr.mxu0 0.0
  %5202 = vmatpush1.msra.mxu0 1.0
  %5203 = vmatprep.subr.mxu0 0.0
  %5204 = vmatpush1.msra.mxu0 1.0
  %5205 = vmatprep.subr.mxu0 0.0
  %5206 = vmatpush1.msra.mxu0 1.0
  %5207 = vmatprep.subr.mxu0 0.0
  %5208 = vmatpush1.msra.mxu0 1.0
  %5209 = vmatprep.subr.mxu0 0.0
  %5210 = vmatpush2.msra.mxu0 0.0
  %5211 = vmatprep.subr.mxu0 0.0
  %5212 = vmatpush2.msra.mxu0 0.0
  %5213 = vmatprep.subr.mxu0 0.0
  %5214 = vmatpush2.msra.mxu0 0.0
  %5215 = vmatprep.subr.mxu0 0.0
  %5216 = vmatpush2.msra.mxu0 0.0
  %5217 = vmatprep.subr.mxu0 0.0
  %5218 = vmatpush2.msra.mxu0 0.0
  %5219 = vmatprep.subr.mxu0 0.0
  %5220 = vmatpush2.msra.mxu0 0.0
  %5221 = vmatprep.subr.mxu0 0.0
  %5222 = vmatpush2.msra.mxu0 0.0
  %5223 = vmatprep.subr.mxu0 0.0
  %5224 = vmatpush2.msra.mxu0 0.0
  %5225 = vmatprep.subr.mxu0 0.0
  %5226 = vmatpush2.msra.mxu0 0.0
  %5227 = vmatprep.subr.mxu0 0.0
  %5228 = vmatpush2.msra.mxu0 0.0
  %5229 = vmatprep.subr.mxu0 0.0
  %5230 = vmatpush2.msra.mxu0 0.0
  %5231 = vmatprep.subr.mxu0 0.0
  %5232 = vmatpush2.msra.mxu0 0.0
  %5233 = vmatprep.subr.mxu0 0.0
  %5234 = vmatpush2.msra.mxu0 0.0
  %5235 = vmatprep.subr.mxu0 0.0
  %5236 = vmatpush2.msra.mxu0 0.0
  %5237 = vmatprep.subr.mxu0 0.0
  %5238 = vmatpush2.msra.mxu0 0.0
  %5239 = vmatprep.subr.mxu0 0.0
  %5240 = vmatpush2.msra.mxu0 0.0
  %5241 = vmatprep.mubr.f32.mxu0 0.0
  %v5242 = vand.u32 %v2909, 4294901760
  %v5243 = vsub.f32 %v2909, %v5242
  %v5244 = vand.u32 %v5243, 4294901760
  %5245 = vmatmul.mubr.f32.gmra.mxu0 %v5244
  %v5246 = vpop.f32.mrf.mxu0
  %v5247 = vadd.f32 %v5167, %v5246
  %v5248 = vpop.f32.mrf.mxu0
  %5249 = vmatprep.mubr.f32.mxu0 0.0
  %v5250 = vand.u32 %v2927, 4294901760
  %v5251 = vsub.f32 %v2927, %v5250
  %v5252 = vand.u32 %v5251, 4294901760
  %5253 = vmatmul.mubr.f32.gmra.mxu0 %v5252
  %v5254 = vpop.f32.mrf.mxu0
  %v5255 = vadd.f32 %v5174, %v5254
  %v5256 = vpop.f32.mrf.mxu0
  %5257 = vdwg.mxu0
  %5258 = vmatprep.subr.mxu0 0.0
  %5259 = vmatpush1.msra.mxu0 0.0
  %5260 = vmatprep.subr.mxu0 0.0
  %5261 = vmatpush1.msra.mxu0 0.0
  %5262 = vmatprep.subr.mxu0 0.0
  %5263 = vmatpush1.msra.mxu0 0.0
  %5264 = vmatprep.subr.mxu0 0.0
  %5265 = vmatpush1.msra.mxu0 0.0
  %5266 = vmatprep.subr.mxu0 0.0
  %5267 = vmatpush1.msra.mxu0 0.0
  %5268 = vmatprep.subr.mxu0 0.0
  %5269 = vmatpush1.msra.mxu0 0.0
  %5270 = vmatprep.subr.mxu0 0.0
  %5271 = vmatpush1.msra.mxu0 0.0
  %5272 = vmatprep.subr.mxu0 0.0
  %5273 = vmatpush1.msra.mxu0 0.0
  %5274 = vmatprep.subr.mxu0 0.0
  %5275 = vmatpush1.msra.mxu0 0.0
  %5276 = vmatprep.subr.mxu0 0.0
  %5277 = vmatpush1.msra.mxu0 0.0
  %5278 = vmatprep.subr.mxu0 0.0
  %5279 = vmatpush1.msra.mxu0 0.0
  %5280 = vmatprep.subr.mxu0 0.0
  %5281 = vmatpush1.msra.mxu0 0.0
  %5282 = vmatprep.subr.mxu0 0.0
  %5283 = vmatpush1.msra.mxu0 0.0
  %5284 = vmatprep.subr.mxu0 0.0
  %5285 = vmatpush1.msra.mxu0 0.0
  %5286 = vmatprep.subr.mxu0 0.0
  %5287 = vmatpush1.msra.mxu0 0.0
  %5288 = vmatprep.subr.mxu0 0.0
  %5289 = vmatpush1.msra.mxu0 0.0
  %5290 = vmatprep.subr.mxu0 0.0
  %5291 = vmatpush2.msra.mxu0 0.0
  %5292 = vmatprep.subr.mxu0 0.0
  %5293 = vmatpush2.msra.mxu0 0.0
  %5294 = vmatprep.subr.mxu0 0.0
  %5295 = vmatpush2.msra.mxu0 0.0
  %5296 = vmatprep.subr.mxu0 0.0
  %5297 = vmatpush2.msra.mxu0 0.0
  %5298 = vmatprep.subr.mxu0 0.0
  %5299 = vmatpush2.msra.mxu0 0.0
  %5300 = vmatprep.subr.mxu0 0.0
  %5301 = vmatpush2.msra.mxu0 0.0
  %5302 = vmatprep.subr.mxu0 0.0
  %5303 = vmatpush2.msra.mxu0 0.0
  %5304 = vmatprep.subr.mxu0 0.0
  %5305 = vmatpush2.msra.mxu0 0.0
  %5306 = vmatprep.subr.mxu0 0.0
  %5307 = vmatpush2.msra.mxu0 0.0
  %5308 = vmatprep.subr.mxu0 0.0
  %5309 = vmatpush2.msra.mxu0 0.0
  %5310 = vmatprep.subr.mxu0 0.0
  %5311 = vmatpush2.msra.mxu0 0.0
  %5312 = vmatprep.subr.mxu0 0.0
  %5313 = vmatpush2.msra.mxu0 0.0
  %5314 = vmatprep.subr.mxu0 0.0
  %5315 = vmatpush2.msra.mxu0 0.0
  %5316 = vmatprep.subr.mxu0 0.0
  %5317 = vmatpush2.msra.mxu0 0.0
  %5318 = vmatprep.subr.mxu0 0.0
  %5319 = vmatpush2.msra.mxu0 0.0
  %5320 = vmatprep.subr.mxu0 0.0
  %5321 = vmatpush2.msra.mxu0 0.0
  %5322 = vmatprep.mubr.f32.mxu0 0.0
  %v5323 = vand.u32 %v2909, 4294901760
  %5324 = vmatmul.mubr.f32.gmra.mxu0 %v5323
  %v5325 = vpop.f32.mrf.mxu0
  %v5326 = vadd.f32 %v5247, %v5325
  %v5327 = vpop.f32.mrf.mxu0
  %5328 = vmatprep.mubr.f32.mxu0 0.0
  %v5329 = vand.u32 %v2927, 4294901760
  %5330 = vmatmul.mubr.f32.gmra.mxu0 %v5329
  %v5331 = vpop.f32.mrf.mxu0
  %v5332 = vadd.f32 %v5255, %v5331
  %v5333 = vpop.f32.mrf.mxu0
  %5334 = vdwg.mxu0
  %5335 = vmatprep.subr.mxu0 0.0
  %5336 = vmatpush1.msra.mxu0 1.0
  %5337 = vmatprep.subr.mxu0 0.0
  %5338 = vmatpush1.msra.mxu0 1.0
  %5339 = vmatprep.subr.mxu0 0.0
  %5340 = vmatpush1.msra.mxu0 1.0
  %5341 = vmatprep.subr.mxu0 0.0
  %5342 = vmatpush1.msra.mxu0 1.0
  %5343 = vmatprep.subr.mxu0 0.0
  %5344 = vmatpush1.msra.mxu0 1.0
  %5345 = vmatprep.subr.mxu0 0.0
  %5346 = vmatpush1.msra.mxu0 1.0
  %5347 = vmatprep.subr.mxu0 0.0
  %5348 = vmatpush1.msra.mxu0 1.0
  %5349 = vmatprep.subr.mxu0 0.0
  %5350 = vmatpush1.msra.mxu0 1.0
  %5351 = vmatprep.subr.mxu0 0.0
  %5352 = vmatpush1.msra.mxu0 1.0
  %5353 = vmatprep.subr.mxu0 0.0
  %5354 = vmatpush1.msra.mxu0 1.0
  %5355 = vmatprep.subr.mxu0 0.0
  %5356 = vmatpush1.msra.mxu0 1.0
  %5357 = vmatprep.subr.mxu0 0.0
  %5358 = vmatpush1.msra.mxu0 1.0
  %5359 = vmatprep.subr.mxu0 0.0
  %5360 = vmatpush1.msra.mxu0 1.0
  %5361 = vmatprep.subr.mxu0 0.0
  %5362 = vmatpush1.msra.mxu0 1.0
  %5363 = vmatprep.subr.mxu0 0.0
  %5364 = vmatpush1.msra.mxu0 1.0
  %5365 = vmatprep.subr.mxu0 0.0
  %5366 = vmatpush1.msra.mxu0 1.0
  %5367 = vmatprep.subr.mxu0 0.0
  %5368 = vmatpush2.msra.mxu0 0.0
  %5369 = vmatprep.subr.mxu0 0.0
  %5370 = vmatpush2.msra.mxu0 0.0
  %5371 = vmatprep.subr.mxu0 0.0
  %5372 = vmatpush2.msra.mxu0 0.0
  %5373 = vmatprep.subr.mxu0 0.0
  %5374 = vmatpush2.msra.mxu0 0.0
  %5375 = vmatprep.subr.mxu0 0.0
  %5376 = vmatpush2.msra.mxu0 0.0
  %5377 = vmatprep.subr.mxu0 0.0
  %5378 = vmatpush2.msra.mxu0 0.0
  %5379 = vmatprep.subr.mxu0 0.0
  %5380 = vmatpush2.msra.mxu0 0.0
  %5381 = vmatprep.subr.mxu0 0.0
  %5382 = vmatpush2.msra.mxu0 0.0
  %5383 = vmatprep.subr.mxu0 0.0
  %5384 = vmatpush2.msra.mxu0 0.0
  %5385 = vmatprep.subr.mxu0 0.0
  %5386 = vmatpush2.msra.mxu0 0.0
  %5387 = vmatprep.subr.mxu0 0.0
  %5388 = vmatpush2.msra.mxu0 0.0
  %5389 = vmatprep.subr.mxu0 0.0
  %5390 = vmatpush2.msra.mxu0 0.0
  %5391 = vmatprep.subr.mxu0 0.0
  %5392 = vmatpush2.msra.mxu0 0.0
  %5393 = vmatprep.subr.mxu0 0.0
  %5394 = vmatpush2.msra.mxu0 0.0
  %5395 = vmatprep.subr.mxu0 0.0
  %5396 = vmatpush2.msra.mxu0 0.0
  %5397 = vmatprep.subr.mxu0 0.0
  %5398 = vmatpush2.msra.mxu0 0.0
  %5399 = vmatprep.mubr.f32.mxu0 0.0
  %v5400 = vand.u32 %v2909, 4294901760
  %5401 = vmatmul.mubr.f32.gmra.mxu0 %v5400
  %v5402 = vpop.f32.mrf.mxu0
  %v5403 = vadd.f32 %v5326, %v5402
  %v5404 = vpop.f32.mrf.mxu0
  %5405 = vmatprep.mubr.f32.mxu0 0.0
  %v5406 = vand.u32 %v2927, 4294901760
  %5407 = vmatmul.mubr.f32.gmra.mxu0 %v5406
  %v5408 = vpop.f32.mrf.mxu0
  %v5409 = vadd.f32 %v5332, %v5408
  %v5410 = vpop.f32.mrf.mxu0
  %5411 = vdwg.mxu0
  %v5412 = vlog2.pop %v5403
  %v5413 = vmul.f32 %v5412, 0.6931472
  %v5414 = vlog2.pop %v5409
  %v5415 = vmul.f32 %v5414, 0.6931472
  %v5416 = vadd.f32 %v5413, %v2863
  %v5417 = vadd.f32 %v5415, %v2873
  %5418 = vrot.lane.b32.xlu0 %v37, 124
  %v5419 = vpop.permute.xlu0 %5418
  %5420 = vrot.lane.b32.xlu0 %v38, 124
  %v5421 = vpop.permute.xlu0 %5420
  %v5424 = vsub.f32 %v5416, %v5419
  %v5425 = vsub.f32 %v5417, %v5421
  %5426 = vmatprep.subr.mxu0 0.0
  %5427 = vmatpush1.msra.mxu0 1.0
  %5428 = vmatprep.subr.mxu0 0.0
  %5429 = vmatpush1.msra.mxu0 1.0
  %5430 = vmatprep.subr.mxu0 0.0
  %5431 = vmatpush1.msra.mxu0 1.0
  %5432 = vmatprep.subr.mxu0 0.0
  %5433 = vmatpush1.msra.mxu0 1.0
  %5434 = vmatprep.subr.mxu0 0.0
  %5435 = vmatpush1.msra.mxu0 1.0
  %5436 = vmatprep.subr.mxu0 0.0
  %5437 = vmatpush1.msra.mxu0 1.0
  %5438 = vmatprep.subr.mxu0 0.0
  %5439 = vmatpush1.msra.mxu0 1.0
  %5440 = vmatprep.subr.mxu0 0.0
  %5441 = vmatpush1.msra.mxu0 1.0
  %5442 = vmatprep.subr.mxu0 0.0
  %5443 = vmatpush1.msra.mxu0 1.0
  %5444 = vmatprep.subr.mxu0 0.0
  %5445 = vmatpush1.msra.mxu0 1.0
  %5446 = vmatprep.subr.mxu0 0.0
  %5447 = vmatpush1.msra.mxu0 1.0
  %5448 = vmatprep.subr.mxu0 0.0
  %5449 = vmatpush1.msra.mxu0 1.0
  %5450 = vmatprep.subr.mxu0 0.0
  %5451 = vmatpush1.msra.mxu0 1.0
  %5452 = vmatprep.subr.mxu0 0.0
  %5453 = vmatpush1.msra.mxu0 1.0
  %5454 = vmatprep.subr.mxu0 0.0
  %5455 = vmatpush1.msra.mxu0 1.0
  %5456 = vmatprep.subr.mxu0 0.0
  %5457 = vmatpush1.msra.mxu0 1.0
  %5458 = vmatprep.subr.mxu0 0.0
  %5459 = vmatpush2.msra.mxu0 1.0
  %5460 = vmatprep.subr.mxu0 0.0
  %5461 = vmatpush2.msra.mxu0 1.0
  %5462 = vmatprep.subr.mxu0 0.0
  %5463 = vmatpush2.msra.mxu0 1.0
  %5464 = vmatprep.subr.mxu0 0.0
  %5465 = vmatpush2.msra.mxu0 1.0
  %5466 = vmatprep.subr.mxu0 0.0
  %5467 = vmatpush2.msra.mxu0 1.0
  %5468 = vmatprep.subr.mxu0 0.0
  %5469 = vmatpush2.msra.mxu0 1.0
  %5470 = vmatprep.subr.mxu0 0.0
  %5471 = vmatpush2.msra.mxu0 1.0
  %5472 = vmatprep.subr.mxu0 0.0
  %5473 = vmatpush2.msra.mxu0 1.0
  %5474 = vmatprep.subr.mxu0 0.0
  %5475 = vmatpush2.msra.mxu0 1.0
  %5476 = vmatprep.subr.mxu0 0.0
  %5477 = vmatpush2.msra.mxu0 1.0
  %5478 = vmatprep.subr.mxu0 0.0
  %5479 = vmatpush2.msra.mxu0 1.0
  %5480 = vmatprep.subr.mxu0 0.0
  %5481 = vmatpush2.msra.mxu0 1.0
  %5482 = vmatprep.subr.mxu0 0.0
  %5483 = vmatpush2.msra.mxu0 1.0
  %5484 = vmatprep.subr.mxu0 0.0
  %5485 = vmatpush2.msra.mxu0 1.0
  %5486 = vmatprep.subr.mxu0 0.0
  %5487 = vmatpush2.msra.mxu0 1.0
  %5488 = vmatprep.subr.mxu0 0.0
  %5489 = vmatpush2.msra.mxu0 1.0
  %v5490 = vand.u32 %v20, 4294901760
  %v5491 = vsub.f32 %v20, %v5490
  %v5492 = vand.u32 %v5491, 4294901760
  %v5493 = vsub.f32 %v5491, %v5492
  %v5494 = vand.u32 %v5493, 4294901760
  %5495 = vmatprep.mubr.f32.mxu0 %v5494
  %v5496 = vand.u32 %v19, 4294901760
  %v5497 = vsub.f32 %v19, %v5496
  %v5498 = vand.u32 %v5497, 4294901760
  %v5499 = vsub.f32 %v5497, %v5498
  %v5500 = vand.u32 %v5499, 4294901760
  %5501 = vmatmul.mubr.f32.gmra.mxu0 %v5500
  %v5502 = vpop.f32.mrf.mxu0
  %v5503 = vadd.f32 0.0, %v5502
  %v5504 = vpop.f32.mrf.mxu0
  %v5505 = vand.u32 %v29, 4294901760
  %v5506 = vsub.f32 %v29, %v5505
  %v5507 = vand.u32 %v5506, 4294901760
  %v5508 = vsub.f32 %v5506, %v5507
  %v5509 = vand.u32 %v5508, 4294901760
  %5510 = vmatprep.mubr.f32.mxu0 %v5509
  %v5511 = vand.u32 %v28, 4294901760
  %v5512 = vsub.f32 %v28, %v5511
  %v5513 = vand.u32 %v5512, 4294901760
  %v5514 = vsub.f32 %v5512, %v5513
  %v5515 = vand.u32 %v5514, 4294901760
  %5516 = vmatmul.mubr.f32.gmra.mxu0 %v5515
  %v5517 = vpop.f32.mrf.mxu0
  %v5518 = vadd.f32 0.0, %v5517
  %v5519 = vpop.f32.mrf.mxu0
  %5520 = vdwg.mxu0
  %5521 = vmatprep.subr.mxu0 0.0
  %5522 = vmatpush1.msra.mxu0 0.0
  %5523 = vmatprep.subr.mxu0 0.0
  %5524 = vmatpush1.msra.mxu0 0.0
  %5525 = vmatprep.subr.mxu0 0.0
  %5526 = vmatpush1.msra.mxu0 0.0
  %5527 = vmatprep.subr.mxu0 0.0
  %5528 = vmatpush1.msra.mxu0 0.0
  %5529 = vmatprep.subr.mxu0 0.0
  %5530 = vmatpush1.msra.mxu0 0.0
  %5531 = vmatprep.subr.mxu0 0.0
  %5532 = vmatpush1.msra.mxu0 0.0
  %5533 = vmatprep.subr.mxu0 0.0
  %5534 = vmatpush1.msra.mxu0 0.0
  %5535 = vmatprep.subr.mxu0 0.0
  %5536 = vmatpush1.msra.mxu0 0.0
  %5537 = vmatprep.subr.mxu0 0.0
  %5538 = vmatpush1.msra.mxu0 0.0
  %5539 = vmatprep.subr.mxu0 0.0
  %5540 = vmatpush1.msra.mxu0 0.0
  %5541 = vmatprep.subr.mxu0 0.0
  %5542 = vmatpush1.msra.mxu0 0.0
  %5543 = vmatprep.subr.mxu0 0.0
  %5544 = vmatpush1.msra.mxu0 0.0
  %5545 = vmatprep.subr.mxu0 0.0
  %5546 = vmatpush1.msra.mxu0 0.0
  %5547 = vmatprep.subr.mxu0 0.0
  %5548 = vmatpush1.msra.mxu0 0.0
  %5549 = vmatprep.subr.mxu0 0.0
  %5550 = vmatpush1.msra.mxu0 0.0
  %5551 = vmatprep.subr.mxu0 0.0
  %5552 = vmatpush1.msra.mxu0 0.0
  %5553 = vmatprep.subr.mxu0 0.0
  %5554 = vmatpush2.msra.mxu0 0.0
  %5555 = vmatprep.subr.mxu0 0.0
  %5556 = vmatpush2.msra.mxu0 0.0
  %5557 = vmatprep.subr.mxu0 0.0
  %5558 = vmatpush2.msra.mxu0 0.0
  %5559 = vmatprep.subr.mxu0 0.0
  %5560 = vmatpush2.msra.mxu0 0.0
  %5561 = vmatprep.subr.mxu0 0.0
  %5562 = vmatpush2.msra.mxu0 0.0
  %5563 = vmatprep.subr.mxu0 0.0
  %5564 = vmatpush2.msra.mxu0 0.0
  %5565 = vmatprep.subr.mxu0 0.0
  %5566 = vmatpush2.msra.mxu0 0.0
  %5567 = vmatprep.subr.mxu0 0.0
  %5568 = vmatpush2.msra.mxu0 0.0
  %5569 = vmatprep.subr.mxu0 0.0
  %5570 = vmatpush2.msra.mxu0 0.0
  %5571 = vmatprep.subr.mxu0 0.0
  %5572 = vmatpush2.msra.mxu0 0.0
  %5573 = vmatprep.subr.mxu0 0.0
  %5574 = vmatpush2.msra.mxu0 0.0
  %5575 = vmatprep.subr.mxu0 0.0
  %5576 = vmatpush2.msra.mxu0 0.0
  %5577 = vmatprep.subr.mxu0 0.0
  %5578 = vmatpush2.msra.mxu0 0.0
  %5579 = vmatprep.subr.mxu0 0.0
  %5580 = vmatpush2.msra.mxu0 0.0
  %5581 = vmatprep.subr.mxu0 0.0
  %5582 = vmatpush2.msra.mxu0 0.0
  %5583 = vmatprep.subr.mxu0 0.0
  %5584 = vmatpush2.msra.mxu0 0.0
  %v5585 = vand.u32 %v20, 4294901760
  %5586 = vmatprep.mubr.f32.mxu0 %v5585
  %v5587 = vand.u32 %v19, 4294901760
  %5588 = vmatmul.mubr.f32.gmra.mxu0 %v5587
  %v5589 = vpop.f32.mrf.mxu0
  %v5590 = vadd.f32 %v5503, %v5589
  %v5591 = vpop.f32.mrf.mxu0
  %v5592 = vand.u32 %v29, 4294901760
  %5593 = vmatprep.mubr.f32.mxu0 %v5592
  %v5594 = vand.u32 %v28, 4294901760
  %5595 = vmatmul.mubr.f32.gmra.mxu0 %v5594
  %v5596 = vpop.f32.mrf.mxu0
  %v5597 = vadd.f32 %v5518, %v5596
  %v5598 = vpop.f32.mrf.mxu0
  %5599 = vdwg.mxu0
  %5600 = vmatprep.subr.mxu0 0.0
  %5601 = vmatpush1.msra.mxu0 0.0
  %5602 = vmatprep.subr.mxu0 0.0
  %5603 = vmatpush1.msra.mxu0 0.0
  %5604 = vmatprep.subr.mxu0 0.0
  %5605 = vmatpush1.msra.mxu0 0.0
  %5606 = vmatprep.subr.mxu0 0.0
  %5607 = vmatpush1.msra.mxu0 0.0
  %5608 = vmatprep.subr.mxu0 0.0
  %5609 = vmatpush1.msra.mxu0 0.0
  %5610 = vmatprep.subr.mxu0 0.0
  %5611 = vmatpush1.msra.mxu0 0.0
  %5612 = vmatprep.subr.mxu0 0.0
  %5613 = vmatpush1.msra.mxu0 0.0
  %5614 = vmatprep.subr.mxu0 0.0
  %5615 = vmatpush1.msra.mxu0 0.0
  %5616 = vmatprep.subr.mxu0 0.0
  %5617 = vmatpush1.msra.mxu0 0.0
  %5618 = vmatprep.subr.mxu0 0.0
  %5619 = vmatpush1.msra.mxu0 0.0
  %5620 = vmatprep.subr.mxu0 0.0
  %5621 = vmatpush1.msra.mxu0 0.0
  %5622 = vmatprep.subr.mxu0 0.0
  %5623 = vmatpush1.msra.mxu0 0.0
  %5624 = vmatprep.subr.mxu0 0.0
  %5625 = vmatpush1.msra.mxu0 0.0
  %5626 = vmatprep.subr.mxu0 0.0
  %5627 = vmatpush1.msra.mxu0 0.0
  %5628 = vmatprep.subr.mxu0 0.0
  %5629 = vmatpush1.msra.mxu0 0.0
  %5630 = vmatprep.subr.mxu0 0.0
  %5631 = vmatpush1.msra.mxu0 0.0
  %5632 = vmatprep.subr.mxu0 0.0
  %5633 = vmatpush2.msra.mxu0 0.0
  %5634 = vmatprep.subr.mxu0 0.0
  %5635 = vmatpush2.msra.mxu0 0.0
  %5636 = vmatprep.subr.mxu0 0.0
  %5637 = vmatpush2.msra.mxu0 0.0
  %5638 = vmatprep.subr.mxu0 0.0
  %5639 = vmatpush2.msra.mxu0 0.0
  %5640 = vmatprep.subr.mxu0 0.0
  %5641 = vmatpush2.msra.mxu0 0.0
  %5642 = vmatprep.subr.mxu0 0.0
  %5643 = vmatpush2.msra.mxu0 0.0
  %5644 = vmatprep.subr.mxu0 0.0
  %5645 = vmatpush2.msra.mxu0 0.0
  %5646 = vmatprep.subr.mxu0 0.0
  %5647 = vmatpush2.msra.mxu0 0.0
  %5648 = vmatprep.subr.mxu0 0.0
  %5649 = vmatpush2.msra.mxu0 0.0
  %5650 = vmatprep.subr.mxu0 0.0
  %5651 = vmatpush2.msra.mxu0 0.0
  %5652 = vmatprep.subr.mxu0 0.0
  %5653 = vmatpush2.msra.mxu0 0.0
  %5654 = vmatprep.subr.mxu0 0.0
  %5655 = vmatpush2.msra.mxu0 0.0
  %5656 = vmatprep.subr.mxu0 0.0
  %5657 = vmatpush2.msra.mxu0 0.0
  %5658 = vmatprep.subr.mxu0 0.0
  %5659 = vmatpush2.msra.mxu0 0.0
  %5660 = vmatprep.subr.mxu0 0.0
  %5661 = vmatpush2.msra.mxu0 0.0
  %5662 = vmatprep.subr.mxu0 0.0
  %5663 = vmatpush2.msra.mxu0 0.0
  %v5664 = vand.u32 %v20, 4294901760
  %v5665 = vsub.f32 %v20, %v5664
  %5666 = vmatprep.mubr.f32.mxu0 %v5665
  %v5667 = vand.u32 %v19, 4294901760
  %v5668 = vsub.f32 %v19, %v5667
  %5669 = vmatmul.mubr.f32.gmra.mxu0 %v5668
  %v5670 = vpop.f32.mrf.mxu0
  %v5671 = vadd.f32 %v5590, %v5670
  %v5672 = vpop.f32.mrf.mxu0
  %v5673 = vand.u32 %v29, 4294901760
  %v5674 = vsub.f32 %v29, %v5673
  %5675 = vmatprep.mubr.f32.mxu0 %v5674
  %v5676 = vand.u32 %v28, 4294901760
  %v5677 = vsub.f32 %v28, %v5676
  %5678 = vmatmul.mubr.f32.gmra.mxu0 %v5677
  %v5679 = vpop.f32.mrf.mxu0
  %v5680 = vadd.f32 %v5597, %v5679
  %v5681 = vpop.f32.mrf.mxu0
  %5682 = vdwg.mxu0
  %5683 = vmatprep.subr.mxu0 0.0
  %5684 = vmatpush1.msra.mxu0 1.0
  %5685 = vmatprep.subr.mxu0 0.0
  %5686 = vmatpush1.msra.mxu0 1.0
  %5687 = vmatprep.subr.mxu0 0.0
  %5688 = vmatpush1.msra.mxu0 1.0
  %5689 = vmatprep.subr.mxu0 0.0
  %5690 = vmatpush1.msra.mxu0 1.0
  %5691 = vmatprep.subr.mxu0 0.0
  %5692 = vmatpush1.msra.mxu0 1.0
  %5693 = vmatprep.subr.mxu0 0.0
  %5694 = vmatpush1.msra.mxu0 1.0
  %5695 = vmatprep.subr.mxu0 0.0
  %5696 = vmatpush1.msra.mxu0 1.0
  %5697 = vmatprep.subr.mxu0 0.0
  %5698 = vmatpush1.msra.mxu0 1.0
  %5699 = vmatprep.subr.mxu0 0.0
  %5700 = vmatpush1.msra.mxu0 1.0
  %5701 = vmatprep.subr.mxu0 0.0
  %5702 = vmatpush1.msra.mxu0 1.0
  %5703 = vmatprep.subr.mxu0 0.0
  %5704 = vmatpush1.msra.mxu0 1.0
  %5705 = vmatprep.subr.mxu0 0.0
  %5706 = vmatpush1.msra.mxu0 1.0
  %5707 = vmatprep.subr.mxu0 0.0
  %5708 = vmatpush1.msra.mxu0 1.0
  %5709 = vmatprep.subr.mxu0 0.0
  %5710 = vmatpush1.msra.mxu0 1.0
  %5711 = vmatprep.subr.mxu0 0.0
  %5712 = vmatpush1.msra.mxu0 1.0
  %5713 = vmatprep.subr.mxu0 0.0
  %5714 = vmatpush1.msra.mxu0 1.0
  %5715 = vmatprep.subr.mxu0 0.0
  %5716 = vmatpush2.msra.mxu0 1.0
  %5717 = vmatprep.subr.mxu0 0.0
  %5718 = vmatpush2.msra.mxu0 1.0
  %5719 = vmatprep.subr.mxu0 0.0
  %5720 = vmatpush2.msra.mxu0 1.0
  %5721 = vmatprep.subr.mxu0 0.0
  %5722 = vmatpush2.msra.mxu0 1.0
  %5723 = vmatprep.subr.mxu0 0.0
  %5724 = vmatpush2.msra.mxu0 1.0
  %5725 = vmatprep.subr.mxu0 0.0
  %5726 = vmatpush2.msra.mxu0 1.0
  %5727 = vmatprep.subr.mxu0 0.0
  %5728 = vmatpush2.msra.mxu0 1.0
  %5729 = vmatprep.subr.mxu0 0.0
  %5730 = vmatpush2.msra.mxu0 1.0
  %5731 = vmatprep.subr.mxu0 0.0
  %5732 = vmatpush2.msra.mxu0 1.0
  %5733 = vmatprep.subr.mxu0 0.0
  %5734 = vmatpush2.msra.mxu0 1.0
  %5735 = vmatprep.subr.mxu0 0.0
  %5736 = vmatpush2.msra.mxu0 1.0
  %5737 = vmatprep.subr.mxu0 0.0
  %5738 = vmatpush2.msra.mxu0 1.0
  %5739 = vmatprep.subr.mxu0 0.0
  %5740 = vmatpush2.msra.mxu0 1.0
  %5741 = vmatprep.subr.mxu0 0.0
  %5742 = vmatpush2.msra.mxu0 1.0
  %5743 = vmatprep.subr.mxu0 0.0
  %5744 = vmatpush2.msra.mxu0 1.0
  %5745 = vmatprep.subr.mxu0 0.0
  %5746 = vmatpush2.msra.mxu0 1.0
  %v5747 = vand.u32 %v20, 4294901760
  %v5748 = vsub.f32 %v20, %v5747
  %v5749 = vand.u32 %v5748, 4294901760
  %5750 = vmatprep.mubr.f32.mxu0 %v5749
  %v5751 = vand.u32 %v19, 4294901760
  %v5752 = vsub.f32 %v19, %v5751
  %v5753 = vand.u32 %v5752, 4294901760
  %5754 = vmatmul.mubr.f32.gmra.mxu0 %v5753
  %v5755 = vpop.f32.mrf.mxu0
  %v5756 = vadd.f32 %v5671, %v5755
  %v5757 = vpop.f32.mrf.mxu0
  %v5758 = vand.u32 %v29, 4294901760
  %v5759 = vsub.f32 %v29, %v5758
  %v5760 = vand.u32 %v5759, 4294901760
  %5761 = vmatprep.mubr.f32.mxu0 %v5760
  %v5762 = vand.u32 %v28, 4294901760
  %v5763 = vsub.f32 %v28, %v5762
  %v5764 = vand.u32 %v5763, 4294901760
  %5765 = vmatmul.mubr.f32.gmra.mxu0 %v5764
  %v5766 = vpop.f32.mrf.mxu0
  %v5767 = vadd.f32 %v5680, %v5766
  %v5768 = vpop.f32.mrf.mxu0
  %5769 = vdwg.mxu0
  %5770 = vmatprep.subr.mxu0 0.0
  %5771 = vmatpush1.msra.mxu0 0.0
  %5772 = vmatprep.subr.mxu0 0.0
  %5773 = vmatpush1.msra.mxu0 0.0
  %5774 = vmatprep.subr.mxu0 0.0
  %5775 = vmatpush1.msra.mxu0 0.0
  %5776 = vmatprep.subr.mxu0 0.0
  %5777 = vmatpush1.msra.mxu0 0.0
  %5778 = vmatprep.subr.mxu0 0.0
  %5779 = vmatpush1.msra.mxu0 0.0
  %5780 = vmatprep.subr.mxu0 0.0
  %5781 = vmatpush1.msra.mxu0 0.0
  %5782 = vmatprep.subr.mxu0 0.0
  %5783 = vmatpush1.msra.mxu0 0.0
  %5784 = vmatprep.subr.mxu0 0.0
  %5785 = vmatpush1.msra.mxu0 0.0
  %5786 = vmatprep.subr.mxu0 0.0
  %5787 = vmatpush1.msra.mxu0 0.0
  %5788 = vmatprep.subr.mxu0 0.0
  %5789 = vmatpush1.msra.mxu0 0.0
  %5790 = vmatprep.subr.mxu0 0.0
  %5791 = vmatpush1.msra.mxu0 0.0
  %5792 = vmatprep.subr.mxu0 0.0
  %5793 = vmatpush1.msra.mxu0 0.0
  %5794 = vmatprep.subr.mxu0 0.0
  %5795 = vmatpush1.msra.mxu0 0.0
  %5796 = vmatprep.subr.mxu0 0.0
  %5797 = vmatpush1.msra.mxu0 0.0
  %5798 = vmatprep.subr.mxu0 0.0
  %5799 = vmatpush1.msra.mxu0 0.0
  %5800 = vmatprep.subr.mxu0 0.0
  %5801 = vmatpush1.msra.mxu0 0.0
  %5802 = vmatprep.subr.mxu0 0.0
  %5803 = vmatpush2.msra.mxu0 0.0
  %5804 = vmatprep.subr.mxu0 0.0
  %5805 = vmatpush2.msra.mxu0 0.0
  %5806 = vmatprep.subr.mxu0 0.0
  %5807 = vmatpush2.msra.mxu0 0.0
  %5808 = vmatprep.subr.mxu0 0.0
  %5809 = vmatpush2.msra.mxu0 0.0
  %5810 = vmatprep.subr.mxu0 0.0
  %5811 = vmatpush2.msra.mxu0 0.0
  %5812 = vmatprep.subr.mxu0 0.0
  %5813 = vmatpush2.msra.mxu0 0.0
  %5814 = vmatprep.subr.mxu0 0.0
  %5815 = vmatpush2.msra.mxu0 0.0
  %5816 = vmatprep.subr.mxu0 0.0
  %5817 = vmatpush2.msra.mxu0 0.0
  %5818 = vmatprep.subr.mxu0 0.0
  %5819 = vmatpush2.msra.mxu0 0.0
  %5820 = vmatprep.subr.mxu0 0.0
  %5821 = vmatpush2.msra.mxu0 0.0
  %5822 = vmatprep.subr.mxu0 0.0
  %5823 = vmatpush2.msra.mxu0 0.0
  %5824 = vmatprep.subr.mxu0 0.0
  %5825 = vmatpush2.msra.mxu0 0.0
  %5826 = vmatprep.subr.mxu0 0.0
  %5827 = vmatpush2.msra.mxu0 0.0
  %5828 = vmatprep.subr.mxu0 0.0
  %5829 = vmatpush2.msra.mxu0 0.0
  %5830 = vmatprep.subr.mxu0 0.0
  %5831 = vmatpush2.msra.mxu0 0.0
  %5832 = vmatprep.subr.mxu0 0.0
  %5833 = vmatpush2.msra.mxu0 0.0
  %v5834 = vand.u32 %v20, 4294901760
  %5835 = vmatprep.mubr.f32.mxu0 %v5834
  %v5836 = vand.u32 %v19, 4294901760
  %5837 = vmatmul.mubr.f32.gmra.mxu0 %v5836
  %v5838 = vpop.f32.mrf.mxu0
  %v5839 = vadd.f32 %v5756, %v5838
  %v5840 = vpop.f32.mrf.mxu0
  %v5841 = vand.u32 %v29, 4294901760
  %5842 = vmatprep.mubr.f32.mxu0 %v5841
  %v5843 = vand.u32 %v28, 4294901760
  %5844 = vmatmul.mubr.f32.gmra.mxu0 %v5843
  %v5845 = vpop.f32.mrf.mxu0
  %v5846 = vadd.f32 %v5767, %v5845
  %v5847 = vpop.f32.mrf.mxu0
  %5848 = vdwg.mxu0
  %5849 = vmatprep.subr.mxu0 0.0
  %5850 = vmatpush1.msra.mxu0 1.0
  %5851 = vmatprep.subr.mxu0 0.0
  %5852 = vmatpush1.msra.mxu0 1.0
  %5853 = vmatprep.subr.mxu0 0.0
  %5854 = vmatpush1.msra.mxu0 1.0
  %5855 = vmatprep.subr.mxu0 0.0
  %5856 = vmatpush1.msra.mxu0 1.0
  %5857 = vmatprep.subr.mxu0 0.0
  %5858 = vmatpush1.msra.mxu0 1.0
  %5859 = vmatprep.subr.mxu0 0.0
  %5860 = vmatpush1.msra.mxu0 1.0
  %5861 = vmatprep.subr.mxu0 0.0
  %5862 = vmatpush1.msra.mxu0 1.0
  %5863 = vmatprep.subr.mxu0 0.0
  %5864 = vmatpush1.msra.mxu0 1.0
  %5865 = vmatprep.subr.mxu0 0.0
  %5866 = vmatpush1.msra.mxu0 1.0
  %5867 = vmatprep.subr.mxu0 0.0
  %5868 = vmatpush1.msra.mxu0 1.0
  %5869 = vmatprep.subr.mxu0 0.0
  %5870 = vmatpush1.msra.mxu0 1.0
  %5871 = vmatprep.subr.mxu0 0.0
  %5872 = vmatpush1.msra.mxu0 1.0
  %5873 = vmatprep.subr.mxu0 0.0
  %5874 = vmatpush1.msra.mxu0 1.0
  %5875 = vmatprep.subr.mxu0 0.0
  %5876 = vmatpush1.msra.mxu0 1.0
  %5877 = vmatprep.subr.mxu0 0.0
  %5878 = vmatpush1.msra.mxu0 1.0
  %5879 = vmatprep.subr.mxu0 0.0
  %5880 = vmatpush1.msra.mxu0 1.0
  %5881 = vmatprep.subr.mxu0 0.0
  %5882 = vmatpush2.msra.mxu0 1.0
  %5883 = vmatprep.subr.mxu0 0.0
  %5884 = vmatpush2.msra.mxu0 1.0
  %5885 = vmatprep.subr.mxu0 0.0
  %5886 = vmatpush2.msra.mxu0 1.0
  %5887 = vmatprep.subr.mxu0 0.0
  %5888 = vmatpush2.msra.mxu0 1.0
  %5889 = vmatprep.subr.mxu0 0.0
  %5890 = vmatpush2.msra.mxu0 1.0
  %5891 = vmatprep.subr.mxu0 0.0
  %5892 = vmatpush2.msra.mxu0 1.0
  %5893 = vmatprep.subr.mxu0 0.0
  %5894 = vmatpush2.msra.mxu0 1.0
  %5895 = vmatprep.subr.mxu0 0.0
  %5896 = vmatpush2.msra.mxu0 1.0
  %5897 = vmatprep.subr.mxu0 0.0
  %5898 = vmatpush2.msra.mxu0 1.0
  %5899 = vmatprep.subr.mxu0 0.0
  %5900 = vmatpush2.msra.mxu0 1.0
  %5901 = vmatprep.subr.mxu0 0.0
  %5902 = vmatpush2.msra.mxu0 1.0
  %5903 = vmatprep.subr.mxu0 0.0
  %5904 = vmatpush2.msra.mxu0 1.0
  %5905 = vmatprep.subr.mxu0 0.0
  %5906 = vmatpush2.msra.mxu0 1.0
  %5907 = vmatprep.subr.mxu0 0.0
  %5908 = vmatpush2.msra.mxu0 1.0
  %5909 = vmatprep.subr.mxu0 0.0
  %5910 = vmatpush2.msra.mxu0 1.0
  %5911 = vmatprep.subr.mxu0 0.0
  %5912 = vmatpush2.msra.mxu0 1.0
  %v5913 = vand.u32 %v20, 4294901760
  %5914 = vmatprep.mubr.f32.mxu0 %v5913
  %v5915 = vand.u32 %v19, 4294901760
  %5916 = vmatmul.mubr.f32.gmra.mxu0 %v5915
  %v5917 = vpop.f32.mrf.mxu0
  %v5918 = vadd.f32 %v5839, %v5917
  %v5919 = vpop.f32.mrf.mxu0
  %v5920 = vand.u32 %v29, 4294901760
  %5921 = vmatprep.mubr.f32.mxu0 %v5920
  %v5922 = vand.u32 %v28, 4294901760
  %5923 = vmatmul.mubr.f32.gmra.mxu0 %v5922
  %v5924 = vpop.f32.mrf.mxu0
  %v5925 = vadd.f32 %v5846, %v5924
  %v5926 = vpop.f32.mrf.mxu0
  %5927 = vdwg.mxu0
  %5928 = vmatprep.subr.mxu0 0.0
  %5929 = vmatpush1.msra.mxu0 1.0
  %5930 = vmatprep.subr.mxu0 0.0
  %5931 = vmatpush1.msra.mxu0 1.0
  %5932 = vmatprep.subr.mxu0 0.0
  %5933 = vmatpush1.msra.mxu0 1.0
  %5934 = vmatprep.subr.mxu0 0.0
  %5935 = vmatpush1.msra.mxu0 1.0
  %5936 = vmatprep.subr.mxu0 0.0
  %5937 = vmatpush1.msra.mxu0 1.0
  %5938 = vmatprep.subr.mxu0 0.0
  %5939 = vmatpush1.msra.mxu0 1.0
  %5940 = vmatprep.subr.mxu0 0.0
  %5941 = vmatpush1.msra.mxu0 1.0
  %5942 = vmatprep.subr.mxu0 0.0
  %5943 = vmatpush1.msra.mxu0 1.0
  %5944 = vmatprep.subr.mxu0 0.0
  %5945 = vmatpush1.msra.mxu0 1.0
  %5946 = vmatprep.subr.mxu0 0.0
  %5947 = vmatpush1.msra.mxu0 1.0
  %5948 = vmatprep.subr.mxu0 0.0
  %5949 = vmatpush1.msra.mxu0 1.0
  %5950 = vmatprep.subr.mxu0 0.0
  %5951 = vmatpush1.msra.mxu0 1.0
  %5952 = vmatprep.subr.mxu0 0.0
  %5953 = vmatpush1.msra.mxu0 1.0
  %5954 = vmatprep.subr.mxu0 0.0
  %5955 = vmatpush1.msra.mxu0 1.0
  %5956 = vmatprep.subr.mxu0 0.0
  %5957 = vmatpush1.msra.mxu0 1.0
  %5958 = vmatprep.subr.mxu0 0.0
  %5959 = vmatpush1.msra.mxu0 1.0
  %5960 = vmatprep.subr.mxu0 0.0
  %5961 = vmatpush2.msra.mxu0 1.0
  %5962 = vmatprep.subr.mxu0 0.0
  %5963 = vmatpush2.msra.mxu0 1.0
  %5964 = vmatprep.subr.mxu0 0.0
  %5965 = vmatpush2.msra.mxu0 1.0
  %5966 = vmatprep.subr.mxu0 0.0
  %5967 = vmatpush2.msra.mxu0 1.0
  %5968 = vmatprep.subr.mxu0 0.0
  %5969 = vmatpush2.msra.mxu0 1.0
  %5970 = vmatprep.subr.mxu0 0.0
  %5971 = vmatpush2.msra.mxu0 1.0
  %5972 = vmatprep.subr.mxu0 0.0
  %5973 = vmatpush2.msra.mxu0 1.0
  %5974 = vmatprep.subr.mxu0 0.0
  %5975 = vmatpush2.msra.mxu0 1.0
  %5976 = vmatprep.subr.mxu0 0.0
  %5977 = vmatpush2.msra.mxu0 1.0
  %5978 = vmatprep.subr.mxu0 0.0
  %5979 = vmatpush2.msra.mxu0 1.0
  %5980 = vmatprep.subr.mxu0 0.0
  %5981 = vmatpush2.msra.mxu0 1.0
  %5982 = vmatprep.subr.mxu0 0.0
  %5983 = vmatpush2.msra.mxu0 1.0
  %5984 = vmatprep.subr.mxu0 0.0
  %5985 = vmatpush2.msra.mxu0 1.0
  %5986 = vmatprep.subr.mxu0 0.0
  %5987 = vmatpush2.msra.mxu0 1.0
  %5988 = vmatprep.subr.mxu0 0.0
  %5989 = vmatpush2.msra.mxu0 1.0
  %5990 = vmatprep.subr.mxu0 0.0
  %5991 = vmatpush2.msra.mxu0 1.0
  %v5992 = vand.u32 %v22, 4294901760
  %v5993 = vsub.f32 %v22, %v5992
  %v5994 = vand.u32 %v5993, 4294901760
  %v5995 = vsub.f32 %v5993, %v5994
  %v5996 = vand.u32 %v5995, 4294901760
  %5997 = vmatprep.mubr.f32.mxu0 %v5996
  %v5998 = vand.u32 %v21, 4294901760
  %v5999 = vsub.f32 %v21, %v5998
  %v6000 = vand.u32 %v5999, 4294901760
  %v6001 = vsub.f32 %v5999, %v6000
  %v6002 = vand.u32 %v6001, 4294901760
  %6003 = vmatmul.mubr.f32.gmra.mxu0 %v6002
  %v6004 = vpop.f32.mrf.mxu0
  %v6005 = vadd.f32 %v5918, %v6004
  %v6006 = vpop.f32.mrf.mxu0
  %v6007 = vand.u32 %v31, 4294901760
  %v6008 = vsub.f32 %v31, %v6007
  %v6009 = vand.u32 %v6008, 4294901760
  %v6010 = vsub.f32 %v6008, %v6009
  %v6011 = vand.u32 %v6010, 4294901760
  %6012 = vmatprep.mubr.f32.mxu0 %v6011
  %v6013 = vand.u32 %v30, 4294901760
  %v6014 = vsub.f32 %v30, %v6013
  %v6015 = vand.u32 %v6014, 4294901760
  %v6016 = vsub.f32 %v6014, %v6015
  %v6017 = vand.u32 %v6016, 4294901760
  %6018 = vmatmul.mubr.f32.gmra.mxu0 %v6017
  %v6019 = vpop.f32.mrf.mxu0
  %v6020 = vadd.f32 %v5925, %v6019
  %v6021 = vpop.f32.mrf.mxu0
  %6022 = vdwg.mxu0
  %6023 = vmatprep.subr.mxu0 0.0
  %6024 = vmatpush1.msra.mxu0 0.0
  %6025 = vmatprep.subr.mxu0 0.0
  %6026 = vmatpush1.msra.mxu0 0.0
  %6027 = vmatprep.subr.mxu0 0.0
  %6028 = vmatpush1.msra.mxu0 0.0
  %6029 = vmatprep.subr.mxu0 0.0
  %6030 = vmatpush1.msra.mxu0 0.0
  %6031 = vmatprep.subr.mxu0 0.0
  %6032 = vmatpush1.msra.mxu0 0.0
  %6033 = vmatprep.subr.mxu0 0.0
  %6034 = vmatpush1.msra.mxu0 0.0
  %6035 = vmatprep.subr.mxu0 0.0
  %6036 = vmatpush1.msra.mxu0 0.0
  %6037 = vmatprep.subr.mxu0 0.0
  %6038 = vmatpush1.msra.mxu0 0.0
  %6039 = vmatprep.subr.mxu0 0.0
  %6040 = vmatpush1.msra.mxu0 0.0
  %6041 = vmatprep.subr.mxu0 0.0
  %6042 = vmatpush1.msra.mxu0 0.0
  %6043 = vmatprep.subr.mxu0 0.0
  %6044 = vmatpush1.msra.mxu0 0.0
  %6045 = vmatprep.subr.mxu0 0.0
  %6046 = vmatpush1.msra.mxu0 0.0
  %6047 = vmatprep.subr.mxu0 0.0
  %6048 = vmatpush1.msra.mxu0 0.0
  %6049 = vmatprep.subr.mxu0 0.0
  %6050 = vmatpush1.msra.mxu0 0.0
  %6051 = vmatprep.subr.mxu0 0.0
  %6052 = vmatpush1.msra.mxu0 0.0
  %6053 = vmatprep.subr.mxu0 0.0
  %6054 = vmatpush1.msra.mxu0 0.0
  %6055 = vmatprep.subr.mxu0 0.0
  %6056 = vmatpush2.msra.mxu0 0.0
  %6057 = vmatprep.subr.mxu0 0.0
  %6058 = vmatpush2.msra.mxu0 0.0
  %6059 = vmatprep.subr.mxu0 0.0
  %6060 = vmatpush2.msra.mxu0 0.0
  %6061 = vmatprep.subr.mxu0 0.0
  %6062 = vmatpush2.msra.mxu0 0.0
  %6063 = vmatprep.subr.mxu0 0.0
  %6064 = vmatpush2.msra.mxu0 0.0
  %6065 = vmatprep.subr.mxu0 0.0
  %6066 = vmatpush2.msra.mxu0 0.0
  %6067 = vmatprep.subr.mxu0 0.0
  %6068 = vmatpush2.msra.mxu0 0.0
  %6069 = vmatprep.subr.mxu0 0.0
  %6070 = vmatpush2.msra.mxu0 0.0
  %6071 = vmatprep.subr.mxu0 0.0
  %6072 = vmatpush2.msra.mxu0 0.0
  %6073 = vmatprep.subr.mxu0 0.0
  %6074 = vmatpush2.msra.mxu0 0.0
  %6075 = vmatprep.subr.mxu0 0.0
  %6076 = vmatpush2.msra.mxu0 0.0
  %6077 = vmatprep.subr.mxu0 0.0
  %6078 = vmatpush2.msra.mxu0 0.0
  %6079 = vmatprep.subr.mxu0 0.0
  %6080 = vmatpush2.msra.mxu0 0.0
  %6081 = vmatprep.subr.mxu0 0.0
  %6082 = vmatpush2.msra.mxu0 0.0
  %6083 = vmatprep.subr.mxu0 0.0
  %6084 = vmatpush2.msra.mxu0 0.0
  %6085 = vmatprep.subr.mxu0 0.0
  %6086 = vmatpush2.msra.mxu0 0.0
  %v6087 = vand.u32 %v22, 4294901760
  %6088 = vmatprep.mubr.f32.mxu0 %v6087
  %v6089 = vand.u32 %v21, 4294901760
  %6090 = vmatmul.mubr.f32.gmra.mxu0 %v6089
  %v6091 = vpop.f32.mrf.mxu0
  %v6092 = vadd.f32 %v6005, %v6091
  %v6093 = vpop.f32.mrf.mxu0
  %v6094 = vand.u32 %v31, 4294901760
  %6095 = vmatprep.mubr.f32.mxu0 %v6094
  %v6096 = vand.u32 %v30, 4294901760
  %6097 = vmatmul.mubr.f32.gmra.mxu0 %v6096
  %v6098 = vpop.f32.mrf.mxu0
  %v6099 = vadd.f32 %v6020, %v6098
  %v6100 = vpop.f32.mrf.mxu0
  %6101 = vdwg.mxu0
  %6102 = vmatprep.subr.mxu0 0.0
  %6103 = vmatpush1.msra.mxu0 0.0
  %6104 = vmatprep.subr.mxu0 0.0
  %6105 = vmatpush1.msra.mxu0 0.0
  %6106 = vmatprep.subr.mxu0 0.0
  %6107 = vmatpush1.msra.mxu0 0.0
  %6108 = vmatprep.subr.mxu0 0.0
  %6109 = vmatpush1.msra.mxu0 0.0
  %6110 = vmatprep.subr.mxu0 0.0
  %6111 = vmatpush1.msra.mxu0 0.0
  %6112 = vmatprep.subr.mxu0 0.0
  %6113 = vmatpush1.msra.mxu0 0.0
  %6114 = vmatprep.subr.mxu0 0.0
  %6115 = vmatpush1.msra.mxu0 0.0
  %6116 = vmatprep.subr.mxu0 0.0
  %6117 = vmatpush1.msra.mxu0 0.0
  %6118 = vmatprep.subr.mxu0 0.0
  %6119 = vmatpush1.msra.mxu0 0.0
  %6120 = vmatprep.subr.mxu0 0.0
  %6121 = vmatpush1.msra.mxu0 0.0
  %6122 = vmatprep.subr.mxu0 0.0
  %6123 = vmatpush1.msra.mxu0 0.0
  %6124 = vmatprep.subr.mxu0 0.0
  %6125 = vmatpush1.msra.mxu0 0.0
  %6126 = vmatprep.subr.mxu0 0.0
  %6127 = vmatpush1.msra.mxu0 0.0
  %6128 = vmatprep.subr.mxu0 0.0
  %6129 = vmatpush1.msra.mxu0 0.0
  %6130 = vmatprep.subr.mxu0 0.0
  %6131 = vmatpush1.msra.mxu0 0.0
  %6132 = vmatprep.subr.mxu0 0.0
  %6133 = vmatpush1.msra.mxu0 0.0
  %6134 = vmatprep.subr.mxu0 0.0
  %6135 = vmatpush2.msra.mxu0 0.0
  %6136 = vmatprep.subr.mxu0 0.0
  %6137 = vmatpush2.msra.mxu0 0.0
  %6138 = vmatprep.subr.mxu0 0.0
  %6139 = vmatpush2.msra.mxu0 0.0
  %6140 = vmatprep.subr.mxu0 0.0
  %6141 = vmatpush2.msra.mxu0 0.0
  %6142 = vmatprep.subr.mxu0 0.0
  %6143 = vmatpush2.msra.mxu0 0.0
  %6144 = vmatprep.subr.mxu0 0.0
  %6145 = vmatpush2.msra.mxu0 0.0
  %6146 = vmatprep.subr.mxu0 0.0
  %6147 = vmatpush2.msra.mxu0 0.0
  %6148 = vmatprep.subr.mxu0 0.0
  %6149 = vmatpush2.msra.mxu0 0.0
  %6150 = vmatprep.subr.mxu0 0.0
  %6151 = vmatpush2.msra.mxu0 0.0
  %6152 = vmatprep.subr.mxu0 0.0
  %6153 = vmatpush2.msra.mxu0 0.0
  %6154 = vmatprep.subr.mxu0 0.0
  %6155 = vmatpush2.msra.mxu0 0.0
  %6156 = vmatprep.subr.mxu0 0.0
  %6157 = vmatpush2.msra.mxu0 0.0
  %6158 = vmatprep.subr.mxu0 0.0
  %6159 = vmatpush2.msra.mxu0 0.0
  %6160 = vmatprep.subr.mxu0 0.0
  %6161 = vmatpush2.msra.mxu0 0.0
  %6162 = vmatprep.subr.mxu0 0.0
  %6163 = vmatpush2.msra.mxu0 0.0
  %6164 = vmatprep.subr.mxu0 0.0
  %6165 = vmatpush2.msra.mxu0 0.0
  %v6166 = vand.u32 %v22, 4294901760
  %v6167 = vsub.f32 %v22, %v6166
  %6168 = vmatprep.mubr.f32.mxu0 %v6167
  %v6169 = vand.u32 %v21, 4294901760
  %v6170 = vsub.f32 %v21, %v6169
  %6171 = vmatmul.mubr.f32.gmra.mxu0 %v6170
  %v6172 = vpop.f32.mrf.mxu0
  %v6173 = vadd.f32 %v6092, %v6172
  %v6174 = vpop.f32.mrf.mxu0
  %v6175 = vand.u32 %v31, 4294901760
  %v6176 = vsub.f32 %v31, %v6175
  %6177 = vmatprep.mubr.f32.mxu0 %v6176
  %v6178 = vand.u32 %v30, 4294901760
  %v6179 = vsub.f32 %v30, %v6178
  %6180 = vmatmul.mubr.f32.gmra.mxu0 %v6179
  %v6181 = vpop.f32.mrf.mxu0
  %v6182 = vadd.f32 %v6099, %v6181
  %v6183 = vpop.f32.mrf.mxu0
  %6184 = vdwg.mxu0
  %6185 = vmatprep.subr.mxu0 0.0
  %6186 = vmatpush1.msra.mxu0 1.0
  %6187 = vmatprep.subr.mxu0 0.0
  %6188 = vmatpush1.msra.mxu0 1.0
  %6189 = vmatprep.subr.mxu0 0.0
  %6190 = vmatpush1.msra.mxu0 1.0
  %6191 = vmatprep.subr.mxu0 0.0
  %6192 = vmatpush1.msra.mxu0 1.0
  %6193 = vmatprep.subr.mxu0 0.0
  %6194 = vmatpush1.msra.mxu0 1.0
  %6195 = vmatprep.subr.mxu0 0.0
  %6196 = vmatpush1.msra.mxu0 1.0
  %6197 = vmatprep.subr.mxu0 0.0
  %6198 = vmatpush1.msra.mxu0 1.0
  %6199 = vmatprep.subr.mxu0 0.0
  %6200 = vmatpush1.msra.mxu0 1.0
  %6201 = vmatprep.subr.mxu0 0.0
  %6202 = vmatpush1.msra.mxu0 1.0
  %6203 = vmatprep.subr.mxu0 0.0
  %6204 = vmatpush1.msra.mxu0 1.0
  %6205 = vmatprep.subr.mxu0 0.0
  %6206 = vmatpush1.msra.mxu0 1.0
  %6207 = vmatprep.subr.mxu0 0.0
  %6208 = vmatpush1.msra.mxu0 1.0
  %6209 = vmatprep.subr.mxu0 0.0
  %6210 = vmatpush1.msra.mxu0 1.0
  %6211 = vmatprep.subr.mxu0 0.0
  %6212 = vmatpush1.msra.mxu0 1.0
  %6213 = vmatprep.subr.mxu0 0.0
  %6214 = vmatpush1.msra.mxu0 1.0
  %6215 = vmatprep.subr.mxu0 0.0
  %6216 = vmatpush1.msra.mxu0 1.0
  %6217 = vmatprep.subr.mxu0 0.0
  %6218 = vmatpush2.msra.mxu0 1.0
  %6219 = vmatprep.subr.mxu0 0.0
  %6220 = vmatpush2.msra.mxu0 1.0
  %6221 = vmatprep.subr.mxu0 0.0
  %6222 = vmatpush2.msra.mxu0 1.0
  %6223 = vmatprep.subr.mxu0 0.0
  %6224 = vmatpush2.msra.mxu0 1.0
  %6225 = vmatprep.subr.mxu0 0.0
  %6226 = vmatpush2.msra.mxu0 1.0
  %6227 = vmatprep.subr.mxu0 0.0
  %6228 = vmatpush2.msra.mxu0 1.0
  %6229 = vmatprep.subr.mxu0 0.0
  %6230 = vmatpush2.msra.mxu0 1.0
  %6231 = vmatprep.subr.mxu0 0.0
  %6232 = vmatpush2.msra.mxu0 1.0
  %6233 = vmatprep.subr.mxu0 0.0
  %6234 = vmatpush2.msra.mxu0 1.0
  %6235 = vmatprep.subr.mxu0 0.0
  %6236 = vmatpush2.msra.mxu0 1.0
  %6237 = vmatprep.subr.mxu0 0.0
  %6238 = vmatpush2.msra.mxu0 1.0
  %6239 = vmatprep.subr.mxu0 0.0
  %6240 = vmatpush2.msra.mxu0 1.0
  %6241 = vmatprep.subr.mxu0 0.0
  %6242 = vmatpush2.msra.mxu0 1.0
  %6243 = vmatprep.subr.mxu0 0.0
  %6244 = vmatpush2.msra.mxu0 1.0
  %6245 = vmatprep.subr.mxu0 0.0
  %6246 = vmatpush2.msra.mxu0 1.0
  %6247 = vmatprep.subr.mxu0 0.0
  %6248 = vmatpush2.msra.mxu0 1.0
  %v6249 = vand.u32 %v22, 4294901760
  %v6250 = vsub.f32 %v22, %v6249
  %v6251 = vand.u32 %v6250, 4294901760
  %6252 = vmatprep.mubr.f32.mxu0 %v6251
  %v6253 = vand.u32 %v21, 4294901760
  %v6254 = vsub.f32 %v21, %v6253
  %v6255 = vand.u32 %v6254, 4294901760
  %6256 = vmatmul.mubr.f32.gmra.mxu0 %v6255
  %v6257 = vpop.f32.mrf.mxu0
  %v6258 = vadd.f32 %v6173, %v6257
  %v6259 = vpop.f32.mrf.mxu0
  %v6260 = vand.u32 %v31, 4294901760
  %v6261 = vsub.f32 %v31, %v6260
  %v6262 = vand.u32 %v6261, 4294901760
  %6263 = vmatprep.mubr.f32.mxu0 %v6262
  %v6264 = vand.u32 %v30, 4294901760
  %v6265 = vsub.f32 %v30, %v6264
  %v6266 = vand.u32 %v6265, 4294901760
  %6267 = vmatmul.mubr.f32.gmra.mxu0 %v6266
  %v6268 = vpop.f32.mrf.mxu0
  %v6269 = vadd.f32 %v6182, %v6268
  %v6270 = vpop.f32.mrf.mxu0
  %6271 = vdwg.mxu0
  %6272 = vmatprep.subr.mxu0 0.0
  %6273 = vmatpush1.msra.mxu0 0.0
  %6274 = vmatprep.subr.mxu0 0.0
  %6275 = vmatpush1.msra.mxu0 0.0
  %6276 = vmatprep.subr.mxu0 0.0
  %6277 = vmatpush1.msra.mxu0 0.0
  %6278 = vmatprep.subr.mxu0 0.0
  %6279 = vmatpush1.msra.mxu0 0.0
  %6280 = vmatprep.subr.mxu0 0.0
  %6281 = vmatpush1.msra.mxu0 0.0
  %6282 = vmatprep.subr.mxu0 0.0
  %6283 = vmatpush1.msra.mxu0 0.0
  %6284 = vmatprep.subr.mxu0 0.0
  %6285 = vmatpush1.msra.mxu0 0.0
  %6286 = vmatprep.subr.mxu0 0.0
  %6287 = vmatpush1.msra.mxu0 0.0
  %6288 = vmatprep.subr.mxu0 0.0
  %6289 = vmatpush1.msra.mxu0 0.0
  %6290 = vmatprep.subr.mxu0 0.0
  %6291 = vmatpush1.msra.mxu0 0.0
  %6292 = vmatprep.subr.mxu0 0.0
  %6293 = vmatpush1.msra.mxu0 0.0
  %6294 = vmatprep.subr.mxu0 0.0
  %6295 = vmatpush1.msra.mxu0 0.0
  %6296 = vmatprep.subr.mxu0 0.0
  %6297 = vmatpush1.msra.mxu0 0.0
  %6298 = vmatprep.subr.mxu0 0.0
  %6299 = vmatpush1.msra.mxu0 0.0
  %6300 = vmatprep.subr.mxu0 0.0
  %6301 = vmatpush1.msra.mxu0 0.0
  %6302 = vmatprep.subr.mxu0 0.0
  %6303 = vmatpush1.msra.mxu0 0.0
  %6304 = vmatprep.subr.mxu0 0.0
  %6305 = vmatpush2.msra.mxu0 0.0
  %6306 = vmatprep.subr.mxu0 0.0
  %6307 = vmatpush2.msra.mxu0 0.0
  %6308 = vmatprep.subr.mxu0 0.0
  %6309 = vmatpush2.msra.mxu0 0.0
  %6310 = vmatprep.subr.mxu0 0.0
  %6311 = vmatpush2.msra.mxu0 0.0
  %6312 = vmatprep.subr.mxu0 0.0
  %6313 = vmatpush2.msra.mxu0 0.0
  %6314 = vmatprep.subr.mxu0 0.0
  %6315 = vmatpush2.msra.mxu0 0.0
  %6316 = vmatprep.subr.mxu0 0.0
  %6317 = vmatpush2.msra.mxu0 0.0
  %6318 = vmatprep.subr.mxu0 0.0
  %6319 = vmatpush2.msra.mxu0 0.0
  %6320 = vmatprep.subr.mxu0 0.0
  %6321 = vmatpush2.msra.mxu0 0.0
  %6322 = vmatprep.subr.mxu0 0.0
  %6323 = vmatpush2.msra.mxu0 0.0
  %6324 = vmatprep.subr.mxu0 0.0
  %6325 = vmatpush2.msra.mxu0 0.0
  %6326 = vmatprep.subr.mxu0 0.0
  %6327 = vmatpush2.msra.mxu0 0.0
  %6328 = vmatprep.subr.mxu0 0.0
  %6329 = vmatpush2.msra.mxu0 0.0
  %6330 = vmatprep.subr.mxu0 0.0
  %6331 = vmatpush2.msra.mxu0 0.0
  %6332 = vmatprep.subr.mxu0 0.0
  %6333 = vmatpush2.msra.mxu0 0.0
  %6334 = vmatprep.subr.mxu0 0.0
  %6335 = vmatpush2.msra.mxu0 0.0
  %v6336 = vand.u32 %v22, 4294901760
  %6337 = vmatprep.mubr.f32.mxu0 %v6336
  %v6338 = vand.u32 %v21, 4294901760
  %6339 = vmatmul.mubr.f32.gmra.mxu0 %v6338
  %v6340 = vpop.f32.mrf.mxu0
  %v6341 = vadd.f32 %v6258, %v6340
  %v6342 = vpop.f32.mrf.mxu0
  %v6343 = vand.u32 %v31, 4294901760
  %6344 = vmatprep.mubr.f32.mxu0 %v6343
  %v6345 = vand.u32 %v30, 4294901760
  %6346 = vmatmul.mubr.f32.gmra.mxu0 %v6345
  %v6347 = vpop.f32.mrf.mxu0
  %v6348 = vadd.f32 %v6269, %v6347
  %v6349 = vpop.f32.mrf.mxu0
  %6350 = vdwg.mxu0
  %6351 = vmatprep.subr.mxu0 0.0
  %6352 = vmatpush1.msra.mxu0 1.0
  %6353 = vmatprep.subr.mxu0 0.0
  %6354 = vmatpush1.msra.mxu0 1.0
  %6355 = vmatprep.subr.mxu0 0.0
  %6356 = vmatpush1.msra.mxu0 1.0
  %6357 = vmatprep.subr.mxu0 0.0
  %6358 = vmatpush1.msra.mxu0 1.0
  %6359 = vmatprep.subr.mxu0 0.0
  %6360 = vmatpush1.msra.mxu0 1.0
  %6361 = vmatprep.subr.mxu0 0.0
  %6362 = vmatpush1.msra.mxu0 1.0
  %6363 = vmatprep.subr.mxu0 0.0
  %6364 = vmatpush1.msra.mxu0 1.0
  %6365 = vmatprep.subr.mxu0 0.0
  %6366 = vmatpush1.msra.mxu0 1.0
  %6367 = vmatprep.subr.mxu0 0.0
  %6368 = vmatpush1.msra.mxu0 1.0
  %6369 = vmatprep.subr.mxu0 0.0
  %6370 = vmatpush1.msra.mxu0 1.0
  %6371 = vmatprep.subr.mxu0 0.0
  %6372 = vmatpush1.msra.mxu0 1.0
  %6373 = vmatprep.subr.mxu0 0.0
  %6374 = vmatpush1.msra.mxu0 1.0
  %6375 = vmatprep.subr.mxu0 0.0
  %6376 = vmatpush1.msra.mxu0 1.0
  %6377 = vmatprep.subr.mxu0 0.0
  %6378 = vmatpush1.msra.mxu0 1.0
  %6379 = vmatprep.subr.mxu0 0.0
  %6380 = vmatpush1.msra.mxu0 1.0
  %6381 = vmatprep.subr.mxu0 0.0
  %6382 = vmatpush1.msra.mxu0 1.0
  %6383 = vmatprep.subr.mxu0 0.0
  %6384 = vmatpush2.msra.mxu0 1.0
  %6385 = vmatprep.subr.mxu0 0.0
  %6386 = vmatpush2.msra.mxu0 1.0
  %6387 = vmatprep.subr.mxu0 0.0
  %6388 = vmatpush2.msra.mxu0 1.0
  %6389 = vmatprep.subr.mxu0 0.0
  %6390 = vmatpush2.msra.mxu0 1.0
  %6391 = vmatprep.subr.mxu0 0.0
  %6392 = vmatpush2.msra.mxu0 1.0
  %6393 = vmatprep.subr.mxu0 0.0
  %6394 = vmatpush2.msra.mxu0 1.0
  %6395 = vmatprep.subr.mxu0 0.0
  %6396 = vmatpush2.msra.mxu0 1.0
  %6397 = vmatprep.subr.mxu0 0.0
  %6398 = vmatpush2.msra.mxu0 1.0
  %6399 = vmatprep.subr.mxu0 0.0
  %6400 = vmatpush2.msra.mxu0 1.0
  %6401 = vmatprep.subr.mxu0 0.0
  %6402 = vmatpush2.msra.mxu0 1.0
  %6403 = vmatprep.subr.mxu0 0.0
  %6404 = vmatpush2.msra.mxu0 1.0
  %6405 = vmatprep.subr.mxu0 0.0
  %6406 = vmatpush2.msra.mxu0 1.0
  %6407 = vmatprep.subr.mxu0 0.0
  %6408 = vmatpush2.msra.mxu0 1.0
  %6409 = vmatprep.subr.mxu0 0.0
  %6410 = vmatpush2.msra.mxu0 1.0
  %6411 = vmatprep.subr.mxu0 0.0
  %6412 = vmatpush2.msra.mxu0 1.0
  %6413 = vmatprep.subr.mxu0 0.0
  %6414 = vmatpush2.msra.mxu0 1.0
  %v6415 = vand.u32 %v22, 4294901760
  %6416 = vmatprep.mubr.f32.mxu0 %v6415
  %v6417 = vand.u32 %v21, 4294901760
  %6418 = vmatmul.mubr.f32.gmra.mxu0 %v6417
  %v6419 = vpop.f32.mrf.mxu0
  %v6420 = vadd.f32 %v6341, %v6419
  %v6421 = vpop.f32.mrf.mxu0
  %v6422 = vand.u32 %v31, 4294901760
  %6423 = vmatprep.mubr.f32.mxu0 %v6422
  %v6424 = vand.u32 %v30, 4294901760
  %6425 = vmatmul.mubr.f32.gmra.mxu0 %v6424
  %v6426 = vpop.f32.mrf.mxu0
  %v6427 = vadd.f32 %v6348, %v6426
  %v6428 = vpop.f32.mrf.mxu0
  %6429 = vdwg.mxu0
  %6430 = vmatprep.subr.mxu0 0.0
  %6431 = vmatpush1.msra.mxu0 1.0
  %6432 = vmatprep.subr.mxu0 0.0
  %6433 = vmatpush1.msra.mxu0 1.0
  %6434 = vmatprep.subr.mxu0 0.0
  %6435 = vmatpush1.msra.mxu0 1.0
  %6436 = vmatprep.subr.mxu0 0.0
  %6437 = vmatpush1.msra.mxu0 1.0
  %6438 = vmatprep.subr.mxu0 0.0
  %6439 = vmatpush1.msra.mxu0 1.0
  %6440 = vmatprep.subr.mxu0 0.0
  %6441 = vmatpush1.msra.mxu0 1.0
  %6442 = vmatprep.subr.mxu0 0.0
  %6443 = vmatpush1.msra.mxu0 1.0
  %6444 = vmatprep.subr.mxu0 0.0
  %6445 = vmatpush1.msra.mxu0 1.0
  %6446 = vmatprep.subr.mxu0 0.0
  %6447 = vmatpush1.msra.mxu0 1.0
  %6448 = vmatprep.subr.mxu0 0.0
  %6449 = vmatpush1.msra.mxu0 1.0
  %6450 = vmatprep.subr.mxu0 0.0
  %6451 = vmatpush1.msra.mxu0 1.0
  %6452 = vmatprep.subr.mxu0 0.0
  %6453 = vmatpush1.msra.mxu0 1.0
  %6454 = vmatprep.subr.mxu0 0.0
  %6455 = vmatpush1.msra.mxu0 1.0
  %6456 = vmatprep.subr.mxu0 0.0
  %6457 = vmatpush1.msra.mxu0 1.0
  %6458 = vmatprep.subr.mxu0 0.0
  %6459 = vmatpush1.msra.mxu0 1.0
  %6460 = vmatprep.subr.mxu0 0.0
  %6461 = vmatpush1.msra.mxu0 1.0
  %6462 = vmatprep.subr.mxu0 0.0
  %6463 = vmatpush2.msra.mxu0 1.0
  %6464 = vmatprep.subr.mxu0 0.0
  %6465 = vmatpush2.msra.mxu0 1.0
  %6466 = vmatprep.subr.mxu0 0.0
  %6467 = vmatpush2.msra.mxu0 1.0
  %6468 = vmatprep.subr.mxu0 0.0
  %6469 = vmatpush2.msra.mxu0 1.0
  %6470 = vmatprep.subr.mxu0 0.0
  %6471 = vmatpush2.msra.mxu0 1.0
  %6472 = vmatprep.subr.mxu0 0.0
  %6473 = vmatpush2.msra.mxu0 1.0
  %6474 = vmatprep.subr.mxu0 0.0
  %6475 = vmatpush2.msra.mxu0 1.0
  %6476 = vmatprep.subr.mxu0 0.0
  %6477 = vmatpush2.msra.mxu0 1.0
  %6478 = vmatprep.subr.mxu0 0.0
  %6479 = vmatpush2.msra.mxu0 1.0
  %6480 = vmatprep.subr.mxu0 0.0
  %6481 = vmatpush2.msra.mxu0 1.0
  %6482 = vmatprep.subr.mxu0 0.0
  %6483 = vmatpush2.msra.mxu0 1.0
  %6484 = vmatprep.subr.mxu0 0.0
  %6485 = vmatpush2.msra.mxu0 1.0
  %6486 = vmatprep.subr.mxu0 0.0
  %6487 = vmatpush2.msra.mxu0 1.0
  %6488 = vmatprep.subr.mxu0 0.0
  %6489 = vmatpush2.msra.mxu0 1.0
  %6490 = vmatprep.subr.mxu0 0.0
  %6491 = vmatpush2.msra.mxu0 1.0
  %6492 = vmatprep.subr.mxu0 0.0
  %6493 = vmatpush2.msra.mxu0 1.0
  %v6494 = vand.u32 %v24, 4294901760
  %v6495 = vsub.f32 %v24, %v6494
  %v6496 = vand.u32 %v6495, 4294901760
  %v6497 = vsub.f32 %v6495, %v6496
  %v6498 = vand.u32 %v6497, 4294901760
  %6499 = vmatprep.mubr.f32.mxu0 %v6498
  %v6500 = vand.u32 %v23, 4294901760
  %v6501 = vsub.f32 %v23, %v6500
  %v6502 = vand.u32 %v6501, 4294901760
  %v6503 = vsub.f32 %v6501, %v6502
  %v6504 = vand.u32 %v6503, 4294901760
  %6505 = vmatmul.mubr.f32.gmra.mxu0 %v6504
  %v6506 = vpop.f32.mrf.mxu0
  %v6507 = vadd.f32 %v6420, %v6506
  %v6508 = vpop.f32.mrf.mxu0
  %v6509 = vand.u32 %v33, 4294901760
  %v6510 = vsub.f32 %v33, %v6509
  %v6511 = vand.u32 %v6510, 4294901760
  %v6512 = vsub.f32 %v6510, %v6511
  %v6513 = vand.u32 %v6512, 4294901760
  %6514 = vmatprep.mubr.f32.mxu0 %v6513
  %v6515 = vand.u32 %v32, 4294901760
  %v6516 = vsub.f32 %v32, %v6515
  %v6517 = vand.u32 %v6516, 4294901760
  %v6518 = vsub.f32 %v6516, %v6517
  %v6519 = vand.u32 %v6518, 4294901760
  %6520 = vmatmul.mubr.f32.gmra.mxu0 %v6519
  %v6521 = vpop.f32.mrf.mxu0
  %v6522 = vadd.f32 %v6427, %v6521
  %v6523 = vpop.f32.mrf.mxu0
  %6524 = vdwg.mxu0
  %6525 = vmatprep.subr.mxu0 0.0
  %6526 = vmatpush1.msra.mxu0 0.0
  %6527 = vmatprep.subr.mxu0 0.0
  %6528 = vmatpush1.msra.mxu0 0.0
  %6529 = vmatprep.subr.mxu0 0.0
  %6530 = vmatpush1.msra.mxu0 0.0
  %6531 = vmatprep.subr.mxu0 0.0
  %6532 = vmatpush1.msra.mxu0 0.0
  %6533 = vmatprep.subr.mxu0 0.0
  %6534 = vmatpush1.msra.mxu0 0.0
  %6535 = vmatprep.subr.mxu0 0.0
  %6536 = vmatpush1.msra.mxu0 0.0
  %6537 = vmatprep.subr.mxu0 0.0
  %6538 = vmatpush1.msra.mxu0 0.0
  %6539 = vmatprep.subr.mxu0 0.0
  %6540 = vmatpush1.msra.mxu0 0.0
  %6541 = vmatprep.subr.mxu0 0.0
  %6542 = vmatpush1.msra.mxu0 0.0
  %6543 = vmatprep.subr.mxu0 0.0
  %6544 = vmatpush1.msra.mxu0 0.0
  %6545 = vmatprep.subr.mxu0 0.0
  %6546 = vmatpush1.msra.mxu0 0.0
  %6547 = vmatprep.subr.mxu0 0.0
  %6548 = vmatpush1.msra.mxu0 0.0
  %6549 = vmatprep.subr.mxu0 0.0
  %6550 = vmatpush1.msra.mxu0 0.0
  %6551 = vmatprep.subr.mxu0 0.0
  %6552 = vmatpush1.msra.mxu0 0.0
  %6553 = vmatprep.subr.mxu0 0.0
  %6554 = vmatpush1.msra.mxu0 0.0
  %6555 = vmatprep.subr.mxu0 0.0
  %6556 = vmatpush1.msra.mxu0 0.0
  %6557 = vmatprep.subr.mxu0 0.0
  %6558 = vmatpush2.msra.mxu0 0.0
  %6559 = vmatprep.subr.mxu0 0.0
  %6560 = vmatpush2.msra.mxu0 0.0
  %6561 = vmatprep.subr.mxu0 0.0
  %6562 = vmatpush2.msra.mxu0 0.0
  %6563 = vmatprep.subr.mxu0 0.0
  %6564 = vmatpush2.msra.mxu0 0.0
  %6565 = vmatprep.subr.mxu0 0.0
  %6566 = vmatpush2.msra.mxu0 0.0
  %6567 = vmatprep.subr.mxu0 0.0
  %6568 = vmatpush2.msra.mxu0 0.0
  %6569 = vmatprep.subr.mxu0 0.0
  %6570 = vmatpush2.msra.mxu0 0.0
  %6571 = vmatprep.subr.mxu0 0.0
  %6572 = vmatpush2.msra.mxu0 0.0
  %6573 = vmatprep.subr.mxu0 0.0
  %6574 = vmatpush2.msra.mxu0 0.0
  %6575 = vmatprep.subr.mxu0 0.0
  %6576 = vmatpush2.msra.mxu0 0.0
  %6577 = vmatprep.subr.mxu0 0.0
  %6578 = vmatpush2.msra.mxu0 0.0
  %6579 = vmatprep.subr.mxu0 0.0
  %6580 = vmatpush2.msra.mxu0 0.0
  %6581 = vmatprep.subr.mxu0 0.0
  %6582 = vmatpush2.msra.mxu0 0.0
  %6583 = vmatprep.subr.mxu0 0.0
  %6584 = vmatpush2.msra.mxu0 0.0
  %6585 = vmatprep.subr.mxu0 0.0
  %6586 = vmatpush2.msra.mxu0 0.0
  %6587 = vmatprep.subr.mxu0 0.0
  %6588 = vmatpush2.msra.mxu0 0.0
  %v6589 = vand.u32 %v24, 4294901760
  %6590 = vmatprep.mubr.f32.mxu0 %v6589
  %v6591 = vand.u32 %v23, 4294901760
  %6592 = vmatmul.mubr.f32.gmra.mxu0 %v6591
  %v6593 = vpop.f32.mrf.mxu0
  %v6594 = vadd.f32 %v6507, %v6593
  %v6595 = vpop.f32.mrf.mxu0
  %v6596 = vand.u32 %v33, 4294901760
  %6597 = vmatprep.mubr.f32.mxu0 %v6596
  %v6598 = vand.u32 %v32, 4294901760
  %6599 = vmatmul.mubr.f32.gmra.mxu0 %v6598
  %v6600 = vpop.f32.mrf.mxu0
  %v6601 = vadd.f32 %v6522, %v6600
  %v6602 = vpop.f32.mrf.mxu0
  %6603 = vdwg.mxu0
  %6604 = vmatprep.subr.mxu0 0.0
  %6605 = vmatpush1.msra.mxu0 0.0
  %6606 = vmatprep.subr.mxu0 0.0
  %6607 = vmatpush1.msra.mxu0 0.0
  %6608 = vmatprep.subr.mxu0 0.0
  %6609 = vmatpush1.msra.mxu0 0.0
  %6610 = vmatprep.subr.mxu0 0.0
  %6611 = vmatpush1.msra.mxu0 0.0
  %6612 = vmatprep.subr.mxu0 0.0
  %6613 = vmatpush1.msra.mxu0 0.0
  %6614 = vmatprep.subr.mxu0 0.0
  %6615 = vmatpush1.msra.mxu0 0.0
  %6616 = vmatprep.subr.mxu0 0.0
  %6617 = vmatpush1.msra.mxu0 0.0
  %6618 = vmatprep.subr.mxu0 0.0
  %6619 = vmatpush1.msra.mxu0 0.0
  %6620 = vmatprep.subr.mxu0 0.0
  %6621 = vmatpush1.msra.mxu0 0.0
  %6622 = vmatprep.subr.mxu0 0.0
  %6623 = vmatpush1.msra.mxu0 0.0
  %6624 = vmatprep.subr.mxu0 0.0
  %6625 = vmatpush1.msra.mxu0 0.0
  %6626 = vmatprep.subr.mxu0 0.0
  %6627 = vmatpush1.msra.mxu0 0.0
  %6628 = vmatprep.subr.mxu0 0.0
  %6629 = vmatpush1.msra.mxu0 0.0
  %6630 = vmatprep.subr.mxu0 0.0
  %6631 = vmatpush1.msra.mxu0 0.0
  %6632 = vmatprep.subr.mxu0 0.0
  %6633 = vmatpush1.msra.mxu0 0.0
  %6634 = vmatprep.subr.mxu0 0.0
  %6635 = vmatpush1.msra.mxu0 0.0
  %6636 = vmatprep.subr.mxu0 0.0
  %6637 = vmatpush2.msra.mxu0 0.0
  %6638 = vmatprep.subr.mxu0 0.0
  %6639 = vmatpush2.msra.mxu0 0.0
  %6640 = vmatprep.subr.mxu0 0.0
  %6641 = vmatpush2.msra.mxu0 0.0
  %6642 = vmatprep.subr.mxu0 0.0
  %6643 = vmatpush2.msra.mxu0 0.0
  %6644 = vmatprep.subr.mxu0 0.0
  %6645 = vmatpush2.msra.mxu0 0.0
  %6646 = vmatprep.subr.mxu0 0.0
  %6647 = vmatpush2.msra.mxu0 0.0
  %6648 = vmatprep.subr.mxu0 0.0
  %6649 = vmatpush2.msra.mxu0 0.0
  %6650 = vmatprep.subr.mxu0 0.0
  %6651 = vmatpush2.msra.mxu0 0.0
  %6652 = vmatprep.subr.mxu0 0.0
  %6653 = vmatpush2.msra.mxu0 0.0
  %6654 = vmatprep.subr.mxu0 0.0
  %6655 = vmatpush2.msra.mxu0 0.0
  %6656 = vmatprep.subr.mxu0 0.0
  %6657 = vmatpush2.msra.mxu0 0.0
  %6658 = vmatprep.subr.mxu0 0.0
  %6659 = vmatpush2.msra.mxu0 0.0
  %6660 = vmatprep.subr.mxu0 0.0
  %6661 = vmatpush2.msra.mxu0 0.0
  %6662 = vmatprep.subr.mxu0 0.0
  %6663 = vmatpush2.msra.mxu0 0.0
  %6664 = vmatprep.subr.mxu0 0.0
  %6665 = vmatpush2.msra.mxu0 0.0
  %6666 = vmatprep.subr.mxu0 0.0
  %6667 = vmatpush2.msra.mxu0 0.0
  %v6668 = vand.u32 %v24, 4294901760
  %v6669 = vsub.f32 %v24, %v6668
  %6670 = vmatprep.mubr.f32.mxu0 %v6669
  %v6671 = vand.u32 %v23, 4294901760
  %v6672 = vsub.f32 %v23, %v6671
  %6673 = vmatmul.mubr.f32.gmra.mxu0 %v6672
  %v6674 = vpop.f32.mrf.mxu0
  %v6675 = vadd.f32 %v6594, %v6674
  %v6676 = vpop.f32.mrf.mxu0
  %v6677 = vand.u32 %v33, 4294901760
  %v6678 = vsub.f32 %v33, %v6677
  %6679 = vmatprep.mubr.f32.mxu0 %v6678
  %v6680 = vand.u32 %v32, 4294901760
  %v6681 = vsub.f32 %v32, %v6680
  %6682 = vmatmul.mubr.f32.gmra.mxu0 %v6681
  %v6683 = vpop.f32.mrf.mxu0
  %v6684 = vadd.f32 %v6601, %v6683
  %v6685 = vpop.f32.mrf.mxu0
  %6686 = vdwg.mxu0
  %6687 = vmatprep.subr.mxu0 0.0
  %6688 = vmatpush1.msra.mxu0 1.0
  %6689 = vmatprep.subr.mxu0 0.0
  %6690 = vmatpush1.msra.mxu0 1.0
  %6691 = vmatprep.subr.mxu0 0.0
  %6692 = vmatpush1.msra.mxu0 1.0
  %6693 = vmatprep.subr.mxu0 0.0
  %6694 = vmatpush1.msra.mxu0 1.0
  %6695 = vmatprep.subr.mxu0 0.0
  %6696 = vmatpush1.msra.mxu0 1.0
  %6697 = vmatprep.subr.mxu0 0.0
  %6698 = vmatpush1.msra.mxu0 1.0
  %6699 = vmatprep.subr.mxu0 0.0
  %6700 = vmatpush1.msra.mxu0 1.0
  %6701 = vmatprep.subr.mxu0 0.0
  %6702 = vmatpush1.msra.mxu0 1.0
  %6703 = vmatprep.subr.mxu0 0.0
  %6704 = vmatpush1.msra.mxu0 1.0
  %6705 = vmatprep.subr.mxu0 0.0
  %6706 = vmatpush1.msra.mxu0 1.0
  %6707 = vmatprep.subr.mxu0 0.0
  %6708 = vmatpush1.msra.mxu0 1.0
  %6709 = vmatprep.subr.mxu0 0.0
  %6710 = vmatpush1.msra.mxu0 1.0
  %6711 = vmatprep.subr.mxu0 0.0
  %6712 = vmatpush1.msra.mxu0 1.0
  %6713 = vmatprep.subr.mxu0 0.0
  %6714 = vmatpush1.msra.mxu0 1.0
  %6715 = vmatprep.subr.mxu0 0.0
  %6716 = vmatpush1.msra.mxu0 1.0
  %6717 = vmatprep.subr.mxu0 0.0
  %6718 = vmatpush1.msra.mxu0 1.0
  %6719 = vmatprep.subr.mxu0 0.0
  %6720 = vmatpush2.msra.mxu0 1.0
  %6721 = vmatprep.subr.mxu0 0.0
  %6722 = vmatpush2.msra.mxu0 1.0
  %6723 = vmatprep.subr.mxu0 0.0
  %6724 = vmatpush2.msra.mxu0 1.0
  %6725 = vmatprep.subr.mxu0 0.0
  %6726 = vmatpush2.msra.mxu0 1.0
  %6727 = vmatprep.subr.mxu0 0.0
  %6728 = vmatpush2.msra.mxu0 1.0
  %6729 = vmatprep.subr.mxu0 0.0
  %6730 = vmatpush2.msra.mxu0 1.0
  %6731 = vmatprep.subr.mxu0 0.0
  %6732 = vmatpush2.msra.mxu0 1.0
  %6733 = vmatprep.subr.mxu0 0.0
  %6734 = vmatpush2.msra.mxu0 1.0
  %6735 = vmatprep.subr.mxu0 0.0
  %6736 = vmatpush2.msra.mxu0 1.0
  %6737 = vmatprep.subr.mxu0 0.0
  %6738 = vmatpush2.msra.mxu0 1.0
  %6739 = vmatprep.subr.mxu0 0.0
  %6740 = vmatpush2.msra.mxu0 1.0
  %6741 = vmatprep.subr.mxu0 0.0
  %6742 = vmatpush2.msra.mxu0 1.0
  %6743 = vmatprep.subr.mxu0 0.0
  %6744 = vmatpush2.msra.mxu0 1.0
  %6745 = vmatprep.subr.mxu0 0.0
  %6746 = vmatpush2.msra.mxu0 1.0
  %6747 = vmatprep.subr.mxu0 0.0
  %6748 = vmatpush2.msra.mxu0 1.0
  %6749 = vmatprep.subr.mxu0 0.0
  %6750 = vmatpush2.msra.mxu0 1.0
  %v6751 = vand.u32 %v24, 4294901760
  %v6752 = vsub.f32 %v24, %v6751
  %v6753 = vand.u32 %v6752, 4294901760
  %6754 = vmatprep.mubr.f32.mxu0 %v6753
  %v6755 = vand.u32 %v23, 4294901760
  %v6756 = vsub.f32 %v23, %v6755
  %v6757 = vand.u32 %v6756, 4294901760
  %6758 = vmatmul.mubr.f32.gmra.mxu0 %v6757
  %v6759 = vpop.f32.mrf.mxu0
  %v6760 = vadd.f32 %v6675, %v6759
  %v6761 = vpop.f32.mrf.mxu0
  %v6762 = vand.u32 %v33, 4294901760
  %v6763 = vsub.f32 %v33, %v6762
  %v6764 = vand.u32 %v6763, 4294901760
  %6765 = vmatprep.mubr.f32.mxu0 %v6764
  %v6766 = vand.u32 %v32, 4294901760
  %v6767 = vsub.f32 %v32, %v6766
  %v6768 = vand.u32 %v6767, 4294901760
  %6769 = vmatmul.mubr.f32.gmra.mxu0 %v6768
  %v6770 = vpop.f32.mrf.mxu0
  %v6771 = vadd.f32 %v6684, %v6770
  %v6772 = vpop.f32.mrf.mxu0
  %6773 = vdwg.mxu0
  %6774 = vmatprep.subr.mxu0 0.0
  %6775 = vmatpush1.msra.mxu0 0.0
  %6776 = vmatprep.subr.mxu0 0.0
  %6777 = vmatpush1.msra.mxu0 0.0
  %6778 = vmatprep.subr.mxu0 0.0
  %6779 = vmatpush1.msra.mxu0 0.0
  %6780 = vmatprep.subr.mxu0 0.0
  %6781 = vmatpush1.msra.mxu0 0.0
  %6782 = vmatprep.subr.mxu0 0.0
  %6783 = vmatpush1.msra.mxu0 0.0
  %6784 = vmatprep.subr.mxu0 0.0
  %6785 = vmatpush1.msra.mxu0 0.0
  %6786 = vmatprep.subr.mxu0 0.0
  %6787 = vmatpush1.msra.mxu0 0.0
  %6788 = vmatprep.subr.mxu0 0.0
  %6789 = vmatpush1.msra.mxu0 0.0
  %6790 = vmatprep.subr.mxu0 0.0
  %6791 = vmatpush1.msra.mxu0 0.0
  %6792 = vmatprep.subr.mxu0 0.0
  %6793 = vmatpush1.msra.mxu0 0.0
  %6794 = vmatprep.subr.mxu0 0.0
  %6795 = vmatpush1.msra.mxu0 0.0
  %6796 = vmatprep.subr.mxu0 0.0
  %6797 = vmatpush1.msra.mxu0 0.0
  %6798 = vmatprep.subr.mxu0 0.0
  %6799 = vmatpush1.msra.mxu0 0.0
  %6800 = vmatprep.subr.mxu0 0.0
  %6801 = vmatpush1.msra.mxu0 0.0
  %6802 = vmatprep.subr.mxu0 0.0
  %6803 = vmatpush1.msra.mxu0 0.0
  %6804 = vmatprep.subr.mxu0 0.0
  %6805 = vmatpush1.msra.mxu0 0.0
  %6806 = vmatprep.subr.mxu0 0.0
  %6807 = vmatpush2.msra.mxu0 0.0
  %6808 = vmatprep.subr.mxu0 0.0
  %6809 = vmatpush2.msra.mxu0 0.0
  %6810 = vmatprep.subr.mxu0 0.0
  %6811 = vmatpush2.msra.mxu0 0.0
  %6812 = vmatprep.subr.mxu0 0.0
  %6813 = vmatpush2.msra.mxu0 0.0
  %6814 = vmatprep.subr.mxu0 0.0
  %6815 = vmatpush2.msra.mxu0 0.0
  %6816 = vmatprep.subr.mxu0 0.0
  %6817 = vmatpush2.msra.mxu0 0.0
  %6818 = vmatprep.subr.mxu0 0.0
  %6819 = vmatpush2.msra.mxu0 0.0
  %6820 = vmatprep.subr.mxu0 0.0
  %6821 = vmatpush2.msra.mxu0 0.0
  %6822 = vmatprep.subr.mxu0 0.0
  %6823 = vmatpush2.msra.mxu0 0.0
  %6824 = vmatprep.subr.mxu0 0.0
  %6825 = vmatpush2.msra.mxu0 0.0
  %6826 = vmatprep.subr.mxu0 0.0
  %6827 = vmatpush2.msra.mxu0 0.0
  %6828 = vmatprep.subr.mxu0 0.0
  %6829 = vmatpush2.msra.mxu0 0.0
  %6830 = vmatprep.subr.mxu0 0.0
  %6831 = vmatpush2.msra.mxu0 0.0
  %6832 = vmatprep.subr.mxu0 0.0
  %6833 = vmatpush2.msra.mxu0 0.0
  %6834 = vmatprep.subr.mxu0 0.0
  %6835 = vmatpush2.msra.mxu0 0.0
  %6836 = vmatprep.subr.mxu0 0.0
  %6837 = vmatpush2.msra.mxu0 0.0
  %v6838 = vand.u32 %v24, 4294901760
  %6839 = vmatprep.mubr.f32.mxu0 %v6838
  %v6840 = vand.u32 %v23, 4294901760
  %6841 = vmatmul.mubr.f32.gmra.mxu0 %v6840
  %v6842 = vpop.f32.mrf.mxu0
  %v6843 = vadd.f32 %v6760, %v6842
  %v6844 = vpop.f32.mrf.mxu0
  %v6845 = vand.u32 %v33, 4294901760
  %6846 = vmatprep.mubr.f32.mxu0 %v6845
  %v6847 = vand.u32 %v32, 4294901760
  %6848 = vmatmul.mubr.f32.gmra.mxu0 %v6847
  %v6849 = vpop.f32.mrf.mxu0
  %v6850 = vadd.f32 %v6771, %v6849
  %v6851 = vpop.f32.mrf.mxu0
  %6852 = vdwg.mxu0
  %6853 = vmatprep.subr.mxu0 0.0
  %6854 = vmatpush1.msra.mxu0 1.0
  %6855 = vmatprep.subr.mxu0 0.0
  %6856 = vmatpush1.msra.mxu0 1.0
  %6857 = vmatprep.subr.mxu0 0.0
  %6858 = vmatpush1.msra.mxu0 1.0
  %6859 = vmatprep.subr.mxu0 0.0
  %6860 = vmatpush1.msra.mxu0 1.0
  %6861 = vmatprep.subr.mxu0 0.0
  %6862 = vmatpush1.msra.mxu0 1.0
  %6863 = vmatprep.subr.mxu0 0.0
  %6864 = vmatpush1.msra.mxu0 1.0
  %6865 = vmatprep.subr.mxu0 0.0
  %6866 = vmatpush1.msra.mxu0 1.0
  %6867 = vmatprep.subr.mxu0 0.0
  %6868 = vmatpush1.msra.mxu0 1.0
  %6869 = vmatprep.subr.mxu0 0.0
  %6870 = vmatpush1.msra.mxu0 1.0
  %6871 = vmatprep.subr.mxu0 0.0
  %6872 = vmatpush1.msra.mxu0 1.0
  %6873 = vmatprep.subr.mxu0 0.0
  %6874 = vmatpush1.msra.mxu0 1.0
  %6875 = vmatprep.subr.mxu0 0.0
  %6876 = vmatpush1.msra.mxu0 1.0
  %6877 = vmatprep.subr.mxu0 0.0
  %6878 = vmatpush1.msra.mxu0 1.0
  %6879 = vmatprep.subr.mxu0 0.0
  %6880 = vmatpush1.msra.mxu0 1.0
  %6881 = vmatprep.subr.mxu0 0.0
  %6882 = vmatpush1.msra.mxu0 1.0
  %6883 = vmatprep.subr.mxu0 0.0
  %6884 = vmatpush1.msra.mxu0 1.0
  %6885 = vmatprep.subr.mxu0 0.0
  %6886 = vmatpush2.msra.mxu0 1.0
  %6887 = vmatprep.subr.mxu0 0.0
  %6888 = vmatpush2.msra.mxu0 1.0
  %6889 = vmatprep.subr.mxu0 0.0
  %6890 = vmatpush2.msra.mxu0 1.0
  %6891 = vmatprep.subr.mxu0 0.0
  %6892 = vmatpush2.msra.mxu0 1.0
  %6893 = vmatprep.subr.mxu0 0.0
  %6894 = vmatpush2.msra.mxu0 1.0
  %6895 = vmatprep.subr.mxu0 0.0
  %6896 = vmatpush2.msra.mxu0 1.0
  %6897 = vmatprep.subr.mxu0 0.0
  %6898 = vmatpush2.msra.mxu0 1.0
  %6899 = vmatprep.subr.mxu0 0.0
  %6900 = vmatpush2.msra.mxu0 1.0
  %6901 = vmatprep.subr.mxu0 0.0
  %6902 = vmatpush2.msra.mxu0 1.0
  %6903 = vmatprep.subr.mxu0 0.0
  %6904 = vmatpush2.msra.mxu0 1.0
  %6905 = vmatprep.subr.mxu0 0.0
  %6906 = vmatpush2.msra.mxu0 1.0
  %6907 = vmatprep.subr.mxu0 0.0
  %6908 = vmatpush2.msra.mxu0 1.0
  %6909 = vmatprep.subr.mxu0 0.0
  %6910 = vmatpush2.msra.mxu0 1.0
  %6911 = vmatprep.subr.mxu0 0.0
  %6912 = vmatpush2.msra.mxu0 1.0
  %6913 = vmatprep.subr.mxu0 0.0
  %6914 = vmatpush2.msra.mxu0 1.0
  %6915 = vmatprep.subr.mxu0 0.0
  %6916 = vmatpush2.msra.mxu0 1.0
  %v6917 = vand.u32 %v24, 4294901760
  %6918 = vmatprep.mubr.f32.mxu0 %v6917
  %v6919 = vand.u32 %v23, 4294901760
  %6920 = vmatmul.mubr.f32.gmra.mxu0 %v6919
  %v6921 = vpop.f32.mrf.mxu0
  %v6922 = vadd.f32 %v6843, %v6921
  %v6923 = vpop.f32.mrf.mxu0
  %v6924 = vand.u32 %v33, 4294901760
  %6925 = vmatprep.mubr.f32.mxu0 %v6924
  %v6926 = vand.u32 %v32, 4294901760
  %6927 = vmatmul.mubr.f32.gmra.mxu0 %v6926
  %v6928 = vpop.f32.mrf.mxu0
  %v6929 = vadd.f32 %v6850, %v6928
  %v6930 = vpop.f32.mrf.mxu0
  %6931 = vdwg.mxu0
  %6932 = vmatprep.subr.mxu0 0.0
  %6933 = vmatpush1.msra.mxu0 1.0
  %6934 = vmatprep.subr.mxu0 0.0
  %6935 = vmatpush1.msra.mxu0 1.0
  %6936 = vmatprep.subr.mxu0 0.0
  %6937 = vmatpush1.msra.mxu0 1.0
  %6938 = vmatprep.subr.mxu0 0.0
  %6939 = vmatpush1.msra.mxu0 1.0
  %6940 = vmatprep.subr.mxu0 0.0
  %6941 = vmatpush1.msra.mxu0 1.0
  %6942 = vmatprep.subr.mxu0 0.0
  %6943 = vmatpush1.msra.mxu0 1.0
  %6944 = vmatprep.subr.mxu0 0.0
  %6945 = vmatpush1.msra.mxu0 1.0
  %6946 = vmatprep.subr.mxu0 0.0
  %6947 = vmatpush1.msra.mxu0 1.0
  %6948 = vmatprep.subr.mxu0 0.0
  %6949 = vmatpush1.msra.mxu0 1.0
  %6950 = vmatprep.subr.mxu0 0.0
  %6951 = vmatpush1.msra.mxu0 1.0
  %6952 = vmatprep.subr.mxu0 0.0
  %6953 = vmatpush1.msra.mxu0 1.0
  %6954 = vmatprep.subr.mxu0 0.0
  %6955 = vmatpush1.msra.mxu0 1.0
  %6956 = vmatprep.subr.mxu0 0.0
  %6957 = vmatpush1.msra.mxu0 1.0
  %6958 = vmatprep.subr.mxu0 0.0
  %6959 = vmatpush1.msra.mxu0 1.0
  %6960 = vmatprep.subr.mxu0 0.0
  %6961 = vmatpush1.msra.mxu0 1.0
  %6962 = vmatprep.subr.mxu0 0.0
  %6963 = vmatpush1.msra.mxu0 1.0
  %6964 = vmatprep.subr.mxu0 0.0
  %6965 = vmatpush2.msra.mxu0 1.0
  %6966 = vmatprep.subr.mxu0 0.0
  %6967 = vmatpush2.msra.mxu0 1.0
  %6968 = vmatprep.subr.mxu0 0.0
  %6969 = vmatpush2.msra.mxu0 1.0
  %6970 = vmatprep.subr.mxu0 0.0
  %6971 = vmatpush2.msra.mxu0 1.0
  %6972 = vmatprep.subr.mxu0 0.0
  %6973 = vmatpush2.msra.mxu0 1.0
  %6974 = vmatprep.subr.mxu0 0.0
  %6975 = vmatpush2.msra.mxu0 1.0
  %6976 = vmatprep.subr.mxu0 0.0
  %6977 = vmatpush2.msra.mxu0 1.0
  %6978 = vmatprep.subr.mxu0 0.0
  %6979 = vmatpush2.msra.mxu0 1.0
  %6980 = vmatprep.subr.mxu0 0.0
  %6981 = vmatpush2.msra.mxu0 1.0
  %6982 = vmatprep.subr.mxu0 0.0
  %6983 = vmatpush2.msra.mxu0 1.0
  %6984 = vmatprep.subr.mxu0 0.0
  %6985 = vmatpush2.msra.mxu0 1.0
  %6986 = vmatprep.subr.mxu0 0.0
  %6987 = vmatpush2.msra.mxu0 1.0
  %6988 = vmatprep.subr.mxu0 0.0
  %6989 = vmatpush2.msra.mxu0 1.0
  %6990 = vmatprep.subr.mxu0 0.0
  %6991 = vmatpush2.msra.mxu0 1.0
  %6992 = vmatprep.subr.mxu0 0.0
  %6993 = vmatpush2.msra.mxu0 1.0
  %6994 = vmatprep.subr.mxu0 0.0
  %6995 = vmatpush2.msra.mxu0 1.0
  %v6996 = vand.u32 %v26, 4294901760
  %v6997 = vsub.f32 %v26, %v6996
  %v6998 = vand.u32 %v6997, 4294901760
  %v6999 = vsub.f32 %v6997, %v6998
  %v7000 = vand.u32 %v6999, 4294901760
  %7001 = vmatprep.mubr.f32.mxu0 %v7000
  %v7002 = vand.u32 %v25, 4294901760
  %v7003 = vsub.f32 %v25, %v7002
  %v7004 = vand.u32 %v7003, 4294901760
  %v7005 = vsub.f32 %v7003, %v7004
  %v7006 = vand.u32 %v7005, 4294901760
  %7007 = vmatmul.mubr.f32.gmra.mxu0 %v7006
  %v7008 = vpop.f32.mrf.mxu0
  %v7009 = vadd.f32 %v6922, %v7008
  %v7010 = vpop.f32.mrf.mxu0
  %v7011 = vand.u32 %v35, 4294901760
  %v7012 = vsub.f32 %v35, %v7011
  %v7013 = vand.u32 %v7012, 4294901760
  %v7014 = vsub.f32 %v7012, %v7013
  %v7015 = vand.u32 %v7014, 4294901760
  %7016 = vmatprep.mubr.f32.mxu0 %v7015
  %v7017 = vand.u32 %v34, 4294901760
  %v7018 = vsub.f32 %v34, %v7017
  %v7019 = vand.u32 %v7018, 4294901760
  %v7020 = vsub.f32 %v7018, %v7019
  %v7021 = vand.u32 %v7020, 4294901760
  %7022 = vmatmul.mubr.f32.gmra.mxu0 %v7021
  %v7023 = vpop.f32.mrf.mxu0
  %v7024 = vadd.f32 %v6929, %v7023
  %v7025 = vpop.f32.mrf.mxu0
  %7026 = vdwg.mxu0
  %7027 = vmatprep.subr.mxu0 0.0
  %7028 = vmatpush1.msra.mxu0 0.0
  %7029 = vmatprep.subr.mxu0 0.0
  %7030 = vmatpush1.msra.mxu0 0.0
  %7031 = vmatprep.subr.mxu0 0.0
  %7032 = vmatpush1.msra.mxu0 0.0
  %7033 = vmatprep.subr.mxu0 0.0
  %7034 = vmatpush1.msra.mxu0 0.0
  %7035 = vmatprep.subr.mxu0 0.0
  %7036 = vmatpush1.msra.mxu0 0.0
  %7037 = vmatprep.subr.mxu0 0.0
  %7038 = vmatpush1.msra.mxu0 0.0
  %7039 = vmatprep.subr.mxu0 0.0
  %7040 = vmatpush1.msra.mxu0 0.0
  %7041 = vmatprep.subr.mxu0 0.0
  %7042 = vmatpush1.msra.mxu0 0.0
  %7043 = vmatprep.subr.mxu0 0.0
  %7044 = vmatpush1.msra.mxu0 0.0
  %7045 = vmatprep.subr.mxu0 0.0
  %7046 = vmatpush1.msra.mxu0 0.0
  %7047 = vmatprep.subr.mxu0 0.0
  %7048 = vmatpush1.msra.mxu0 0.0
  %7049 = vmatprep.subr.mxu0 0.0
  %7050 = vmatpush1.msra.mxu0 0.0
  %7051 = vmatprep.subr.mxu0 0.0
  %7052 = vmatpush1.msra.mxu0 0.0
  %7053 = vmatprep.subr.mxu0 0.0
  %7054 = vmatpush1.msra.mxu0 0.0
  %7055 = vmatprep.subr.mxu0 0.0
  %7056 = vmatpush1.msra.mxu0 0.0
  %7057 = vmatprep.subr.mxu0 0.0
  %7058 = vmatpush1.msra.mxu0 0.0
  %7059 = vmatprep.subr.mxu0 0.0
  %7060 = vmatpush2.msra.mxu0 0.0
  %7061 = vmatprep.subr.mxu0 0.0
  %7062 = vmatpush2.msra.mxu0 0.0
  %7063 = vmatprep.subr.mxu0 0.0
  %7064 = vmatpush2.msra.mxu0 0.0
  %7065 = vmatprep.subr.mxu0 0.0
  %7066 = vmatpush2.msra.mxu0 0.0
  %7067 = vmatprep.subr.mxu0 0.0
  %7068 = vmatpush2.msra.mxu0 0.0
  %7069 = vmatprep.subr.mxu0 0.0
  %7070 = vmatpush2.msra.mxu0 0.0
  %7071 = vmatprep.subr.mxu0 0.0
  %7072 = vmatpush2.msra.mxu0 0.0
  %7073 = vmatprep.subr.mxu0 0.0
  %7074 = vmatpush2.msra.mxu0 0.0
  %7075 = vmatprep.subr.mxu0 0.0
  %7076 = vmatpush2.msra.mxu0 0.0
  %7077 = vmatprep.subr.mxu0 0.0
  %7078 = vmatpush2.msra.mxu0 0.0
  %7079 = vmatprep.subr.mxu0 0.0
  %7080 = vmatpush2.msra.mxu0 0.0
  %7081 = vmatprep.subr.mxu0 0.0
  %7082 = vmatpush2.msra.mxu0 0.0
  %7083 = vmatprep.subr.mxu0 0.0
  %7084 = vmatpush2.msra.mxu0 0.0
  %7085 = vmatprep.subr.mxu0 0.0
  %7086 = vmatpush2.msra.mxu0 0.0
  %7087 = vmatprep.subr.mxu0 0.0
  %7088 = vmatpush2.msra.mxu0 0.0
  %7089 = vmatprep.subr.mxu0 0.0
  %7090 = vmatpush2.msra.mxu0 0.0
  %v7091 = vand.u32 %v26, 4294901760
  %7092 = vmatprep.mubr.f32.mxu0 %v7091
  %v7093 = vand.u32 %v25, 4294901760
  %7094 = vmatmul.mubr.f32.gmra.mxu0 %v7093
  %v7095 = vpop.f32.mrf.mxu0
  %v7096 = vadd.f32 %v7009, %v7095
  %v7097 = vpop.f32.mrf.mxu0
  %v7098 = vand.u32 %v35, 4294901760
  %7099 = vmatprep.mubr.f32.mxu0 %v7098
  %v7100 = vand.u32 %v34, 4294901760
  %7101 = vmatmul.mubr.f32.gmra.mxu0 %v7100
  %v7102 = vpop.f32.mrf.mxu0
  %v7103 = vadd.f32 %v7024, %v7102
  %v7104 = vpop.f32.mrf.mxu0
  %7105 = vdwg.mxu0
  %7106 = vmatprep.subr.mxu0 0.0
  %7107 = vmatpush1.msra.mxu0 0.0
  %7108 = vmatprep.subr.mxu0 0.0
  %7109 = vmatpush1.msra.mxu0 0.0
  %7110 = vmatprep.subr.mxu0 0.0
  %7111 = vmatpush1.msra.mxu0 0.0
  %7112 = vmatprep.subr.mxu0 0.0
  %7113 = vmatpush1.msra.mxu0 0.0
  %7114 = vmatprep.subr.mxu0 0.0
  %7115 = vmatpush1.msra.mxu0 0.0
  %7116 = vmatprep.subr.mxu0 0.0
  %7117 = vmatpush1.msra.mxu0 0.0
  %7118 = vmatprep.subr.mxu0 0.0
  %7119 = vmatpush1.msra.mxu0 0.0
  %7120 = vmatprep.subr.mxu0 0.0
  %7121 = vmatpush1.msra.mxu0 0.0
  %7122 = vmatprep.subr.mxu0 0.0
  %7123 = vmatpush1.msra.mxu0 0.0
  %7124 = vmatprep.subr.mxu0 0.0
  %7125 = vmatpush1.msra.mxu0 0.0
  %7126 = vmatprep.subr.mxu0 0.0
  %7127 = vmatpush1.msra.mxu0 0.0
  %7128 = vmatprep.subr.mxu0 0.0
  %7129 = vmatpush1.msra.mxu0 0.0
  %7130 = vmatprep.subr.mxu0 0.0
  %7131 = vmatpush1.msra.mxu0 0.0
  %7132 = vmatprep.subr.mxu0 0.0
  %7133 = vmatpush1.msra.mxu0 0.0
  %7134 = vmatprep.subr.mxu0 0.0
  %7135 = vmatpush1.msra.mxu0 0.0
  %7136 = vmatprep.subr.mxu0 0.0
  %7137 = vmatpush1.msra.mxu0 0.0
  %7138 = vmatprep.subr.mxu0 0.0
  %7139 = vmatpush2.msra.mxu0 0.0
  %7140 = vmatprep.subr.mxu0 0.0
  %7141 = vmatpush2.msra.mxu0 0.0
  %7142 = vmatprep.subr.mxu0 0.0
  %7143 = vmatpush2.msra.mxu0 0.0
  %7144 = vmatprep.subr.mxu0 0.0
  %7145 = vmatpush2.msra.mxu0 0.0
  %7146 = vmatprep.subr.mxu0 0.0
  %7147 = vmatpush2.msra.mxu0 0.0
  %7148 = vmatprep.subr.mxu0 0.0
  %7149 = vmatpush2.msra.mxu0 0.0
  %7150 = vmatprep.subr.mxu0 0.0
  %7151 = vmatpush2.msra.mxu0 0.0
  %7152 = vmatprep.subr.mxu0 0.0
  %7153 = vmatpush2.msra.mxu0 0.0
  %7154 = vmatprep.subr.mxu0 0.0
  %7155 = vmatpush2.msra.mxu0 0.0
  %7156 = vmatprep.subr.mxu0 0.0
  %7157 = vmatpush2.msra.mxu0 0.0
  %7158 = vmatprep.subr.mxu0 0.0
  %7159 = vmatpush2.msra.mxu0 0.0
  %7160 = vmatprep.subr.mxu0 0.0
  %7161 = vmatpush2.msra.mxu0 0.0
  %7162 = vmatprep.subr.mxu0 0.0
  %7163 = vmatpush2.msra.mxu0 0.0
  %7164 = vmatprep.subr.mxu0 0.0
  %7165 = vmatpush2.msra.mxu0 0.0
  %7166 = vmatprep.subr.mxu0 0.0
  %7167 = vmatpush2.msra.mxu0 0.0
  %7168 = vmatprep.subr.mxu0 0.0
  %7169 = vmatpush2.msra.mxu0 0.0
  %v7170 = vand.u32 %v26, 4294901760
  %v7171 = vsub.f32 %v26, %v7170
  %7172 = vmatprep.mubr.f32.mxu0 %v7171
  %v7173 = vand.u32 %v25, 4294901760
  %v7174 = vsub.f32 %v25, %v7173
  %7175 = vmatmul.mubr.f32.gmra.mxu0 %v7174
  %v7176 = vpop.f32.mrf.mxu0
  %v7177 = vadd.f32 %v7096, %v7176
  %v7178 = vpop.f32.mrf.mxu0
  %v7179 = vand.u32 %v35, 4294901760
  %v7180 = vsub.f32 %v35, %v7179
  %7181 = vmatprep.mubr.f32.mxu0 %v7180
  %v7182 = vand.u32 %v34, 4294901760
  %v7183 = vsub.f32 %v34, %v7182
  %7184 = vmatmul.mubr.f32.gmra.mxu0 %v7183
  %v7185 = vpop.f32.mrf.mxu0
  %v7186 = vadd.f32 %v7103, %v7185
  %v7187 = vpop.f32.mrf.mxu0
  %7188 = vdwg.mxu0
  %7189 = vmatprep.subr.mxu0 0.0
  %7190 = vmatpush1.msra.mxu0 1.0
  %7191 = vmatprep.subr.mxu0 0.0
  %7192 = vmatpush1.msra.mxu0 1.0
  %7193 = vmatprep.subr.mxu0 0.0
  %7194 = vmatpush1.msra.mxu0 1.0
  %7195 = vmatprep.subr.mxu0 0.0
  %7196 = vmatpush1.msra.mxu0 1.0
  %7197 = vmatprep.subr.mxu0 0.0
  %7198 = vmatpush1.msra.mxu0 1.0
  %7199 = vmatprep.subr.mxu0 0.0
  %7200 = vmatpush1.msra.mxu0 1.0
  %7201 = vmatprep.subr.mxu0 0.0
  %7202 = vmatpush1.msra.mxu0 1.0
  %7203 = vmatprep.subr.mxu0 0.0
  %7204 = vmatpush1.msra.mxu0 1.0
  %7205 = vmatprep.subr.mxu0 0.0
  %7206 = vmatpush1.msra.mxu0 1.0
  %7207 = vmatprep.subr.mxu0 0.0
  %7208 = vmatpush1.msra.mxu0 1.0
  %7209 = vmatprep.subr.mxu0 0.0
  %7210 = vmatpush1.msra.mxu0 1.0
  %7211 = vmatprep.subr.mxu0 0.0
  %7212 = vmatpush1.msra.mxu0 1.0
  %7213 = vmatprep.subr.mxu0 0.0
  %7214 = vmatpush1.msra.mxu0 1.0
  %7215 = vmatprep.subr.mxu0 0.0
  %7216 = vmatpush1.msra.mxu0 1.0
  %7217 = vmatprep.subr.mxu0 0.0
  %7218 = vmatpush1.msra.mxu0 1.0
  %7219 = vmatprep.subr.mxu0 0.0
  %7220 = vmatpush1.msra.mxu0 1.0
  %7221 = vmatprep.subr.mxu0 0.0
  %7222 = vmatpush2.msra.mxu0 1.0
  %7223 = vmatprep.subr.mxu0 0.0
  %7224 = vmatpush2.msra.mxu0 1.0
  %7225 = vmatprep.subr.mxu0 0.0
  %7226 = vmatpush2.msra.mxu0 1.0
  %7227 = vmatprep.subr.mxu0 0.0
  %7228 = vmatpush2.msra.mxu0 1.0
  %7229 = vmatprep.subr.mxu0 0.0
  %7230 = vmatpush2.msra.mxu0 1.0
  %7231 = vmatprep.subr.mxu0 0.0
  %7232 = vmatpush2.msra.mxu0 1.0
  %7233 = vmatprep.subr.mxu0 0.0
  %7234 = vmatpush2.msra.mxu0 1.0
  %7235 = vmatprep.subr.mxu0 0.0
  %7236 = vmatpush2.msra.mxu0 1.0
  %7237 = vmatprep.subr.mxu0 0.0
  %7238 = vmatpush2.msra.mxu0 1.0
  %7239 = vmatprep.subr.mxu0 0.0
  %7240 = vmatpush2.msra.mxu0 1.0
  %7241 = vmatprep.subr.mxu0 0.0
  %7242 = vmatpush2.msra.mxu0 1.0
  %7243 = vmatprep.subr.mxu0 0.0
  %7244 = vmatpush2.msra.mxu0 1.0
  %7245 = vmatprep.subr.mxu0 0.0
  %7246 = vmatpush2.msra.mxu0 1.0
  %7247 = vmatprep.subr.mxu0 0.0
  %7248 = vmatpush2.msra.mxu0 1.0
  %7249 = vmatprep.subr.mxu0 0.0
  %7250 = vmatpush2.msra.mxu0 1.0
  %7251 = vmatprep.subr.mxu0 0.0
  %7252 = vmatpush2.msra.mxu0 1.0
  %v7253 = vand.u32 %v26, 4294901760
  %v7254 = vsub.f32 %v26, %v7253
  %v7255 = vand.u32 %v7254, 4294901760
  %7256 = vmatprep.mubr.f32.mxu0 %v7255
  %v7257 = vand.u32 %v25, 4294901760
  %v7258 = vsub.f32 %v25, %v7257
  %v7259 = vand.u32 %v7258, 4294901760
  %7260 = vmatmul.mubr.f32.gmra.mxu0 %v7259
  %v7261 = vpop.f32.mrf.mxu0
  %v7262 = vadd.f32 %v7177, %v7261
  %v7263 = vpop.f32.mrf.mxu0
  %v7264 = vand.u32 %v35, 4294901760
  %v7265 = vsub.f32 %v35, %v7264
  %v7266 = vand.u32 %v7265, 4294901760
  %7267 = vmatprep.mubr.f32.mxu0 %v7266
  %v7268 = vand.u32 %v34, 4294901760
  %v7269 = vsub.f32 %v34, %v7268
  %v7270 = vand.u32 %v7269, 4294901760
  %7271 = vmatmul.mubr.f32.gmra.mxu0 %v7270
  %v7272 = vpop.f32.mrf.mxu0
  %v7273 = vadd.f32 %v7186, %v7272
  %v7274 = vpop.f32.mrf.mxu0
  %7275 = vdwg.mxu0
  %7276 = vmatprep.subr.mxu0 0.0
  %7277 = vmatpush1.msra.mxu0 0.0
  %7278 = vmatprep.subr.mxu0 0.0
  %7279 = vmatpush1.msra.mxu0 0.0
  %7280 = vmatprep.subr.mxu0 0.0
  %7281 = vmatpush1.msra.mxu0 0.0
  %7282 = vmatprep.subr.mxu0 0.0
  %7283 = vmatpush1.msra.mxu0 0.0
  %7284 = vmatprep.subr.mxu0 0.0
  %7285 = vmatpush1.msra.mxu0 0.0
  %7286 = vmatprep.subr.mxu0 0.0
  %7287 = vmatpush1.msra.mxu0 0.0
  %7288 = vmatprep.subr.mxu0 0.0
  %7289 = vmatpush1.msra.mxu0 0.0
  %7290 = vmatprep.subr.mxu0 0.0
  %7291 = vmatpush1.msra.mxu0 0.0
  %7292 = vmatprep.subr.mxu0 0.0
  %7293 = vmatpush1.msra.mxu0 0.0
  %7294 = vmatprep.subr.mxu0 0.0
  %7295 = vmatpush1.msra.mxu0 0.0
  %7296 = vmatprep.subr.mxu0 0.0
  %7297 = vmatpush1.msra.mxu0 0.0
  %7298 = vmatprep.subr.mxu0 0.0
  %7299 = vmatpush1.msra.mxu0 0.0
  %7300 = vmatprep.subr.mxu0 0.0
  %7301 = vmatpush1.msra.mxu0 0.0
  %7302 = vmatprep.subr.mxu0 0.0
  %7303 = vmatpush1.msra.mxu0 0.0
  %7304 = vmatprep.subr.mxu0 0.0
  %7305 = vmatpush1.msra.mxu0 0.0
  %7306 = vmatprep.subr.mxu0 0.0
  %7307 = vmatpush1.msra.mxu0 0.0
  %7308 = vmatprep.subr.mxu0 0.0
  %7309 = vmatpush2.msra.mxu0 0.0
  %7310 = vmatprep.subr.mxu0 0.0
  %7311 = vmatpush2.msra.mxu0 0.0
  %7312 = vmatprep.subr.mxu0 0.0
  %7313 = vmatpush2.msra.mxu0 0.0
  %7314 = vmatprep.subr.mxu0 0.0
  %7315 = vmatpush2.msra.mxu0 0.0
  %7316 = vmatprep.subr.mxu0 0.0
  %7317 = vmatpush2.msra.mxu0 0.0
  %7318 = vmatprep.subr.mxu0 0.0
  %7319 = vmatpush2.msra.mxu0 0.0
  %7320 = vmatprep.subr.mxu0 0.0
  %7321 = vmatpush2.msra.mxu0 0.0
  %7322 = vmatprep.subr.mxu0 0.0
  %7323 = vmatpush2.msra.mxu0 0.0
  %7324 = vmatprep.subr.mxu0 0.0
  %7325 = vmatpush2.msra.mxu0 0.0
  %7326 = vmatprep.subr.mxu0 0.0
  %7327 = vmatpush2.msra.mxu0 0.0
  %7328 = vmatprep.subr.mxu0 0.0
  %7329 = vmatpush2.msra.mxu0 0.0
  %7330 = vmatprep.subr.mxu0 0.0
  %7331 = vmatpush2.msra.mxu0 0.0
  %7332 = vmatprep.subr.mxu0 0.0
  %7333 = vmatpush2.msra.mxu0 0.0
  %7334 = vmatprep.subr.mxu0 0.0
  %7335 = vmatpush2.msra.mxu0 0.0
  %7336 = vmatprep.subr.mxu0 0.0
  %7337 = vmatpush2.msra.mxu0 0.0
  %7338 = vmatprep.subr.mxu0 0.0
  %7339 = vmatpush2.msra.mxu0 0.0
  %v7340 = vand.u32 %v26, 4294901760
  %7341 = vmatprep.mubr.f32.mxu0 %v7340
  %v7342 = vand.u32 %v25, 4294901760
  %7343 = vmatmul.mubr.f32.gmra.mxu0 %v7342
  %v7344 = vpop.f32.mrf.mxu0
  %v7345 = vadd.f32 %v7262, %v7344
  %v7346 = vpop.f32.mrf.mxu0
  %v7347 = vand.u32 %v35, 4294901760
  %7348 = vmatprep.mubr.f32.mxu0 %v7347
  %v7349 = vand.u32 %v34, 4294901760
  %7350 = vmatmul.mubr.f32.gmra.mxu0 %v7349
  %v7351 = vpop.f32.mrf.mxu0
  %v7352 = vadd.f32 %v7273, %v7351
  %v7353 = vpop.f32.mrf.mxu0
  %7354 = vdwg.mxu0
  %7355 = vmatprep.subr.mxu0 0.0
  %7356 = vmatpush1.msra.mxu0 1.0
  %7357 = vmatprep.subr.mxu0 0.0
  %7358 = vmatpush1.msra.mxu0 1.0
  %7359 = vmatprep.subr.mxu0 0.0
  %7360 = vmatpush1.msra.mxu0 1.0
  %7361 = vmatprep.subr.mxu0 0.0
  %7362 = vmatpush1.msra.mxu0 1.0
  %7363 = vmatprep.subr.mxu0 0.0
  %7364 = vmatpush1.msra.mxu0 1.0
  %7365 = vmatprep.subr.mxu0 0.0
  %7366 = vmatpush1.msra.mxu0 1.0
  %7367 = vmatprep.subr.mxu0 0.0
  %7368 = vmatpush1.msra.mxu0 1.0
  %7369 = vmatprep.subr.mxu0 0.0
  %7370 = vmatpush1.msra.mxu0 1.0
  %7371 = vmatprep.subr.mxu0 0.0
  %7372 = vmatpush1.msra.mxu0 1.0
  %7373 = vmatprep.subr.mxu0 0.0
  %7374 = vmatpush1.msra.mxu0 1.0
  %7375 = vmatprep.subr.mxu0 0.0
  %7376 = vmatpush1.msra.mxu0 1.0
  %7377 = vmatprep.subr.mxu0 0.0
  %7378 = vmatpush1.msra.mxu0 1.0
  %7379 = vmatprep.subr.mxu0 0.0
  %7380 = vmatpush1.msra.mxu0 1.0
  %7381 = vmatprep.subr.mxu0 0.0
  %7382 = vmatpush1.msra.mxu0 1.0
  %7383 = vmatprep.subr.mxu0 0.0
  %7384 = vmatpush1.msra.mxu0 1.0
  %7385 = vmatprep.subr.mxu0 0.0
  %7386 = vmatpush1.msra.mxu0 1.0
  %7387 = vmatprep.subr.mxu0 0.0
  %7388 = vmatpush2.msra.mxu0 1.0
  %7389 = vmatprep.subr.mxu0 0.0
  %7390 = vmatpush2.msra.mxu0 1.0
  %7391 = vmatprep.subr.mxu0 0.0
  %7392 = vmatpush2.msra.mxu0 1.0
  %7393 = vmatprep.subr.mxu0 0.0
  %7394 = vmatpush2.msra.mxu0 1.0
  %7395 = vmatprep.subr.mxu0 0.0
  %7396 = vmatpush2.msra.mxu0 1.0
  %7397 = vmatprep.subr.mxu0 0.0
  %7398 = vmatpush2.msra.mxu0 1.0
  %7399 = vmatprep.subr.mxu0 0.0
  %7400 = vmatpush2.msra.mxu0 1.0
  %7401 = vmatprep.subr.mxu0 0.0
  %7402 = vmatpush2.msra.mxu0 1.0
  %7403 = vmatprep.subr.mxu0 0.0
  %7404 = vmatpush2.msra.mxu0 1.0
  %7405 = vmatprep.subr.mxu0 0.0
  %7406 = vmatpush2.msra.mxu0 1.0
  %7407 = vmatprep.subr.mxu0 0.0
  %7408 = vmatpush2.msra.mxu0 1.0
  %7409 = vmatprep.subr.mxu0 0.0
  %7410 = vmatpush2.msra.mxu0 1.0
  %7411 = vmatprep.subr.mxu0 0.0
  %7412 = vmatpush2.msra.mxu0 1.0
  %7413 = vmatprep.subr.mxu0 0.0
  %7414 = vmatpush2.msra.mxu0 1.0
  %7415 = vmatprep.subr.mxu0 0.0
  %7416 = vmatpush2.msra.mxu0 1.0
  %7417 = vmatprep.subr.mxu0 0.0
  %7418 = vmatpush2.msra.mxu0 1.0
  %v7419 = vand.u32 %v26, 4294901760
  %7420 = vmatprep.mubr.f32.mxu0 %v7419
  %v7421 = vand.u32 %v25, 4294901760
  %7422 = vmatmul.mubr.f32.gmra.mxu0 %v7421
  %v7423 = vpop.f32.mrf.mxu0
  %v7424 = vadd.f32 %v7345, %v7423
  %v7425 = vpop.f32.mrf.mxu0
  %v7426 = vand.u32 %v35, 4294901760
  %7427 = vmatprep.mubr.f32.mxu0 %v7426
  %v7428 = vand.u32 %v34, 4294901760
  %7429 = vmatmul.mubr.f32.gmra.mxu0 %v7428
  %v7430 = vpop.f32.mrf.mxu0
  %v7431 = vadd.f32 %v7352, %v7430
  %v7432 = vpop.f32.mrf.mxu0
  %7433 = vdwg.mxu0
  %7434 = vmatprep.subr.mxu0 0.0
  %7435 = vmatpush1.msra.mxu0 1.0
  %7436 = vmatprep.subr.mxu0 0.0
  %7437 = vmatpush1.msra.mxu0 1.0
  %7438 = vmatprep.subr.mxu0 0.0
  %7439 = vmatpush1.msra.mxu0 1.0
  %7440 = vmatprep.subr.mxu0 0.0
  %7441 = vmatpush1.msra.mxu0 1.0
  %7442 = vmatprep.subr.mxu0 0.0
  %7443 = vmatpush1.msra.mxu0 1.0
  %7444 = vmatprep.subr.mxu0 0.0
  %7445 = vmatpush1.msra.mxu0 1.0
  %7446 = vmatprep.subr.mxu0 0.0
  %7447 = vmatpush1.msra.mxu0 1.0
  %7448 = vmatprep.subr.mxu0 0.0
  %7449 = vmatpush1.msra.mxu0 1.0
  %7450 = vmatprep.subr.mxu0 0.0
  %7451 = vmatpush1.msra.mxu0 1.0
  %7452 = vmatprep.subr.mxu0 0.0
  %7453 = vmatpush1.msra.mxu0 1.0
  %7454 = vmatprep.subr.mxu0 0.0
  %7455 = vmatpush1.msra.mxu0 1.0
  %7456 = vmatprep.subr.mxu0 0.0
  %7457 = vmatpush1.msra.mxu0 1.0
  %7458 = vmatprep.subr.mxu0 0.0
  %7459 = vmatpush1.msra.mxu0 1.0
  %7460 = vmatprep.subr.mxu0 0.0
  %7461 = vmatpush1.msra.mxu0 1.0
  %7462 = vmatprep.subr.mxu0 0.0
  %7463 = vmatpush1.msra.mxu0 1.0
  %7464 = vmatprep.subr.mxu0 0.0
  %7465 = vmatpush1.msra.mxu0 1.0
  %7466 = vmatprep.subr.mxu0 0.0
  %7467 = vmatpush2.msra.mxu0 0.0
  %7468 = vmatprep.subr.mxu0 0.0
  %7469 = vmatpush2.msra.mxu0 0.0
  %7470 = vmatprep.subr.mxu0 0.0
  %7471 = vmatpush2.msra.mxu0 0.0
  %7472 = vmatprep.subr.mxu0 0.0
  %7473 = vmatpush2.msra.mxu0 0.0
  %7474 = vmatprep.subr.mxu0 0.0
  %7475 = vmatpush2.msra.mxu0 0.0
  %7476 = vmatprep.subr.mxu0 0.0
  %7477 = vmatpush2.msra.mxu0 0.0
  %7478 = vmatprep.subr.mxu0 0.0
  %7479 = vmatpush2.msra.mxu0 0.0
  %7480 = vmatprep.subr.mxu0 0.0
  %7481 = vmatpush2.msra.mxu0 0.0
  %7482 = vmatprep.subr.mxu0 0.0
  %7483 = vmatpush2.msra.mxu0 0.0
  %7484 = vmatprep.subr.mxu0 0.0
  %7485 = vmatpush2.msra.mxu0 0.0
  %7486 = vmatprep.subr.mxu0 0.0
  %7487 = vmatpush2.msra.mxu0 0.0
  %7488 = vmatprep.subr.mxu0 0.0
  %7489 = vmatpush2.msra.mxu0 0.0
  %7490 = vmatprep.subr.mxu0 0.0
  %7491 = vmatpush2.msra.mxu0 0.0
  %7492 = vmatprep.subr.mxu0 0.0
  %7493 = vmatpush2.msra.mxu0 0.0
  %7494 = vmatprep.subr.mxu0 0.0
  %7495 = vmatpush2.msra.mxu0 0.0
  %7496 = vmatprep.subr.mxu0 0.0
  %7497 = vmatpush2.msra.mxu0 0.0
  %7498 = vmatprep.mubr.f32.mxu0 0.0
  %v7499 = vand.u32 %v27, 4294901760
  %v7500 = vsub.f32 %v27, %v7499
  %v7501 = vand.u32 %v7500, 4294901760
  %v7502 = vsub.f32 %v7500, %v7501
  %v7503 = vand.u32 %v7502, 4294901760
  %7504 = vmatmul.mubr.f32.gmra.mxu0 %v7503
  %v7505 = vpop.f32.mrf.mxu0
  %v7506 = vadd.f32 %v7424, %v7505
  %v7507 = vpop.f32.mrf.mxu0
  %7508 = vmatprep.mubr.f32.mxu0 0.0
  %v7509 = vand.u32 %v36, 4294901760
  %v7510 = vsub.f32 %v36, %v7509
  %v7511 = vand.u32 %v7510, 4294901760
  %v7512 = vsub.f32 %v7510, %v7511
  %v7513 = vand.u32 %v7512, 4294901760
  %7514 = vmatmul.mubr.f32.gmra.mxu0 %v7513
  %v7515 = vpop.f32.mrf.mxu0
  %v7516 = vadd.f32 %v7431, %v7515
  %v7517 = vpop.f32.mrf.mxu0
  %7518 = vdwg.mxu0
  %7519 = vmatprep.subr.mxu0 0.0
  %7520 = vmatpush1.msra.mxu0 0.0
  %7521 = vmatprep.subr.mxu0 0.0
  %7522 = vmatpush1.msra.mxu0 0.0
  %7523 = vmatprep.subr.mxu0 0.0
  %7524 = vmatpush1.msra.mxu0 0.0
  %7525 = vmatprep.subr.mxu0 0.0
  %7526 = vmatpush1.msra.mxu0 0.0
  %7527 = vmatprep.subr.mxu0 0.0
  %7528 = vmatpush1.msra.mxu0 0.0
  %7529 = vmatprep.subr.mxu0 0.0
  %7530 = vmatpush1.msra.mxu0 0.0
  %7531 = vmatprep.subr.mxu0 0.0
  %7532 = vmatpush1.msra.mxu0 0.0
  %7533 = vmatprep.subr.mxu0 0.0
  %7534 = vmatpush1.msra.mxu0 0.0
  %7535 = vmatprep.subr.mxu0 0.0
  %7536 = vmatpush1.msra.mxu0 0.0
  %7537 = vmatprep.subr.mxu0 0.0
  %7538 = vmatpush1.msra.mxu0 0.0
  %7539 = vmatprep.subr.mxu0 0.0
  %7540 = vmatpush1.msra.mxu0 0.0
  %7541 = vmatprep.subr.mxu0 0.0
  %7542 = vmatpush1.msra.mxu0 0.0
  %7543 = vmatprep.subr.mxu0 0.0
  %7544 = vmatpush1.msra.mxu0 0.0
  %7545 = vmatprep.subr.mxu0 0.0
  %7546 = vmatpush1.msra.mxu0 0.0
  %7547 = vmatprep.subr.mxu0 0.0
  %7548 = vmatpush1.msra.mxu0 0.0
  %7549 = vmatprep.subr.mxu0 0.0
  %7550 = vmatpush1.msra.mxu0 0.0
  %7551 = vmatprep.subr.mxu0 0.0
  %7552 = vmatpush2.msra.mxu0 0.0
  %7553 = vmatprep.subr.mxu0 0.0
  %7554 = vmatpush2.msra.mxu0 0.0
  %7555 = vmatprep.subr.mxu0 0.0
  %7556 = vmatpush2.msra.mxu0 0.0
  %7557 = vmatprep.subr.mxu0 0.0
  %7558 = vmatpush2.msra.mxu0 0.0
  %7559 = vmatprep.subr.mxu0 0.0
  %7560 = vmatpush2.msra.mxu0 0.0
  %7561 = vmatprep.subr.mxu0 0.0
  %7562 = vmatpush2.msra.mxu0 0.0
  %7563 = vmatprep.subr.mxu0 0.0
  %7564 = vmatpush2.msra.mxu0 0.0
  %7565 = vmatprep.subr.mxu0 0.0
  %7566 = vmatpush2.msra.mxu0 0.0
  %7567 = vmatprep.subr.mxu0 0.0
  %7568 = vmatpush2.msra.mxu0 0.0
  %7569 = vmatprep.subr.mxu0 0.0
  %7570 = vmatpush2.msra.mxu0 0.0
  %7571 = vmatprep.subr.mxu0 0.0
  %7572 = vmatpush2.msra.mxu0 0.0
  %7573 = vmatprep.subr.mxu0 0.0
  %7574 = vmatpush2.msra.mxu0 0.0
  %7575 = vmatprep.subr.mxu0 0.0
  %7576 = vmatpush2.msra.mxu0 0.0
  %7577 = vmatprep.subr.mxu0 0.0
  %7578 = vmatpush2.msra.mxu0 0.0
  %7579 = vmatprep.subr.mxu0 0.0
  %7580 = vmatpush2.msra.mxu0 0.0
  %7581 = vmatprep.subr.mxu0 0.0
  %7582 = vmatpush2.msra.mxu0 0.0
  %7583 = vmatprep.mubr.f32.mxu0 0.0
  %v7584 = vand.u32 %v27, 4294901760
  %7585 = vmatmul.mubr.f32.gmra.mxu0 %v7584
  %v7586 = vpop.f32.mrf.mxu0
  %v7587 = vadd.f32 %v7506, %v7586
  %v7588 = vpop.f32.mrf.mxu0
  %7589 = vmatprep.mubr.f32.mxu0 0.0
  %v7590 = vand.u32 %v36, 4294901760
  %7591 = vmatmul.mubr.f32.gmra.mxu0 %v7590
  %v7592 = vpop.f32.mrf.mxu0
  %v7593 = vadd.f32 %v7516, %v7592
  %v7594 = vpop.f32.mrf.mxu0
  %7595 = vdwg.mxu0
  %7596 = vmatprep.subr.mxu0 0.0
  %7597 = vmatpush1.msra.mxu0 0.0
  %7598 = vmatprep.subr.mxu0 0.0
  %7599 = vmatpush1.msra.mxu0 0.0
  %7600 = vmatprep.subr.mxu0 0.0
  %7601 = vmatpush1.msra.mxu0 0.0
  %7602 = vmatprep.subr.mxu0 0.0
  %7603 = vmatpush1.msra.mxu0 0.0
  %7604 = vmatprep.subr.mxu0 0.0
  %7605 = vmatpush1.msra.mxu0 0.0
  %7606 = vmatprep.subr.mxu0 0.0
  %7607 = vmatpush1.msra.mxu0 0.0
  %7608 = vmatprep.subr.mxu0 0.0
  %7609 = vmatpush1.msra.mxu0 0.0
  %7610 = vmatprep.subr.mxu0 0.0
  %7611 = vmatpush1.msra.mxu0 0.0
  %7612 = vmatprep.subr.mxu0 0.0
  %7613 = vmatpush1.msra.mxu0 0.0
  %7614 = vmatprep.subr.mxu0 0.0
  %7615 = vmatpush1.msra.mxu0 0.0
  %7616 = vmatprep.subr.mxu0 0.0
  %7617 = vmatpush1.msra.mxu0 0.0
  %7618 = vmatprep.subr.mxu0 0.0
  %7619 = vmatpush1.msra.mxu0 0.0
  %7620 = vmatprep.subr.mxu0 0.0
  %7621 = vmatpush1.msra.mxu0 0.0
  %7622 = vmatprep.subr.mxu0 0.0
  %7623 = vmatpush1.msra.mxu0 0.0
  %7624 = vmatprep.subr.mxu0 0.0
  %7625 = vmatpush1.msra.mxu0 0.0
  %7626 = vmatprep.subr.mxu0 0.0
  %7627 = vmatpush1.msra.mxu0 0.0
  %7628 = vmatprep.subr.mxu0 0.0
  %7629 = vmatpush2.msra.mxu0 0.0
  %7630 = vmatprep.subr.mxu0 0.0
  %7631 = vmatpush2.msra.mxu0 0.0
  %7632 = vmatprep.subr.mxu0 0.0
  %7633 = vmatpush2.msra.mxu0 0.0
  %7634 = vmatprep.subr.mxu0 0.0
  %7635 = vmatpush2.msra.mxu0 0.0
  %7636 = vmatprep.subr.mxu0 0.0
  %7637 = vmatpush2.msra.mxu0 0.0
  %7638 = vmatprep.subr.mxu0 0.0
  %7639 = vmatpush2.msra.mxu0 0.0
  %7640 = vmatprep.subr.mxu0 0.0
  %7641 = vmatpush2.msra.mxu0 0.0
  %7642 = vmatprep.subr.mxu0 0.0
  %7643 = vmatpush2.msra.mxu0 0.0
  %7644 = vmatprep.subr.mxu0 0.0
  %7645 = vmatpush2.msra.mxu0 0.0
  %7646 = vmatprep.subr.mxu0 0.0
  %7647 = vmatpush2.msra.mxu0 0.0
  %7648 = vmatprep.subr.mxu0 0.0
  %7649 = vmatpush2.msra.mxu0 0.0
  %7650 = vmatprep.subr.mxu0 0.0
  %7651 = vmatpush2.msra.mxu0 0.0
  %7652 = vmatprep.subr.mxu0 0.0
  %7653 = vmatpush2.msra.mxu0 0.0
  %7654 = vmatprep.subr.mxu0 0.0
  %7655 = vmatpush2.msra.mxu0 0.0
  %7656 = vmatprep.subr.mxu0 0.0
  %7657 = vmatpush2.msra.mxu0 0.0
  %7658 = vmatprep.subr.mxu0 0.0
  %7659 = vmatpush2.msra.mxu0 0.0
  %7660 = vmatprep.mubr.f32.mxu0 0.0
  %v7661 = vand.u32 %v27, 4294901760
  %v7662 = vsub.f32 %v27, %v7661
  %7663 = vmatmul.mubr.f32.gmra.mxu0 %v7662
  %v7664 = vpop.f32.mrf.mxu0
  %v7665 = vadd.f32 %v7587, %v7664
  %v7666 = vpop.f32.mrf.mxu0
  %7667 = vmatprep.mubr.f32.mxu0 0.0
  %v7668 = vand.u32 %v36, 4294901760
  %v7669 = vsub.f32 %v36, %v7668
  %7670 = vmatmul.mubr.f32.gmra.mxu0 %v7669
  %v7671 = vpop.f32.mrf.mxu0
  %v7672 = vadd.f32 %v7593, %v7671
  %v7673 = vpop.f32.mrf.mxu0
  %7674 = vdwg.mxu0
  %7675 = vmatprep.subr.mxu0 0.0
  %7676 = vmatpush1.msra.mxu0 1.0
  %7677 = vmatprep.subr.mxu0 0.0
  %7678 = vmatpush1.msra.mxu0 1.0
  %7679 = vmatprep.subr.mxu0 0.0
  %7680 = vmatpush1.msra.mxu0 1.0
  %7681 = vmatprep.subr.mxu0 0.0
  %7682 = vmatpush1.msra.mxu0 1.0
  %7683 = vmatprep.subr.mxu0 0.0
  %7684 = vmatpush1.msra.mxu0 1.0
  %7685 = vmatprep.subr.mxu0 0.0
  %7686 = vmatpush1.msra.mxu0 1.0
  %7687 = vmatprep.subr.mxu0 0.0
  %7688 = vmatpush1.msra.mxu0 1.0
  %7689 = vmatprep.subr.mxu0 0.0
  %7690 = vmatpush1.msra.mxu0 1.0
  %7691 = vmatprep.subr.mxu0 0.0
  %7692 = vmatpush1.msra.mxu0 1.0
  %7693 = vmatprep.subr.mxu0 0.0
  %7694 = vmatpush1.msra.mxu0 1.0
  %7695 = vmatprep.subr.mxu0 0.0
  %7696 = vmatpush1.msra.mxu0 1.0
  %7697 = vmatprep.subr.mxu0 0.0
  %7698 = vmatpush1.msra.mxu0 1.0
  %7699 = vmatprep.subr.mxu0 0.0
  %7700 = vmatpush1.msra.mxu0 1.0
  %7701 = vmatprep.subr.mxu0 0.0
  %7702 = vmatpush1.msra.mxu0 1.0
  %7703 = vmatprep.subr.mxu0 0.0
  %7704 = vmatpush1.msra.mxu0 1.0
  %7705 = vmatprep.subr.mxu0 0.0
  %7706 = vmatpush1.msra.mxu0 1.0
  %7707 = vmatprep.subr.mxu0 0.0
  %7708 = vmatpush2.msra.mxu0 0.0
  %7709 = vmatprep.subr.mxu0 0.0
  %7710 = vmatpush2.msra.mxu0 0.0
  %7711 = vmatprep.subr.mxu0 0.0
  %7712 = vmatpush2.msra.mxu0 0.0
  %7713 = vmatprep.subr.mxu0 0.0
  %7714 = vmatpush2.msra.mxu0 0.0
  %7715 = vmatprep.subr.mxu0 0.0
  %7716 = vmatpush2.msra.mxu0 0.0
  %7717 = vmatprep.subr.mxu0 0.0
  %7718 = vmatpush2.msra.mxu0 0.0
  %7719 = vmatprep.subr.mxu0 0.0
  %7720 = vmatpush2.msra.mxu0 0.0
  %7721 = vmatprep.subr.mxu0 0.0
  %7722 = vmatpush2.msra.mxu0 0.0
  %7723 = vmatprep.subr.mxu0 0.0
  %7724 = vmatpush2.msra.mxu0 0.0
  %7725 = vmatprep.subr.mxu0 0.0
  %7726 = vmatpush2.msra.mxu0 0.0
  %7727 = vmatprep.subr.mxu0 0.0
  %7728 = vmatpush2.msra.mxu0 0.0
  %7729 = vmatprep.subr.mxu0 0.0
  %7730 = vmatpush2.msra.mxu0 0.0
  %7731 = vmatprep.subr.mxu0 0.0
  %7732 = vmatpush2.msra.mxu0 0.0
  %7733 = vmatprep.subr.mxu0 0.0
  %7734 = vmatpush2.msra.mxu0 0.0
  %7735 = vmatprep.subr.mxu0 0.0
  %7736 = vmatpush2.msra.mxu0 0.0
  %7737 = vmatprep.subr.mxu0 0.0
  %7738 = vmatpush2.msra.mxu0 0.0
  %7739 = vmatprep.mubr.f32.mxu0 0.0
  %v7740 = vand.u32 %v27, 4294901760
  %v7741 = vsub.f32 %v27, %v7740
  %v7742 = vand.u32 %v7741, 4294901760
  %7743 = vmatmul.mubr.f32.gmra.mxu0 %v7742
  %v7744 = vpop.f32.mrf.mxu0
  %v7745 = vadd.f32 %v7665, %v7744
  %v7746 = vpop.f32.mrf.mxu0
  %7747 = vmatprep.mubr.f32.mxu0 0.0
  %v7748 = vand.u32 %v36, 4294901760
  %v7749 = vsub.f32 %v36, %v7748
  %v7750 = vand.u32 %v7749, 4294901760
  %7751 = vmatmul.mubr.f32.gmra.mxu0 %v7750
  %v7752 = vpop.f32.mrf.mxu0
  %v7753 = vadd.f32 %v7672, %v7752
  %v7754 = vpop.f32.mrf.mxu0
  %7755 = vdwg.mxu0
  %7756 = vmatprep.subr.mxu0 0.0
  %7757 = vmatpush1.msra.mxu0 0.0
  %7758 = vmatprep.subr.mxu0 0.0
  %7759 = vmatpush1.msra.mxu0 0.0
  %7760 = vmatprep.subr.mxu0 0.0
  %7761 = vmatpush1.msra.mxu0 0.0
  %7762 = vmatprep.subr.mxu0 0.0
  %7763 = vmatpush1.msra.mxu0 0.0
  %7764 = vmatprep.subr.mxu0 0.0
  %7765 = vmatpush1.msra.mxu0 0.0
  %7766 = vmatprep.subr.mxu0 0.0
  %7767 = vmatpush1.msra.mxu0 0.0
  %7768 = vmatprep.subr.mxu0 0.0
  %7769 = vmatpush1.msra.mxu0 0.0
  %7770 = vmatprep.subr.mxu0 0.0
  %7771 = vmatpush1.msra.mxu0 0.0
  %7772 = vmatprep.subr.mxu0 0.0
  %7773 = vmatpush1.msra.mxu0 0.0
  %7774 = vmatprep.subr.mxu0 0.0
  %7775 = vmatpush1.msra.mxu0 0.0
  %7776 = vmatprep.subr.mxu0 0.0
  %7777 = vmatpush1.msra.mxu0 0.0
  %7778 = vmatprep.subr.mxu0 0.0
  %7779 = vmatpush1.msra.mxu0 0.0
  %7780 = vmatprep.subr.mxu0 0.0
  %7781 = vmatpush1.msra.mxu0 0.0
  %7782 = vmatprep.subr.mxu0 0.0
  %7783 = vmatpush1.msra.mxu0 0.0
  %7784 = vmatprep.subr.mxu0 0.0
  %7785 = vmatpush1.msra.mxu0 0.0
  %7786 = vmatprep.subr.mxu0 0.0
  %7787 = vmatpush1.msra.mxu0 0.0
  %7788 = vmatprep.subr.mxu0 0.0
  %7789 = vmatpush2.msra.mxu0 0.0
  %7790 = vmatprep.subr.mxu0 0.0
  %7791 = vmatpush2.msra.mxu0 0.0
  %7792 = vmatprep.subr.mxu0 0.0
  %7793 = vmatpush2.msra.mxu0 0.0
  %7794 = vmatprep.subr.mxu0 0.0
  %7795 = vmatpush2.msra.mxu0 0.0
  %7796 = vmatprep.subr.mxu0 0.0
  %7797 = vmatpush2.msra.mxu0 0.0
  %7798 = vmatprep.subr.mxu0 0.0
  %7799 = vmatpush2.msra.mxu0 0.0
  %7800 = vmatprep.subr.mxu0 0.0
  %7801 = vmatpush2.msra.mxu0 0.0
  %7802 = vmatprep.subr.mxu0 0.0
  %7803 = vmatpush2.msra.mxu0 0.0
  %7804 = vmatprep.subr.mxu0 0.0
  %7805 = vmatpush2.msra.mxu0 0.0
  %7806 = vmatprep.subr.mxu0 0.0
  %7807 = vmatpush2.msra.mxu0 0.0
  %7808 = vmatprep.subr.mxu0 0.0
  %7809 = vmatpush2.msra.mxu0 0.0
  %7810 = vmatprep.subr.mxu0 0.0
  %7811 = vmatpush2.msra.mxu0 0.0
  %7812 = vmatprep.subr.mxu0 0.0
  %7813 = vmatpush2.msra.mxu0 0.0
  %7814 = vmatprep.subr.mxu0 0.0
  %7815 = vmatpush2.msra.mxu0 0.0
  %7816 = vmatprep.subr.mxu0 0.0
  %7817 = vmatpush2.msra.mxu0 0.0
  %7818 = vmatprep.subr.mxu0 0.0
  %7819 = vmatpush2.msra.mxu0 0.0
  %7820 = vmatprep.mubr.f32.mxu0 0.0
  %v7821 = vand.u32 %v27, 4294901760
  %7822 = vmatmul.mubr.f32.gmra.mxu0 %v7821
  %v7823 = vpop.f32.mrf.mxu0
  %v7824 = vadd.f32 %v7745, %v7823
  %v7825 = vpop.f32.mrf.mxu0
  %7826 = vmatprep.mubr.f32.mxu0 0.0
  %v7827 = vand.u32 %v36, 4294901760
  %7828 = vmatmul.mubr.f32.gmra.mxu0 %v7827
  %v7829 = vpop.f32.mrf.mxu0
  %v7830 = vadd.f32 %v7753, %v7829
  %v7831 = vpop.f32.mrf.mxu0
  %7832 = vdwg.mxu0
  %7833 = vmatprep.subr.mxu0 0.0
  %7834 = vmatpush1.msra.mxu0 1.0
  %7835 = vmatprep.subr.mxu0 0.0
  %7836 = vmatpush1.msra.mxu0 1.0
  %7837 = vmatprep.subr.mxu0 0.0
  %7838 = vmatpush1.msra.mxu0 1.0
  %7839 = vmatprep.subr.mxu0 0.0
  %7840 = vmatpush1.msra.mxu0 1.0
  %7841 = vmatprep.subr.mxu0 0.0
  %7842 = vmatpush1.msra.mxu0 1.0
  %7843 = vmatprep.subr.mxu0 0.0
  %7844 = vmatpush1.msra.mxu0 1.0
  %7845 = vmatprep.subr.mxu0 0.0
  %7846 = vmatpush1.msra.mxu0 1.0
  %7847 = vmatprep.subr.mxu0 0.0
  %7848 = vmatpush1.msra.mxu0 1.0
  %7849 = vmatprep.subr.mxu0 0.0
  %7850 = vmatpush1.msra.mxu0 1.0
  %7851 = vmatprep.subr.mxu0 0.0
  %7852 = vmatpush1.msra.mxu0 1.0
  %7853 = vmatprep.subr.mxu0 0.0
  %7854 = vmatpush1.msra.mxu0 1.0
  %7855 = vmatprep.subr.mxu0 0.0
  %7856 = vmatpush1.msra.mxu0 1.0
  %7857 = vmatprep.subr.mxu0 0.0
  %7858 = vmatpush1.msra.mxu0 1.0
  %7859 = vmatprep.subr.mxu0 0.0
  %7860 = vmatpush1.msra.mxu0 1.0
  %7861 = vmatprep.subr.mxu0 0.0
  %7862 = vmatpush1.msra.mxu0 1.0
  %7863 = vmatprep.subr.mxu0 0.0
  %7864 = vmatpush1.msra.mxu0 1.0
  %7865 = vmatprep.subr.mxu0 0.0
  %7866 = vmatpush2.msra.mxu0 0.0
  %7867 = vmatprep.subr.mxu0 0.0
  %7868 = vmatpush2.msra.mxu0 0.0
  %7869 = vmatprep.subr.mxu0 0.0
  %7870 = vmatpush2.msra.mxu0 0.0
  %7871 = vmatprep.subr.mxu0 0.0
  %7872 = vmatpush2.msra.mxu0 0.0
  %7873 = vmatprep.subr.mxu0 0.0
  %7874 = vmatpush2.msra.mxu0 0.0
  %7875 = vmatprep.subr.mxu0 0.0
  %7876 = vmatpush2.msra.mxu0 0.0
  %7877 = vmatprep.subr.mxu0 0.0
  %7878 = vmatpush2.msra.mxu0 0.0
  %7879 = vmatprep.subr.mxu0 0.0
  %7880 = vmatpush2.msra.mxu0 0.0
  %7881 = vmatprep.subr.mxu0 0.0
  %7882 = vmatpush2.msra.mxu0 0.0
  %7883 = vmatprep.subr.mxu0 0.0
  %7884 = vmatpush2.msra.mxu0 0.0
  %7885 = vmatprep.subr.mxu0 0.0
  %7886 = vmatpush2.msra.mxu0 0.0
  %7887 = vmatprep.subr.mxu0 0.0
  %7888 = vmatpush2.msra.mxu0 0.0
  %7889 = vmatprep.subr.mxu0 0.0
  %7890 = vmatpush2.msra.mxu0 0.0
  %7891 = vmatprep.subr.mxu0 0.0
  %7892 = vmatpush2.msra.mxu0 0.0
  %7893 = vmatprep.subr.mxu0 0.0
  %7894 = vmatpush2.msra.mxu0 0.0
  %7895 = vmatprep.subr.mxu0 0.0
  %7896 = vmatpush2.msra.mxu0 0.0
  %7897 = vmatprep.mubr.f32.mxu0 0.0
  %v7898 = vand.u32 %v27, 4294901760
  %7899 = vmatmul.mubr.f32.gmra.mxu0 %v7898
  %v7900 = vpop.f32.mrf.mxu0
  %v7901 = vadd.f32 %v7824, %v7900
  %v7902 = vpop.f32.mrf.mxu0
  %7903 = vmatprep.mubr.f32.mxu0 0.0
  %v7904 = vand.u32 %v36, 4294901760
  %7905 = vmatmul.mubr.f32.gmra.mxu0 %v7904
  %v7906 = vpop.f32.mrf.mxu0
  %v7907 = vadd.f32 %v7830, %v7906
  %v7908 = vpop.f32.mrf.mxu0
  %7909 = vdwg.mxu0
  %v7910 = vmul.f32 %v7901, 0.00086805556
  %v7911 = vmul.f32 %v7907, 0.00086805556
  %v7912 = vadd.f32 %v2598, %v48
  %v7913 = vadd.f32 %v2600, %v58
  %v7914 = vsub.f32 %v7912, %v7910
  %v7915 = vsub.f32 %v7913, %v7911
  %7916 = vrot.lane.b32.xlu0 %v37, 126
  %v7917 = vpop.permute.xlu0 %7916
  %7918 = vrot.lane.b32.xlu0 %v38, 126
  %v7919 = vpop.permute.xlu0 %7918
  %v7922 = vmul.f32 %v5424, %v7917
  %v7923 = vmul.f32 %v5425, %v7919
  %7924 = vrot.lane.b32.xlu0 %v37, 127
  %v7925 = vpop.permute.xlu0 %7924
  %7926 = vrot.lane.b32.xlu0 %v38, 127
  %v7927 = vpop.permute.xlu0 %7926
  %v7930 = vmul.f32 %v7914, %v7925
  %v7931 = vmul.f32 %v7915, %v7927
  %v7932 = vadd.f32 %v7922, %v7930
  %v7933 = vadd.f32 %v7923, %v7931
  %v7934 = vadd.f32 %v37, %v7925
  %v7935 = vadd.f32 %v38, %v7927
  %vm7936 = vcmask 7168
  %v7937 = vsel %vm7936, %v7932, 0.0
  %v7938 = vsel %vm7936, %v7933, 0.0
  %v7939 = vadd.f32 %v7937, %v7938
  %v7940 = vrot.slane %v7939, 4
  %v7941 = vadd.f32 %v7939, %v7940
  %v7942 = vrot.slane %v7941, 2
  %v7943 = vadd.f32 %v7941, %v7942
  %v7944 = vrot.slane %v7943, 1
  %v7945 = vadd.f32 %v7943, %v7944
  %v7946 = vsel %vm7936, %v7934, 0.0
  %v7947 = vsel %vm7936, %v7935, 0.0
  %v7948 = vadd.f32 %v7946, %v7947
  %v7949 = vrot.slane %v7948, 4
  %v7950 = vadd.f32 %v7948, %v7949
  %v7951 = vrot.slane %v7950, 2
  %v7952 = vadd.f32 %v7950, %v7951
  %v7953 = vrot.slane %v7952, 1
  %v7954 = vadd.f32 %v7952, %v7953
  %v7955 = vlaneseq
  %v7956 = vand.u32 %v7955, 127
  %vm7957 = vcmp.eq.s32.totalorder %v7956, 0
  %vm7958 = vcmp.eq.s32.totalorder %v7956, 1
  %7960 = vset.pattern.permute.xlu0 0
  %7961 = vperm.xlu0 %7960, %v7954
  %v7962 = vpop.permute.xlu0 %7961
  %v7964 = vsel %vm7958, %v7962, 0.0
  %7966 = vset.pattern.permute.xlu0 0
  %7967 = vperm.xlu0 %7966, %v7945
  %v7968 = vpop.permute.xlu0 %7967
  %v7970 = vsel %vm7957, %v7968, %v7964
  %7971 = vst [vmem:[%s5] sm:$0xff] %v7970
  %s7972 = sld [smem:[#allocation3]]
  %p7973 = scmp.ne.s32.totalorder %s7972, 0
  // Predicated region
  $region18: #{_seesaw_loss_impl.1} parent=0 // pred_check
    %p7974 = pneg %p7973
  $region19: #{_seesaw_loss_impl.1} parent=0 // pred_check_branch
    %7976 = sbr.rel (%p7974) target = $region21
  $region20: #{_seesaw_loss_impl.1} parent=0 // pred_region
    %v7977 = vld [vmem:[%s3] sm:$0xff]
    %v7978 = vld [vmem:[%s3 + $0x8] sm:$0x1]
    %vm7979 = vcmp.gt.f32.partialorder %v7977, 0.0
    %vm7980 = vcmp.gt.f32.partialorder %v7978, 0.0
    %v7981 = vsel %vm7979, 1, 0
    %v7982 = vsel %vm7980, 1, 0
    %v7983 = vlaneseq
    %v7984 = vshrl.u32 %v7983, 7
    %v7985 = vsub.s32 0, %v7984
    %v7986 = vrot.slane %v7981, %v7985
    %v7987 = vlaneseq
    %v7988 = vshrl.u32 %v7987, 7
    %v7989 = vsub.s32 1, %v7988
    %v7990 = vrot.slane %v7981, %v7989
    %v7991 = vlaneseq
    %v7992 = vshrl.u32 %v7991, 7
    %v7993 = vsub.s32 2, %v7992
    %v7994 = vrot.slane %v7981, %v7993
    %v7995 = vlaneseq
    %v7996 = vshrl.u32 %v7995, 7
    %v7997 = vsub.s32 3, %v7996
    %v7998 = vrot.slane %v7981, %v7997
    %v7999 = vlaneseq
    %v8000 = vshrl.u32 %v7999, 7
    %v8001 = vsub.s32 4, %v8000
    %v8002 = vrot.slane %v7981, %v8001
    %v8003 = vlaneseq
    %v8004 = vshrl.u32 %v8003, 7
    %v8005 = vsub.s32 5, %v8004
    %v8006 = vrot.slane %v7981, %v8005
    %v8007 = vlaneseq
    %v8008 = vshrl.u32 %v8007, 7
    %v8009 = vsub.s32 6, %v8008
    %v8010 = vrot.slane %v7981, %v8009
    %v8011 = vlaneseq
    %v8012 = vshrl.u32 %v8011, 7
    %v8013 = vsub.s32 7, %v8012
    %v8014 = vrot.slane %v7981, %v8013
    %v8015 = vlaneseq
    %v8016 = vshrl.u32 %v8015, 7
    %v8017 = vsub.s32 0, %v8016
    %v8018 = vrot.slane %v7982, %v8017
    %vm8019 = vcmp.eq.s32.totalorder %v7986, 1
    %vm8020 = vcmp.eq.s32.totalorder %v7990, 1
    %vm8021 = vcmp.eq.s32.totalorder %v7994, 1
    %vm8022 = vcmp.eq.s32.totalorder %v7998, 1
    %vm8023 = vcmp.eq.s32.totalorder %v8002, 1
    %vm8024 = vcmp.eq.s32.totalorder %v8006, 1
    %vm8025 = vcmp.eq.s32.totalorder %v8010, 1
    %vm8026 = vcmp.eq.s32.totalorder %v8014, 1
    %vm8027 = vcmp.eq.s32.totalorder %v8018, 1
    %v8028 = vsel %vm8019, %v19, -1e+30
    %v8029 = vsel %vm8020, %v20, -1e+30
    %v8030 = vsel %vm8021, %v21, -1e+30
    %v8031 = vsel %vm8022, %v22, -1e+30
    %v8032 = vsel %vm8023, %v23, -1e+30
    %v8033 = vsel %vm8024, %v24, -1e+30
    %v8034 = vsel %vm8025, %v25, -1e+30
    %v8035 = vsel %vm8026, %v26, -1e+30
    %v8036 = vsel %vm8027, %v27, -1e+30
    %v8037 = vsel %vm8019, %v28, -1e+30
    %v8038 = vsel %vm8020, %v29, -1e+30
    %v8039 = vsel %vm8021, %v30, -1e+30
    %v8040 = vsel %vm8022, %v31, -1e+30
    %v8041 = vsel %vm8023, %v32, -1e+30
    %v8042 = vsel %vm8024, %v33, -1e+30
    %v8043 = vsel %vm8025, %v34, -1e+30
    %v8044 = vsel %vm8026, %v35, -1e+30
    %v8045 = vsel %vm8027, %v36, -1e+30
    %v8046 = vmax.f32 %v8028, %v8030
    %v8047 = vmax.f32 %v8029, %v8031
    %v8048 = vmax.f32 %v8046, %v8032
    %v8049 = vmax.f32 %v8047, %v8033
    %v8050 = vmax.f32 %v8048, %v8034
    %v8051 = vmax.f32 %v8049, %v8035
    %v8052 = vmax.f32 %v8050, %v8036
    %v8053 = vmax.f32 %v8052, %v8051
    %8054 = vmax.xlane.f32.xlu0 %v8053
    %v8055 = vpop.xlane.xlu0 %8054
    %v8056 = vmax.f32 %v8037, %v8039
    %v8057 = vmax.f32 %v8038, %v8040
    %v8058 = vmax.f32 %v8056, %v8041
    %v8059 = vmax.f32 %v8057, %v8042
    %v8060 = vmax.f32 %v8058, %v8043
    %v8061 = vmax.f32 %v8059, %v8044
    %v8062 = vmax.f32 %v8060, %v8045
    %v8063 = vmax.f32 %v8062, %v8061
    %8064 = vmax.xlane.f32.xlu0 %v8063
    %v8065 = vpop.xlane.xlu0 %8064
    %v8066 = vadd.f32 %v8055, 0.0
    %v8067 = vadd.f32 %v8065, 0.0
    %vm8068 = vcmp.eq.f32.partialorder %v8028, %v8055
    %vm8069 = vcmp.eq.f32.partialorder %v8029, %v8055
    %vm8070 = vcmp.eq.f32.partialorder %v8030, %v8055
    %vm8071 = vcmp.eq.f32.partialorder %v8031, %v8055
    %vm8072 = vcmp.eq.f32.partialorder %v8032, %v8055
    %vm8073 = vcmp.eq.f32.partialorder %v8033, %v8055
    %vm8074 = vcmp.eq.f32.partialorder %v8034, %v8055
    %vm8075 = vcmp.eq.f32.partialorder %v8035, %v8055
    %vm8076 = vcmp.eq.f32.partialorder %v8036, %v8055
    %vm8077 = vcmp.eq.f32.partialorder %v8037, %v8065
    %vm8078 = vcmp.eq.f32.partialorder %v8038, %v8065
    %vm8079 = vcmp.eq.f32.partialorder %v8039, %v8065
    %vm8080 = vcmp.eq.f32.partialorder %v8040, %v8065
    %vm8081 = vcmp.eq.f32.partialorder %v8041, %v8065
    %vm8082 = vcmp.eq.f32.partialorder %v8042, %v8065
    %vm8083 = vcmp.eq.f32.partialorder %v8043, %v8065
    %vm8084 = vcmp.eq.f32.partialorder %v8044, %v8065
    %vm8085 = vcmp.eq.f32.partialorder %v8045, %v8065
    %v8086 = vsel %vm8068, -1e+30, %v8028
    %v8087 = vsel %vm8069, -1e+30, %v8029
    %v8088 = vsel %vm8070, -1e+30, %v8030
    %v8089 = vsel %vm8071, -1e+30, %v8031
    %v8090 = vsel %vm8072, -1e+30, %v8032
    %v8091 = vsel %vm8073, -1e+30, %v8033
    %v8092 = vsel %vm8074, -1e+30, %v8034
    %v8093 = vsel %vm8075, -1e+30, %v8035
    %v8094 = vsel %vm8076, -1e+30, %v8036
    %v8095 = vsel %vm8077, -1e+30, %v8037
    %v8096 = vsel %vm8078, -1e+30, %v8038
    %v8097 = vsel %vm8079, -1e+30, %v8039
    %v8098 = vsel %vm8080, -1e+30, %v8040
    %v8099 = vsel %vm8081, -1e+30, %v8041
    %v8100 = vsel %vm8082, -1e+30, %v8042
    %v8101 = vsel %vm8083, -1e+30, %v8043
    %v8102 = vsel %vm8084, -1e+30, %v8044
    %v8103 = vsel %vm8085, -1e+30, %v8045
    %v8104 = vmax.f32 %v8086, %v8088
    %v8105 = vmax.f32 %v8087, %v8089
    %v8106 = vmax.f32 %v8104, %v8090
    %v8107 = vmax.f32 %v8105, %v8091
    %v8108 = vmax.f32 %v8106, %v8092
    %v8109 = vmax.f32 %v8107, %v8093
    %v8110 = vmax.f32 %v8108, %v8094
    %v8111 = vmax.f32 %v8110, %v8109
    %8112 = vmax.xlane.f32.xlu0 %v8111
    %v8113 = vpop.xlane.xlu0 %8112
    %v8114 = vmax.f32 %v8095, %v8097
    %v8115 = vmax.f32 %v8096, %v8098
    %v8116 = vmax.f32 %v8114, %v8099
    %v8117 = vmax.f32 %v8115, %v8100
    %v8118 = vmax.f32 %v8116, %v8101
    %v8119 = vmax.f32 %v8117, %v8102
    %v8120 = vmax.f32 %v8118, %v8103
    %v8121 = vmax.f32 %v8120, %v8119
    %8122 = vmax.xlane.f32.xlu0 %v8121
    %v8123 = vpop.xlane.xlu0 %8122
    %v8124 = vadd.f32 %v8066, %v8113
    %v8125 = vadd.f32 %v8067, %v8123
    %vm8126 = vcmp.eq.f32.partialorder %v8086, %v8113
    %vm8127 = vcmp.eq.f32.partialorder %v8087, %v8113
    %vm8128 = vcmp.eq.f32.partialorder %v8088, %v8113
    %vm8129 = vcmp.eq.f32.partialorder %v8089, %v8113
    %vm8130 = vcmp.eq.f32.partialorder %v8090, %v8113
    %vm8131 = vcmp.eq.f32.partialorder %v8091, %v8113
    %vm8132 = vcmp.eq.f32.partialorder %v8092, %v8113
    %vm8133 = vcmp.eq.f32.partialorder %v8093, %v8113
    %vm8134 = vcmp.eq.f32.partialorder %v8094, %v8113
    %vm8135 = vcmp.eq.f32.partialorder %v8095, %v8123
    %vm8136 = vcmp.eq.f32.partialorder %v8096, %v8123
    %vm8137 = vcmp.eq.f32.partialorder %v8097, %v8123
    %vm8138 = vcmp.eq.f32.partialorder %v8098, %v8123
    %vm8139 = vcmp.eq.f32.partialorder %v8099, %v8123
    %vm8140 = vcmp.eq.f32.partialorder %v8100, %v8123
    %vm8141 = vcmp.eq.f32.partialorder %v8101, %v8123
    %vm8142 = vcmp.eq.f32.partialorder %v8102, %v8123
    %vm8143 = vcmp.eq.f32.partialorder %v8103, %v8123
    %v8144 = vsel %vm8126, -1e+30, %v8086
    %v8145 = vsel %vm8127, -1e+30, %v8087
    %v8146 = vsel %vm8128, -1e+30, %v8088
    %v8147 = vsel %vm8129, -1e+30, %v8089
    %v8148 = vsel %vm8130, -1e+30, %v8090
    %v8149 = vsel %vm8131, -1e+30, %v8091
    %v8150 = vsel %vm8132, -1e+30, %v8092
    %v8151 = vsel %vm8133, -1e+30, %v8093
    %v8152 = vsel %vm8134, -1e+30, %v8094
    %v8153 = vsel %vm8135, -1e+30, %v8095
    %v8154 = vsel %vm8136, -1e+30, %v8096
    %v8155 = vsel %vm8137, -1e+30, %v8097
    %v8156 = vsel %vm8138, -1e+30, %v8098
    %v8157 = vsel %vm8139, -1e+30, %v8099
    %v8158 = vsel %vm8140, -1e+30, %v8100
    %v8159 = vsel %vm8141, -1e+30, %v8101
    %v8160 = vsel %vm8142, -1e+30, %v8102
    %v8161 = vsel %vm8143, -1e+30, %v8103
    %v8162 = vmax.f32 %v8144, %v8146
    %v8163 = vmax.f32 %v8145, %v8147
    %v8164 = vmax.f32 %v8162, %v8148
    %v8165 = vmax.f32 %v8163, %v8149
    %v8166 = vmax.f32 %v8164, %v8150
    %v8167 = vmax.f32 %v8165, %v8151
    %v8168 = vmax.f32 %v8166, %v8152
    %v8169 = vmax.f32 %v8168, %v8167
    %8170 = vmax.xlane.f32.xlu0 %v8169
    %v8171 = vpop.xlane.xlu0 %8170
    %v8172 = vmax.f32 %v8153, %v8155
    %v8173 = vmax.f32 %v8154, %v8156
    %v8174 = vmax.f32 %v8172, %v8157
    %v8175 = vmax.f32 %v8173, %v8158
    %v8176 = vmax.f32 %v8174, %v8159
    %v8177 = vmax.f32 %v8175, %v8160
    %v8178 = vmax.f32 %v8176, %v8161
    %v8179 = vmax.f32 %v8178, %v8177
    %8180 = vmax.xlane.f32.xlu0 %v8179
    %v8181 = vpop.xlane.xlu0 %8180
    %v8182 = vadd.f32 %v8124, %v8171
    %v8183 = vadd.f32 %v8125, %v8181
    %vm8184 = vcmp.eq.f32.partialorder %v8144, %v8171
    %vm8185 = vcmp.eq.f32.partialorder %v8145, %v8171
    %vm8186 = vcmp.eq.f32.partialorder %v8146, %v8171
    %vm8187 = vcmp.eq.f32.partialorder %v8147, %v8171
    %vm8188 = vcmp.eq.f32.partialorder %v8148, %v8171
    %vm8189 = vcmp.eq.f32.partialorder %v8149, %v8171
    %vm8190 = vcmp.eq.f32.partialorder %v8150, %v8171
    %vm8191 = vcmp.eq.f32.partialorder %v8151, %v8171
    %vm8192 = vcmp.eq.f32.partialorder %v8152, %v8171
    %vm8193 = vcmp.eq.f32.partialorder %v8153, %v8181
    %vm8194 = vcmp.eq.f32.partialorder %v8154, %v8181
    %vm8195 = vcmp.eq.f32.partialorder %v8155, %v8181
    %vm8196 = vcmp.eq.f32.partialorder %v8156, %v8181
    %vm8197 = vcmp.eq.f32.partialorder %v8157, %v8181
    %vm8198 = vcmp.eq.f32.partialorder %v8158, %v8181
    %vm8199 = vcmp.eq.f32.partialorder %v8159, %v8181
    %vm8200 = vcmp.eq.f32.partialorder %v8160, %v8181
    %vm8201 = vcmp.eq.f32.partialorder %v8161, %v8181
    %v8202 = vsel %vm8184, -1e+30, %v8144
    %v8203 = vsel %vm8185, -1e+30, %v8145
    %v8204 = vsel %vm8186, -1e+30, %v8146
    %v8205 = vsel %vm8187, -1e+30, %v8147
    %v8206 = vsel %vm8188, -1e+30, %v8148
    %v8207 = vsel %vm8189, -1e+30, %v8149
    %v8208 = vsel %vm8190, -1e+30, %v8150
    %v8209 = vsel %vm8191, -1e+30, %v8151
    %v8210 = vsel %vm8192, -1e+30, %v8152
    %v8211 = vsel %vm8193, -1e+30, %v8153
    %v8212 = vsel %vm8194, -1e+30, %v8154
    %v8213 = vsel %vm8195, -1e+30, %v8155
    %v8214 = vsel %vm8196, -1e+30, %v8156
    %v8215 = vsel %vm8197, -1e+30, %v8157
    %v8216 = vsel %vm8198, -1e+30, %v8158
    %v8217 = vsel %vm8199, -1e+30, %v8159
    %v8218 = vsel %vm8200, -1e+30, %v8160
    %v8219 = vsel %vm8201, -1e+30, %v8161
    %v8220 = vmax.f32 %v8202, %v8204
    %v8221 = vmax.f32 %v8203, %v8205
    %v8222 = vmax.f32 %v8220, %v8206
    %v8223 = vmax.f32 %v8221, %v8207
    %v8224 = vmax.f32 %v8222, %v8208
    %v8225 = vmax.f32 %v8223, %v8209
    %v8226 = vmax.f32 %v8224, %v8210
    %v8227 = vmax.f32 %v8226, %v8225
    %8228 = vmax.xlane.f32.xlu0 %v8227
    %v8229 = vpop.xlane.xlu0 %8228
    %v8230 = vmax.f32 %v8211, %v8213
    %v8231 = vmax.f32 %v8212, %v8214
    %v8232 = vmax.f32 %v8230, %v8215
    %v8233 = vmax.f32 %v8231, %v8216
    %v8234 = vmax.f32 %v8232, %v8217
    %v8235 = vmax.f32 %v8233, %v8218
    %v8236 = vmax.f32 %v8234, %v8219
    %v8237 = vmax.f32 %v8236, %v8235
    %8238 = vmax.xlane.f32.xlu0 %v8237
    %v8239 = vpop.xlane.xlu0 %8238
    %v8240 = vadd.f32 %v8182, %v8229
    %v8241 = vadd.f32 %v8183, %v8239
    %vm8242 = vcmp.eq.f32.partialorder %v8202, %v8229
    %vm8243 = vcmp.eq.f32.partialorder %v8203, %v8229
    %vm8244 = vcmp.eq.f32.partialorder %v8204, %v8229
    %vm8245 = vcmp.eq.f32.partialorder %v8205, %v8229
    %vm8246 = vcmp.eq.f32.partialorder %v8206, %v8229
    %vm8247 = vcmp.eq.f32.partialorder %v8207, %v8229
    %vm8248 = vcmp.eq.f32.partialorder %v8208, %v8229
    %vm8249 = vcmp.eq.f32.partialorder %v8209, %v8229
    %vm8250 = vcmp.eq.f32.partialorder %v8210, %v8229
    %vm8251 = vcmp.eq.f32.partialorder %v8211, %v8239
    %vm8252 = vcmp.eq.f32.partialorder %v8212, %v8239
    %vm8253 = vcmp.eq.f32.partialorder %v8213, %v8239
    %vm8254 = vcmp.eq.f32.partialorder %v8214, %v8239
    %vm8255 = vcmp.eq.f32.partialorder %v8215, %v8239
    %vm8256 = vcmp.eq.f32.partialorder %v8216, %v8239
    %vm8257 = vcmp.eq.f32.partialorder %v8217, %v8239
    %vm8258 = vcmp.eq.f32.partialorder %v8218, %v8239
    %vm8259 = vcmp.eq.f32.partialorder %v8219, %v8239
    %v8260 = vsel %vm8242, -1e+30, %v8202
    %v8261 = vsel %vm8243, -1e+30, %v8203
    %v8262 = vsel %vm8244, -1e+30, %v8204
    %v8263 = vsel %vm8245, -1e+30, %v8205
    %v8264 = vsel %vm8246, -1e+30, %v8206
    %v8265 = vsel %vm8247, -1e+30, %v8207
    %v8266 = vsel %vm8248, -1e+30, %v8208
    %v8267 = vsel %vm8249, -1e+30, %v8209
    %v8268 = vsel %vm8250, -1e+30, %v8210
    %v8269 = vsel %vm8251, -1e+30, %v8211
    %v8270 = vsel %vm8252, -1e+30, %v8212
    %v8271 = vsel %vm8253, -1e+30, %v8213
    %v8272 = vsel %vm8254, -1e+30, %v8214
    %v8273 = vsel %vm8255, -1e+30, %v8215
    %v8274 = vsel %vm8256, -1e+30, %v8216
    %v8275 = vsel %vm8257, -1e+30, %v8217
    %v8276 = vsel %vm8258, -1e+30, %v8218
    %v8277 = vsel %vm8259, -1e+30, %v8219
    %v8278 = vmax.f32 %v8260, %v8262
    %v8279 = vmax.f32 %v8261, %v8263
    %v8280 = vmax.f32 %v8278, %v8264
    %v8281 = vmax.f32 %v8279, %v8265
    %v8282 = vmax.f32 %v8280, %v8266
    %v8283 = vmax.f32 %v8281, %v8267
    %v8284 = vmax.f32 %v8282, %v8268
    %v8285 = vmax.f32 %v8284, %v8283
    %8286 = vmax.xlane.f32.xlu0 %v8285
    %v8287 = vpop.xlane.xlu0 %8286
    %v8288 = vmax.f32 %v8269, %v8271
    %v8289 = vmax.f32 %v8270, %v8272
    %v8290 = vmax.f32 %v8288, %v8273
    %v8291 = vmax.f32 %v8289, %v8274
    %v8292 = vmax.f32 %v8290, %v8275
    %v8293 = vmax.f32 %v8291, %v8276
    %v8294 = vmax.f32 %v8292, %v8277
    %v8295 = vmax.f32 %v8294, %v8293
    %8296 = vmax.xlane.f32.xlu0 %v8295
    %v8297 = vpop.xlane.xlu0 %8296
    %v8298 = vadd.f32 %v8240, %v8287
    %v8299 = vadd.f32 %v8241, %v8297
    %v8300 = vmul.f32 %v8298, 0.2
    %v8301 = vmul.f32 %v8299, 0.2
    %v8302 = vsel %vm8019, -1e+30, %v19
    %v8303 = vsel %vm8020, -1e+30, %v20
    %v8304 = vsel %vm8021, -1e+30, %v21
    %v8305 = vsel %vm8022, -1e+30, %v22
    %v8306 = vsel %vm8023, -1e+30, %v23
    %v8307 = vsel %vm8024, -1e+30, %v24
    %v8308 = vsel %vm8025, -1e+30, %v25
    %v8309 = vsel %vm8026, -1e+30, %v26
    %v8310 = vsel %vm8027, -1e+30, %v27
    %v8311 = vsel %vm8019, -1e+30, %v28
    %v8312 = vsel %vm8020, -1e+30, %v29
    %v8313 = vsel %vm8021, -1e+30, %v30
    %v8314 = vsel %vm8022, -1e+30, %v31
    %v8315 = vsel %vm8023, -1e+30, %v32
    %v8316 = vsel %vm8024, -1e+30, %v33
    %v8317 = vsel %vm8025, -1e+30, %v34
    %v8318 = vsel %vm8026, -1e+30, %v35
    %v8319 = vsel %vm8027, -1e+30, %v36
    %v8320 = vmax.f32 %v8302, %v8304
    %v8321 = vmax.f32 %v8303, %v8305
    %v8322 = vmax.f32 %v8320, %v8306
    %v8323 = vmax.f32 %v8321, %v8307
    %v8324 = vmax.f32 %v8322, %v8308
    %v8325 = vmax.f32 %v8323, %v8309
    %v8326 = vmax.f32 %v8324, %v8310
    %v8327 = vmax.f32 %v8326, %v8325
    %8328 = vmax.xlane.f32.xlu0 %v8327
    %v8329 = vpop.xlane.xlu0 %8328
    %v8330 = vmax.f32 %v8311, %v8313
    %v8331 = vmax.f32 %v8312, %v8314
    %v8332 = vmax.f32 %v8330, %v8315
    %v8333 = vmax.f32 %v8331, %v8316
    %v8334 = vmax.f32 %v8332, %v8317
    %v8335 = vmax.f32 %v8333, %v8318
    %v8336 = vmax.f32 %v8334, %v8319
    %v8337 = vmax.f32 %v8336, %v8335
    %8338 = vmax.xlane.f32.xlu0 %v8337
    %v8339 = vpop.xlane.xlu0 %8338
    %v8340 = vadd.f32 %v8329, 0.0
    %v8341 = vadd.f32 %v8339, 0.0
    %vm8342 = vcmp.eq.f32.partialorder %v8302, %v8329
    %vm8343 = vcmp.eq.f32.partialorder %v8303, %v8329
    %vm8344 = vcmp.eq.f32.partialorder %v8304, %v8329
    %vm8345 = vcmp.eq.f32.partialorder %v8305, %v8329
    %vm8346 = vcmp.eq.f32.partialorder %v8306, %v8329
    %vm8347 = vcmp.eq.f32.partialorder %v8307, %v8329
    %vm8348 = vcmp.eq.f32.partialorder %v8308, %v8329
    %vm8349 = vcmp.eq.f32.partialorder %v8309, %v8329
    %vm8350 = vcmp.eq.f32.partialorder %v8310, %v8329
    %vm8351 = vcmp.eq.f32.partialorder %v8311, %v8339
    %vm8352 = vcmp.eq.f32.partialorder %v8312, %v8339
    %vm8353 = vcmp.eq.f32.partialorder %v8313, %v8339
    %vm8354 = vcmp.eq.f32.partialorder %v8314, %v8339
    %vm8355 = vcmp.eq.f32.partialorder %v8315, %v8339
    %vm8356 = vcmp.eq.f32.partialorder %v8316, %v8339
    %vm8357 = vcmp.eq.f32.partialorder %v8317, %v8339
    %vm8358 = vcmp.eq.f32.partialorder %v8318, %v8339
    %vm8359 = vcmp.eq.f32.partialorder %v8319, %v8339
    %v8360 = vsel %vm8342, -1e+30, %v8302
    %v8361 = vsel %vm8343, -1e+30, %v8303
    %v8362 = vsel %vm8344, -1e+30, %v8304
    %v8363 = vsel %vm8345, -1e+30, %v8305
    %v8364 = vsel %vm8346, -1e+30, %v8306
    %v8365 = vsel %vm8347, -1e+30, %v8307
    %v8366 = vsel %vm8348, -1e+30, %v8308
    %v8367 = vsel %vm8349, -1e+30, %v8309
    %v8368 = vsel %vm8350, -1e+30, %v8310
    %v8369 = vsel %vm8351, -1e+30, %v8311
    %v8370 = vsel %vm8352, -1e+30, %v8312
    %v8371 = vsel %vm8353, -1e+30, %v8313
    %v8372 = vsel %vm8354, -1e+30, %v8314
    %v8373 = vsel %vm8355, -1e+30, %v8315
    %v8374 = vsel %vm8356, -1e+30, %v8316
    %v8375 = vsel %vm8357, -1e+30, %v8317
    %v8376 = vsel %vm8358, -1e+30, %v8318
    %v8377 = vsel %vm8359, -1e+30, %v8319
    %v8378 = vmax.f32 %v8360, %v8362
    %v8379 = vmax.f32 %v8361, %v8363
    %v8380 = vmax.f32 %v8378, %v8364
    %v8381 = vmax.f32 %v8379, %v8365
    %v8382 = vmax.f32 %v8380, %v8366
    %v8383 = vmax.f32 %v8381, %v8367
    %v8384 = vmax.f32 %v8382, %v8368
    %v8385 = vmax.f32 %v8384, %v8383
    %8386 = vmax.xlane.f32.xlu0 %v8385
    %v8387 = vpop.xlane.xlu0 %8386
    %v8388 = vmax.f32 %v8369, %v8371
    %v8389 = vmax.f32 %v8370, %v8372
    %v8390 = vmax.f32 %v8388, %v8373
    %v8391 = vmax.f32 %v8389, %v8374
    %v8392 = vmax.f32 %v8390, %v8375
    %v8393 = vmax.f32 %v8391, %v8376
    %v8394 = vmax.f32 %v8392, %v8377
    %v8395 = vmax.f32 %v8394, %v8393
    %8396 = vmax.xlane.f32.xlu0 %v8395
    %v8397 = vpop.xlane.xlu0 %8396
    %v8398 = vadd.f32 %v8340, %v8387
    %v8399 = vadd.f32 %v8341, %v8397
    %vm8400 = vcmp.eq.f32.partialorder %v8360, %v8387
    %vm8401 = vcmp.eq.f32.partialorder %v8361, %v8387
    %vm8402 = vcmp.eq.f32.partialorder %v8362, %v8387
    %vm8403 = vcmp.eq.f32.partialorder %v8363, %v8387
    %vm8404 = vcmp.eq.f32.partialorder %v8364, %v8387
    %vm8405 = vcmp.eq.f32.partialorder %v8365, %v8387
    %vm8406 = vcmp.eq.f32.partialorder %v8366, %v8387
    %vm8407 = vcmp.eq.f32.partialorder %v8367, %v8387
    %vm8408 = vcmp.eq.f32.partialorder %v8368, %v8387
    %vm8409 = vcmp.eq.f32.partialorder %v8369, %v8397
    %vm8410 = vcmp.eq.f32.partialorder %v8370, %v8397
    %vm8411 = vcmp.eq.f32.partialorder %v8371, %v8397
    %vm8412 = vcmp.eq.f32.partialorder %v8372, %v8397
    %vm8413 = vcmp.eq.f32.partialorder %v8373, %v8397
    %vm8414 = vcmp.eq.f32.partialorder %v8374, %v8397
    %vm8415 = vcmp.eq.f32.partialorder %v8375, %v8397
    %vm8416 = vcmp.eq.f32.partialorder %v8376, %v8397
    %vm8417 = vcmp.eq.f32.partialorder %v8377, %v8397
    %v8418 = vsel %vm8400, -1e+30, %v8360
    %v8419 = vsel %vm8401, -1e+30, %v8361
    %v8420 = vsel %vm8402, -1e+30, %v8362
    %v8421 = vsel %vm8403, -1e+30, %v8363
    %v8422 = vsel %vm8404, -1e+30, %v8364
    %v8423 = vsel %vm8405, -1e+30, %v8365
    %v8424 = vsel %vm8406, -1e+30, %v8366
    %v8425 = vsel %vm8407, -1e+30, %v8367
    %v8426 = vsel %vm8408, -1e+30, %v8368
    %v8427 = vsel %vm8409, -1e+30, %v8369
    %v8428 = vsel %vm8410, -1e+30, %v8370
    %v8429 = vsel %vm8411, -1e+30, %v8371
    %v8430 = vsel %vm8412, -1e+30, %v8372
    %v8431 = vsel %vm8413, -1e+30, %v8373
    %v8432 = vsel %vm8414, -1e+30, %v8374
    %v8433 = vsel %vm8415, -1e+30, %v8375
    %v8434 = vsel %vm8416, -1e+30, %v8376
    %v8435 = vsel %vm8417, -1e+30, %v8377
    %v8436 = vmax.f32 %v8418, %v8420
    %v8437 = vmax.f32 %v8419, %v8421
    %v8438 = vmax.f32 %v8436, %v8422
    %v8439 = vmax.f32 %v8437, %v8423
    %v8440 = vmax.f32 %v8438, %v8424
    %v8441 = vmax.f32 %v8439, %v8425
    %v8442 = vmax.f32 %v8440, %v8426
    %v8443 = vmax.f32 %v8442, %v8441
    %8444 = vmax.xlane.f32.xlu0 %v8443
    %v8445 = vpop.xlane.xlu0 %8444
    %v8446 = vmax.f32 %v8427, %v8429
    %v8447 = vmax.f32 %v8428, %v8430
    %v8448 = vmax.f32 %v8446, %v8431
    %v8449 = vmax.f32 %v8447, %v8432
    %v8450 = vmax.f32 %v8448, %v8433
    %v8451 = vmax.f32 %v8449, %v8434
    %v8452 = vmax.f32 %v8450, %v8435
    %v8453 = vmax.f32 %v8452, %v8451
    %8454 = vmax.xlane.f32.xlu0 %v8453
    %v8455 = vpop.xlane.xlu0 %8454
    %v8456 = vadd.f32 %v8398, %v8445
    %v8457 = vadd.f32 %v8399, %v8455
    %vm8458 = vcmp.eq.f32.partialorder %v8418, %v8445
    %vm8459 = vcmp.eq.f32.partialorder %v8419, %v8445
    %vm8460 = vcmp.eq.f32.partialorder %v8420, %v8445
    %vm8461 = vcmp.eq.f32.partialorder %v8421, %v8445
    %vm8462 = vcmp.eq.f32.partialorder %v8422, %v8445
    %vm8463 = vcmp.eq.f32.partialorder %v8423, %v8445
    %vm8464 = vcmp.eq.f32.partialorder %v8424, %v8445
    %vm8465 = vcmp.eq.f32.partialorder %v8425, %v8445
    %vm8466 = vcmp.eq.f32.partialorder %v8426, %v8445
    %vm8467 = vcmp.eq.f32.partialorder %v8427, %v8455
    %vm8468 = vcmp.eq.f32.partialorder %v8428, %v8455
    %vm8469 = vcmp.eq.f32.partialorder %v8429, %v8455
    %vm8470 = vcmp.eq.f32.partialorder %v8430, %v8455
    %vm8471 = vcmp.eq.f32.partialorder %v8431, %v8455
    %vm8472 = vcmp.eq.f32.partialorder %v8432, %v8455
    %vm8473 = vcmp.eq.f32.partialorder %v8433, %v8455
    %vm8474 = vcmp.eq.f32.partialorder %v8434, %v8455
    %vm8475 = vcmp.eq.f32.partialorder %v8435, %v8455
    %v8476 = vsel %vm8458, -1e+30, %v8418
    %v8477 = vsel %vm8459, -1e+30, %v8419
    %v8478 = vsel %vm8460, -1e+30, %v8420
    %v8479 = vsel %vm8461, -1e+30, %v8421
    %v8480 = vsel %vm8462, -1e+30, %v8422
    %v8481 = vsel %vm8463, -1e+30, %v8423
    %v8482 = vsel %vm8464, -1e+30, %v8424
    %v8483 = vsel %vm8465, -1e+30, %v8425
    %v8484 = vsel %vm8466, -1e+30, %v8426
    %v8485 = vsel %vm8467, -1e+30, %v8427
    %v8486 = vsel %vm8468, -1e+30, %v8428
    %v8487 = vsel %vm8469, -1e+30, %v8429
    %v8488 = vsel %vm8470, -1e+30, %v8430
    %v8489 = vsel %vm8471, -1e+30, %v8431
    %v8490 = vsel %vm8472, -1e+30, %v8432
    %v8491 = vsel %vm8473, -1e+30, %v8433
    %v8492 = vsel %vm8474, -1e+30, %v8434
    %v8493 = vsel %vm8475, -1e+30, %v8435
    %v8494 = vmax.f32 %v8476, %v8478
    %v8495 = vmax.f32 %v8477, %v8479
    %v8496 = vmax.f32 %v8494, %v8480
    %v8497 = vmax.f32 %v8495, %v8481
    %v8498 = vmax.f32 %v8496, %v8482
    %v8499 = vmax.f32 %v8497, %v8483
    %v8500 = vmax.f32 %v8498, %v8484
    %v8501 = vmax.f32 %v8500, %v8499
    %8502 = vmax.xlane.f32.xlu0 %v8501
    %v8503 = vpop.xlane.xlu0 %8502
    %v8504 = vmax.f32 %v8485, %v8487
    %v8505 = vmax.f32 %v8486, %v8488
    %v8506 = vmax.f32 %v8504, %v8489
    %v8507 = vmax.f32 %v8505, %v8490
    %v8508 = vmax.f32 %v8506, %v8491
    %v8509 = vmax.f32 %v8507, %v8492
    %v8510 = vmax.f32 %v8508, %v8493
    %v8511 = vmax.f32 %v8510, %v8509
    %8512 = vmax.xlane.f32.xlu0 %v8511
    %v8513 = vpop.xlane.xlu0 %8512
    %v8514 = vadd.f32 %v8456, %v8503
    %v8515 = vadd.f32 %v8457, %v8513
    %vm8516 = vcmp.eq.f32.partialorder %v8476, %v8503
    %vm8517 = vcmp.eq.f32.partialorder %v8477, %v8503
    %vm8518 = vcmp.eq.f32.partialorder %v8478, %v8503
    %vm8519 = vcmp.eq.f32.partialorder %v8479, %v8503
    %vm8520 = vcmp.eq.f32.partialorder %v8480, %v8503
    %vm8521 = vcmp.eq.f32.partialorder %v8481, %v8503
    %vm8522 = vcmp.eq.f32.partialorder %v8482, %v8503
    %vm8523 = vcmp.eq.f32.partialorder %v8483, %v8503
    %vm8524 = vcmp.eq.f32.partialorder %v8484, %v8503
    %vm8525 = vcmp.eq.f32.partialorder %v8485, %v8513
    %vm8526 = vcmp.eq.f32.partialorder %v8486, %v8513
    %vm8527 = vcmp.eq.f32.partialorder %v8487, %v8513
    %vm8528 = vcmp.eq.f32.partialorder %v8488, %v8513
    %vm8529 = vcmp.eq.f32.partialorder %v8489, %v8513
    %vm8530 = vcmp.eq.f32.partialorder %v8490, %v8513
    %vm8531 = vcmp.eq.f32.partialorder %v8491, %v8513
    %vm8532 = vcmp.eq.f32.partialorder %v8492, %v8513
    %vm8533 = vcmp.eq.f32.partialorder %v8493, %v8513
    %v8534 = vsel %vm8516, -1e+30, %v8476
    %v8535 = vsel %vm8517, -1e+30, %v8477
    %v8536 = vsel %vm8518, -1e+30, %v8478
    %v8537 = vsel %vm8519, -1e+30, %v8479
    %v8538 = vsel %vm8520, -1e+30, %v8480
    %v8539 = vsel %vm8521, -1e+30, %v8481
    %v8540 = vsel %vm8522, -1e+30, %v8482
    %v8541 = vsel %vm8523, -1e+30, %v8483
    %v8542 = vsel %vm8524, -1e+30, %v8484
    %v8543 = vsel %vm8525, -1e+30, %v8485
    %v8544 = vsel %vm8526, -1e+30, %v8486
    %v8545 = vsel %vm8527, -1e+30, %v8487
    %v8546 = vsel %vm8528, -1e+30, %v8488
    %v8547 = vsel %vm8529, -1e+30, %v8489
    %v8548 = vsel %vm8530, -1e+30, %v8490
    %v8549 = vsel %vm8531, -1e+30, %v8491
    %v8550 = vsel %vm8532, -1e+30, %v8492
    %v8551 = vsel %vm8533, -1e+30, %v8493
    %v8552 = vmax.f32 %v8534, %v8536
    %v8553 = vmax.f32 %v8535, %v8537
    %v8554 = vmax.f32 %v8552, %v8538
    %v8555 = vmax.f32 %v8553, %v8539
    %v8556 = vmax.f32 %v8554, %v8540
    %v8557 = vmax.f32 %v8555, %v8541
    %v8558 = vmax.f32 %v8556, %v8542
    %v8559 = vmax.f32 %v8558, %v8557
    %8560 = vmax.xlane.f32.xlu0 %v8559
    %v8561 = vpop.xlane.xlu0 %8560
    %v8562 = vmax.f32 %v8543, %v8545
    %v8563 = vmax.f32 %v8544, %v8546
    %v8564 = vmax.f32 %v8562, %v8547
    %v8565 = vmax.f32 %v8563, %v8548
    %v8566 = vmax.f32 %v8564, %v8549
    %v8567 = vmax.f32 %v8565, %v8550
    %v8568 = vmax.f32 %v8566, %v8551
    %v8569 = vmax.f32 %v8568, %v8567
    %8570 = vmax.xlane.f32.xlu0 %v8569
    %v8571 = vpop.xlane.xlu0 %8570
    %v8572 = vadd.f32 %v8514, %v8561
    %v8573 = vadd.f32 %v8515, %v8571
    %v8574 = vmul.f32 %v8572, 0.2
    %v8575 = vmul.f32 %v8573, 0.2
    %v8576 = vsub.f32 %v8574, %v8300
    %v8577 = vsub.f32 %v8575, %v8301
    %v8578 = vmax.f32 %v8576, 0.0
    %v8579 = vmax.f32 %v8577, 0.0
    %v8580 = vand.u32 2147483647, %v8576
    %v8581 = vand.u32 2147483647, %v8577
    %v8582 = vsub.f32 0.0, %v8580
    %v8583 = vsub.f32 0.0, %v8581
    %v8584 = vmul.f32 %v8582, 1.442695
    %v8585 = vpow.pop %v8584
    %v8586 = vmul.f32 %v8583, 1.442695
    %v8587 = vpow.pop %v8586
    %v8588 = vadd.f32 %v8585, 1.0
    %v8589 = vadd.f32 %v8587, 1.0
    %v8590 = vlog2.pop %v8588
    %v8591 = vmul.f32 %v8590, 0.6931472
    %v8592 = vlog2.pop %v8589
    %v8593 = vmul.f32 %v8592, 0.6931472
    %v8594 = vadd.f32 %v8578, %v8591
    %v8595 = vadd.f32 %v8579, %v8593
    %v8596 = vmul.f32 %v8594, %v37
    %v8597 = vmul.f32 %v8595, %v38
    %vm8598 = vcmask 48168
    %v8599 = vsel %vm8598, %v8596, 0.0
    %v8600 = vsel %vm8598, %v8597, 0.0
    %v8601 = vadd.f32 %v8599, %v8600
    %v8602 = vrot.slane %v8601, 4
    %v8603 = vadd.f32 %v8601, %v8602
    %v8604 = vrot.slane %v8603, 2
    %v8605 = vadd.f32 %v8603, %v8604
    %v8606 = vrot.slane %v8605, 1
    %v8607 = vadd.f32 %v8605, %v8606
    %v8608 = vsel %vm8598, %v37, 0.0
    %v8609 = vsel %vm8598, %v38, 0.0
    %v8610 = vadd.f32 %v8608, %v8609
    %v8611 = vrot.slane %v8610, 4
    %v8612 = vadd.f32 %v8610, %v8611
    %v8613 = vrot.slane %v8612, 2
    %v8614 = vadd.f32 %v8612, %v8613
    %v8615 = vrot.slane %v8614, 1
    %v8616 = vadd.f32 %v8614, %v8615
    %v8617 = vld [vmem:[%s5] sm:$0xff]
    %8619 = vset.pattern.permute.xlu0 5
    %8620 = vperm.xlu0 %8619, %v8616
    %v8621 = vpop.permute.xlu0 %8620
    %v8623 = vsel %vm7958, %v8621, 0.0
    %8625 = vset.pattern.permute.xlu0 5
    %8626 = vperm.xlu0 %8625, %v8607
    %v8627 = vpop.permute.xlu0 %8626
    %v8629 = vsel %vm7957, %v8627, %v8623
    %v8630 = vadd.f32 %v8617, %v8629
    %8631 = vst [vmem:[%s5] sm:$0xff] %v8630
  $region21: #{_seesaw_loss_impl.1} parent=0 // pred_fallthru
    _
  // Predicated region
  $region22: #{_seesaw_loss_impl.1} parent=0 // pred_check
    _
  $region23: #{_seesaw_loss_impl.1} parent=0 // pred_check_branch
    %8633 = sbr.rel (0) target = $region25
  $region24: #{_seesaw_loss_impl.1} parent=0 // pred_region
    _
  $region25: #{_seesaw_loss_impl.1} parent=0 // pred_fallthru
    _
  // Predicated region
  $region26: #{_seesaw_loss_impl.1} parent=0 // pred_check
    _
  $region27: #{_seesaw_loss_impl.1} parent=0 // pred_check_branch
    %8635 = sbr.rel (0) target = $region29
  $region28: #{_seesaw_loss_impl.1} parent=0 // pred_region
    _
  $region29: #{_seesaw_loss_impl.1} parent=0 // pred_fallthru
    _

</llo_original>
